<compile_context>
chip_gen: v7x
topology: tpu7x:2x2x1
jax: 0.10.0
libtpu: 0.0.40
codegen_flags: <defaults>
</compile_context>

<pallas_src>
import functools

import jax
import jax.numpy as jnp
from jax.experimental import pallas as pl
from jax.experimental.pallas import tpu as pltpu


# ----------------------------------------------------------------------------
# Pallas kernels
# ----------------------------------------------------------------------------
def _conv1_kernel(p_ref, w_ref, s_ref, o_ref):
    # p_ref: (M, Kpad) bf16   w_ref: (Kpad, C) bf16   s_ref: (1, C) f32
    acc = jnp.dot(p_ref[...], w_ref[...], preferred_element_type=jnp.float32)
    o_ref[...] = jnp.maximum(acc + s_ref[...], 0.0).astype(o_ref.dtype)


def _conv3_stack(h, layers, scr_ref):
    """Apply a stack of fused Conv1d(K=3, pad=1) + BN + ReLU layers in VMEM.

    h       : (L, Cin) value (bf16 or f32)
    layers  : list of (w_ref (3, Cin_i, Cout_i) bf16, shift_ref (1, Cout_i) f32)
    scr_ref : (L + 16, Cmax) f32 VMEM scratch; rows 7 and L+8 stay zero (halo).

    Each conv is computed as three shifted matmuls: the layer input is written
    once into the haloed scratch (aligned store at row 8) and the t-1 / t+1
    taps are read back as row-offset slices — no materialized im2col and no
    HBM round trip between the layers of a stage.
    """
    L = h.shape[0]
    for w_ref, s_ref in layers:
        cin = w_ref.shape[1]
        scr_ref[pl.ds(8, L), pl.ds(0, cin)] = h.astype(jnp.float32)
        h_m1 = scr_ref[pl.ds(7, L), pl.ds(0, cin)].astype(jnp.bfloat16)  # x[t-1]
        h_p1 = scr_ref[pl.ds(9, L), pl.ds(0, cin)].astype(jnp.bfloat16)  # x[t+1]
        h_c = h.astype(jnp.bfloat16)                                     # x[t]
        y = (jnp.dot(h_m1, w_ref[0], preferred_element_type=jnp.float32)
             + jnp.dot(h_c, w_ref[1], preferred_element_type=jnp.float32)
             + jnp.dot(h_p1, w_ref[2], preferred_element_type=jnp.float32))
        h = jnp.maximum(y + s_ref[...], 0.0)    # f32 epilogue (v5e-safe)
    return h


def _stage_kernel(x_ref, w1, s1, w2, s2, w3, s3, w4, s4, o_ref, scr_ref):
    scr_ref[...] = jnp.zeros(scr_ref.shape, scr_ref.dtype)
    h = _conv3_stack(x_ref[0], [(w1, s1), (w2, s2), (w3, s3), (w4, s4)], scr_ref)
    o_ref[0] = h.astype(o_ref.dtype)


def _final_stage_kernel(x_ref, w1, s1, w2, s2, w3, s3, w4, s4,
                        fcw_ref, fcb_ref, o_ref, scr_ref):
    scr_ref[...] = jnp.zeros(scr_ref.shape, scr_ref.dtype)
    h = _conv3_stack(x_ref[0], [(w1, s1), (w2, s2), (w3, s3), (w4, s4)], scr_ref)
    # Global average pool over length + Linear + log_softmax, fused in-kernel.
    pooled = jnp.mean(h, axis=0, keepdims=True)                       # (1, C)
    logits = jnp.dot(pooled, fcw_ref[...],
                     preferred_element_type=jnp.float32) + fcb_ref[...]
    m = jnp.max(logits, axis=-1, keepdims=True)
    lse = m + jnp.log(jnp.sum(jnp.exp(logits - m), axis=-1, keepdims=True))
    o_ref[0] = logits - lse


# ----------------------------------------------------------------------------
# Pallas wrappers
# ----------------------------------------------------------------------------
def conv1_bn_relu(patches, w_mat, shift):
    # patches: (M, Kpad) bf16   w_mat: (Kpad, Cout) bf16   shift: (1, Cout) f32
    M = patches.shape[0]
    Cout = w_mat.shape[1]
    return pl.pallas_call(
        _conv1_kernel,
        out_shape=jax.ShapeDtypeStruct((M, Cout), jnp.bfloat16),
        in_specs=[pl.BlockSpec(memory_space=pltpu.MemorySpace.VMEM)] * 3,
        out_specs=pl.BlockSpec(memory_space=pltpu.MemorySpace.VMEM),
    )(patches, w_mat, shift)


def run_stage(h, folded, tail=None):
    """Run 4 fused conv3+BN+ReLU layers as one Pallas call (grid over batch).

    h      : (B, L, Cin) bf16
    folded : list of 4 (w_taps (3, Cin_i, Cout_i) bf16, shift (1, Cout_i) f32)
    tail   : optional (fc_w (C, n_out) f32, fc_b (1, n_out) f32) — when given,
             the kernel also fuses global-avg-pool + Linear + log_softmax and
             returns (B, 1, n_out) f32; otherwise returns (B, L, Cout) bf16.
    """
    B, L, Cin = h.shape
    args = [h]
    in_specs = [pl.BlockSpec((1, L, Cin), lambda b: (b, 0, 0))]
    c_scr = Cin
    for w_taps, shift in folded:
        kk, ci, co = w_taps.shape
        c_scr = max(c_scr, ci)
        args += [w_taps, shift]
        in_specs += [pl.BlockSpec((kk, ci, co), lambda b: (0, 0, 0)),
                     pl.BlockSpec((1, co), lambda b: (0, 0))]
    cout = folded[-1][0].shape[2]

    if tail is None:
        kernel = _stage_kernel
        out_shape = jax.ShapeDtypeStruct((B, L, cout), jnp.bfloat16)
        out_specs = pl.BlockSpec((1, L, cout), lambda b: (b, 0, 0))
    else:
        kernel = _final_stage_kernel
        fc_w, fc_b = tail
        n_out = fc_w.shape[1]
        args += [fc_w, fc_b]
        in_specs += [pl.BlockSpec(fc_w.shape, lambda b: (0, 0)),
                     pl.BlockSpec(fc_b.shape, lambda b: (0, 0))]
        out_shape = jax.ShapeDtypeStruct((B, 1, n_out), jnp.float32)
        out_specs = pl.BlockSpec((1, 1, n_out), lambda b: (b, 0, 0))

    return pl.pallas_call(
        kernel,
        out_shape=out_shape,
        grid=(B,),
        in_specs=in_specs,
        out_specs=out_specs,
        scratch_shapes=[pltpu.VMEM((L + 16, c_scr), jnp.float32)],
        compiler_params=pltpu.CompilerParams(dimension_semantics=("parallel",)),
    )(*args)


# ----------------------------------------------------------------------------
# Plain-JAX glue (conv1 im2col, pooling, parameter folding)
# ----------------------------------------------------------------------------
def conv1_patches(x_ncw, K, stride, kpad):
    """im2col for conv1 only (tiny: single input channel, done once)."""
    B, Cin, L = x_ncw.shape
    Lout = (L - K) // stride + 1
    cols = [x_ncw[:, :, k: k + stride * (Lout - 1) + 1: stride]
            for k in range(K)]                       # each (B, Cin, Lout)
    p = jnp.stack(cols, axis=-1)                     # (B, Cin, Lout, K)
    p = jnp.transpose(p, (0, 2, 3, 1))               # (B, Lout, K, Cin)
    p = p.reshape(B * Lout, K * Cin)
    p = jnp.pad(p, ((0, 0), (0, kpad - K * Cin)))    # lane-pad contraction dim
    return p.astype(jnp.bfloat16), Lout


def max_pool1d(x, k=4):
    # MaxPool1d(kernel=4, stride=4), floor mode — matches PyTorch defaults.
    B, L, C = x.shape
    Lp = L // k
    return x[:, : Lp * k, :].reshape(B, Lp, k, C).max(axis=2)


def fold_conv(layer, kpad=None, eps=1e-5):
    """Fold conv bias + eval-mode BatchNorm into the conv weights.

    Returns (w_taps (K, Cin, Cout) bf16, shift (1, Cout) f32), or, when kpad is
    given (conv1), (w_mat (kpad, Cout) bf16, shift (1, Cout) f32).
    """
    w, b = layer["w"], layer["b"]
    gamma, beta, mean, var = layer["gamma"], layer["beta"], layer["mean"], layer["var"]
    Cout, Cin, K = w.shape
    scale = gamma / jnp.sqrt(var + eps)                       # (Cout,)
    wf = w * scale[:, None, None]                             # BN scale folded in
    shift = (beta - mean * scale + b * scale).reshape(1, Cout).astype(jnp.float32)
    wt = jnp.transpose(wf, (2, 1, 0))                         # (K, Cin, Cout)
    if kpad is not None:
        wm = wt.reshape(K * Cin, Cout)
        wm = jnp.pad(wm, ((0, kpad - K * Cin), (0, 0)))
        return wm.astype(jnp.bfloat16), shift
    return wt.astype(jnp.bfloat16), shift


# ----------------------------------------------------------------------------
# Model definition
# ----------------------------------------------------------------------------
# (Cin, Cout, kernel, stride, padding) for conv1..conv17
def conv_configs(n_input=1, n_channel=32):
    cfg = [(n_input, n_channel, 80, 4, 0)]
    cfg += [(n_channel, n_channel, 3, 1, 1)] * 4
    cfg += [(n_channel, 2 * n_channel, 3, 1, 1)]
    cfg += [(2 * n_channel, 2 * n_channel, 3, 1, 1)] * 3
    cfg += [(2 * n_channel, 4 * n_channel, 3, 1, 1)]
    cfg += [(4 * n_channel, 4 * n_channel, 3, 1, 1)] * 3
    cfg += [(4 * n_channel, 8 * n_channel, 3, 1, 1)]
    cfg += [(8 * n_channel, 8 * n_channel, 3, 1, 1)] * 3
    return cfg


def init_params(key, n_input=1, n_output=2, n_channel=32):
    cfgs = conv_configs(n_input, n_channel)
    convs = []
    for (cin, cout, k, _, _) in cfgs:
        key, kw, kb, kg, kbt, km, kv = jax.random.split(key, 7)
        fan_in = cin * k
        convs.append(dict(
            w=jax.random.normal(kw, (cout, cin, k), jnp.float32) / jnp.sqrt(fan_in),
            b=0.01 * jax.random.normal(kb, (cout,), jnp.float32),
            gamma=1.0 + 0.05 * jax.random.normal(kg, (cout,), jnp.float32),
            beta=0.05 * jax.random.normal(kbt, (cout,), jnp.float32),
            mean=0.05 * jax.random.normal(km, (cout,), jnp.float32),
            var=1.0 + 0.1 * jnp.abs(jax.random.normal(kv, (cout,), jnp.float32)),
        ))
    key, kfw, kfb = jax.random.split(key, 3)
    d = 8 * n_channel
    fc_w = jax.random.normal(kfw, (d, n_output), jnp.float32) / jnp.sqrt(d)
    fc_b = 0.01 * jax.random.normal(kfb, (1, n_output), jnp.float32)
    return dict(convs=convs, fc_w=fc_w, fc_b=fc_b)


def m18_forward(x_ncw, params):
    """x_ncw: (B, n_input, L) like PyTorch; returns (B, 1, n_output) log-probs."""
    n_channel = params["convs"][0]["w"].shape[0]
    cfgs = conv_configs(n_input=x_ncw.shape[1], n_channel=n_channel)
    B = x_ncw.shape[0]
    cin1, cout1, K1, stride1, _ = cfgs[0]
    kpad = ((K1 * cin1 + 127) // 128) * 128

    # conv1 + BN + ReLU: one fused matmul kernel on lane-padded patches.
    patches, Lout0 = conv1_patches(x_ncw, K1, stride1, kpad)
    w1_mat, s1 = fold_conv(params["convs"][0], kpad=kpad)
    h = conv1_bn_relu(patches, w1_mat, s1).reshape(B, Lout0, cout1)

    folded = [fold_conv(params["convs"][i]) for i in range(1, 17)]

    h = max_pool1d(h)
    h = run_stage(h, folded[0:4])      # conv2..conv5
    h = max_pool1d(h)
    h = run_stage(h, folded[4:8])      # conv6..conv9
    h = max_pool1d(h)
    h = run_stage(h, folded[8:12])     # conv10..conv13
    h = max_pool1d(h)
    # conv14..conv17 + global avg pool + fc + log_softmax, all in one kernel.
    out = run_stage(h, folded[12:16], tail=(params["fc_w"], params["fc_b"]))
    return out                         # (B, 1, n_output)


if __name__ == "__main__":
    key = jax.random.PRNGKey(0)
    k_param, k_x = jax.random.split(key)
    params = init_params(k_param)

    B, L = 2, 2048  # smallest-ish length that survives conv1 + four /4 pools
    x = jax.random.normal(k_x, (B, 1, L), jnp.float32)

    fwd = jax.jit(functools.partial(m18_forward, params=params))
    y = fwd(x)
    jax.block_until_ready(y)
    assert y.shape == (B, 1, 2)
    # log-softmax sanity: probabilities sum to 1.
    assert jnp.allclose(jnp.exp(y).sum(-1), 1.0, atol=1e-2)
    print("KERNEL_OK")
</pallas_src>

<mosaic_0001>
module attributes {stable_mosaic.version = 11 : i64} {
  func.func @_conv1_kernel(%arg0: memref<986x128xbf16, #tpu.memory_space<vmem>>, %arg1: memref<128x32xbf16, #tpu.memory_space<vmem>>, %arg2: memref<1x32xf32, #tpu.memory_space<vmem>>, %arg3: memref<986x32xbf16, #tpu.memory_space<vmem>>) attributes {dimension_semantics = [], scalar_prefetch = 0 : i64, scratch_operands = 0 : i64, tpu.core_type = #tpu.core_type<tc>} {
    %c0 = arith.constant 0 : index
    %c0_0 = arith.constant 0 : index
    %0 = vector.load %arg0[%c0, %c0_0] : memref<986x128xbf16, #tpu.memory_space<vmem>>, vector<986x128xbf16>
    %c0_1 = arith.constant 0 : index
    %c0_2 = arith.constant 0 : index
    %1 = vector.load %arg1[%c0_1, %c0_2] : memref<128x32xbf16, #tpu.memory_space<vmem>>, vector<128x32xbf16>
    %cst = arith.constant dense<0.000000e+00> : vector<986x32xf32>
    %2 = tpu.matmul %0, %1, %cst {dimension_numbers = #tpu.dot_dimension_numbers<[1], [0], [0], [1], [0, 0, 1, 1], [], []>} : vector<986x128xbf16>, vector<128x32xbf16>, vector<986x32xf32> -> vector<986x32xf32>
    %c0_3 = arith.constant 0 : index
    %c0_4 = arith.constant 0 : index
    %3 = vector.load %arg2[%c0_3, %c0_4] : memref<1x32xf32, #tpu.memory_space<vmem>>, vector<1x32xf32>
    %4 = vector.broadcast %3 : vector<1x32xf32> to vector<986x32xf32>
    %5 = arith.addf %2, %4 : vector<986x32xf32>
    %cst_5 = arith.constant 0.000000e+00 : f32
    %6 = vector.broadcast %cst_5 : f32 to vector<986x32xf32>
    %7 = arith.maximumf %5, %6 : vector<986x32xf32>
    %8 = arith.truncf %7 : vector<986x32xf32> to vector<986x32xbf16>
    %c0_6 = arith.constant 0 : index
    %c0_7 = arith.constant 0 : index
    %9 = vector.load %arg3[%c0_6, %c0_7] : memref<986x32xbf16, #tpu.memory_space<vmem>>, vector<986x32xbf16>
    tpu.vector_store %arg3[%c0_6, %c0_7], %8 {strides = array<i32>} : memref<986x32xbf16, #tpu.memory_space<vmem>>, vector<986x32xbf16>,
    return
  }
}

module attributes {stable_mosaic.version = 11 : i64} {
  func.func @_stage_kernel(%arg0: i32, %arg1: memref<1x123x32xbf16, #tpu.memory_space<vmem>>, %arg2: memref<3x32x32xbf16, #tpu.memory_space<vmem>>, %arg3: memref<1x32xf32, #tpu.memory_space<vmem>>, %arg4: memref<3x32x32xbf16, #tpu.memory_space<vmem>>, %arg5: memref<1x32xf32, #tpu.memory_space<vmem>>, %arg6: memref<3x32x32xbf16, #tpu.memory_space<vmem>>, %arg7: memref<1x32xf32, #tpu.memory_space<vmem>>, %arg8: memref<3x32x32xbf16, #tpu.memory_space<vmem>>, %arg9: memref<1x32xf32, #tpu.memory_space<vmem>>, %arg10: memref<1x123x32xbf16, #tpu.memory_space<vmem>>, %arg11: memref<139x32xf32, #tpu.memory_space<vmem>>) attributes {dimension_semantics = [#tpu.dimension_semantics<parallel>], iteration_bounds = array<i64: 2>, scalar_prefetch = 0 : i64, scratch_operands = 1 : i64, tpu.core_type = #tpu.core_type<tc>, window_params = [{transform_indices = @transform_0, window_bounds = array<i64: 1, 123, 32>}, {pipeline_mode = #tpu.pipeline_mode<synchronous>, transform_indices = @transform_1, window_bounds = array<i64: 3, 32, 32>}, {pipeline_mode = #tpu.pipeline_mode<synchronous>, transform_indices = @transform_2, window_bounds = array<i64: 1, 32>}, {pipeline_mode = #tpu.pipeline_mode<synchronous>, transform_indices = @transform_3, window_bounds = array<i64: 3, 32, 32>}, {pipeline_mode = #tpu.pipeline_mode<synchronous>, transform_indices = @transform_4, window_bounds = array<i64: 1, 32>}, {pipeline_mode = #tpu.pipeline_mode<synchronous>, transform_indices = @transform_5, window_bounds = array<i64: 3, 32, 32>}, {pipeline_mode = #tpu.pipeline_mode<synchronous>, transform_indices = @transform_6, window_bounds = array<i64: 1, 32>}, {pipeline_mode = #tpu.pipeline_mode<synchronous>, transform_indices = @transform_7, window_bounds = array<i64: 3, 32, 32>}, {pipeline_mode = #tpu.pipeline_mode<synchronous>, transform_indices = @transform_8, window_bounds = array<i64: 1, 32>}, {transform_indices = @transform_9, window_bounds = array<i64: 1, 123, 32>}]} {
    %cst = arith.constant 0.000000e+00 : f32
    %0 = vector.broadcast %cst : f32 to vector<139x32xf32>
    %c0 = arith.constant 0 : index
    %c0_0 = arith.constant 0 : index
    %1 = vector.load %arg11[%c0, %c0_0] : memref<139x32xf32, #tpu.memory_space<vmem>>, vector<139x32xf32>
    tpu.vector_store %arg11[%c0, %c0_0], %0 {strides = array<i32>} : memref<139x32xf32, #tpu.memory_space<vmem>>, vector<139x32xf32>,
    %c0_1 = arith.constant 0 : index
    %c0_2 = arith.constant 0 : index
    %c0_3 = arith.constant 0 : index
    %2 = vector.load %arg1[%c0_1, %c0_2, %c0_3] : memref<1x123x32xbf16, #tpu.memory_space<vmem>>, vector<1x123x32xbf16>
    %3 = vector.shape_cast %2 : vector<1x123x32xbf16> to vector<123x32xbf16>
    %4 = arith.extf %3 : vector<123x32xbf16> to vector<123x32xf32>
    %c8 = arith.constant 8 : index
    %c0_4 = arith.constant 0 : index
    %5 = vector.load %arg11[%c8, %c0_4] : memref<139x32xf32, #tpu.memory_space<vmem>>, vector<123x32xf32>
    tpu.vector_store %arg11[%c8, %c0_4], %4 {strides = array<i32>} : memref<139x32xf32, #tpu.memory_space<vmem>>, vector<123x32xf32>,
    %c7 = arith.constant 7 : index
    %c0_5 = arith.constant 0 : index
    %6 = vector.load %arg11[%c7, %c0_5] : memref<139x32xf32, #tpu.memory_space<vmem>>, vector<123x32xf32>
    %7 = arith.truncf %6 : vector<123x32xf32> to vector<123x32xbf16>
    %c9 = arith.constant 9 : index
    %c0_6 = arith.constant 0 : index
    %8 = vector.load %arg11[%c9, %c0_6] : memref<139x32xf32, #tpu.memory_space<vmem>>, vector<123x32xf32>
    %9 = arith.truncf %8 : vector<123x32xf32> to vector<123x32xbf16>
    %c0_7 = arith.constant 0 : index
    %c0_8 = arith.constant 0 : index
    %c0_9 = arith.constant 0 : index
    %10 = vector.load %arg2[%c0_7, %c0_8, %c0_9] : memref<3x32x32xbf16, #tpu.memory_space<vmem>>, vector<1x32x32xbf16>
    %11 = vector.shape_cast %10 : vector<1x32x32xbf16> to vector<32x32xbf16>
    %cst_10 = arith.constant dense<0.000000e+00> : vector<123x32xf32>
    %12 = tpu.matmul %7, %11, %cst_10 {dimension_numbers = #tpu.dot_dimension_numbers<[1], [0], [0], [1], [0, 0, 1, 1], [], []>} : vector<123x32xbf16>, vector<32x32xbf16>, vector<123x32xf32> -> vector<123x32xf32>
    %c1 = arith.constant 1 : index
    %c0_11 = arith.constant 0 : index
    %c0_12 = arith.constant 0 : index
    %13 = vector.load %arg2[%c1, %c0_11, %c0_12] : memref<3x32x32xbf16, #tpu.memory_space<vmem>>, vector<1x32x32xbf16>
    %14 = vector.shape_cast %13 : vector<1x32x32xbf16> to vector<32x32xbf16>
    %cst_13 = arith.constant dense<0.000000e+00> : vector<123x32xf32>
    %15 = tpu.matmul %3, %14, %cst_13 {dimension_numbers = #tpu.dot_dimension_numbers<[1], [0], [0], [1], [0, 0, 1, 1], [], []>} : vector<123x32xbf16>, vector<32x32xbf16>, vector<123x32xf32> -> vector<123x32xf32>
    %16 = arith.addf %12, %15 : vector<123x32xf32>
    %c2 = arith.constant 2 : index
    %c0_14 = arith.constant 0 : index
    %c0_15 = arith.constant 0 : index
    %17 = vector.load %arg2[%c2, %c0_14, %c0_15] : memref<3x32x32xbf16, #tpu.memory_space<vmem>>, vector<1x32x32xbf16>
    %18 = vector.shape_cast %17 : vector<1x32x32xbf16> to vector<32x32xbf16>
    %cst_16 = arith.constant dense<0.000000e+00> : vector<123x32xf32>
    %19 = tpu.matmul %9, %18, %cst_16 {dimension_numbers = #tpu.dot_dimension_numbers<[1], [0], [0], [1], [0, 0, 1, 1], [], []>} : vector<123x32xbf16>, vector<32x32xbf16>, vector<123x32xf32> -> vector<123x32xf32>
    %20 = arith.addf %16, %19 : vector<123x32xf32>
    %c0_17 = arith.constant 0 : index
    %c0_18 = arith.constant 0 : index
    %21 = vector.load %arg3[%c0_17, %c0_18] : memref<1x32xf32, #tpu.memory_space<vmem>>, vector<1x32xf32>
    %22 = vector.broadcast %21 : vector<1x32xf32> to vector<123x32xf32>
    %23 = arith.addf %20, %22 : vector<123x32xf32>
    %cst_19 = arith.constant 0.000000e+00 : f32
    %24 = vector.broadcast %cst_19 : f32 to vector<123x32xf32>
    %25 = arith.maximumf %23, %24 : vector<123x32xf32>
    %c8_20 = arith.constant 8 : index
    %c0_21 = arith.constant 0 : index
    %26 = vector.load %arg11[%c8_20, %c0_21] : memref<139x32xf32, #tpu.memory_space<vmem>>, vector<123x32xf32>
    tpu.vector_store %arg11[%c8_20, %c0_21], %25 {strides = array<i32>} : memref<139x32xf32, #tpu.memory_space<vmem>>, vector<123x32xf32>,
    %c7_22 = arith.constant 7 : index
    %c0_23 = arith.constant 0 : index
    %27 = vector.load %arg11[%c7_22, %c0_23] : memref<139x32xf32, #tpu.memory_space<vmem>>, vector<123x32xf32>
    %28 = arith.truncf %27 : vector<123x32xf32> to vector<123x32xbf16>
    %c9_24 = arith.constant 9 : index
    %c0_25 = arith.constant 0 : index
    %29 = vector.load %arg11[%c9_24, %c0_25] : memref<139x32xf32, #tpu.memory_space<vmem>>, vector<123x32xf32>
    %30 = arith.truncf %29 : vector<123x32xf32> to vector<123x32xbf16>
    %31 = arith.truncf %25 : vector<123x32xf32> to vector<123x32xbf16>
    %c0_26 = arith.constant 0 : index
    %c0_27 = arith.constant 0 : index
    %c0_28 = arith.constant 0 : index
    %32 = vector.load %arg4[%c0_26, %c0_27, %c0_28] : memref<3x32x32xbf16, #tpu.memory_space<vmem>>, vector<1x32x32xbf16>
    %33 = vector.shape_cast %32 : vector<1x32x32xbf16> to vector<32x32xbf16>
    %cst_29 = arith.constant dense<0.000000e+00> : vector<123x32xf32>
    %34 = tpu.matmul %28, %33, %cst_29 {dimension_numbers = #tpu.dot_dimension_numbers<[1], [0], [0], [1], [0, 0, 1, 1], [], []>} : vector<123x32xbf16>, vector<32x32xbf16>, vector<123x32xf32> -> vector<123x32xf32>
    %c1_30 = arith.constant 1 : index
    %c0_31 = arith.constant 0 : index
    %c0_32 = arith.constant 0 : index
    %35 = vector.load %arg4[%c1_30, %c0_31, %c0_32] : memref<3x32x32xbf16, #tpu.memory_space<vmem>>, vector<1x32x32xbf16>
    %36 = vector.shape_cast %35 : vector<1x32x32xbf16> to vector<32x32xbf16>
    %cst_33 = arith.constant dense<0.000000e+00> : vector<123x32xf32>
    %37 = tpu.matmul %31, %36, %cst_33 {dimension_numbers = #tpu.dot_dimension_numbers<[1], [0], [0], [1], [0, 0, 1, 1], [], []>} : vector<123x32xbf16>, vector<32x32xbf16>, vector<123x32xf32> -> vector<123x32xf32>
    %38 = arith.addf %34, %37 : vector<123x32xf32>
    %c2_34 = arith.constant 2 : index
    %c0_35 = arith.constant 0 : index
    %c0_36 = arith.constant 0 : index
    %39 = vector.load %arg4[%c2_34, %c0_35, %c0_36] : memref<3x32x32xbf16, #tpu.memory_space<vmem>>, vector<1x32x32xbf16>
    %40 = vector.shape_cast %39 : vector<1x32x32xbf16> to vector<32x32xbf16>
    %cst_37 = arith.constant dense<0.000000e+00> : vector<123x32xf32>
    %41 = tpu.matmul %30, %40, %cst_37 {dimension_numbers = #tpu.dot_dimension_numbers<[1], [0], [0], [1], [0, 0, 1, 1], [], []>} : vector<123x32xbf16>, vector<32x32xbf16>, vector<123x32xf32> -> vector<123x32xf32>
    %42 = arith.addf %38, %41 : vector<123x32xf32>
    %c0_38 = arith.constant 0 : index
    %c0_39 = arith.constant 0 : index
    %43 = vector.load %arg5[%c0_38, %c0_39] : memref<1x32xf32, #tpu.memory_space<vmem>>, vector<1x32xf32>
    %44 = vector.broadcast %43 : vector<1x32xf32> to vector<123x32xf32>
    %45 = arith.addf %42, %44 : vector<123x32xf32>
    %cst_40 = arith.constant 0.000000e+00 : f32
    %46 = vector.broadcast %cst_40 : f32 to vector<123x32xf32>
    %47 = arith.maximumf %45, %46 : vector<123x32xf32>
    %c8_41 = arith.constant 8 : index
    %c0_42 = arith.constant 0 : index
    %48 = vector.load %arg11[%c8_41, %c0_42] : memref<139x32xf32, #tpu.memory_space<vmem>>, vector<123x32xf32>
    tpu.vector_store %arg11[%c8_41, %c0_42], %47 {strides = array<i32>} : memref<139x32xf32, #tpu.memory_space<vmem>>, vector<123x32xf32>,
    %c7_43 = arith.constant 7 : index
    %c0_44 = arith.constant 0 : index
    %49 = vector.load %arg11[%c7_43, %c0_44] : memref<139x32xf32, #tpu.memory_space<vmem>>, vector<123x32xf32>
    %50 = arith.truncf %49 : vector<123x32xf32> to vector<123x32xbf16>
    %c9_45 = arith.constant 9 : index
    %c0_46 = arith.constant 0 : index
    %51 = vector.load %arg11[%c9_45, %c0_46] : memref<139x32xf32, #tpu.memory_space<vmem>>, vector<123x32xf32>
    %52 = arith.truncf %51 : vector<123x32xf32> to vector<123x32xbf16>
    %53 = arith.truncf %47 : vector<123x32xf32> to vector<123x32xbf16>
    %c0_47 = arith.constant 0 : index
    %c0_48 = arith.constant 0 : index
    %c0_49 = arith.constant 0 : index
    %54 = vector.load %arg6[%c0_47, %c0_48, %c0_49] : memref<3x32x32xbf16, #tpu.memory_space<vmem>>, vector<1x32x32xbf16>
    %55 = vector.shape_cast %54 : vector<1x32x32xbf16> to vector<32x32xbf16>
    %cst_50 = arith.constant dense<0.000000e+00> : vector<123x32xf32>
    %56 = tpu.matmul %50, %55, %cst_50 {dimension_numbers = #tpu.dot_dimension_numbers<[1], [0], [0], [1], [0, 0, 1, 1], [], []>} : vector<123x32xbf16>, vector<32x32xbf16>, vector<123x32xf32> -> vector<123x32xf32>
    %c1_51 = arith.constant 1 : index
    %c0_52 = arith.constant 0 : index
    %c0_53 = arith.constant 0 : index
    %57 = vector.load %arg6[%c1_51, %c0_52, %c0_53] : memref<3x32x32xbf16, #tpu.memory_space<vmem>>, vector<1x32x32xbf16>
    %58 = vector.shape_cast %57 : vector<1x32x32xbf16> to vector<32x32xbf16>
    %cst_54 = arith.constant dense<0.000000e+00> : vector<123x32xf32>
    %59 = tpu.matmul %53, %58, %cst_54 {dimension_numbers = #tpu.dot_dimension_numbers<[1], [0], [0], [1], [0, 0, 1, 1], [], []>} : vector<123x32xbf16>, vector<32x32xbf16>, vector<123x32xf32> -> vector<123x32xf32>
    %60 = arith.addf %56, %59 : vector<123x32xf32>
    %c2_55 = arith.constant 2 : index
    %c0_56 = arith.constant 0 : index
    %c0_57 = arith.constant 0 : index
    %61 = vector.load %arg6[%c2_55, %c0_56, %c0_57] : memref<3x32x32xbf16, #tpu.memory_space<vmem>>, vector<1x32x32xbf16>
    %62 = vector.shape_cast %61 : vector<1x32x32xbf16> to vector<32x32xbf16>
    %cst_58 = arith.constant dense<0.000000e+00> : vector<123x32xf32>
    %63 = tpu.matmul %52, %62, %cst_58 {dimension_numbers = #tpu.dot_dimension_numbers<[1], [0], [0], [1], [0, 0, 1, 1], [], []>} : vector<123x32xbf16>, vector<32x32xbf16>, vector<123x32xf32> -> vector<123x32xf32>
    %64 = arith.addf %60, %63 : vector<123x32xf32>
    %c0_59 = arith.constant 0 : index
    %c0_60 = arith.constant 0 : index
    %65 = vector.load %arg7[%c0_59, %c0_60] : memref<1x32xf32, #tpu.memory_space<vmem>>, vector<1x32xf32>
    %66 = vector.broadcast %65 : vector<1x32xf32> to vector<123x32xf32>
    %67 = arith.addf %64, %66 : vector<123x32xf32>
    %cst_61 = arith.constant 0.000000e+00 : f32
    %68 = vector.broadcast %cst_61 : f32 to vector<123x32xf32>
    %69 = arith.maximumf %67, %68 : vector<123x32xf32>
    %c8_62 = arith.constant 8 : index
    %c0_63 = arith.constant 0 : index
    %70 = vector.load %arg11[%c8_62, %c0_63] : memref<139x32xf32, #tpu.memory_space<vmem>>, vector<123x32xf32>
    tpu.vector_store %arg11[%c8_62, %c0_63], %69 {strides = array<i32>} : memref<139x32xf32, #tpu.memory_space<vmem>>, vector<123x32xf32>,
    %c7_64 = arith.constant 7 : index
    %c0_65 = arith.constant 0 : index
    %71 = vector.load %arg11[%c7_64, %c0_65] : memref<139x32xf32, #tpu.memory_space<vmem>>, vector<123x32xf32>
    %72 = arith.truncf %71 : vector<123x32xf32> to vector<123x32xbf16>
    %c9_66 = arith.constant 9 : index
    %c0_67 = arith.constant 0 : index
    %73 = vector.load %arg11[%c9_66, %c0_67] : memref<139x32xf32, #tpu.memory_space<vmem>>, vector<123x32xf32>
    %74 = arith.truncf %73 : vector<123x32xf32> to vector<123x32xbf16>
    %75 = arith.truncf %69 : vector<123x32xf32> to vector<123x32xbf16>
    %c0_68 = arith.constant 0 : index
    %c0_69 = arith.constant 0 : index
    %c0_70 = arith.constant 0 : index
    %76 = vector.load %arg8[%c0_68, %c0_69, %c0_70] : memref<3x32x32xbf16, #tpu.memory_space<vmem>>, vector<1x32x32xbf16>
    %77 = vector.shape_cast %76 : vector<1x32x32xbf16> to vector<32x32xbf16>
    %cst_71 = arith.constant dense<0.000000e+00> : vector<123x32xf32>
    %78 = tpu.matmul %72, %77, %cst_71 {dimension_numbers = #tpu.dot_dimension_numbers<[1], [0], [0], [1], [0, 0, 1, 1], [], []>} : vector<123x32xbf16>, vector<32x32xbf16>, vector<123x32xf32> -> vector<123x32xf32>
    %c1_72 = arith.constant 1 : index
    %c0_73 = arith.constant 0 : index
    %c0_74 = arith.constant 0 : index
    %79 = vector.load %arg8[%c1_72, %c0_73, %c0_74] : memref<3x32x32xbf16, #tpu.memory_space<vmem>>, vector<1x32x32xbf16>
    %80 = vector.shape_cast %79 : vector<1x32x32xbf16> to vector<32x32xbf16>
    %cst_75 = arith.constant dense<0.000000e+00> : vector<123x32xf32>
    %81 = tpu.matmul %75, %80, %cst_75 {dimension_numbers = #tpu.dot_dimension_numbers<[1], [0], [0], [1], [0, 0, 1, 1], [], []>} : vector<123x32xbf16>, vector<32x32xbf16>, vector<123x32xf32> -> vector<123x32xf32>
    %82 = arith.addf %78, %81 : vector<123x32xf32>
    %c2_76 = arith.constant 2 : index
    %c0_77 = arith.constant 0 : index
    %c0_78 = arith.constant 0 : index
    %83 = vector.load %arg8[%c2_76, %c0_77, %c0_78] : memref<3x32x32xbf16, #tpu.memory_space<vmem>>, vector<1x32x32xbf16>
    %84 = vector.shape_cast %83 : vector<1x32x32xbf16> to vector<32x32xbf16>
    %cst_79 = arith.constant dense<0.000000e+00> : vector<123x32xf32>
    %85 = tpu.matmul %74, %84, %cst_79 {dimension_numbers = #tpu.dot_dimension_numbers<[1], [0], [0], [1], [0, 0, 1, 1], [], []>} : vector<123x32xbf16>, vector<32x32xbf16>, vector<123x32xf32> -> vector<123x32xf32>
    %86 = arith.addf %82, %85 : vector<123x32xf32>
    %c0_80 = arith.constant 0 : index
    %c0_81 = arith.constant 0 : index
    %87 = vector.load %arg9[%c0_80, %c0_81] : memref<1x32xf32, #tpu.memory_space<vmem>>, vector<1x32xf32>
    %88 = vector.broadcast %87 : vector<1x32xf32> to vector<123x32xf32>
    %89 = arith.addf %86, %88 : vector<123x32xf32>
    %cst_82 = arith.constant 0.000000e+00 : f32
    %90 = vector.broadcast %cst_82 : f32 to vector<123x32xf32>
    %91 = arith.maximumf %89, %90 : vector<123x32xf32>
    %92 = arith.truncf %91 : vector<123x32xf32> to vector<123x32xbf16>
    %c0_83 = arith.constant 0 : index
    %c0_84 = arith.constant 0 : index
    %c0_85 = arith.constant 0 : index
    %93 = vector.load %arg10[%c0_83, %c0_84, %c0_85] : memref<1x123x32xbf16, #tpu.memory_space<vmem>>, vector<1x123x32xbf16>
    %94 = vector.shape_cast %93 : vector<1x123x32xbf16> to vector<123x32xbf16>
    %95 = vector.shape_cast %92 : vector<123x32xbf16> to vector<1x123x32xbf16>
    tpu.vector_store %arg10[%c0_83, %c0_84, %c0_85], %95 {strides = array<i32>} : memref<1x123x32xbf16, #tpu.memory_space<vmem>>, vector<1x123x32xbf16>,
    return
  }
  func.func @transform_0(%arg0: i32) -> (i32, i32, i32) {
    %c0_i32 = arith.constant 0 : i32
    %c0_i32_0 = arith.constant 0 : i32
    %c0_i32_1 = arith.constant 0 : i32
    return %arg0, %c0_i32, %c0_i32_0 : i32, i32, i32
  }
  func.func @transform_1(%arg0: i32) -> (i32, i32, i32) {
    %c0_i32 = arith.constant 0 : i32
    %c0_i32_0 = arith.constant 0 : i32
    %c0_i32_1 = arith.constant 0 : i32
    %c0_i32_2 = arith.constant 0 : i32
    return %c0_i32, %c0_i32_0, %c0_i32_1 : i32, i32, i32
  }
  func.func @transform_2(%arg0: i32) -> (i32, i32) {
    %c0_i32 = arith.constant 0 : i32
    %c0_i32_0 = arith.constant 0 : i32
    %c0_i32_1 = arith.constant 0 : i32
    return %c0_i32, %c0_i32_0 : i32, i32
  }
  func.func @transform_3(%arg0: i32) -> (i32, i32, i32) {
    %c0_i32 = arith.constant 0 : i32
    %c0_i32_0 = arith.constant 0 : i32
    %c0_i32_1 = arith.constant 0 : i32
    %c0_i32_2 = arith.constant 0 : i32
    return %c0_i32, %c0_i32_0, %c0_i32_1 : i32, i32, i32
  }
  func.func @transform_4(%arg0: i32) -> (i32, i32) {
    %c0_i32 = arith.constant 0 : i32
    %c0_i32_0 = arith.constant 0 : i32
    %c0_i32_1 = arith.constant 0 : i32
    return %c0_i32, %c0_i32_0 : i32, i32
  }
  func.func @transform_5(%arg0: i32) -> (i32, i32, i32) {
    %c0_i32 = arith.constant 0 : i32
    %c0_i32_0 = arith.constant 0 : i32
    %c0_i32_1 = arith.constant 0 : i32
    %c0_i32_2 = arith.constant 0 : i32
    return %c0_i32, %c0_i32_0, %c0_i32_1 : i32, i32, i32
  }
  func.func @transform_6(%arg0: i32) -> (i32, i32) {
    %c0_i32 = arith.constant 0 : i32
    %c0_i32_0 = arith.constant 0 : i32
    %c0_i32_1 = arith.constant 0 : i32
    return %c0_i32, %c0_i32_0 : i32, i32
  }
  func.func @transform_7(%arg0: i32) -> (i32, i32, i32) {
    %c0_i32 = arith.constant 0 : i32
    %c0_i32_0 = arith.constant 0 : i32
    %c0_i32_1 = arith.constant 0 : i32
    %c0_i32_2 = arith.constant 0 : i32
    return %c0_i32, %c0_i32_0, %c0_i32_1 : i32, i32, i32
  }
  func.func @transform_8(%arg0: i32) -> (i32, i32) {
    %c0_i32 = arith.constant 0 : i32
    %c0_i32_0 = arith.constant 0 : i32
    %c0_i32_1 = arith.constant 0 : i32
    return %c0_i32, %c0_i32_0 : i32, i32
  }
  func.func @transform_9(%arg0: i32) -> (i32, i32, i32) {
    %c0_i32 = arith.constant 0 : i32
    %c0_i32_0 = arith.constant 0 : i32
    %c0_i32_1 = arith.constant 0 : i32
    return %arg0, %c0_i32, %c0_i32_0 : i32, i32, i32
  }
}

module attributes {stable_mosaic.version = 11 : i64} {
  func.func @_stage_kernel(%arg0: i32, %arg1: memref<1x30x32xbf16, #tpu.memory_space<vmem>>, %arg2: memref<3x32x64xbf16, #tpu.memory_space<vmem>>, %arg3: memref<1x64xf32, #tpu.memory_space<vmem>>, %arg4: memref<3x64x64xbf16, #tpu.memory_space<vmem>>, %arg5: memref<1x64xf32, #tpu.memory_space<vmem>>, %arg6: memref<3x64x64xbf16, #tpu.memory_space<vmem>>, %arg7: memref<1x64xf32, #tpu.memory_space<vmem>>, %arg8: memref<3x64x64xbf16, #tpu.memory_space<vmem>>, %arg9: memref<1x64xf32, #tpu.memory_space<vmem>>, %arg10: memref<1x30x64xbf16, #tpu.memory_space<vmem>>, %arg11: memref<46x64xf32, #tpu.memory_space<vmem>>) attributes {dimension_semantics = [#tpu.dimension_semantics<parallel>], iteration_bounds = array<i64: 2>, scalar_prefetch = 0 : i64, scratch_operands = 1 : i64, tpu.core_type = #tpu.core_type<tc>, window_params = [{transform_indices = @transform_0, window_bounds = array<i64: 1, 30, 32>}, {pipeline_mode = #tpu.pipeline_mode<synchronous>, transform_indices = @transform_1, window_bounds = array<i64: 3, 32, 64>}, {pipeline_mode = #tpu.pipeline_mode<synchronous>, transform_indices = @transform_2, window_bounds = array<i64: 1, 64>}, {pipeline_mode = #tpu.pipeline_mode<synchronous>, transform_indices = @transform_3, window_bounds = array<i64: 3, 64, 64>}, {pipeline_mode = #tpu.pipeline_mode<synchronous>, transform_indices = @transform_4, window_bounds = array<i64: 1, 64>}, {pipeline_mode = #tpu.pipeline_mode<synchronous>, transform_indices = @transform_5, window_bounds = array<i64: 3, 64, 64>}, {pipeline_mode = #tpu.pipeline_mode<synchronous>, transform_indices = @transform_6, window_bounds = array<i64: 1, 64>}, {pipeline_mode = #tpu.pipeline_mode<synchronous>, transform_indices = @transform_7, window_bounds = array<i64: 3, 64, 64>}, {pipeline_mode = #tpu.pipeline_mode<synchronous>, transform_indices = @transform_8, window_bounds = array<i64: 1, 64>}, {transform_indices = @transform_9, window_bounds = array<i64: 1, 30, 64>}]} {
    %cst = arith.constant 0.000000e+00 : f32
    %0 = vector.broadcast %cst : f32 to vector<46x64xf32>
    %c0 = arith.constant 0 : index
    %c0_0 = arith.constant 0 : index
    %1 = vector.load %arg11[%c0, %c0_0] : memref<46x64xf32, #tpu.memory_space<vmem>>, vector<46x64xf32>
    tpu.vector_store %arg11[%c0, %c0_0], %0 {strides = array<i32>} : memref<46x64xf32, #tpu.memory_space<vmem>>, vector<46x64xf32>,
    %c0_1 = arith.constant 0 : index
    %c0_2 = arith.constant 0 : index
    %c0_3 = arith.constant 0 : index
    %2 = vector.load %arg1[%c0_1, %c0_2, %c0_3] : memref<1x30x32xbf16, #tpu.memory_space<vmem>>, vector<1x30x32xbf16>
    %3 = vector.shape_cast %2 : vector<1x30x32xbf16> to vector<30x32xbf16>
    %4 = arith.extf %3 : vector<30x32xbf16> to vector<30x32xf32>
    %c8 = arith.constant 8 : index
    %c0_4 = arith.constant 0 : index
    %5 = vector.load %arg11[%c8, %c0_4] : memref<46x64xf32, #tpu.memory_space<vmem>>, vector<30x32xf32>
    tpu.vector_store %arg11[%c8, %c0_4], %4 {strides = array<i32>} : memref<46x64xf32, #tpu.memory_space<vmem>>, vector<30x32xf32>,
    %c7 = arith.constant 7 : index
    %c0_5 = arith.constant 0 : index
    %6 = vector.load %arg11[%c7, %c0_5] : memref<46x64xf32, #tpu.memory_space<vmem>>, vector<30x32xf32>
    %7 = arith.truncf %6 : vector<30x32xf32> to vector<30x32xbf16>
    %c9 = arith.constant 9 : index
    %c0_6 = arith.constant 0 : index
    %8 = vector.load %arg11[%c9, %c0_6] : memref<46x64xf32, #tpu.memory_space<vmem>>, vector<30x32xf32>
    %9 = arith.truncf %8 : vector<30x32xf32> to vector<30x32xbf16>
    %c0_7 = arith.constant 0 : index
    %c0_8 = arith.constant 0 : index
    %c0_9 = arith.constant 0 : index
    %10 = vector.load %arg2[%c0_7, %c0_8, %c0_9] : memref<3x32x64xbf16, #tpu.memory_space<vmem>>, vector<1x32x64xbf16>
    %11 = vector.shape_cast %10 : vector<1x32x64xbf16> to vector<32x64xbf16>
    %cst_10 = arith.constant dense<0.000000e+00> : vector<30x64xf32>
    %12 = tpu.matmul %7, %11, %cst_10 {dimension_numbers = #tpu.dot_dimension_numbers<[1], [0], [0], [1], [0, 0, 1, 1], [], []>} : vector<30x32xbf16>, vector<32x64xbf16>, vector<30x64xf32> -> vector<30x64xf32>
    %c1 = arith.constant 1 : index
    %c0_11 = arith.constant 0 : index
    %c0_12 = arith.constant 0 : index
    %13 = vector.load %arg2[%c1, %c0_11, %c0_12] : memref<3x32x64xbf16, #tpu.memory_space<vmem>>, vector<1x32x64xbf16>
    %14 = vector.shape_cast %13 : vector<1x32x64xbf16> to vector<32x64xbf16>
    %cst_13 = arith.constant dense<0.000000e+00> : vector<30x64xf32>
    %15 = tpu.matmul %3, %14, %cst_13 {dimension_numbers = #tpu.dot_dimension_numbers<[1], [0], [0], [1], [0, 0, 1, 1], [], []>} : vector<30x32xbf16>, vector<32x64xbf16>, vector<30x64xf32> -> vector<30x64xf32>
    %16 = arith.addf %12, %15 : vector<30x64xf32>
    %c2 = arith.constant 2 : index
    %c0_14 = arith.constant 0 : index
    %c0_15 = arith.constant 0 : index
    %17 = vector.load %arg2[%c2, %c0_14, %c0_15] : memref<3x32x64xbf16, #tpu.memory_space<vmem>>, vector<1x32x64xbf16>
    %18 = vector.shape_cast %17 : vector<1x32x64xbf16> to vector<32x64xbf16>
    %cst_16 = arith.constant dense<0.000000e+00> : vector<30x64xf32>
    %19 = tpu.matmul %9, %18, %cst_16 {dimension_numbers = #tpu.dot_dimension_numbers<[1], [0], [0], [1], [0, 0, 1, 1], [], []>} : vector<30x32xbf16>, vector<32x64xbf16>, vector<30x64xf32> -> vector<30x64xf32>
    %20 = arith.addf %16, %19 : vector<30x64xf32>
    %c0_17 = arith.constant 0 : index
    %c0_18 = arith.constant 0 : index
    %21 = vector.load %arg3[%c0_17, %c0_18] : memref<1x64xf32, #tpu.memory_space<vmem>>, vector<1x64xf32>
    %22 = vector.broadcast %21 : vector<1x64xf32> to vector<30x64xf32>
    %23 = arith.addf %20, %22 : vector<30x64xf32>
    %cst_19 = arith.constant 0.000000e+00 : f32
    %24 = vector.broadcast %cst_19 : f32 to vector<30x64xf32>
    %25 = arith.maximumf %23, %24 : vector<30x64xf32>
    %c8_20 = arith.constant 8 : index
    %c0_21 = arith.constant 0 : index
    %26 = vector.load %arg11[%c8_20, %c0_21] : memref<46x64xf32, #tpu.memory_space<vmem>>, vector<30x64xf32>
    tpu.vector_store %arg11[%c8_20, %c0_21], %25 {strides = array<i32>} : memref<46x64xf32, #tpu.memory_space<vmem>>, vector<30x64xf32>,
    %c7_22 = arith.constant 7 : index
    %c0_23 = arith.constant 0 : index
    %27 = vector.load %arg11[%c7_22, %c0_23] : memref<46x64xf32, #tpu.memory_space<vmem>>, vector<30x64xf32>
    %28 = arith.truncf %27 : vector<30x64xf32> to vector<30x64xbf16>
    %c9_24 = arith.constant 9 : index
    %c0_25 = arith.constant 0 : index
    %29 = vector.load %arg11[%c9_24, %c0_25] : memref<46x64xf32, #tpu.memory_space<vmem>>, vector<30x64xf32>
    %30 = arith.truncf %29 : vector<30x64xf32> to vector<30x64xbf16>
    %31 = arith.truncf %25 : vector<30x64xf32> to vector<30x64xbf16>
    %c0_26 = arith.constant 0 : index
    %c0_27 = arith.constant 0 : index
    %c0_28 = arith.constant 0 : index
    %32 = vector.load %arg4[%c0_26, %c0_27, %c0_28] : memref<3x64x64xbf16, #tpu.memory_space<vmem>>, vector<1x64x64xbf16>
    %33 = vector.shape_cast %32 : vector<1x64x64xbf16> to vector<64x64xbf16>
    %cst_29 = arith.constant dense<0.000000e+00> : vector<30x64xf32>
    %34 = tpu.matmul %28, %33, %cst_29 {dimension_numbers = #tpu.dot_dimension_numbers<[1], [0], [0], [1], [0, 0, 1, 1], [], []>} : vector<30x64xbf16>, vector<64x64xbf16>, vector<30x64xf32> -> vector<30x64xf32>
    %c1_30 = arith.constant 1 : index
    %c0_31 = arith.constant 0 : index
    %c0_32 = arith.constant 0 : index
    %35 = vector.load %arg4[%c1_30, %c0_31, %c0_32] : memref<3x64x64xbf16, #tpu.memory_space<vmem>>, vector<1x64x64xbf16>
    %36 = vector.shape_cast %35 : vector<1x64x64xbf16> to vector<64x64xbf16>
    %cst_33 = arith.constant dense<0.000000e+00> : vector<30x64xf32>
    %37 = tpu.matmul %31, %36, %cst_33 {dimension_numbers = #tpu.dot_dimension_numbers<[1], [0], [0], [1], [0, 0, 1, 1], [], []>} : vector<30x64xbf16>, vector<64x64xbf16>, vector<30x64xf32> -> vector<30x64xf32>
    %38 = arith.addf %34, %37 : vector<30x64xf32>
    %c2_34 = arith.constant 2 : index
    %c0_35 = arith.constant 0 : index
    %c0_36 = arith.constant 0 : index
    %39 = vector.load %arg4[%c2_34, %c0_35, %c0_36] : memref<3x64x64xbf16, #tpu.memory_space<vmem>>, vector<1x64x64xbf16>
    %40 = vector.shape_cast %39 : vector<1x64x64xbf16> to vector<64x64xbf16>
    %cst_37 = arith.constant dense<0.000000e+00> : vector<30x64xf32>
    %41 = tpu.matmul %30, %40, %cst_37 {dimension_numbers = #tpu.dot_dimension_numbers<[1], [0], [0], [1], [0, 0, 1, 1], [], []>} : vector<30x64xbf16>, vector<64x64xbf16>, vector<30x64xf32> -> vector<30x64xf32>
    %42 = arith.addf %38, %41 : vector<30x64xf32>
    %c0_38 = arith.constant 0 : index
    %c0_39 = arith.constant 0 : index
    %43 = vector.load %arg5[%c0_38, %c0_39] : memref<1x64xf32, #tpu.memory_space<vmem>>, vector<1x64xf32>
    %44 = vector.broadcast %43 : vector<1x64xf32> to vector<30x64xf32>
    %45 = arith.addf %42, %44 : vector<30x64xf32>
    %cst_40 = arith.constant 0.000000e+00 : f32
    %46 = vector.broadcast %cst_40 : f32 to vector<30x64xf32>
    %47 = arith.maximumf %45, %46 : vector<30x64xf32>
    %c8_41 = arith.constant 8 : index
    %c0_42 = arith.constant 0 : index
    %48 = vector.load %arg11[%c8_41, %c0_42] : memref<46x64xf32, #tpu.memory_space<vmem>>, vector<30x64xf32>
    tpu.vector_store %arg11[%c8_41, %c0_42], %47 {strides = array<i32>} : memref<46x64xf32, #tpu.memory_space<vmem>>, vector<30x64xf32>,
    %c7_43 = arith.constant 7 : index
    %c0_44 = arith.constant 0 : index
    %49 = vector.load %arg11[%c7_43, %c0_44] : memref<46x64xf32, #tpu.memory_space<vmem>>, vector<30x64xf32>
    %50 = arith.truncf %49 : vector<30x64xf32> to vector<30x64xbf16>
    %c9_45 = arith.constant 9 : index
    %c0_46 = arith.constant 0 : index
    %51 = vector.load %arg11[%c9_45, %c0_46] : memref<46x64xf32, #tpu.memory_space<vmem>>, vector<30x64xf32>
    %52 = arith.truncf %51 : vector<30x64xf32> to vector<30x64xbf16>
    %53 = arith.truncf %47 : vector<30x64xf32> to vector<30x64xbf16>
    %c0_47 = arith.constant 0 : index
    %c0_48 = arith.constant 0 : index
    %c0_49 = arith.constant 0 : index
    %54 = vector.load %arg6[%c0_47, %c0_48, %c0_49] : memref<3x64x64xbf16, #tpu.memory_space<vmem>>, vector<1x64x64xbf16>
    %55 = vector.shape_cast %54 : vector<1x64x64xbf16> to vector<64x64xbf16>
    %cst_50 = arith.constant dense<0.000000e+00> : vector<30x64xf32>
    %56 = tpu.matmul %50, %55, %cst_50 {dimension_numbers = #tpu.dot_dimension_numbers<[1], [0], [0], [1], [0, 0, 1, 1], [], []>} : vector<30x64xbf16>, vector<64x64xbf16>, vector<30x64xf32> -> vector<30x64xf32>
    %c1_51 = arith.constant 1 : index
    %c0_52 = arith.constant 0 : index
    %c0_53 = arith.constant 0 : index
    %57 = vector.load %arg6[%c1_51, %c0_52, %c0_53] : memref<3x64x64xbf16, #tpu.memory_space<vmem>>, vector<1x64x64xbf16>
    %58 = vector.shape_cast %57 : vector<1x64x64xbf16> to vector<64x64xbf16>
    %cst_54 = arith.constant dense<0.000000e+00> : vector<30x64xf32>
    %59 = tpu.matmul %53, %58, %cst_54 {dimension_numbers = #tpu.dot_dimension_numbers<[1], [0], [0], [1], [0, 0, 1, 1], [], []>} : vector<30x64xbf16>, vector<64x64xbf16>, vector<30x64xf32> -> vector<30x64xf32>
    %60 = arith.addf %56, %59 : vector<30x64xf32>
    %c2_55 = arith.constant 2 : index
    %c0_56 = arith.constant 0 : index
    %c0_57 = arith.constant 0 : index
    %61 = vector.load %arg6[%c2_55, %c0_56, %c0_57] : memref<3x64x64xbf16, #tpu.memory_space<vmem>>, vector<1x64x64xbf16>
    %62 = vector.shape_cast %61 : vector<1x64x64xbf16> to vector<64x64xbf16>
    %cst_58 = arith.constant dense<0.000000e+00> : vector<30x64xf32>
    %63 = tpu.matmul %52, %62, %cst_58 {dimension_numbers = #tpu.dot_dimension_numbers<[1], [0], [0], [1], [0, 0, 1, 1], [], []>} : vector<30x64xbf16>, vector<64x64xbf16>, vector<30x64xf32> -> vector<30x64xf32>
    %64 = arith.addf %60, %63 : vector<30x64xf32>
    %c0_59 = arith.constant 0 : index
    %c0_60 = arith.constant 0 : index
    %65 = vector.load %arg7[%c0_59, %c0_60] : memref<1x64xf32, #tpu.memory_space<vmem>>, vector<1x64xf32>
    %66 = vector.broadcast %65 : vector<1x64xf32> to vector<30x64xf32>
    %67 = arith.addf %64, %66 : vector<30x64xf32>
    %cst_61 = arith.constant 0.000000e+00 : f32
    %68 = vector.broadcast %cst_61 : f32 to vector<30x64xf32>
    %69 = arith.maximumf %67, %68 : vector<30x64xf32>
    %c8_62 = arith.constant 8 : index
    %c0_63 = arith.constant 0 : index
    %70 = vector.load %arg11[%c8_62, %c0_63] : memref<46x64xf32, #tpu.memory_space<vmem>>, vector<30x64xf32>
    tpu.vector_store %arg11[%c8_62, %c0_63], %69 {strides = array<i32>} : memref<46x64xf32, #tpu.memory_space<vmem>>, vector<30x64xf32>,
    %c7_64 = arith.constant 7 : index
    %c0_65 = arith.constant 0 : index
    %71 = vector.load %arg11[%c7_64, %c0_65] : memref<46x64xf32, #tpu.memory_space<vmem>>, vector<30x64xf32>
    %72 = arith.truncf %71 : vector<30x64xf32> to vector<30x64xbf16>
    %c9_66 = arith.constant 9 : index
    %c0_67 = arith.constant 0 : index
    %73 = vector.load %arg11[%c9_66, %c0_67] : memref<46x64xf32, #tpu.memory_space<vmem>>, vector<30x64xf32>
    %74 = arith.truncf %73 : vector<30x64xf32> to vector<30x64xbf16>
    %75 = arith.truncf %69 : vector<30x64xf32> to vector<30x64xbf16>
    %c0_68 = arith.constant 0 : index
    %c0_69 = arith.constant 0 : index
    %c0_70 = arith.constant 0 : index
    %76 = vector.load %arg8[%c0_68, %c0_69, %c0_70] : memref<3x64x64xbf16, #tpu.memory_space<vmem>>, vector<1x64x64xbf16>
    %77 = vector.shape_cast %76 : vector<1x64x64xbf16> to vector<64x64xbf16>
    %cst_71 = arith.constant dense<0.000000e+00> : vector<30x64xf32>
    %78 = tpu.matmul %72, %77, %cst_71 {dimension_numbers = #tpu.dot_dimension_numbers<[1], [0], [0], [1], [0, 0, 1, 1], [], []>} : vector<30x64xbf16>, vector<64x64xbf16>, vector<30x64xf32> -> vector<30x64xf32>
    %c1_72 = arith.constant 1 : index
    %c0_73 = arith.constant 0 : index
    %c0_74 = arith.constant 0 : index
    %79 = vector.load %arg8[%c1_72, %c0_73, %c0_74] : memref<3x64x64xbf16, #tpu.memory_space<vmem>>, vector<1x64x64xbf16>
    %80 = vector.shape_cast %79 : vector<1x64x64xbf16> to vector<64x64xbf16>
    %cst_75 = arith.constant dense<0.000000e+00> : vector<30x64xf32>
    %81 = tpu.matmul %75, %80, %cst_75 {dimension_numbers = #tpu.dot_dimension_numbers<[1], [0], [0], [1], [0, 0, 1, 1], [], []>} : vector<30x64xbf16>, vector<64x64xbf16>, vector<30x64xf32> -> vector<30x64xf32>
    %82 = arith.addf %78, %81 : vector<30x64xf32>
    %c2_76 = arith.constant 2 : index
    %c0_77 = arith.constant 0 : index
    %c0_78 = arith.constant 0 : index
    %83 = vector.load %arg8[%c2_76, %c0_77, %c0_78] : memref<3x64x64xbf16, #tpu.memory_space<vmem>>, vector<1x64x64xbf16>
    %84 = vector.shape_cast %83 : vector<1x64x64xbf16> to vector<64x64xbf16>
    %cst_79 = arith.constant dense<0.000000e+00> : vector<30x64xf32>
    %85 = tpu.matmul %74, %84, %cst_79 {dimension_numbers = #tpu.dot_dimension_numbers<[1], [0], [0], [1], [0, 0, 1, 1], [], []>} : vector<30x64xbf16>, vector<64x64xbf16>, vector<30x64xf32> -> vector<30x64xf32>
    %86 = arith.addf %82, %85 : vector<30x64xf32>
    %c0_80 = arith.constant 0 : index
    %c0_81 = arith.constant 0 : index
    %87 = vector.load %arg9[%c0_80, %c0_81] : memref<1x64xf32, #tpu.memory_space<vmem>>, vector<1x64xf32>
    %88 = vector.broadcast %87 : vector<1x64xf32> to vector<30x64xf32>
    %89 = arith.addf %86, %88 : vector<30x64xf32>
    %cst_82 = arith.constant 0.000000e+00 : f32
    %90 = vector.broadcast %cst_82 : f32 to vector<30x64xf32>
    %91 = arith.maximumf %89, %90 : vector<30x64xf32>
    %92 = arith.truncf %91 : vector<30x64xf32> to vector<30x64xbf16>
    %c0_83 = arith.constant 0 : index
    %c0_84 = arith.constant 0 : index
    %c0_85 = arith.constant 0 : index
    %93 = vector.load %arg10[%c0_83, %c0_84, %c0_85] : memref<1x30x64xbf16, #tpu.memory_space<vmem>>, vector<1x30x64xbf16>
    %94 = vector.shape_cast %93 : vector<1x30x64xbf16> to vector<30x64xbf16>
    %95 = vector.shape_cast %92 : vector<30x64xbf16> to vector<1x30x64xbf16>
    tpu.vector_store %arg10[%c0_83, %c0_84, %c0_85], %95 {strides = array<i32>} : memref<1x30x64xbf16, #tpu.memory_space<vmem>>, vector<1x30x64xbf16>,
    return
  }
  func.func @transform_0(%arg0: i32) -> (i32, i32, i32) {
    %c0_i32 = arith.constant 0 : i32
    %c0_i32_0 = arith.constant 0 : i32
    %c0_i32_1 = arith.constant 0 : i32
    return %arg0, %c0_i32, %c0_i32_0 : i32, i32, i32
  }
  func.func @transform_1(%arg0: i32) -> (i32, i32, i32) {
    %c0_i32 = arith.constant 0 : i32
    %c0_i32_0 = arith.constant 0 : i32
    %c0_i32_1 = arith.constant 0 : i32
    %c0_i32_2 = arith.constant 0 : i32
    return %c0_i32, %c0_i32_0, %c0_i32_1 : i32, i32, i32
  }
  func.func @transform_2(%arg0: i32) -> (i32, i32) {
    %c0_i32 = arith.constant 0 : i32
    %c0_i32_0 = arith.constant 0 : i32
    %c0_i32_1 = arith.constant 0 : i32
    return %c0_i32, %c0_i32_0 : i32, i32
  }
  func.func @transform_3(%arg0: i32) -> (i32, i32, i32) {
    %c0_i32 = arith.constant 0 : i32
    %c0_i32_0 = arith.constant 0 : i32
    %c0_i32_1 = arith.constant 0 : i32
    %c0_i32_2 = arith.constant 0 : i32
    return %c0_i32, %c0_i32_0, %c0_i32_1 : i32, i32, i32
  }
  func.func @transform_4(%arg0: i32) -> (i32, i32) {
    %c0_i32 = arith.constant 0 : i32
    %c0_i32_0 = arith.constant 0 : i32
    %c0_i32_1 = arith.constant 0 : i32
    return %c0_i32, %c0_i32_0 : i32, i32
  }
  func.func @transform_5(%arg0: i32) -> (i32, i32, i32) {
    %c0_i32 = arith.constant 0 : i32
    %c0_i32_0 = arith.constant 0 : i32
    %c0_i32_1 = arith.constant 0 : i32
    %c0_i32_2 = arith.constant 0 : i32
    return %c0_i32, %c0_i32_0, %c0_i32_1 : i32, i32, i32
  }
  func.func @transform_6(%arg0: i32) -> (i32, i32) {
    %c0_i32 = arith.constant 0 : i32
    %c0_i32_0 = arith.constant 0 : i32
    %c0_i32_1 = arith.constant 0 : i32
    return %c0_i32, %c0_i32_0 : i32, i32
  }
  func.func @transform_7(%arg0: i32) -> (i32, i32, i32) {
    %c0_i32 = arith.constant 0 : i32
    %c0_i32_0 = arith.constant 0 : i32
    %c0_i32_1 = arith.constant 0 : i32
    %c0_i32_2 = arith.constant 0 : i32
    return %c0_i32, %c0_i32_0, %c0_i32_1 : i32, i32, i32
  }
  func.func @transform_8(%arg0: i32) -> (i32, i32) {
    %c0_i32 = arith.constant 0 : i32
    %c0_i32_0 = arith.constant 0 : i32
    %c0_i32_1 = arith.constant 0 : i32
    return %c0_i32, %c0_i32_0 : i32, i32
  }
  func.func @transform_9(%arg0: i32) -> (i32, i32, i32) {
    %c0_i32 = arith.constant 0 : i32
    %c0_i32_0 = arith.constant 0 : i32
    %c0_i32_1 = arith.constant 0 : i32
    return %arg0, %c0_i32, %c0_i32_0 : i32, i32, i32
  }
}

module attributes {stable_mosaic.version = 11 : i64} {
  func.func @_stage_kernel(%arg0: i32, %arg1: memref<1x7x64xbf16, #tpu.memory_space<vmem>>, %arg2: memref<3x64x128xbf16, #tpu.memory_space<vmem>>, %arg3: memref<1x128xf32, #tpu.memory_space<vmem>>, %arg4: memref<3x128x128xbf16, #tpu.memory_space<vmem>>, %arg5: memref<1x128xf32, #tpu.memory_space<vmem>>, %arg6: memref<3x128x128xbf16, #tpu.memory_space<vmem>>, %arg7: memref<1x128xf32, #tpu.memory_space<vmem>>, %arg8: memref<3x128x128xbf16, #tpu.memory_space<vmem>>, %arg9: memref<1x128xf32, #tpu.memory_space<vmem>>, %arg10: memref<1x7x128xbf16, #tpu.memory_space<vmem>>, %arg11: memref<23x128xf32, #tpu.memory_space<vmem>>) attributes {dimension_semantics = [#tpu.dimension_semantics<parallel>], iteration_bounds = array<i64: 2>, scalar_prefetch = 0 : i64, scratch_operands = 1 : i64, tpu.core_type = #tpu.core_type<tc>, window_params = [{transform_indices = @transform_0, window_bounds = array<i64: 1, 7, 64>}, {pipeline_mode = #tpu.pipeline_mode<synchronous>, transform_indices = @transform_1, window_bounds = array<i64: 3, 64, 128>}, {pipeline_mode = #tpu.pipeline_mode<synchronous>, transform_indices = @transform_2, window_bounds = array<i64: 1, 128>}, {pipeline_mode = #tpu.pipeline_mode<synchronous>, transform_indices = @transform_3, window_bounds = array<i64: 3, 128, 128>}, {pipeline_mode = #tpu.pipeline_mode<synchronous>, transform_indices = @transform_4, window_bounds = array<i64: 1, 128>}, {pipeline_mode = #tpu.pipeline_mode<synchronous>, transform_indices = @transform_5, window_bounds = array<i64: 3, 128, 128>}, {pipeline_mode = #tpu.pipeline_mode<synchronous>, transform_indices = @transform_6, window_bounds = array<i64: 1, 128>}, {pipeline_mode = #tpu.pipeline_mode<synchronous>, transform_indices = @transform_7, window_bounds = array<i64: 3, 128, 128>}, {pipeline_mode = #tpu.pipeline_mode<synchronous>, transform_indices = @transform_8, window_bounds = array<i64: 1, 128>}, {transform_indices = @transform_9, window_bounds = array<i64: 1, 7, 128>}]} {
    %cst = arith.constant 0.000000e+00 : f32
    %0 = vector.broadcast %cst : f32 to vector<23x128xf32>
    %c0 = arith.constant 0 : index
    %c0_0 = arith.constant 0 : index
    %1 = vector.load %arg11[%c0, %c0_0] : memref<23x128xf32, #tpu.memory_space<vmem>>, vector<23x128xf32>
    tpu.vector_store %arg11[%c0, %c0_0], %0 {strides = array<i32>} : memref<23x128xf32, #tpu.memory_space<vmem>>, vector<23x128xf32>,
    %c0_1 = arith.constant 0 : index
    %c0_2 = arith.constant 0 : index
    %c0_3 = arith.constant 0 : index
    %2 = vector.load %arg1[%c0_1, %c0_2, %c0_3] : memref<1x7x64xbf16, #tpu.memory_space<vmem>>, vector<1x7x64xbf16>
    %3 = vector.shape_cast %2 : vector<1x7x64xbf16> to vector<7x64xbf16>
    %4 = arith.extf %3 : vector<7x64xbf16> to vector<7x64xf32>
    %c8 = arith.constant 8 : index
    %c0_4 = arith.constant 0 : index
    %5 = vector.load %arg11[%c8, %c0_4] : memref<23x128xf32, #tpu.memory_space<vmem>>, vector<7x64xf32>
    tpu.vector_store %arg11[%c8, %c0_4], %4 {strides = array<i32>} : memref<23x128xf32, #tpu.memory_space<vmem>>, vector<7x64xf32>,
    %c7 = arith.constant 7 : index
    %c0_5 = arith.constant 0 : index
    %6 = vector.load %arg11[%c7, %c0_5] : memref<23x128xf32, #tpu.memory_space<vmem>>, vector<7x64xf32>
    %7 = arith.truncf %6 : vector<7x64xf32> to vector<7x64xbf16>
    %c9 = arith.constant 9 : index
    %c0_6 = arith.constant 0 : index
    %8 = vector.load %arg11[%c9, %c0_6] : memref<23x128xf32, #tpu.memory_space<vmem>>, vector<7x64xf32>
    %9 = arith.truncf %8 : vector<7x64xf32> to vector<7x64xbf16>
    %c0_7 = arith.constant 0 : index
    %c0_8 = arith.constant 0 : index
    %c0_9 = arith.constant 0 : index
    %10 = vector.load %arg2[%c0_7, %c0_8, %c0_9] : memref<3x64x128xbf16, #tpu.memory_space<vmem>>, vector<1x64x128xbf16>
    %11 = vector.shape_cast %10 : vector<1x64x128xbf16> to vector<64x128xbf16>
    %cst_10 = arith.constant dense<0.000000e+00> : vector<7x128xf32>
    %12 = tpu.matmul %7, %11, %cst_10 {dimension_numbers = #tpu.dot_dimension_numbers<[1], [0], [0], [1], [0, 0, 1, 1], [], []>} : vector<7x64xbf16>, vector<64x128xbf16>, vector<7x128xf32> -> vector<7x128xf32>
    %c1 = arith.constant 1 : index
    %c0_11 = arith.constant 0 : index
    %c0_12 = arith.constant 0 : index
    %13 = vector.load %arg2[%c1, %c0_11, %c0_12] : memref<3x64x128xbf16, #tpu.memory_space<vmem>>, vector<1x64x128xbf16>
    %14 = vector.shape_cast %13 : vector<1x64x128xbf16> to vector<64x128xbf16>
    %cst_13 = arith.constant dense<0.000000e+00> : vector<7x128xf32>
    %15 = tpu.matmul %3, %14, %cst_13 {dimension_numbers = #tpu.dot_dimension_numbers<[1], [0], [0], [1], [0, 0, 1, 1], [], []>} : vector<7x64xbf16>, vector<64x128xbf16>, vector<7x128xf32> -> vector<7x128xf32>
    %16 = arith.addf %12, %15 : vector<7x128xf32>
    %c2 = arith.constant 2 : index
    %c0_14 = arith.constant 0 : index
    %c0_15 = arith.constant 0 : index
    %17 = vector.load %arg2[%c2, %c0_14, %c0_15] : memref<3x64x128xbf16, #tpu.memory_space<vmem>>, vector<1x64x128xbf16>
    %18 = vector.shape_cast %17 : vector<1x64x128xbf16> to vector<64x128xbf16>
    %cst_16 = arith.constant dense<0.000000e+00> : vector<7x128xf32>
    %19 = tpu.matmul %9, %18, %cst_16 {dimension_numbers = #tpu.dot_dimension_numbers<[1], [0], [0], [1], [0, 0, 1, 1], [], []>} : vector<7x64xbf16>, vector<64x128xbf16>, vector<7x128xf32> -> vector<7x128xf32>
    %20 = arith.addf %16, %19 : vector<7x128xf32>
    %c0_17 = arith.constant 0 : index
    %c0_18 = arith.constant 0 : index
    %21 = vector.load %arg3[%c0_17, %c0_18] : memref<1x128xf32, #tpu.memory_space<vmem>>, vector<1x128xf32>
    %22 = vector.broadcast %21 : vector<1x128xf32> to vector<7x128xf32>
    %23 = arith.addf %20, %22 : vector<7x128xf32>
    %cst_19 = arith.constant 0.000000e+00 : f32
    %24 = vector.broadcast %cst_19 : f32 to vector<7x128xf32>
    %25 = arith.maximumf %23, %24 : vector<7x128xf32>
    %c8_20 = arith.constant 8 : index
    %c0_21 = arith.constant 0 : index
    %26 = vector.load %arg11[%c8_20, %c0_21] : memref<23x128xf32, #tpu.memory_space<vmem>>, vector<7x128xf32>
    tpu.vector_store %arg11[%c8_20, %c0_21], %25 {strides = array<i32>} : memref<23x128xf32, #tpu.memory_space<vmem>>, vector<7x128xf32>,
    %c7_22 = arith.constant 7 : index
    %c0_23 = arith.constant 0 : index
    %27 = vector.load %arg11[%c7_22, %c0_23] : memref<23x128xf32, #tpu.memory_space<vmem>>, vector<7x128xf32>
    %28 = arith.truncf %27 : vector<7x128xf32> to vector<7x128xbf16>
    %c9_24 = arith.constant 9 : index
    %c0_25 = arith.constant 0 : index
    %29 = vector.load %arg11[%c9_24, %c0_25] : memref<23x128xf32, #tpu.memory_space<vmem>>, vector<7x128xf32>
    %30 = arith.truncf %29 : vector<7x128xf32> to vector<7x128xbf16>
    %31 = arith.truncf %25 : vector<7x128xf32> to vector<7x128xbf16>
    %c0_26 = arith.constant 0 : index
    %c0_27 = arith.constant 0 : index
    %c0_28 = arith.constant 0 : index
    %32 = vector.load %arg4[%c0_26, %c0_27, %c0_28] : memref<3x128x128xbf16, #tpu.memory_space<vmem>>, vector<1x128x128xbf16>
    %33 = vector.shape_cast %32 : vector<1x128x128xbf16> to vector<128x128xbf16>
    %cst_29 = arith.constant dense<0.000000e+00> : vector<7x128xf32>
    %34 = tpu.matmul %28, %33, %cst_29 {dimension_numbers = #tpu.dot_dimension_numbers<[1], [0], [0], [1], [0, 0, 1, 1], [], []>} : vector<7x128xbf16>, vector<128x128xbf16>, vector<7x128xf32> -> vector<7x128xf32>
    %c1_30 = arith.constant 1 : index
    %c0_31 = arith.constant 0 : index
    %c0_32 = arith.constant 0 : index
    %35 = vector.load %arg4[%c1_30, %c0_31, %c0_32] : memref<3x128x128xbf16, #tpu.memory_space<vmem>>, vector<1x128x128xbf16>
    %36 = vector.shape_cast %35 : vector<1x128x128xbf16> to vector<128x128xbf16>
    %cst_33 = arith.constant dense<0.000000e+00> : vector<7x128xf32>
    %37 = tpu.matmul %31, %36, %cst_33 {dimension_numbers = #tpu.dot_dimension_numbers<[1], [0], [0], [1], [0, 0, 1, 1], [], []>} : vector<7x128xbf16>, vector<128x128xbf16>, vector<7x128xf32> -> vector<7x128xf32>
    %38 = arith.addf %34, %37 : vector<7x128xf32>
    %c2_34 = arith.constant 2 : index
    %c0_35 = arith.constant 0 : index
    %c0_36 = arith.constant 0 : index
    %39 = vector.load %arg4[%c2_34, %c0_35, %c0_36] : memref<3x128x128xbf16, #tpu.memory_space<vmem>>, vector<1x128x128xbf16>
    %40 = vector.shape_cast %39 : vector<1x128x128xbf16> to vector<128x128xbf16>
    %cst_37 = arith.constant dense<0.000000e+00> : vector<7x128xf32>
    %41 = tpu.matmul %30, %40, %cst_37 {dimension_numbers = #tpu.dot_dimension_numbers<[1], [0], [0], [1], [0, 0, 1, 1], [], []>} : vector<7x128xbf16>, vector<128x128xbf16>, vector<7x128xf32> -> vector<7x128xf32>
    %42 = arith.addf %38, %41 : vector<7x128xf32>
    %c0_38 = arith.constant 0 : index
    %c0_39 = arith.constant 0 : index
    %43 = vector.load %arg5[%c0_38, %c0_39] : memref<1x128xf32, #tpu.memory_space<vmem>>, vector<1x128xf32>
    %44 = vector.broadcast %43 : vector<1x128xf32> to vector<7x128xf32>
    %45 = arith.addf %42, %44 : vector<7x128xf32>
    %cst_40 = arith.constant 0.000000e+00 : f32
    %46 = vector.broadcast %cst_40 : f32 to vector<7x128xf32>
    %47 = arith.maximumf %45, %46 : vector<7x128xf32>
    %c8_41 = arith.constant 8 : index
    %c0_42 = arith.constant 0 : index
    %48 = vector.load %arg11[%c8_41, %c0_42] : memref<23x128xf32, #tpu.memory_space<vmem>>, vector<7x128xf32>
    tpu.vector_store %arg11[%c8_41, %c0_42], %47 {strides = array<i32>} : memref<23x128xf32, #tpu.memory_space<vmem>>, vector<7x128xf32>,
    %c7_43 = arith.constant 7 : index
    %c0_44 = arith.constant 0 : index
    %49 = vector.load %arg11[%c7_43, %c0_44] : memref<23x128xf32, #tpu.memory_space<vmem>>, vector<7x128xf32>
    %50 = arith.truncf %49 : vector<7x128xf32> to vector<7x128xbf16>
    %c9_45 = arith.constant 9 : index
    %c0_46 = arith.constant 0 : index
    %51 = vector.load %arg11[%c9_45, %c0_46] : memref<23x128xf32, #tpu.memory_space<vmem>>, vector<7x128xf32>
    %52 = arith.truncf %51 : vector<7x128xf32> to vector<7x128xbf16>
    %53 = arith.truncf %47 : vector<7x128xf32> to vector<7x128xbf16>
    %c0_47 = arith.constant 0 : index
    %c0_48 = arith.constant 0 : index
    %c0_49 = arith.constant 0 : index
    %54 = vector.load %arg6[%c0_47, %c0_48, %c0_49] : memref<3x128x128xbf16, #tpu.memory_space<vmem>>, vector<1x128x128xbf16>
    %55 = vector.shape_cast %54 : vector<1x128x128xbf16> to vector<128x128xbf16>
    %cst_50 = arith.constant dense<0.000000e+00> : vector<7x128xf32>
    %56 = tpu.matmul %50, %55, %cst_50 {dimension_numbers = #tpu.dot_dimension_numbers<[1], [0], [0], [1], [0, 0, 1, 1], [], []>} : vector<7x128xbf16>, vector<128x128xbf16>, vector<7x128xf32> -> vector<7x128xf32>
    %c1_51 = arith.constant 1 : index
    %c0_52 = arith.constant 0 : index
    %c0_53 = arith.constant 0 : index
    %57 = vector.load %arg6[%c1_51, %c0_52, %c0_53] : memref<3x128x128xbf16, #tpu.memory_space<vmem>>, vector<1x128x128xbf16>
    %58 = vector.shape_cast %57 : vector<1x128x128xbf16> to vector<128x128xbf16>
    %cst_54 = arith.constant dense<0.000000e+00> : vector<7x128xf32>
    %59 = tpu.matmul %53, %58, %cst_54 {dimension_numbers = #tpu.dot_dimension_numbers<[1], [0], [0], [1], [0, 0, 1, 1], [], []>} : vector<7x128xbf16>, vector<128x128xbf16>, vector<7x128xf32> -> vector<7x128xf32>
    %60 = arith.addf %56, %59 : vector<7x128xf32>
    %c2_55 = arith.constant 2 : index
    %c0_56 = arith.constant 0 : index
    %c0_57 = arith.constant 0 : index
    %61 = vector.load %arg6[%c2_55, %c0_56, %c0_57] : memref<3x128x128xbf16, #tpu.memory_space<vmem>>, vector<1x128x128xbf16>
    %62 = vector.shape_cast %61 : vector<1x128x128xbf16> to vector<128x128xbf16>
    %cst_58 = arith.constant dense<0.000000e+00> : vector<7x128xf32>
    %63 = tpu.matmul %52, %62, %cst_58 {dimension_numbers = #tpu.dot_dimension_numbers<[1], [0], [0], [1], [0, 0, 1, 1], [], []>} : vector<7x128xbf16>, vector<128x128xbf16>, vector<7x128xf32> -> vector<7x128xf32>
    %64 = arith.addf %60, %63 : vector<7x128xf32>
    %c0_59 = arith.constant 0 : index
    %c0_60 = arith.constant 0 : index
    %65 = vector.load %arg7[%c0_59, %c0_60] : memref<1x128xf32, #tpu.memory_space<vmem>>, vector<1x128xf32>
    %66 = vector.broadcast %65 : vector<1x128xf32> to vector<7x128xf32>
    %67 = arith.addf %64, %66 : vector<7x128xf32>
    %cst_61 = arith.constant 0.000000e+00 : f32
    %68 = vector.broadcast %cst_61 : f32 to vector<7x128xf32>
    %69 = arith.maximumf %67, %68 : vector<7x128xf32>
    %c8_62 = arith.constant 8 : index
    %c0_63 = arith.constant 0 : index
    %70 = vector.load %arg11[%c8_62, %c0_63] : memref<23x128xf32, #tpu.memory_space<vmem>>, vector<7x128xf32>
    tpu.vector_store %arg11[%c8_62, %c0_63], %69 {strides = array<i32>} : memref<23x128xf32, #tpu.memory_space<vmem>>, vector<7x128xf32>,
    %c7_64 = arith.constant 7 : index
    %c0_65 = arith.constant 0 : index
    %71 = vector.load %arg11[%c7_64, %c0_65] : memref<23x128xf32, #tpu.memory_space<vmem>>, vector<7x128xf32>
    %72 = arith.truncf %71 : vector<7x128xf32> to vector<7x128xbf16>
    %c9_66 = arith.constant 9 : index
    %c0_67 = arith.constant 0 : index
    %73 = vector.load %arg11[%c9_66, %c0_67] : memref<23x128xf32, #tpu.memory_space<vmem>>, vector<7x128xf32>
    %74 = arith.truncf %73 : vector<7x128xf32> to vector<7x128xbf16>
    %75 = arith.truncf %69 : vector<7x128xf32> to vector<7x128xbf16>
    %c0_68 = arith.constant 0 : index
    %c0_69 = arith.constant 0 : index
    %c0_70 = arith.constant 0 : index
    %76 = vector.load %arg8[%c0_68, %c0_69, %c0_70] : memref<3x128x128xbf16, #tpu.memory_space<vmem>>, vector<1x128x128xbf16>
    %77 = vector.shape_cast %76 : vector<1x128x128xbf16> to vector<128x128xbf16>
    %cst_71 = arith.constant dense<0.000000e+00> : vector<7x128xf32>
    %78 = tpu.matmul %72, %77, %cst_71 {dimension_numbers = #tpu.dot_dimension_numbers<[1], [0], [0], [1], [0, 0, 1, 1], [], []>} : vector<7x128xbf16>, vector<128x128xbf16>, vector<7x128xf32> -> vector<7x128xf32>
    %c1_72 = arith.constant 1 : index
    %c0_73 = arith.constant 0 : index
    %c0_74 = arith.constant 0 : index
    %79 = vector.load %arg8[%c1_72, %c0_73, %c0_74] : memref<3x128x128xbf16, #tpu.memory_space<vmem>>, vector<1x128x128xbf16>
    %80 = vector.shape_cast %79 : vector<1x128x128xbf16> to vector<128x128xbf16>
    %cst_75 = arith.constant dense<0.000000e+00> : vector<7x128xf32>
    %81 = tpu.matmul %75, %80, %cst_75 {dimension_numbers = #tpu.dot_dimension_numbers<[1], [0], [0], [1], [0, 0, 1, 1], [], []>} : vector<7x128xbf16>, vector<128x128xbf16>, vector<7x128xf32> -> vector<7x128xf32>
    %82 = arith.addf %78, %81 : vector<7x128xf32>
    %c2_76 = arith.constant 2 : index
    %c0_77 = arith.constant 0 : index
    %c0_78 = arith.constant 0 : index
    %83 = vector.load %arg8[%c2_76, %c0_77, %c0_78] : memref<3x128x128xbf16, #tpu.memory_space<vmem>>, vector<1x128x128xbf16>
    %84 = vector.shape_cast %83 : vector<1x128x128xbf16> to vector<128x128xbf16>
    %cst_79 = arith.constant dense<0.000000e+00> : vector<7x128xf32>
    %85 = tpu.matmul %74, %84, %cst_79 {dimension_numbers = #tpu.dot_dimension_numbers<[1], [0], [0], [1], [0, 0, 1, 1], [], []>} : vector<7x128xbf16>, vector<128x128xbf16>, vector<7x128xf32> -> vector<7x128xf32>
    %86 = arith.addf %82, %85 : vector<7x128xf32>
    %c0_80 = arith.constant 0 : index
    %c0_81 = arith.constant 0 : index
    %87 = vector.load %arg9[%c0_80, %c0_81] : memref<1x128xf32, #tpu.memory_space<vmem>>, vector<1x128xf32>
    %88 = vector.broadcast %87 : vector<1x128xf32> to vector<7x128xf32>
    %89 = arith.addf %86, %88 : vector<7x128xf32>
    %cst_82 = arith.constant 0.000000e+00 : f32
    %90 = vector.broadcast %cst_82 : f32 to vector<7x128xf32>
    %91 = arith.maximumf %89, %90 : vector<7x128xf32>
    %92 = arith.truncf %91 : vector<7x128xf32> to vector<7x128xbf16>
    %c0_83 = arith.constant 0 : index
    %c0_84 = arith.constant 0 : index
    %c0_85 = arith.constant 0 : index
    %93 = vector.load %arg10[%c0_83, %c0_84, %c0_85] : memref<1x7x128xbf16, #tpu.memory_space<vmem>>, vector<1x7x128xbf16>
    %94 = vector.shape_cast %93 : vector<1x7x128xbf16> to vector<7x128xbf16>
    %95 = vector.shape_cast %92 : vector<7x128xbf16> to vector<1x7x128xbf16>
    tpu.vector_store %arg10[%c0_83, %c0_84, %c0_85], %95 {strides = array<i32>} : memref<1x7x128xbf16, #tpu.memory_space<vmem>>, vector<1x7x128xbf16>,
    return
  }
  func.func @transform_0(%arg0: i32) -> (i32, i32, i32) {
    %c0_i32 = arith.constant 0 : i32
    %c0_i32_0 = arith.constant 0 : i32
    %c0_i32_1 = arith.constant 0 : i32
    return %arg0, %c0_i32, %c0_i32_0 : i32, i32, i32
  }
  func.func @transform_1(%arg0: i32) -> (i32, i32, i32) {
    %c0_i32 = arith.constant 0 : i32
    %c0_i32_0 = arith.constant 0 : i32
    %c0_i32_1 = arith.constant 0 : i32
    %c0_i32_2 = arith.constant 0 : i32
    return %c0_i32, %c0_i32_0, %c0_i32_1 : i32, i32, i32
  }
  func.func @transform_2(%arg0: i32) -> (i32, i32) {
    %c0_i32 = arith.constant 0 : i32
    %c0_i32_0 = arith.constant 0 : i32
    %c0_i32_1 = arith.constant 0 : i32
    return %c0_i32, %c0_i32_0 : i32, i32
  }
  func.func @transform_3(%arg0: i32) -> (i32, i32, i32) {
    %c0_i32 = arith.constant 0 : i32
    %c0_i32_0 = arith.constant 0 : i32
    %c0_i32_1 = arith.constant 0 : i32
    %c0_i32_2 = arith.constant 0 : i32
    return %c0_i32, %c0_i32_0, %c0_i32_1 : i32, i32, i32
  }
  func.func @transform_4(%arg0: i32) -> (i32, i32) {
    %c0_i32 = arith.constant 0 : i32
    %c0_i32_0 = arith.constant 0 : i32
    %c0_i32_1 = arith.constant 0 : i32
    return %c0_i32, %c0_i32_0 : i32, i32
  }
  func.func @transform_5(%arg0: i32) -> (i32, i32, i32) {
    %c0_i32 = arith.constant 0 : i32
    %c0_i32_0 = arith.constant 0 : i32
    %c0_i32_1 = arith.constant 0 : i32
    %c0_i32_2 = arith.constant 0 : i32
    return %c0_i32, %c0_i32_0, %c0_i32_1 : i32, i32, i32
  }
  func.func @transform_6(%arg0: i32) -> (i32, i32) {
    %c0_i32 = arith.constant 0 : i32
    %c0_i32_0 = arith.constant 0 : i32
    %c0_i32_1 = arith.constant 0 : i32
    return %c0_i32, %c0_i32_0 : i32, i32
  }
  func.func @transform_7(%arg0: i32) -> (i32, i32, i32) {
    %c0_i32 = arith.constant 0 : i32
    %c0_i32_0 = arith.constant 0 : i32
    %c0_i32_1 = arith.constant 0 : i32
    %c0_i32_2 = arith.constant 0 : i32
    return %c0_i32, %c0_i32_0, %c0_i32_1 : i32, i32, i32
  }
  func.func @transform_8(%arg0: i32) -> (i32, i32) {
    %c0_i32 = arith.constant 0 : i32
    %c0_i32_0 = arith.constant 0 : i32
    %c0_i32_1 = arith.constant 0 : i32
    return %c0_i32, %c0_i32_0 : i32, i32
  }
  func.func @transform_9(%arg0: i32) -> (i32, i32, i32) {
    %c0_i32 = arith.constant 0 : i32
    %c0_i32_0 = arith.constant 0 : i32
    %c0_i32_1 = arith.constant 0 : i32
    return %arg0, %c0_i32, %c0_i32_0 : i32, i32, i32
  }
}

module attributes {stable_mosaic.version = 11 : i64} {
  func.func @_final_stage_kernel(%arg0: i32, %arg1: memref<1x1x128xbf16, #tpu.memory_space<vmem>>, %arg2: memref<3x128x256xbf16, #tpu.memory_space<vmem>>, %arg3: memref<1x256xf32, #tpu.memory_space<vmem>>, %arg4: memref<3x256x256xbf16, #tpu.memory_space<vmem>>, %arg5: memref<1x256xf32, #tpu.memory_space<vmem>>, %arg6: memref<3x256x256xbf16, #tpu.memory_space<vmem>>, %arg7: memref<1x256xf32, #tpu.memory_space<vmem>>, %arg8: memref<3x256x256xbf16, #tpu.memory_space<vmem>>, %arg9: memref<1x256xf32, #tpu.memory_space<vmem>>, %arg10: memref<256x2xf32, #tpu.memory_space<vmem>>, %arg11: memref<1x2xf32, #tpu.memory_space<vmem>>, %arg12: memref<1x1x2xf32, #tpu.memory_space<vmem>>, %arg13: memref<17x256xf32, #tpu.memory_space<vmem>>) attributes {dimension_semantics = [#tpu.dimension_semantics<parallel>], iteration_bounds = array<i64: 2>, scalar_prefetch = 0 : i64, scratch_operands = 1 : i64, tpu.core_type = #tpu.core_type<tc>, window_params = [{transform_indices = @transform_0, window_bounds = array<i64: 1, 1, 128>}, {pipeline_mode = #tpu.pipeline_mode<synchronous>, transform_indices = @transform_1, window_bounds = array<i64: 3, 128, 256>}, {pipeline_mode = #tpu.pipeline_mode<synchronous>, transform_indices = @transform_2, window_bounds = array<i64: 1, 256>}, {pipeline_mode = #tpu.pipeline_mode<synchronous>, transform_indices = @transform_3, window_bounds = array<i64: 3, 256, 256>}, {pipeline_mode = #tpu.pipeline_mode<synchronous>, transform_indices = @transform_4, window_bounds = array<i64: 1, 256>}, {pipeline_mode = #tpu.pipeline_mode<synchronous>, transform_indices = @transform_5, window_bounds = array<i64: 3, 256, 256>}, {pipeline_mode = #tpu.pipeline_mode<synchronous>, transform_indices = @transform_6, window_bounds = array<i64: 1, 256>}, {pipeline_mode = #tpu.pipeline_mode<synchronous>, transform_indices = @transform_7, window_bounds = array<i64: 3, 256, 256>}, {pipeline_mode = #tpu.pipeline_mode<synchronous>, transform_indices = @transform_8, window_bounds = array<i64: 1, 256>}, {pipeline_mode = #tpu.pipeline_mode<synchronous>, transform_indices = @transform_9, window_bounds = array<i64: 256, 2>}, {pipeline_mode = #tpu.pipeline_mode<synchronous>, transform_indices = @transform_10, window_bounds = array<i64: 1, 2>}, {transform_indices = @transform_11, window_bounds = array<i64: 1, 1, 2>}]} {
    %cst = arith.constant 0.000000e+00 : f32
    %0 = vector.broadcast %cst : f32 to vector<17x256xf32>
    %c0 = arith.constant 0 : index
    %c0_0 = arith.constant 0 : index
    %1 = vector.load %arg13[%c0, %c0_0] : memref<17x256xf32, #tpu.memory_space<vmem>>, vector<17x256xf32>
    tpu.vector_store %arg13[%c0, %c0_0], %0 {strides = array<i32>} : memref<17x256xf32, #tpu.memory_space<vmem>>, vector<17x256xf32>,
    %c0_1 = arith.constant 0 : index
    %c0_2 = arith.constant 0 : index
    %c0_3 = arith.constant 0 : index
    %2 = vector.load %arg1[%c0_1, %c0_2, %c0_3] : memref<1x1x128xbf16, #tpu.memory_space<vmem>>, vector<1x1x128xbf16>
    %3 = vector.shape_cast %2 : vector<1x1x128xbf16> to vector<1x128xbf16>
    %4 = arith.extf %3 : vector<1x128xbf16> to vector<1x128xf32>
    %c8 = arith.constant 8 : index
    %c0_4 = arith.constant 0 : index
    %5 = vector.load %arg13[%c8, %c0_4] : memref<17x256xf32, #tpu.memory_space<vmem>>, vector<1x128xf32>
    tpu.vector_store %arg13[%c8, %c0_4], %4 {strides = array<i32>} : memref<17x256xf32, #tpu.memory_space<vmem>>, vector<1x128xf32>,
    %c7 = arith.constant 7 : index
    %c0_5 = arith.constant 0 : index
    %6 = vector.load %arg13[%c7, %c0_5] : memref<17x256xf32, #tpu.memory_space<vmem>>, vector<1x128xf32>
    %7 = arith.truncf %6 : vector<1x128xf32> to vector<1x128xbf16>
    %c9 = arith.constant 9 : index
    %c0_6 = arith.constant 0 : index
    %8 = vector.load %arg13[%c9, %c0_6] : memref<17x256xf32, #tpu.memory_space<vmem>>, vector<1x128xf32>
    %9 = arith.truncf %8 : vector<1x128xf32> to vector<1x128xbf16>
    %c0_7 = arith.constant 0 : index
    %c0_8 = arith.constant 0 : index
    %c0_9 = arith.constant 0 : index
    %10 = vector.load %arg2[%c0_7, %c0_8, %c0_9] : memref<3x128x256xbf16, #tpu.memory_space<vmem>>, vector<1x128x256xbf16>
    %11 = vector.shape_cast %10 : vector<1x128x256xbf16> to vector<128x256xbf16>
    %cst_10 = arith.constant dense<0.000000e+00> : vector<1x256xf32>
    %12 = tpu.matmul %7, %11, %cst_10 {dimension_numbers = #tpu.dot_dimension_numbers<[1], [0], [0], [1], [0, 0, 1, 1], [], []>} : vector<1x128xbf16>, vector<128x256xbf16>, vector<1x256xf32> -> vector<1x256xf32>
    %c1 = arith.constant 1 : index
    %c0_11 = arith.constant 0 : index
    %c0_12 = arith.constant 0 : index
    %13 = vector.load %arg2[%c1, %c0_11, %c0_12] : memref<3x128x256xbf16, #tpu.memory_space<vmem>>, vector<1x128x256xbf16>
    %14 = vector.shape_cast %13 : vector<1x128x256xbf16> to vector<128x256xbf16>
    %cst_13 = arith.constant dense<0.000000e+00> : vector<1x256xf32>
    %15 = tpu.matmul %3, %14, %cst_13 {dimension_numbers = #tpu.dot_dimension_numbers<[1], [0], [0], [1], [0, 0, 1, 1], [], []>} : vector<1x128xbf16>, vector<128x256xbf16>, vector<1x256xf32> -> vector<1x256xf32>
    %16 = arith.addf %12, %15 : vector<1x256xf32>
    %c2 = arith.constant 2 : index
    %c0_14 = arith.constant 0 : index
    %c0_15 = arith.constant 0 : index
    %17 = vector.load %arg2[%c2, %c0_14, %c0_15] : memref<3x128x256xbf16, #tpu.memory_space<vmem>>, vector<1x128x256xbf16>
    %18 = vector.shape_cast %17 : vector<1x128x256xbf16> to vector<128x256xbf16>
    %cst_16 = arith.constant dense<0.000000e+00> : vector<1x256xf32>
    %19 = tpu.matmul %9, %18, %cst_16 {dimension_numbers = #tpu.dot_dimension_numbers<[1], [0], [0], [1], [0, 0, 1, 1], [], []>} : vector<1x128xbf16>, vector<128x256xbf16>, vector<1x256xf32> -> vector<1x256xf32>
    %20 = arith.addf %16, %19 : vector<1x256xf32>
    %c0_17 = arith.constant 0 : index
    %c0_18 = arith.constant 0 : index
    %21 = vector.load %arg3[%c0_17, %c0_18] : memref<1x256xf32, #tpu.memory_space<vmem>>, vector<1x256xf32>
    %22 = arith.addf %20, %21 : vector<1x256xf32>
    %cst_19 = arith.constant 0.000000e+00 : f32
    %23 = vector.broadcast %cst_19 : f32 to vector<1x256xf32>
    %24 = arith.maximumf %22, %23 : vector<1x256xf32>
    %c8_20 = arith.constant 8 : index
    %c0_21 = arith.constant 0 : index
    %25 = vector.load %arg13[%c8_20, %c0_21] : memref<17x256xf32, #tpu.memory_space<vmem>>, vector<1x256xf32>
    tpu.vector_store %arg13[%c8_20, %c0_21], %24 {strides = array<i32>} : memref<17x256xf32, #tpu.memory_space<vmem>>, vector<1x256xf32>,
    %c7_22 = arith.constant 7 : index
    %c0_23 = arith.constant 0 : index
    %26 = vector.load %arg13[%c7_22, %c0_23] : memref<17x256xf32, #tpu.memory_space<vmem>>, vector<1x256xf32>
    %27 = arith.truncf %26 : vector<1x256xf32> to vector<1x256xbf16>
    %c9_24 = arith.constant 9 : index
    %c0_25 = arith.constant 0 : index
    %28 = vector.load %arg13[%c9_24, %c0_25] : memref<17x256xf32, #tpu.memory_space<vmem>>, vector<1x256xf32>
    %29 = arith.truncf %28 : vector<1x256xf32> to vector<1x256xbf16>
    %30 = arith.truncf %24 : vector<1x256xf32> to vector<1x256xbf16>
    %c0_26 = arith.constant 0 : index
    %c0_27 = arith.constant 0 : index
    %c0_28 = arith.constant 0 : index
    %31 = vector.load %arg4[%c0_26, %c0_27, %c0_28] : memref<3x256x256xbf16, #tpu.memory_space<vmem>>, vector<1x256x256xbf16>
    %32 = vector.shape_cast %31 : vector<1x256x256xbf16> to vector<256x256xbf16>
    %cst_29 = arith.constant dense<0.000000e+00> : vector<1x256xf32>
    %33 = tpu.matmul %27, %32, %cst_29 {dimension_numbers = #tpu.dot_dimension_numbers<[1], [0], [0], [1], [0, 0, 1, 1], [], []>} : vector<1x256xbf16>, vector<256x256xbf16>, vector<1x256xf32> -> vector<1x256xf32>
    %c1_30 = arith.constant 1 : index
    %c0_31 = arith.constant 0 : index
    %c0_32 = arith.constant 0 : index
    %34 = vector.load %arg4[%c1_30, %c0_31, %c0_32] : memref<3x256x256xbf16, #tpu.memory_space<vmem>>, vector<1x256x256xbf16>
    %35 = vector.shape_cast %34 : vector<1x256x256xbf16> to vector<256x256xbf16>
    %cst_33 = arith.constant dense<0.000000e+00> : vector<1x256xf32>
    %36 = tpu.matmul %30, %35, %cst_33 {dimension_numbers = #tpu.dot_dimension_numbers<[1], [0], [0], [1], [0, 0, 1, 1], [], []>} : vector<1x256xbf16>, vector<256x256xbf16>, vector<1x256xf32> -> vector<1x256xf32>
    %37 = arith.addf %33, %36 : vector<1x256xf32>
    %c2_34 = arith.constant 2 : index
    %c0_35 = arith.constant 0 : index
    %c0_36 = arith.constant 0 : index
    %38 = vector.load %arg4[%c2_34, %c0_35, %c0_36] : memref<3x256x256xbf16, #tpu.memory_space<vmem>>, vector<1x256x256xbf16>
    %39 = vector.shape_cast %38 : vector<1x256x256xbf16> to vector<256x256xbf16>
    %cst_37 = arith.constant dense<0.000000e+00> : vector<1x256xf32>
    %40 = tpu.matmul %29, %39, %cst_37 {dimension_numbers = #tpu.dot_dimension_numbers<[1], [0], [0], [1], [0, 0, 1, 1], [], []>} : vector<1x256xbf16>, vector<256x256xbf16>, vector<1x256xf32> -> vector<1x256xf32>
    %41 = arith.addf %37, %40 : vector<1x256xf32>
    %c0_38 = arith.constant 0 : index
    %c0_39 = arith.constant 0 : index
    %42 = vector.load %arg5[%c0_38, %c0_39] : memref<1x256xf32, #tpu.memory_space<vmem>>, vector<1x256xf32>
    %43 = arith.addf %41, %42 : vector<1x256xf32>
    %cst_40 = arith.constant 0.000000e+00 : f32
    %44 = vector.broadcast %cst_40 : f32 to vector<1x256xf32>
    %45 = arith.maximumf %43, %44 : vector<1x256xf32>
    %c8_41 = arith.constant 8 : index
    %c0_42 = arith.constant 0 : index
    %46 = vector.load %arg13[%c8_41, %c0_42] : memref<17x256xf32, #tpu.memory_space<vmem>>, vector<1x256xf32>
    tpu.vector_store %arg13[%c8_41, %c0_42], %45 {strides = array<i32>} : memref<17x256xf32, #tpu.memory_space<vmem>>, vector<1x256xf32>,
    %c7_43 = arith.constant 7 : index
    %c0_44 = arith.constant 0 : index
    %47 = vector.load %arg13[%c7_43, %c0_44] : memref<17x256xf32, #tpu.memory_space<vmem>>, vector<1x256xf32>
    %48 = arith.truncf %47 : vector<1x256xf32> to vector<1x256xbf16>
    %c9_45 = arith.constant 9 : index
    %c0_46 = arith.constant 0 : index
    %49 = vector.load %arg13[%c9_45, %c0_46] : memref<17x256xf32, #tpu.memory_space<vmem>>, vector<1x256xf32>
    %50 = arith.truncf %49 : vector<1x256xf32> to vector<1x256xbf16>
    %51 = arith.truncf %45 : vector<1x256xf32> to vector<1x256xbf16>
    %c0_47 = arith.constant 0 : index
    %c0_48 = arith.constant 0 : index
    %c0_49 = arith.constant 0 : index
    %52 = vector.load %arg6[%c0_47, %c0_48, %c0_49] : memref<3x256x256xbf16, #tpu.memory_space<vmem>>, vector<1x256x256xbf16>
    %53 = vector.shape_cast %52 : vector<1x256x256xbf16> to vector<256x256xbf16>
    %cst_50 = arith.constant dense<0.000000e+00> : vector<1x256xf32>
    %54 = tpu.matmul %48, %53, %cst_50 {dimension_numbers = #tpu.dot_dimension_numbers<[1], [0], [0], [1], [0, 0, 1, 1], [], []>} : vector<1x256xbf16>, vector<256x256xbf16>, vector<1x256xf32> -> vector<1x256xf32>
    %c1_51 = arith.constant 1 : index
    %c0_52 = arith.constant 0 : index
    %c0_53 = arith.constant 0 : index
    %55 = vector.load %arg6[%c1_51, %c0_52, %c0_53] : memref<3x256x256xbf16, #tpu.memory_space<vmem>>, vector<1x256x256xbf16>
    %56 = vector.shape_cast %55 : vector<1x256x256xbf16> to vector<256x256xbf16>
    %cst_54 = arith.constant dense<0.000000e+00> : vector<1x256xf32>
    %57 = tpu.matmul %51, %56, %cst_54 {dimension_numbers = #tpu.dot_dimension_numbers<[1], [0], [0], [1], [0, 0, 1, 1], [], []>} : vector<1x256xbf16>, vector<256x256xbf16>, vector<1x256xf32> -> vector<1x256xf32>
    %58 = arith.addf %54, %57 : vector<1x256xf32>
    %c2_55 = arith.constant 2 : index
    %c0_56 = arith.constant 0 : index
    %c0_57 = arith.constant 0 : index
    %59 = vector.load %arg6[%c2_55, %c0_56, %c0_57] : memref<3x256x256xbf16, #tpu.memory_space<vmem>>, vector<1x256x256xbf16>
    %60 = vector.shape_cast %59 : vector<1x256x256xbf16> to vector<256x256xbf16>
    %cst_58 = arith.constant dense<0.000000e+00> : vector<1x256xf32>
    %61 = tpu.matmul %50, %60, %cst_58 {dimension_numbers = #tpu.dot_dimension_numbers<[1], [0], [0], [1], [0, 0, 1, 1], [], []>} : vector<1x256xbf16>, vector<256x256xbf16>, vector<1x256xf32> -> vector<1x256xf32>
    %62 = arith.addf %58, %61 : vector<1x256xf32>
    %c0_59 = arith.constant 0 : index
    %c0_60 = arith.constant 0 : index
    %63 = vector.load %arg7[%c0_59, %c0_60] : memref<1x256xf32, #tpu.memory_space<vmem>>, vector<1x256xf32>
    %64 = arith.addf %62, %63 : vector<1x256xf32>
    %cst_61 = arith.constant 0.000000e+00 : f32
    %65 = vector.broadcast %cst_61 : f32 to vector<1x256xf32>
    %66 = arith.maximumf %64, %65 : vector<1x256xf32>
    %c8_62 = arith.constant 8 : index
    %c0_63 = arith.constant 0 : index
    %67 = vector.load %arg13[%c8_62, %c0_63] : memref<17x256xf32, #tpu.memory_space<vmem>>, vector<1x256xf32>
    tpu.vector_store %arg13[%c8_62, %c0_63], %66 {strides = array<i32>} : memref<17x256xf32, #tpu.memory_space<vmem>>, vector<1x256xf32>,
    %c7_64 = arith.constant 7 : index
    %c0_65 = arith.constant 0 : index
    %68 = vector.load %arg13[%c7_64, %c0_65] : memref<17x256xf32, #tpu.memory_space<vmem>>, vector<1x256xf32>
    %69 = arith.truncf %68 : vector<1x256xf32> to vector<1x256xbf16>
    %c9_66 = arith.constant 9 : index
    %c0_67 = arith.constant 0 : index
    %70 = vector.load %arg13[%c9_66, %c0_67] : memref<17x256xf32, #tpu.memory_space<vmem>>, vector<1x256xf32>
    %71 = arith.truncf %70 : vector<1x256xf32> to vector<1x256xbf16>
    %72 = arith.truncf %66 : vector<1x256xf32> to vector<1x256xbf16>
    %c0_68 = arith.constant 0 : index
    %c0_69 = arith.constant 0 : index
    %c0_70 = arith.constant 0 : index
    %73 = vector.load %arg8[%c0_68, %c0_69, %c0_70] : memref<3x256x256xbf16, #tpu.memory_space<vmem>>, vector<1x256x256xbf16>
    %74 = vector.shape_cast %73 : vector<1x256x256xbf16> to vector<256x256xbf16>
    %cst_71 = arith.constant dense<0.000000e+00> : vector<1x256xf32>
    %75 = tpu.matmul %69, %74, %cst_71 {dimension_numbers = #tpu.dot_dimension_numbers<[1], [0], [0], [1], [0, 0, 1, 1], [], []>} : vector<1x256xbf16>, vector<256x256xbf16>, vector<1x256xf32> -> vector<1x256xf32>
    %c1_72 = arith.constant 1 : index
    %c0_73 = arith.constant 0 : index
    %c0_74 = arith.constant 0 : index
    %76 = vector.load %arg8[%c1_72, %c0_73, %c0_74] : memref<3x256x256xbf16, #tpu.memory_space<vmem>>, vector<1x256x256xbf16>
    %77 = vector.shape_cast %76 : vector<1x256x256xbf16> to vector<256x256xbf16>
    %cst_75 = arith.constant dense<0.000000e+00> : vector<1x256xf32>
    %78 = tpu.matmul %72, %77, %cst_75 {dimension_numbers = #tpu.dot_dimension_numbers<[1], [0], [0], [1], [0, 0, 1, 1], [], []>} : vector<1x256xbf16>, vector<256x256xbf16>, vector<1x256xf32> -> vector<1x256xf32>
    %79 = arith.addf %75, %78 : vector<1x256xf32>
    %c2_76 = arith.constant 2 : index
    %c0_77 = arith.constant 0 : index
    %c0_78 = arith.constant 0 : index
    %80 = vector.load %arg8[%c2_76, %c0_77, %c0_78] : memref<3x256x256xbf16, #tpu.memory_space<vmem>>, vector<1x256x256xbf16>
    %81 = vector.shape_cast %80 : vector<1x256x256xbf16> to vector<256x256xbf16>
    %cst_79 = arith.constant dense<0.000000e+00> : vector<1x256xf32>
    %82 = tpu.matmul %71, %81, %cst_79 {dimension_numbers = #tpu.dot_dimension_numbers<[1], [0], [0], [1], [0, 0, 1, 1], [], []>} : vector<1x256xbf16>, vector<256x256xbf16>, vector<1x256xf32> -> vector<1x256xf32>
    %83 = arith.addf %79, %82 : vector<1x256xf32>
    %c0_80 = arith.constant 0 : index
    %c0_81 = arith.constant 0 : index
    %84 = vector.load %arg9[%c0_80, %c0_81] : memref<1x256xf32, #tpu.memory_space<vmem>>, vector<1x256xf32>
    %85 = arith.addf %83, %84 : vector<1x256xf32>
    %cst_82 = arith.constant 0.000000e+00 : f32
    %86 = vector.broadcast %cst_82 : f32 to vector<1x256xf32>
    %87 = arith.maximumf %85, %86 : vector<1x256xf32>
    %cst_83 = arith.constant dense<0.000000e+00> : vector<256xf32>
    %88 = vector.multi_reduction <add>, %87, %cst_83 [0] : vector<1x256xf32> to vector<256xf32>
    %89 = vector.shape_cast %88 : vector<256xf32> to vector<1x256xf32>
    %cst_84 = arith.constant 1.000000e+00 : f32
    %90 = vector.broadcast %cst_84 : f32 to vector<1x256xf32>
    %91 = arith.divf %89, %90 : vector<1x256xf32>
    %c0_85 = arith.constant 0 : index
    %c0_86 = arith.constant 0 : index
    %92 = vector.load %arg10[%c0_85, %c0_86] : memref<256x2xf32, #tpu.memory_space<vmem>>, vector<256x2xf32>
    %cst_87 = arith.constant dense<0.000000e+00> : vector<1x2xf32>
    %93 = tpu.matmul %91, %92, %cst_87 {dimension_numbers = #tpu.dot_dimension_numbers<[1], [0], [0], [1], [0, 0, 1, 1], [], []>} : vector<1x256xf32>, vector<256x2xf32>, vector<1x2xf32> -> vector<1x2xf32>
    %c0_88 = arith.constant 0 : index
    %c0_89 = arith.constant 0 : index
    %94 = vector.load %arg11[%c0_88, %c0_89] : memref<1x2xf32, #tpu.memory_space<vmem>>, vector<1x2xf32>
    %95 = arith.addf %93, %94 : vector<1x2xf32>
    %cst_90 = arith.constant dense<0xFF800000> : vector<1xf32>
    %96 = vector.multi_reduction <maximumf>, %95, %cst_90 [1] : vector<1x2xf32> to vector<1xf32>
    %97 = vector.shape_cast %96 : vector<1xf32> to vector<1x1xf32>
    %98 = vector.broadcast %97 : vector<1x1xf32> to vector<1x2xf32>
    %99 = arith.subf %95, %98 : vector<1x2xf32>
    %100 = math.exp %99 : vector<1x2xf32>
    %cst_91 = arith.constant dense<0.000000e+00> : vector<1xf32>
    %101 = vector.multi_reduction <add>, %100, %cst_91 [1] : vector<1x2xf32> to vector<1xf32>
    %102 = vector.shape_cast %101 : vector<1xf32> to vector<1x1xf32>
    %103 = math.log %102 : vector<1x1xf32>
    %104 = arith.addf %97, %103 : vector<1x1xf32>
    %105 = vector.broadcast %104 : vector<1x1xf32> to vector<1x2xf32>
    %106 = arith.subf %95, %105 : vector<1x2xf32>
    %c0_92 = arith.constant 0 : index
    %c0_93 = arith.constant 0 : index
    %c0_94 = arith.constant 0 : index
    %107 = vector.load %arg12[%c0_92, %c0_93, %c0_94] : memref<1x1x2xf32, #tpu.memory_space<vmem>>, vector<1x1x2xf32>
    %108 = vector.shape_cast %107 : vector<1x1x2xf32> to vector<1x2xf32>
    %109 = vector.shape_cast %106 : vector<1x2xf32> to vector<1x1x2xf32>
    tpu.vector_store %arg12[%c0_92, %c0_93, %c0_94], %109 {strides = array<i32>} : memref<1x1x2xf32, #tpu.memory_space<vmem>>, vector<1x1x2xf32>,
    return
  }
  func.func @transform_0(%arg0: i32) -> (i32, i32, i32) {
    %c0_i32 = arith.constant 0 : i32
    %c0_i32_0 = arith.constant 0 : i32
    %c0_i32_1 = arith.constant 0 : i32
    return %arg0, %c0_i32, %c0_i32_0 : i32, i32, i32
  }
  func.func @transform_1(%arg0: i32) -> (i32, i32, i32) {
    %c0_i32 = arith.constant 0 : i32
    %c0_i32_0 = arith.constant 0 : i32
    %c0_i32_1 = arith.constant 0 : i32
    %c0_i32_2 = arith.constant 0 : i32
    return %c0_i32, %c0_i32_0, %c0_i32_1 : i32, i32, i32
  }
  func.func @transform_2(%arg0: i32) -> (i32, i32) {
    %c0_i32 = arith.constant 0 : i32
    %c0_i32_0 = arith.constant 0 : i32
    %c0_i32_1 = arith.constant 0 : i32
    return %c0_i32, %c0_i32_0 : i32, i32
  }
  func.func @transform_3(%arg0: i32) -> (i32, i32, i32) {
    %c0_i32 = arith.constant 0 : i32
    %c0_i32_0 = arith.constant 0 : i32
    %c0_i32_1 = arith.constant 0 : i32
    %c0_i32_2 = arith.constant 0 : i32
    return %c0_i32, %c0_i32_0, %c0_i32_1 : i32, i32, i32
  }
  func.func @transform_4(%arg0: i32) -> (i32, i32) {
    %c0_i32 = arith.constant 0 : i32
    %c0_i32_0 = arith.constant 0 : i32
    %c0_i32_1 = arith.constant 0 : i32
    return %c0_i32, %c0_i32_0 : i32, i32
  }
  func.func @transform_5(%arg0: i32) -> (i32, i32, i32) {
    %c0_i32 = arith.constant 0 : i32
    %c0_i32_0 = arith.constant 0 : i32
    %c0_i32_1 = arith.constant 0 : i32
    %c0_i32_2 = arith.constant 0 : i32
    return %c0_i32, %c0_i32_0, %c0_i32_1 : i32, i32, i32
  }
  func.func @transform_6(%arg0: i32) -> (i32, i32) {
    %c0_i32 = arith.constant 0 : i32
    %c0_i32_0 = arith.constant 0 : i32
    %c0_i32_1 = arith.constant 0 : i32
    return %c0_i32, %c0_i32_0 : i32, i32
  }
  func.func @transform_7(%arg0: i32) -> (i32, i32, i32) {
    %c0_i32 = arith.constant 0 : i32
    %c0_i32_0 = arith.constant 0 : i32
    %c0_i32_1 = arith.constant 0 : i32
    %c0_i32_2 = arith.constant 0 : i32
    return %c0_i32, %c0_i32_0, %c0_i32_1 : i32, i32, i32
  }
  func.func @transform_8(%arg0: i32) -> (i32, i32) {
    %c0_i32 = arith.constant 0 : i32
    %c0_i32_0 = arith.constant 0 : i32
    %c0_i32_1 = arith.constant 0 : i32
    return %c0_i32, %c0_i32_0 : i32, i32
  }
  func.func @transform_9(%arg0: i32) -> (i32, i32) {
    %c0_i32 = arith.constant 0 : i32
    %c0_i32_0 = arith.constant 0 : i32
    %c0_i32_1 = arith.constant 0 : i32
    return %c0_i32, %c0_i32_0 : i32, i32
  }
  func.func @transform_10(%arg0: i32) -> (i32, i32) {
    %c0_i32 = arith.constant 0 : i32
    %c0_i32_0 = arith.constant 0 : i32
    %c0_i32_1 = arith.constant 0 : i32
    return %c0_i32, %c0_i32_0 : i32, i32
  }
  func.func @transform_11(%arg0: i32) -> (i32, i32, i32) {
    %c0_i32 = arith.constant 0 : i32
    %c0_i32_0 = arith.constant 0 : i32
    %c0_i32_1 = arith.constant 0 : i32
    return %arg0, %c0_i32, %c0_i32_0 : i32, i32, i32
  }
}

</mosaic_0001>

<llo_original>
// kernel: m18_forward.5
$region0: #{m18_forward.5}
  #allocation0 [shape = 'u32[]', space=smem, size = 0x4, offset = 0x4, fixed_abs, tag = 'smem constant byte address 0x4 - core index']
  #allocation1 [shape = 'u32[144,128]{1,0:T(1,128)}', space=vmem, size = 0x12000, scoped, tag = 'internal scratch']
  %s0 = inlined_call_operand.vmem [shape: bf16[986,128], index: 0, kind: input, shape index: {}]
  %s1 = inlined_call_operand.vmem [shape: bf16[128,32], index: 1, kind: input, shape index: {}]
  %s2 = inlined_call_operand.vmem [shape: f32[1,32], index: 2, kind: input, shape index: {}]
  %s3 = inlined_call_operand.vmem [shape: bf16[986,32], index: 3, kind: output, shape index: {}]
  %s4 = sld [smem:[#allocation0]]
  $region22: #{m18_forward.5} parent=0
    _
  %s6 = ssub.s32 1, %s4
  %s7 = scalar_select 0, %s6, %s4
  // Predicated region
  $region2: #{m18_forward.5} parent=0 // pred_check
    _
  $region3: #{m18_forward.5} parent=0 // pred_check_branch
    %9 = sbr.rel (0) target = $region5
  $region4: #{m18_forward.5} parent=0 // pred_region
    _
  $region5: #{m18_forward.5} parent=0 // pred_fallthru
    _
  // Predicated region
  $region6: #{m18_forward.5} parent=0 // pred_check
    _
  $region7: #{m18_forward.5} parent=0 // pred_check_branch
    %11 = sbr.rel (0) target = $region9
  $region8: #{m18_forward.5} parent=0 // pred_region
    _
  $region9: #{m18_forward.5} parent=0 // pred_fallthru
    _
  // Predicated region
  $region10: #{m18_forward.5} parent=0 // pred_check
    _
  $region11: #{m18_forward.5} parent=0 // pred_check_branch
    %13 = sbr.rel (0) target = $region13
  $region12: #{m18_forward.5} parent=0 // pred_region
    _
  $region13: #{m18_forward.5} parent=0 // pred_fallthru
    _
  %v15 = vld [vmem:[%s0] sm:$0xf]
  %v16 = vld [vmem:[%s0 + $0x4] sm:$0xf]
  %v17 = vld [vmem:[%s0 + $0x8] sm:$0xf]
  %v18 = vld [vmem:[%s0 + $0xc] sm:$0xf]
  %v19 = vld [vmem:[%s0 + $0x10] sm:$0xf]
  %v20 = vld [vmem:[%s0 + $0x14] sm:$0xf]
  %v21 = vld [vmem:[%s0 + $0x18] sm:$0xf]
  %v22 = vld [vmem:[%s0 + $0x1c] sm:$0xf]
  %v23 = vld [vmem:[%s0 + $0x20] sm:$0xf]
  %v24 = vld [vmem:[%s0 + $0x24] sm:$0xf]
  %v25 = vld [vmem:[%s0 + $0x28] sm:$0xf]
  %v26 = vld [vmem:[%s0 + $0x2c] sm:$0xf]
  %v27 = vld [vmem:[%s0 + $0x30] sm:$0xf]
  %v28 = vld [vmem:[%s0 + $0x34] sm:$0xf]
  %v29 = vld [vmem:[%s0 + $0x38] sm:$0xf]
  %v30 = vld [vmem:[%s0 + $0x3c] sm:$0xf]
  %v31 = vld [vmem:[%s0 + $0x40] sm:$0xf]
  %v32 = vld [vmem:[%s0 + $0x44] sm:$0xf]
  %v33 = vld [vmem:[%s0 + $0x48] sm:$0xf]
  %v34 = vld [vmem:[%s0 + $0x4c] sm:$0xf]
  %v35 = vld [vmem:[%s0 + $0x50] sm:$0xf]
  %v36 = vld [vmem:[%s0 + $0x54] sm:$0xf]
  %v37 = vld [vmem:[%s0 + $0x58] sm:$0xf]
  %v38 = vld [vmem:[%s0 + $0x5c] sm:$0xf]
  %v39 = vld [vmem:[%s0 + $0x60] sm:$0xf]
  %v40 = vld [vmem:[%s0 + $0x64] sm:$0xf]
  %v41 = vld [vmem:[%s0 + $0x68] sm:$0xf]
  %v42 = vld [vmem:[%s0 + $0x6c] sm:$0xf]
  %v43 = vld [vmem:[%s0 + $0x70] sm:$0xf]
  %v44 = vld [vmem:[%s0 + $0x74] sm:$0xf]
  %v45 = vld [vmem:[%s0 + $0x78] sm:$0xf]
  %v46 = vld [vmem:[%s0 + $0x7c] sm:$0xf]
  %v47 = vld [vmem:[%s0 + $0x80] sm:$0xf]
  %v48 = vld [vmem:[%s0 + $0x84] sm:$0xf]
  %v49 = vld [vmem:[%s0 + $0x88] sm:$0xf]
  %v50 = vld [vmem:[%s0 + $0x8c] sm:$0xf]
  %v51 = vld [vmem:[%s0 + $0x90] sm:$0xf]
  %v52 = vld [vmem:[%s0 + $0x94] sm:$0xf]
  %v53 = vld [vmem:[%s0 + $0x98] sm:$0xf]
  %v54 = vld [vmem:[%s0 + $0x9c] sm:$0xf]
  %v55 = vld [vmem:[%s0 + $0xa0] sm:$0xf]
  %v56 = vld [vmem:[%s0 + $0xa4] sm:$0xf]
  %v57 = vld [vmem:[%s0 + $0xa8] sm:$0xf]
  %v58 = vld [vmem:[%s0 + $0xac] sm:$0xf]
  %v59 = vld [vmem:[%s0 + $0xb0] sm:$0xf]
  %v60 = vld [vmem:[%s0 + $0xb4] sm:$0xf]
  %v61 = vld [vmem:[%s0 + $0xb8] sm:$0xf]
  %v62 = vld [vmem:[%s0 + $0xbc] sm:$0xf]
  %v63 = vld [vmem:[%s0 + $0xc0] sm:$0xf]
  %v64 = vld [vmem:[%s0 + $0xc4] sm:$0xf]
  %v65 = vld [vmem:[%s0 + $0xc8] sm:$0xf]
  %v66 = vld [vmem:[%s0 + $0xcc] sm:$0xf]
  %v67 = vld [vmem:[%s0 + $0xd0] sm:$0xf]
  %v68 = vld [vmem:[%s0 + $0xd4] sm:$0xf]
  %v69 = vld [vmem:[%s0 + $0xd8] sm:$0xf]
  %v70 = vld [vmem:[%s0 + $0xdc] sm:$0xf]
  %v71 = vld [vmem:[%s0 + $0xe0] sm:$0xf]
  %v72 = vld [vmem:[%s0 + $0xe4] sm:$0xf]
  %v73 = vld [vmem:[%s0 + $0xe8] sm:$0xf]
  %v74 = vld [vmem:[%s0 + $0xec] sm:$0xf]
  %v75 = vld [vmem:[%s0 + $0xf0] sm:$0xf]
  %v76 = vld [vmem:[%s0 + $0xf4] sm:$0xf]
  %v77 = vld [vmem:[%s0 + $0xf8] sm:$0xf]
  %v78 = vld [vmem:[%s0 + $0xfc] sm:$0xf]
  %v79 = vld [vmem:[%s0 + $0x100] sm:$0xf]
  %v80 = vld [vmem:[%s0 + $0x104] sm:$0xf]
  %v81 = vld [vmem:[%s0 + $0x108] sm:$0xf]
  %v82 = vld [vmem:[%s0 + $0x10c] sm:$0xf]
  %v83 = vld [vmem:[%s0 + $0x110] sm:$0xf]
  %v84 = vld [vmem:[%s0 + $0x114] sm:$0xf]
  %v85 = vld [vmem:[%s0 + $0x118] sm:$0xf]
  %v86 = vld [vmem:[%s0 + $0x11c] sm:$0xf]
  %v87 = vld [vmem:[%s0 + $0x120] sm:$0xf]
  %v88 = vld [vmem:[%s0 + $0x124] sm:$0xf]
  %v89 = vld [vmem:[%s0 + $0x128] sm:$0xf]
  %v90 = vld [vmem:[%s0 + $0x12c] sm:$0xf]
  %v91 = vld [vmem:[%s0 + $0x130] sm:$0xf]
  %v92 = vld [vmem:[%s0 + $0x134] sm:$0xf]
  %v93 = vld [vmem:[%s0 + $0x138] sm:$0xf]
  %v94 = vld [vmem:[%s0 + $0x13c] sm:$0xf]
  %v95 = vld [vmem:[%s0 + $0x140] sm:$0xf]
  %v96 = vld [vmem:[%s0 + $0x144] sm:$0xf]
  %v97 = vld [vmem:[%s0 + $0x148] sm:$0xf]
  %v98 = vld [vmem:[%s0 + $0x14c] sm:$0xf]
  %v99 = vld [vmem:[%s0 + $0x150] sm:$0xf]
  %v100 = vld [vmem:[%s0 + $0x154] sm:$0xf]
  %v101 = vld [vmem:[%s0 + $0x158] sm:$0xf]
  %v102 = vld [vmem:[%s0 + $0x15c] sm:$0xf]
  %v103 = vld [vmem:[%s0 + $0x160] sm:$0xf]
  %v104 = vld [vmem:[%s0 + $0x164] sm:$0xf]
  %v105 = vld [vmem:[%s0 + $0x168] sm:$0xf]
  %v106 = vld [vmem:[%s0 + $0x16c] sm:$0xf]
  %v107 = vld [vmem:[%s0 + $0x170] sm:$0xf]
  %v108 = vld [vmem:[%s0 + $0x174] sm:$0xf]
  %v109 = vld [vmem:[%s0 + $0x178] sm:$0xf]
  %v110 = vld [vmem:[%s0 + $0x17c] sm:$0xf]
  %v111 = vld [vmem:[%s0 + $0x180] sm:$0xf]
  %v112 = vld [vmem:[%s0 + $0x184] sm:$0xf]
  %v113 = vld [vmem:[%s0 + $0x188] sm:$0xf]
  %v114 = vld [vmem:[%s0 + $0x18c] sm:$0xf]
  %v115 = vld [vmem:[%s0 + $0x190] sm:$0xf]
  %v116 = vld [vmem:[%s0 + $0x194] sm:$0xf]
  %v117 = vld [vmem:[%s0 + $0x198] sm:$0xf]
  %v118 = vld [vmem:[%s0 + $0x19c] sm:$0xf]
  %v119 = vld [vmem:[%s0 + $0x1a0] sm:$0xf]
  %v120 = vld [vmem:[%s0 + $0x1a4] sm:$0xf]
  %v121 = vld [vmem:[%s0 + $0x1a8] sm:$0xf]
  %v122 = vld [vmem:[%s0 + $0x1ac] sm:$0xf]
  %v123 = vld [vmem:[%s0 + $0x1b0] sm:$0xf]
  %v124 = vld [vmem:[%s0 + $0x1b4] sm:$0xf]
  %v125 = vld [vmem:[%s0 + $0x1b8] sm:$0xf]
  %v126 = vld [vmem:[%s0 + $0x1bc] sm:$0xf]
  %v127 = vld [vmem:[%s0 + $0x1c0] sm:$0xf]
  %v128 = vld [vmem:[%s0 + $0x1c4] sm:$0xf]
  %v129 = vld [vmem:[%s0 + $0x1c8] sm:$0xf]
  %v130 = vld [vmem:[%s0 + $0x1cc] sm:$0xf]
  %v131 = vld [vmem:[%s0 + $0x1d0] sm:$0xf]
  %v132 = vld [vmem:[%s0 + $0x1d4] sm:$0xf]
  %v133 = vld [vmem:[%s0 + $0x1d8] sm:$0xf]
  %v134 = vld [vmem:[%s0 + $0x1dc] sm:$0xf]
  %v135 = vld [vmem:[%s0 + $0x1e0] sm:$0xf]
  %v136 = vld [vmem:[%s0 + $0x1e4] sm:$0xf]
  %v137 = vld [vmem:[%s0 + $0x1e8] sm:$0xf]
  %v138 = vld [vmem:[%s0 + $0x1ec] sm:$0x1]
  %v139 = vld [vmem:[%s1] sm:$0xf]
  %v140 = vld [vmem:[%s1 + $0x4] sm:$0xf]
  %v141 = vld [vmem:[%s1 + $0x8] sm:$0xf]
  %v142 = vld [vmem:[%s1 + $0xc] sm:$0xf]
  %v143 = vld [vmem:[%s1 + $0x10] sm:$0xf]
  %v144 = vld [vmem:[%s1 + $0x14] sm:$0xf]
  %v145 = vld [vmem:[%s1 + $0x18] sm:$0xf]
  %v146 = vld [vmem:[%s1 + $0x1c] sm:$0xf]
  %v147 = vld [vmem:[%s1 + $0x20] sm:$0xf]
  %v148 = vld [vmem:[%s1 + $0x24] sm:$0xf]
  %v149 = vld [vmem:[%s1 + $0x28] sm:$0xf]
  %v150 = vld [vmem:[%s1 + $0x2c] sm:$0xf]
  %v151 = vld [vmem:[%s1 + $0x30] sm:$0xf]
  %v152 = vld [vmem:[%s1 + $0x34] sm:$0xf]
  %v153 = vld [vmem:[%s1 + $0x38] sm:$0xf]
  %v154 = vld [vmem:[%s1 + $0x3c] sm:$0xf]
  %v155 = vld [vmem:[%s2] sm:$0x1]
  %v157 = vlaneseq
  %v158 = vshrl.u32 %v157, 7
  %v159 = vsub.s32 0, %v158
  %v160 = vrot.slane %v155, %v159
  %v286 = vunpack.c.l.b16 %v15
  %v287 = vunpack.c.l.b16 %v16
  %v288 = vunpack.c.l.b16 %v17
  %v289 = vunpack.c.l.b16 %v18
  %v290 = vunpack.c.l.b16 %v19
  %v291 = vunpack.c.l.b16 %v20
  %v292 = vunpack.c.l.b16 %v21
  %v293 = vunpack.c.l.b16 %v22
  %v294 = vunpack.c.l.b16 %v23
  %v295 = vunpack.c.l.b16 %v24
  %v296 = vunpack.c.l.b16 %v25
  %v297 = vunpack.c.l.b16 %v26
  %v298 = vunpack.c.l.b16 %v27
  %v299 = vunpack.c.l.b16 %v28
  %v300 = vunpack.c.l.b16 %v29
  %v301 = vunpack.c.l.b16 %v30
  %v302 = vunpack.c.l.b16 %v31
  %v303 = vunpack.c.l.b16 %v32
  %v304 = vunpack.c.l.b16 %v33
  %v305 = vunpack.c.l.b16 %v34
  %v306 = vunpack.c.l.b16 %v35
  %v307 = vunpack.c.l.b16 %v36
  %v308 = vunpack.c.l.b16 %v37
  %v309 = vunpack.c.l.b16 %v38
  %v310 = vunpack.c.l.b16 %v39
  %v311 = vunpack.c.l.b16 %v40
  %v312 = vunpack.c.l.b16 %v41
  %v313 = vunpack.c.l.b16 %v42
  %v314 = vunpack.c.l.b16 %v43
  %v315 = vunpack.c.l.b16 %v44
  %v316 = vunpack.c.l.b16 %v45
  %v317 = vunpack.c.l.b16 %v46
  %v318 = vunpack.c.l.b16 %v47
  %v319 = vunpack.c.l.b16 %v48
  %v320 = vunpack.c.l.b16 %v49
  %v321 = vunpack.c.l.b16 %v50
  %v322 = vunpack.c.l.b16 %v51
  %v323 = vunpack.c.l.b16 %v52
  %v324 = vunpack.c.l.b16 %v53
  %v325 = vunpack.c.l.b16 %v54
  %v326 = vunpack.c.l.b16 %v55
  %v327 = vunpack.c.l.b16 %v56
  %v328 = vunpack.c.l.b16 %v57
  %v329 = vunpack.c.l.b16 %v58
  %v330 = vunpack.c.l.b16 %v59
  %v331 = vunpack.c.l.b16 %v60
  %v332 = vunpack.c.l.b16 %v61
  %v333 = vunpack.c.l.b16 %v62
  %v334 = vunpack.c.l.b16 %v63
  %v335 = vunpack.c.l.b16 %v64
  %v336 = vunpack.c.l.b16 %v65
  %v337 = vunpack.c.l.b16 %v66
  %v338 = vunpack.c.l.b16 %v67
  %v339 = vunpack.c.l.b16 %v68
  %v340 = vunpack.c.l.b16 %v69
  %v341 = vunpack.c.l.b16 %v70
  %v342 = vunpack.c.l.b16 %v71
  %v343 = vunpack.c.l.b16 %v72
  %v344 = vunpack.c.l.b16 %v73
  %v345 = vunpack.c.l.b16 %v74
  %v346 = vunpack.c.l.b16 %v75
  %v347 = vunpack.c.l.b16 %v76
  %v348 = vunpack.c.l.b16 %v77
  %v349 = vunpack.c.l.b16 %v78
  %v350 = vunpack.c.l.b16 %v79
  %v351 = vunpack.c.l.b16 %v80
  %v352 = vunpack.c.l.b16 %v81
  %v353 = vunpack.c.l.b16 %v82
  %v354 = vunpack.c.l.b16 %v83
  %v355 = vunpack.c.l.b16 %v84
  %v356 = vunpack.c.l.b16 %v85
  %v357 = vunpack.c.l.b16 %v86
  %v358 = vunpack.c.l.b16 %v87
  %v359 = vunpack.c.l.b16 %v88
  %v360 = vunpack.c.l.b16 %v89
  %v361 = vunpack.c.l.b16 %v90
  %v362 = vunpack.c.l.b16 %v91
  %v363 = vunpack.c.l.b16 %v92
  %v364 = vunpack.c.l.b16 %v93
  %v365 = vunpack.c.l.b16 %v94
  %v366 = vunpack.c.l.b16 %v95
  %v367 = vunpack.c.l.b16 %v96
  %v368 = vunpack.c.l.b16 %v97
  %v369 = vunpack.c.l.b16 %v98
  %v370 = vunpack.c.l.b16 %v99
  %v371 = vunpack.c.l.b16 %v100
  %v372 = vunpack.c.l.b16 %v101
  %v373 = vunpack.c.l.b16 %v102
  %v374 = vunpack.c.l.b16 %v103
  %v375 = vunpack.c.l.b16 %v104
  %v376 = vunpack.c.l.b16 %v105
  %v377 = vunpack.c.l.b16 %v106
  %v378 = vunpack.c.l.b16 %v107
  %v379 = vunpack.c.l.b16 %v108
  %v380 = vunpack.c.l.b16 %v109
  %v381 = vunpack.c.l.b16 %v110
  %v382 = vunpack.c.l.b16 %v111
  %v383 = vunpack.c.l.b16 %v112
  %v384 = vunpack.c.l.b16 %v113
  %v385 = vunpack.c.l.b16 %v114
  %v386 = vunpack.c.l.b16 %v115
  %v387 = vunpack.c.l.b16 %v116
  %v388 = vunpack.c.l.b16 %v117
  %v389 = vunpack.c.l.b16 %v118
  %v390 = vunpack.c.l.b16 %v119
  %v391 = vunpack.c.l.b16 %v120
  %v392 = vunpack.c.l.b16 %v121
  %v393 = vunpack.c.l.b16 %v122
  %v394 = vunpack.c.l.b16 %v123
  %v395 = vunpack.c.l.b16 %v124
  %v396 = vunpack.c.l.b16 %v125
  %v397 = vunpack.c.l.b16 %v126
  %v398 = vunpack.c.l.b16 %v127
  %v399 = vunpack.c.l.b16 %v128
  %v400 = vunpack.c.l.b16 %v129
  %v401 = vunpack.c.l.b16 %v130
  %v402 = vunpack.c.l.b16 %v131
  %v403 = vunpack.c.l.b16 %v132
  %v404 = vunpack.c.l.b16 %v133
  %v405 = vunpack.c.l.b16 %v134
  %v406 = vunpack.c.l.b16 %v135
  %v407 = vunpack.c.l.b16 %v136
  %v408 = vunpack.c.l.b16 %v137
  %v409 = vunpack.c.l.b16 %v138
  %v410 = vpack.c.b16 %v287, %v286
  %v411 = vpack.c.b16 %v289, %v288
  %v412 = vpack.c.b16 %v291, %v290
  %v413 = vpack.c.b16 %v293, %v292
  %v414 = vpack.c.b16 %v295, %v294
  %v415 = vpack.c.b16 %v297, %v296
  %v416 = vpack.c.b16 %v299, %v298
  %v417 = vpack.c.b16 %v301, %v300
  %v418 = vpack.c.b16 %v303, %v302
  %v419 = vpack.c.b16 %v305, %v304
  %v420 = vpack.c.b16 %v307, %v306
  %v421 = vpack.c.b16 %v309, %v308
  %v422 = vpack.c.b16 %v311, %v310
  %v423 = vpack.c.b16 %v313, %v312
  %v424 = vpack.c.b16 %v315, %v314
  %v425 = vpack.c.b16 %v317, %v316
  %v426 = vpack.c.b16 %v319, %v318
  %v427 = vpack.c.b16 %v321, %v320
  %v428 = vpack.c.b16 %v323, %v322
  %v429 = vpack.c.b16 %v325, %v324
  %v430 = vpack.c.b16 %v327, %v326
  %v431 = vpack.c.b16 %v329, %v328
  %v432 = vpack.c.b16 %v331, %v330
  %v433 = vpack.c.b16 %v333, %v332
  %v434 = vpack.c.b16 %v335, %v334
  %v435 = vpack.c.b16 %v337, %v336
  %v436 = vpack.c.b16 %v339, %v338
  %v437 = vpack.c.b16 %v341, %v340
  %v438 = vpack.c.b16 %v343, %v342
  %v439 = vpack.c.b16 %v345, %v344
  %v440 = vpack.c.b16 %v347, %v346
  %v441 = vpack.c.b16 %v349, %v348
  %v442 = vpack.c.b16 %v351, %v350
  %v443 = vpack.c.b16 %v353, %v352
  %v444 = vpack.c.b16 %v355, %v354
  %v445 = vpack.c.b16 %v357, %v356
  %v446 = vpack.c.b16 %v359, %v358
  %v447 = vpack.c.b16 %v361, %v360
  %v448 = vpack.c.b16 %v363, %v362
  %v449 = vpack.c.b16 %v365, %v364
  %v450 = vpack.c.b16 %v367, %v366
  %v451 = vpack.c.b16 %v369, %v368
  %v452 = vpack.c.b16 %v371, %v370
  %v453 = vpack.c.b16 %v373, %v372
  %v454 = vpack.c.b16 %v375, %v374
  %v455 = vpack.c.b16 %v377, %v376
  %v456 = vpack.c.b16 %v379, %v378
  %v457 = vpack.c.b16 %v381, %v380
  %v458 = vpack.c.b16 %v383, %v382
  %v459 = vpack.c.b16 %v385, %v384
  %v460 = vpack.c.b16 %v387, %v386
  %v461 = vpack.c.b16 %v389, %v388
  %v462 = vpack.c.b16 %v391, %v390
  %v463 = vpack.c.b16 %v393, %v392
  %v464 = vpack.c.b16 %v395, %v394
  %v465 = vpack.c.b16 %v397, %v396
  %v466 = vpack.c.b16 %v399, %v398
  %v467 = vpack.c.b16 %v401, %v400
  %v468 = vpack.c.b16 %v403, %v402
  %v469 = vpack.c.b16 %v405, %v404
  %v470 = vpack.c.b16 %v407, %v406
  %v471 = vpack.c.b16 %v409, %v408
  %v550 = vunpack.c.l.b16 %v139
  %v551 = vunpack.c.l.b16 %v140
  %v552 = vunpack.c.l.b16 %v141
  %v553 = vunpack.c.l.b16 %v142
  %v554 = vunpack.c.l.b16 %v143
  %v555 = vunpack.c.l.b16 %v144
  %v556 = vunpack.c.l.b16 %v145
  %v557 = vunpack.c.l.b16 %v146
  %v558 = vunpack.c.l.b16 %v147
  %v559 = vunpack.c.l.b16 %v148
  %v560 = vunpack.c.l.b16 %v149
  %v561 = vunpack.c.l.b16 %v150
  %v562 = vunpack.c.l.b16 %v151
  %v563 = vunpack.c.l.b16 %v152
  %v564 = vunpack.c.l.b16 %v153
  %v565 = vunpack.c.l.b16 %v154
  %v566 = vpack.c.b16 %v551, %v550
  %v567 = vpack.c.b16 %v553, %v552
  %v568 = vpack.c.b16 %v555, %v554
  %v569 = vpack.c.b16 %v557, %v556
  %v570 = vpack.c.b16 %v559, %v558
  %v571 = vpack.c.b16 %v561, %v560
  %v572 = vpack.c.b16 %v563, %v562
  %v573 = vpack.c.b16 %v565, %v564
  %582 = vmatprep.subr.bf16.mxu0 0
  %583 = vmatpush1.bf16.msra.mxu0 %v566
  %584 = vmatprep.subr.bf16.mxu0 0
  %585 = vmatpush1.bf16.msra.mxu0 %v567
  %586 = vmatprep.subr.bf16.mxu0 0
  %587 = vmatpush1.bf16.msra.mxu0 %v568
  %588 = vmatprep.subr.bf16.mxu0 0
  %589 = vmatpush1.bf16.msra.mxu0 %v569
  %590 = vmatprep.subr.bf16.mxu0 0
  %591 = vmatpush1.bf16.msra.mxu0 %v570
  %592 = vmatprep.subr.bf16.mxu0 0
  %593 = vmatpush1.bf16.msra.mxu0 %v571
  %594 = vmatprep.subr.bf16.mxu0 0
  %595 = vmatpush1.bf16.msra.mxu0 %v572
  %596 = vmatprep.subr.bf16.mxu0 0
  %597 = vmatpush1.bf16.msra.mxu0 %v573
  %598 = vmatprep.subr.bf16.mxu0 0
  %599 = vmatpush1.bf16.msra.mxu0 0
  %600 = vmatprep.subr.bf16.mxu0 0
  %601 = vmatpush1.bf16.msra.mxu0 0
  %602 = vmatprep.subr.bf16.mxu0 0
  %603 = vmatpush1.bf16.msra.mxu0 0
  %604 = vmatprep.subr.bf16.mxu0 0
  %605 = vmatpush1.bf16.msra.mxu0 0
  %606 = vmatprep.subr.bf16.mxu0 0
  %607 = vmatpush1.bf16.msra.mxu0 0
  %608 = vmatprep.subr.bf16.mxu0 0
  %609 = vmatpush1.bf16.msra.mxu0 0
  %610 = vmatprep.subr.bf16.mxu0 0
  %611 = vmatpush1.bf16.msra.mxu0 0
  %612 = vmatprep.subr.bf16.mxu0 0
  %613 = vmatpush1.bf16.msra.mxu0 0
  %614 = vmatprep.mubr.bf16.mxu0 0
  %615 = vmatmul.mubr.bf16.gmra.mrb[0].mxu0 %v410
  %v616 = vpop.f32.mrb[0].mxu0
  %v617 = vadd.f32 %v160, %v616
  %v618 = vpop.f32.mrb[0].mxu0
  %v619 = vpop.f32.mrb[0].mxu0
  %v620 = vadd.f32 %v160, %v619
  %v621 = vpop.f32.mrb[0].mxu0
  %622 = vmatprep.mubr.bf16.mxu0 0
  %623 = vmatmul.mubr.bf16.gmra.mrb[0].mxu0 %v411
  %v624 = vpop.f32.mrb[0].mxu0
  %v625 = vadd.f32 %v160, %v624
  %v626 = vpop.f32.mrb[0].mxu0
  %v627 = vpop.f32.mrb[0].mxu0
  %v628 = vadd.f32 %v160, %v627
  %v629 = vpop.f32.mrb[0].mxu0
  %630 = vmatprep.mubr.bf16.mxu0 0
  %631 = vmatmul.mubr.bf16.gmra.mrb[0].mxu0 %v412
  %v632 = vpop.f32.mrb[0].mxu0
  %v633 = vadd.f32 %v160, %v632
  %v634 = vpop.f32.mrb[0].mxu0
  %v635 = vpop.f32.mrb[0].mxu0
  %v636 = vadd.f32 %v160, %v635
  %v637 = vpop.f32.mrb[0].mxu0
  %638 = vmatprep.mubr.bf16.mxu0 0
  %639 = vmatmul.mubr.bf16.gmra.mrb[0].mxu0 %v413
  %v640 = vpop.f32.mrb[0].mxu0
  %v641 = vadd.f32 %v160, %v640
  %v642 = vpop.f32.mrb[0].mxu0
  %v643 = vpop.f32.mrb[0].mxu0
  %v644 = vadd.f32 %v160, %v643
  %v645 = vpop.f32.mrb[0].mxu0
  %646 = vmatprep.mubr.bf16.mxu0 0
  %647 = vmatmul.mubr.bf16.gmra.mrb[0].mxu0 %v414
  %v648 = vpop.f32.mrb[0].mxu0
  %v649 = vadd.f32 %v160, %v648
  %v650 = vpop.f32.mrb[0].mxu0
  %v651 = vpop.f32.mrb[0].mxu0
  %v652 = vadd.f32 %v160, %v651
  %v653 = vpop.f32.mrb[0].mxu0
  %654 = vmatprep.mubr.bf16.mxu0 0
  %655 = vmatmul.mubr.bf16.gmra.mrb[0].mxu0 %v415
  %v656 = vpop.f32.mrb[0].mxu0
  %v657 = vadd.f32 %v160, %v656
  %v658 = vpop.f32.mrb[0].mxu0
  %v659 = vpop.f32.mrb[0].mxu0
  %v660 = vadd.f32 %v160, %v659
  %v661 = vpop.f32.mrb[0].mxu0
  %662 = vmatprep.mubr.bf16.mxu0 0
  %663 = vmatmul.mubr.bf16.gmra.mrb[0].mxu0 %v416
  %v664 = vpop.f32.mrb[0].mxu0
  %v665 = vadd.f32 %v160, %v664
  %v666 = vpop.f32.mrb[0].mxu0
  %v667 = vpop.f32.mrb[0].mxu0
  %v668 = vadd.f32 %v160, %v667
  %v669 = vpop.f32.mrb[0].mxu0
  %670 = vmatprep.mubr.bf16.mxu0 0
  %671 = vmatmul.mubr.bf16.gmra.mrb[0].mxu0 %v417
  %v672 = vpop.f32.mrb[0].mxu0
  %v673 = vadd.f32 %v160, %v672
  %v674 = vpop.f32.mrb[0].mxu0
  %v675 = vpop.f32.mrb[0].mxu0
  %v676 = vadd.f32 %v160, %v675
  %v677 = vpop.f32.mrb[0].mxu0
  %678 = vmatprep.mubr.bf16.mxu0 0
  %679 = vmatmul.mubr.bf16.gmra.mrb[0].mxu0 %v418
  %v680 = vpop.f32.mrb[0].mxu0
  %v681 = vadd.f32 %v160, %v680
  %v682 = vpop.f32.mrb[0].mxu0
  %v683 = vpop.f32.mrb[0].mxu0
  %v684 = vadd.f32 %v160, %v683
  %v685 = vpop.f32.mrb[0].mxu0
  %686 = vmatprep.mubr.bf16.mxu0 0
  %687 = vmatmul.mubr.bf16.gmra.mrb[0].mxu0 %v419
  %v688 = vpop.f32.mrb[0].mxu0
  %v689 = vadd.f32 %v160, %v688
  %v690 = vpop.f32.mrb[0].mxu0
  %v691 = vpop.f32.mrb[0].mxu0
  %v692 = vadd.f32 %v160, %v691
  %v693 = vpop.f32.mrb[0].mxu0
  %694 = vmatprep.mubr.bf16.mxu0 0
  %695 = vmatmul.mubr.bf16.gmra.mrb[0].mxu0 %v420
  %v696 = vpop.f32.mrb[0].mxu0
  %v697 = vadd.f32 %v160, %v696
  %v698 = vpop.f32.mrb[0].mxu0
  %v699 = vpop.f32.mrb[0].mxu0
  %v700 = vadd.f32 %v160, %v699
  %v701 = vpop.f32.mrb[0].mxu0
  %702 = vmatprep.mubr.bf16.mxu0 0
  %703 = vmatmul.mubr.bf16.gmra.mrb[0].mxu0 %v421
  %v704 = vpop.f32.mrb[0].mxu0
  %v705 = vadd.f32 %v160, %v704
  %v706 = vpop.f32.mrb[0].mxu0
  %v707 = vpop.f32.mrb[0].mxu0
  %v708 = vadd.f32 %v160, %v707
  %v709 = vpop.f32.mrb[0].mxu0
  %710 = vmatprep.mubr.bf16.mxu0 0
  %711 = vmatmul.mubr.bf16.gmra.mrb[0].mxu0 %v422
  %v712 = vpop.f32.mrb[0].mxu0
  %v713 = vadd.f32 %v160, %v712
  %v714 = vpop.f32.mrb[0].mxu0
  %v715 = vpop.f32.mrb[0].mxu0
  %v716 = vadd.f32 %v160, %v715
  %v717 = vpop.f32.mrb[0].mxu0
  %718 = vmatprep.mubr.bf16.mxu0 0
  %719 = vmatmul.mubr.bf16.gmra.mrb[0].mxu0 %v423
  %v720 = vpop.f32.mrb[0].mxu0
  %v721 = vadd.f32 %v160, %v720
  %v722 = vpop.f32.mrb[0].mxu0
  %v723 = vpop.f32.mrb[0].mxu0
  %v724 = vadd.f32 %v160, %v723
  %v725 = vpop.f32.mrb[0].mxu0
  %726 = vmatprep.mubr.bf16.mxu0 0
  %727 = vmatmul.mubr.bf16.gmra.mrb[0].mxu0 %v424
  %v728 = vpop.f32.mrb[0].mxu0
  %v729 = vadd.f32 %v160, %v728
  %v730 = vpop.f32.mrb[0].mxu0
  %v731 = vpop.f32.mrb[0].mxu0
  %v732 = vadd.f32 %v160, %v731
  %v733 = vpop.f32.mrb[0].mxu0
  %734 = vmatprep.mubr.bf16.mxu0 0
  %735 = vmatmul.mubr.bf16.gmra.mrb[0].mxu0 %v425
  %v736 = vpop.f32.mrb[0].mxu0
  %v737 = vadd.f32 %v160, %v736
  %v738 = vpop.f32.mrb[0].mxu0
  %v739 = vpop.f32.mrb[0].mxu0
  %v740 = vadd.f32 %v160, %v739
  %v741 = vpop.f32.mrb[0].mxu0
  %742 = vmatprep.mubr.bf16.mxu0 0
  %743 = vmatmul.mubr.bf16.gmra.mrb[0].mxu0 %v426
  %v744 = vpop.f32.mrb[0].mxu0
  %v745 = vadd.f32 %v160, %v744
  %v746 = vpop.f32.mrb[0].mxu0
  %v747 = vpop.f32.mrb[0].mxu0
  %v748 = vadd.f32 %v160, %v747
  %v749 = vpop.f32.mrb[0].mxu0
  %750 = vmatprep.mubr.bf16.mxu0 0
  %751 = vmatmul.mubr.bf16.gmra.mrb[0].mxu0 %v427
  %v752 = vpop.f32.mrb[0].mxu0
  %v753 = vadd.f32 %v160, %v752
  %v754 = vpop.f32.mrb[0].mxu0
  %v755 = vpop.f32.mrb[0].mxu0
  %v756 = vadd.f32 %v160, %v755
  %v757 = vpop.f32.mrb[0].mxu0
  %758 = vmatprep.mubr.bf16.mxu0 0
  %759 = vmatmul.mubr.bf16.gmra.mrb[0].mxu0 %v428
  %v760 = vpop.f32.mrb[0].mxu0
  %v761 = vadd.f32 %v160, %v760
  %v762 = vpop.f32.mrb[0].mxu0
  %v763 = vpop.f32.mrb[0].mxu0
  %v764 = vadd.f32 %v160, %v763
  %v765 = vpop.f32.mrb[0].mxu0
  %766 = vmatprep.mubr.bf16.mxu0 0
  %767 = vmatmul.mubr.bf16.gmra.mrb[0].mxu0 %v429
  %v768 = vpop.f32.mrb[0].mxu0
  %v769 = vadd.f32 %v160, %v768
  %v770 = vpop.f32.mrb[0].mxu0
  %v771 = vpop.f32.mrb[0].mxu0
  %v772 = vadd.f32 %v160, %v771
  %v773 = vpop.f32.mrb[0].mxu0
  %774 = vmatprep.mubr.bf16.mxu0 0
  %775 = vmatmul.mubr.bf16.gmra.mrb[0].mxu0 %v430
  %v776 = vpop.f32.mrb[0].mxu0
  %v777 = vadd.f32 %v160, %v776
  %v778 = vpop.f32.mrb[0].mxu0
  %v779 = vpop.f32.mrb[0].mxu0
  %v780 = vadd.f32 %v160, %v779
  %v781 = vpop.f32.mrb[0].mxu0
  %782 = vmatprep.mubr.bf16.mxu0 0
  %783 = vmatmul.mubr.bf16.gmra.mrb[0].mxu0 %v431
  %v784 = vpop.f32.mrb[0].mxu0
  %v785 = vadd.f32 %v160, %v784
  %v786 = vpop.f32.mrb[0].mxu0
  %v787 = vpop.f32.mrb[0].mxu0
  %v788 = vadd.f32 %v160, %v787
  %v789 = vpop.f32.mrb[0].mxu0
  %790 = vmatprep.mubr.bf16.mxu0 0
  %791 = vmatmul.mubr.bf16.gmra.mrb[0].mxu0 %v432
  %v792 = vpop.f32.mrb[0].mxu0
  %v793 = vadd.f32 %v160, %v792
  %v794 = vpop.f32.mrb[0].mxu0
  %v795 = vpop.f32.mrb[0].mxu0
  %v796 = vadd.f32 %v160, %v795
  %v797 = vpop.f32.mrb[0].mxu0
  %798 = vmatprep.mubr.bf16.mxu0 0
  %799 = vmatmul.mubr.bf16.gmra.mrb[0].mxu0 %v433
  %v800 = vpop.f32.mrb[0].mxu0
  %v801 = vadd.f32 %v160, %v800
  %v802 = vpop.f32.mrb[0].mxu0
  %v803 = vpop.f32.mrb[0].mxu0
  %v804 = vadd.f32 %v160, %v803
  %v805 = vpop.f32.mrb[0].mxu0
  %806 = vmatprep.mubr.bf16.mxu0 0
  %807 = vmatmul.mubr.bf16.gmra.mrb[0].mxu0 %v434
  %v808 = vpop.f32.mrb[0].mxu0
  %v809 = vadd.f32 %v160, %v808
  %v810 = vpop.f32.mrb[0].mxu0
  %v811 = vpop.f32.mrb[0].mxu0
  %v812 = vadd.f32 %v160, %v811
  %v813 = vpop.f32.mrb[0].mxu0
  %814 = vmatprep.mubr.bf16.mxu0 0
  %815 = vmatmul.mubr.bf16.gmra.mrb[0].mxu0 %v435
  %v816 = vpop.f32.mrb[0].mxu0
  %v817 = vadd.f32 %v160, %v816
  %v818 = vpop.f32.mrb[0].mxu0
  %v819 = vpop.f32.mrb[0].mxu0
  %v820 = vadd.f32 %v160, %v819
  %v821 = vpop.f32.mrb[0].mxu0
  %822 = vmatprep.mubr.bf16.mxu0 0
  %823 = vmatmul.mubr.bf16.gmra.mrb[0].mxu0 %v436
  %v824 = vpop.f32.mrb[0].mxu0
  %v825 = vadd.f32 %v160, %v824
  %v826 = vpop.f32.mrb[0].mxu0
  %v827 = vpop.f32.mrb[0].mxu0
  %v828 = vadd.f32 %v160, %v827
  %v829 = vpop.f32.mrb[0].mxu0
  %830 = vmatprep.mubr.bf16.mxu0 0
  %831 = vmatmul.mubr.bf16.gmra.mrb[0].mxu0 %v437
  %v832 = vpop.f32.mrb[0].mxu0
  %v833 = vadd.f32 %v160, %v832
  %v834 = vpop.f32.mrb[0].mxu0
  %v835 = vpop.f32.mrb[0].mxu0
  %v836 = vadd.f32 %v160, %v835
  %v837 = vpop.f32.mrb[0].mxu0
  %838 = vmatprep.mubr.bf16.mxu0 0
  %839 = vmatmul.mubr.bf16.gmra.mrb[0].mxu0 %v438
  %v840 = vpop.f32.mrb[0].mxu0
  %v841 = vadd.f32 %v160, %v840
  %v842 = vpop.f32.mrb[0].mxu0
  %v843 = vpop.f32.mrb[0].mxu0
  %v844 = vadd.f32 %v160, %v843
  %v845 = vpop.f32.mrb[0].mxu0
  %846 = vmatprep.mubr.bf16.mxu0 0
  %847 = vmatmul.mubr.bf16.gmra.mrb[0].mxu0 %v439
  %v848 = vpop.f32.mrb[0].mxu0
  %v849 = vadd.f32 %v160, %v848
  %v850 = vpop.f32.mrb[0].mxu0
  %v851 = vpop.f32.mrb[0].mxu0
  %v852 = vadd.f32 %v160, %v851
  %v853 = vpop.f32.mrb[0].mxu0
  %854 = vmatprep.mubr.bf16.mxu0 0
  %855 = vmatmul.mubr.bf16.gmra.mrb[0].mxu0 %v440
  %v856 = vpop.f32.mrb[0].mxu0
  %v857 = vadd.f32 %v160, %v856
  %v858 = vpop.f32.mrb[0].mxu0
  %v859 = vpop.f32.mrb[0].mxu0
  %v860 = vadd.f32 %v160, %v859
  %v861 = vpop.f32.mrb[0].mxu0
  %862 = vmatprep.mubr.bf16.mxu0 0
  %863 = vmatmul.mubr.bf16.gmra.mrb[0].mxu0 %v441
  %v864 = vpop.f32.mrb[0].mxu0
  %v865 = vadd.f32 %v160, %v864
  %v866 = vpop.f32.mrb[0].mxu0
  %v867 = vpop.f32.mrb[0].mxu0
  %v868 = vadd.f32 %v160, %v867
  %v869 = vpop.f32.mrb[0].mxu0
  %870 = vmatprep.mubr.bf16.mxu0 0
  %871 = vmatmul.mubr.bf16.gmra.mrb[0].mxu0 %v442
  %v872 = vpop.f32.mrb[0].mxu0
  %v873 = vadd.f32 %v160, %v872
  %v874 = vpop.f32.mrb[0].mxu0
  %v875 = vpop.f32.mrb[0].mxu0
  %v876 = vadd.f32 %v160, %v875
  %v877 = vpop.f32.mrb[0].mxu0
  %878 = vmatprep.mubr.bf16.mxu0 0
  %879 = vmatmul.mubr.bf16.gmra.mrb[0].mxu0 %v443
  %v880 = vpop.f32.mrb[0].mxu0
  %v881 = vadd.f32 %v160, %v880
  %v882 = vpop.f32.mrb[0].mxu0
  %v883 = vpop.f32.mrb[0].mxu0
  %v884 = vadd.f32 %v160, %v883
  %v885 = vpop.f32.mrb[0].mxu0
  %886 = vmatprep.mubr.bf16.mxu0 0
  %887 = vmatmul.mubr.bf16.gmra.mrb[0].mxu0 %v444
  %v888 = vpop.f32.mrb[0].mxu0
  %v889 = vadd.f32 %v160, %v888
  %v890 = vpop.f32.mrb[0].mxu0
  %v891 = vpop.f32.mrb[0].mxu0
  %v892 = vadd.f32 %v160, %v891
  %v893 = vpop.f32.mrb[0].mxu0
  %894 = vmatprep.mubr.bf16.mxu0 0
  %895 = vmatmul.mubr.bf16.gmra.mrb[0].mxu0 %v445
  %v896 = vpop.f32.mrb[0].mxu0
  %v897 = vadd.f32 %v160, %v896
  %v898 = vpop.f32.mrb[0].mxu0
  %v899 = vpop.f32.mrb[0].mxu0
  %v900 = vadd.f32 %v160, %v899
  %v901 = vpop.f32.mrb[0].mxu0
  %902 = vmatprep.mubr.bf16.mxu0 0
  %903 = vmatmul.mubr.bf16.gmra.mrb[0].mxu0 %v446
  %v904 = vpop.f32.mrb[0].mxu0
  %v905 = vadd.f32 %v160, %v904
  %v906 = vpop.f32.mrb[0].mxu0
  %v907 = vpop.f32.mrb[0].mxu0
  %v908 = vadd.f32 %v160, %v907
  %v909 = vpop.f32.mrb[0].mxu0
  %910 = vmatprep.mubr.bf16.mxu0 0
  %911 = vmatmul.mubr.bf16.gmra.mrb[0].mxu0 %v447
  %v912 = vpop.f32.mrb[0].mxu0
  %v913 = vadd.f32 %v160, %v912
  %v914 = vpop.f32.mrb[0].mxu0
  %v915 = vpop.f32.mrb[0].mxu0
  %v916 = vadd.f32 %v160, %v915
  %v917 = vpop.f32.mrb[0].mxu0
  %918 = vmatprep.mubr.bf16.mxu0 0
  %919 = vmatmul.mubr.bf16.gmra.mrb[0].mxu0 %v448
  %v920 = vpop.f32.mrb[0].mxu0
  %v921 = vadd.f32 %v160, %v920
  %v922 = vpop.f32.mrb[0].mxu0
  %v923 = vpop.f32.mrb[0].mxu0
  %v924 = vadd.f32 %v160, %v923
  %v925 = vpop.f32.mrb[0].mxu0
  %926 = vmatprep.mubr.bf16.mxu0 0
  %927 = vmatmul.mubr.bf16.gmra.mrb[0].mxu0 %v449
  %v928 = vpop.f32.mrb[0].mxu0
  %v929 = vadd.f32 %v160, %v928
  %v930 = vpop.f32.mrb[0].mxu0
  %v931 = vpop.f32.mrb[0].mxu0
  %v932 = vadd.f32 %v160, %v931
  %v933 = vpop.f32.mrb[0].mxu0
  %934 = vmatprep.mubr.bf16.mxu0 0
  %935 = vmatmul.mubr.bf16.gmra.mrb[0].mxu0 %v450
  %v936 = vpop.f32.mrb[0].mxu0
  %v937 = vadd.f32 %v160, %v936
  %v938 = vpop.f32.mrb[0].mxu0
  %v939 = vpop.f32.mrb[0].mxu0
  %v940 = vadd.f32 %v160, %v939
  %v941 = vpop.f32.mrb[0].mxu0
  %942 = vmatprep.mubr.bf16.mxu0 0
  %943 = vmatmul.mubr.bf16.gmra.mrb[0].mxu0 %v451
  %v944 = vpop.f32.mrb[0].mxu0
  %v945 = vadd.f32 %v160, %v944
  %v946 = vpop.f32.mrb[0].mxu0
  %v947 = vpop.f32.mrb[0].mxu0
  %v948 = vadd.f32 %v160, %v947
  %v949 = vpop.f32.mrb[0].mxu0
  %950 = vmatprep.mubr.bf16.mxu0 0
  %951 = vmatmul.mubr.bf16.gmra.mrb[0].mxu0 %v452
  %v952 = vpop.f32.mrb[0].mxu0
  %v953 = vadd.f32 %v160, %v952
  %v954 = vpop.f32.mrb[0].mxu0
  %v955 = vpop.f32.mrb[0].mxu0
  %v956 = vadd.f32 %v160, %v955
  %v957 = vpop.f32.mrb[0].mxu0
  %958 = vmatprep.mubr.bf16.mxu0 0
  %959 = vmatmul.mubr.bf16.gmra.mrb[0].mxu0 %v453
  %v960 = vpop.f32.mrb[0].mxu0
  %v961 = vadd.f32 %v160, %v960
  %v962 = vpop.f32.mrb[0].mxu0
  %v963 = vpop.f32.mrb[0].mxu0
  %v964 = vadd.f32 %v160, %v963
  %v965 = vpop.f32.mrb[0].mxu0
  %966 = vmatprep.mubr.bf16.mxu0 0
  %967 = vmatmul.mubr.bf16.gmra.mrb[0].mxu0 %v454
  %v968 = vpop.f32.mrb[0].mxu0
  %v969 = vadd.f32 %v160, %v968
  %v970 = vpop.f32.mrb[0].mxu0
  %v971 = vpop.f32.mrb[0].mxu0
  %v972 = vadd.f32 %v160, %v971
  %v973 = vpop.f32.mrb[0].mxu0
  %974 = vmatprep.mubr.bf16.mxu0 0
  %975 = vmatmul.mubr.bf16.gmra.mrb[0].mxu0 %v455
  %v976 = vpop.f32.mrb[0].mxu0
  %v977 = vadd.f32 %v160, %v976
  %v978 = vpop.f32.mrb[0].mxu0
  %v979 = vpop.f32.mrb[0].mxu0
  %v980 = vadd.f32 %v160, %v979
  %v981 = vpop.f32.mrb[0].mxu0
  %982 = vmatprep.mubr.bf16.mxu0 0
  %983 = vmatmul.mubr.bf16.gmra.mrb[0].mxu0 %v456
  %v984 = vpop.f32.mrb[0].mxu0
  %v985 = vadd.f32 %v160, %v984
  %v986 = vpop.f32.mrb[0].mxu0
  %v987 = vpop.f32.mrb[0].mxu0
  %v988 = vadd.f32 %v160, %v987
  %v989 = vpop.f32.mrb[0].mxu0
  %990 = vmatprep.mubr.bf16.mxu0 0
  %991 = vmatmul.mubr.bf16.gmra.mrb[0].mxu0 %v457
  %v992 = vpop.f32.mrb[0].mxu0
  %v993 = vadd.f32 %v160, %v992
  %v994 = vpop.f32.mrb[0].mxu0
  %v995 = vpop.f32.mrb[0].mxu0
  %v996 = vadd.f32 %v160, %v995
  %v997 = vpop.f32.mrb[0].mxu0
  %998 = vmatprep.mubr.bf16.mxu0 0
  %999 = vmatmul.mubr.bf16.gmra.mrb[0].mxu0 %v458
  %v1000 = vpop.f32.mrb[0].mxu0
  %v1001 = vadd.f32 %v160, %v1000
  %v1002 = vpop.f32.mrb[0].mxu0
  %v1003 = vpop.f32.mrb[0].mxu0
  %v1004 = vadd.f32 %v160, %v1003
  %v1005 = vpop.f32.mrb[0].mxu0
  %1006 = vmatprep.mubr.bf16.mxu0 0
  %1007 = vmatmul.mubr.bf16.gmra.mrb[0].mxu0 %v459
  %v1008 = vpop.f32.mrb[0].mxu0
  %v1009 = vadd.f32 %v160, %v1008
  %v1010 = vpop.f32.mrb[0].mxu0
  %v1011 = vpop.f32.mrb[0].mxu0
  %v1012 = vadd.f32 %v160, %v1011
  %v1013 = vpop.f32.mrb[0].mxu0
  %1014 = vmatprep.mubr.bf16.mxu0 0
  %1015 = vmatmul.mubr.bf16.gmra.mrb[0].mxu0 %v460
  %v1016 = vpop.f32.mrb[0].mxu0
  %v1017 = vadd.f32 %v160, %v1016
  %v1018 = vpop.f32.mrb[0].mxu0
  %v1019 = vpop.f32.mrb[0].mxu0
  %v1020 = vadd.f32 %v160, %v1019
  %v1021 = vpop.f32.mrb[0].mxu0
  %1022 = vmatprep.mubr.bf16.mxu0 0
  %1023 = vmatmul.mubr.bf16.gmra.mrb[0].mxu0 %v461
  %v1024 = vpop.f32.mrb[0].mxu0
  %v1025 = vadd.f32 %v160, %v1024
  %v1026 = vpop.f32.mrb[0].mxu0
  %v1027 = vpop.f32.mrb[0].mxu0
  %v1028 = vadd.f32 %v160, %v1027
  %v1029 = vpop.f32.mrb[0].mxu0
  %1030 = vmatprep.mubr.bf16.mxu0 0
  %1031 = vmatmul.mubr.bf16.gmra.mrb[0].mxu0 %v462
  %v1032 = vpop.f32.mrb[0].mxu0
  %v1033 = vadd.f32 %v160, %v1032
  %v1034 = vpop.f32.mrb[0].mxu0
  %v1035 = vpop.f32.mrb[0].mxu0
  %v1036 = vadd.f32 %v160, %v1035
  %v1037 = vpop.f32.mrb[0].mxu0
  %1038 = vmatprep.mubr.bf16.mxu0 0
  %1039 = vmatmul.mubr.bf16.gmra.mrb[0].mxu0 %v463
  %v1040 = vpop.f32.mrb[0].mxu0
  %v1041 = vadd.f32 %v160, %v1040
  %v1042 = vpop.f32.mrb[0].mxu0
  %v1043 = vpop.f32.mrb[0].mxu0
  %v1044 = vadd.f32 %v160, %v1043
  %v1045 = vpop.f32.mrb[0].mxu0
  %1046 = vmatprep.mubr.bf16.mxu0 0
  %1047 = vmatmul.mubr.bf16.gmra.mrb[0].mxu0 %v464
  %v1048 = vpop.f32.mrb[0].mxu0
  %v1049 = vadd.f32 %v160, %v1048
  %v1050 = vpop.f32.mrb[0].mxu0
  %v1051 = vpop.f32.mrb[0].mxu0
  %v1052 = vadd.f32 %v160, %v1051
  %v1053 = vpop.f32.mrb[0].mxu0
  %1054 = vmatprep.mubr.bf16.mxu0 0
  %1055 = vmatmul.mubr.bf16.gmra.mrb[0].mxu0 %v465
  %v1056 = vpop.f32.mrb[0].mxu0
  %v1057 = vadd.f32 %v160, %v1056
  %v1058 = vpop.f32.mrb[0].mxu0
  %v1059 = vpop.f32.mrb[0].mxu0
  %v1060 = vadd.f32 %v160, %v1059
  %v1061 = vpop.f32.mrb[0].mxu0
  %1062 = vmatprep.mubr.bf16.mxu0 0
  %1063 = vmatmul.mubr.bf16.gmra.mrb[0].mxu0 %v466
  %v1064 = vpop.f32.mrb[0].mxu0
  %v1065 = vadd.f32 %v160, %v1064
  %v1066 = vpop.f32.mrb[0].mxu0
  %v1067 = vpop.f32.mrb[0].mxu0
  %v1068 = vadd.f32 %v160, %v1067
  %v1069 = vpop.f32.mrb[0].mxu0
  %1070 = vmatprep.mubr.bf16.mxu0 0
  %1071 = vmatmul.mubr.bf16.gmra.mrb[0].mxu0 %v467
  %v1072 = vpop.f32.mrb[0].mxu0
  %v1073 = vadd.f32 %v160, %v1072
  %v1074 = vpop.f32.mrb[0].mxu0
  %v1075 = vpop.f32.mrb[0].mxu0
  %v1076 = vadd.f32 %v160, %v1075
  %v1077 = vpop.f32.mrb[0].mxu0
  %1078 = vmatprep.mubr.bf16.mxu0 0
  %1079 = vmatmul.mubr.bf16.gmra.mrb[0].mxu0 %v468
  %v1080 = vpop.f32.mrb[0].mxu0
  %v1081 = vadd.f32 %v160, %v1080
  %v1082 = vpop.f32.mrb[0].mxu0
  %v1083 = vpop.f32.mrb[0].mxu0
  %v1084 = vadd.f32 %v160, %v1083
  %v1085 = vpop.f32.mrb[0].mxu0
  %1086 = vmatprep.mubr.bf16.mxu0 0
  %1087 = vmatmul.mubr.bf16.gmra.mrb[0].mxu0 %v469
  %v1088 = vpop.f32.mrb[0].mxu0
  %v1089 = vadd.f32 %v160, %v1088
  %v1090 = vpop.f32.mrb[0].mxu0
  %v1091 = vpop.f32.mrb[0].mxu0
  %v1092 = vadd.f32 %v160, %v1091
  %v1093 = vpop.f32.mrb[0].mxu0
  %1094 = vmatprep.mubr.bf16.mxu0 0
  %1095 = vmatmul.mubr.bf16.gmra.mrb[0].mxu0 %v470
  %v1096 = vpop.f32.mrb[0].mxu0
  %v1097 = vadd.f32 %v160, %v1096
  %v1098 = vpop.f32.mrb[0].mxu0
  %v1099 = vpop.f32.mrb[0].mxu0
  %v1100 = vadd.f32 %v160, %v1099
  %v1101 = vpop.f32.mrb[0].mxu0
  %1102 = vmatprep.mubr.bf16.mxu0 0
  %1103 = vmatmul.mubr.bf16.gmra.mrb[0].mxu0 %v471
  %v1104 = vpop.f32.mrb[0].mxu0
  %v1105 = vadd.f32 %v160, %v1104
  %v1106 = vpop.f32.mrb[0].mxu0
  %v1107 = vpop.f32.mrb[0].mxu0
  %v1108 = vadd.f32 %v160, %v1107
  %v1109 = vpop.f32.mrb[0].mxu0
  %1110 = vdwg.mxu0
  %v1111 = vmax.f32 %v617, 0.0
  %v1112 = vmax.f32 %v620, 0.0
  %v1113 = vmax.f32 %v625, 0.0
  %v1114 = vmax.f32 %v628, 0.0
  %v1115 = vmax.f32 %v633, 0.0
  %v1116 = vmax.f32 %v636, 0.0
  %v1117 = vmax.f32 %v641, 0.0
  %v1118 = vmax.f32 %v644, 0.0
  %v1119 = vmax.f32 %v649, 0.0
  %v1120 = vmax.f32 %v652, 0.0
  %v1121 = vmax.f32 %v657, 0.0
  %v1122 = vmax.f32 %v660, 0.0
  %v1123 = vmax.f32 %v665, 0.0
  %v1124 = vmax.f32 %v668, 0.0
  %v1125 = vmax.f32 %v673, 0.0
  %v1126 = vmax.f32 %v676, 0.0
  %v1127 = vmax.f32 %v681, 0.0
  %v1128 = vmax.f32 %v684, 0.0
  %v1129 = vmax.f32 %v689, 0.0
  %v1130 = vmax.f32 %v692, 0.0
  %v1131 = vmax.f32 %v697, 0.0
  %v1132 = vmax.f32 %v700, 0.0
  %v1133 = vmax.f32 %v705, 0.0
  %v1134 = vmax.f32 %v708, 0.0
  %v1135 = vmax.f32 %v713, 0.0
  %v1136 = vmax.f32 %v716, 0.0
  %v1137 = vmax.f32 %v721, 0.0
  %v1138 = vmax.f32 %v724, 0.0
  %v1139 = vmax.f32 %v729, 0.0
  %v1140 = vmax.f32 %v732, 0.0
  %v1141 = vmax.f32 %v737, 0.0
  %v1142 = vmax.f32 %v740, 0.0
  %v1143 = vmax.f32 %v745, 0.0
  %v1144 = vmax.f32 %v748, 0.0
  %v1145 = vmax.f32 %v753, 0.0
  %v1146 = vmax.f32 %v756, 0.0
  %v1147 = vmax.f32 %v761, 0.0
  %v1148 = vmax.f32 %v764, 0.0
  %v1149 = vmax.f32 %v769, 0.0
  %v1150 = vmax.f32 %v772, 0.0
  %v1151 = vmax.f32 %v777, 0.0
  %v1152 = vmax.f32 %v780, 0.0
  %v1153 = vmax.f32 %v785, 0.0
  %v1154 = vmax.f32 %v788, 0.0
  %v1155 = vmax.f32 %v793, 0.0
  %v1156 = vmax.f32 %v796, 0.0
  %v1157 = vmax.f32 %v801, 0.0
  %v1158 = vmax.f32 %v804, 0.0
  %v1159 = vmax.f32 %v809, 0.0
  %v1160 = vmax.f32 %v812, 0.0
  %v1161 = vmax.f32 %v817, 0.0
  %v1162 = vmax.f32 %v820, 0.0
  %v1163 = vmax.f32 %v825, 0.0
  %v1164 = vmax.f32 %v828, 0.0
  %v1165 = vmax.f32 %v833, 0.0
  %v1166 = vmax.f32 %v836, 0.0
  %v1167 = vmax.f32 %v841, 0.0
  %v1168 = vmax.f32 %v844, 0.0
  %v1169 = vmax.f32 %v849, 0.0
  %v1170 = vmax.f32 %v852, 0.0
  %v1171 = vmax.f32 %v857, 0.0
  %v1172 = vmax.f32 %v860, 0.0
  %v1173 = vmax.f32 %v865, 0.0
  %v1174 = vmax.f32 %v868, 0.0
  %v1175 = vmax.f32 %v873, 0.0
  %v1176 = vmax.f32 %v876, 0.0
  %v1177 = vmax.f32 %v881, 0.0
  %v1178 = vmax.f32 %v884, 0.0
  %v1179 = vmax.f32 %v889, 0.0
  %v1180 = vmax.f32 %v892, 0.0
  %v1181 = vmax.f32 %v897, 0.0
  %v1182 = vmax.f32 %v900, 0.0
  %v1183 = vmax.f32 %v905, 0.0
  %v1184 = vmax.f32 %v908, 0.0
  %v1185 = vmax.f32 %v913, 0.0
  %v1186 = vmax.f32 %v916, 0.0
  %v1187 = vmax.f32 %v921, 0.0
  %v1188 = vmax.f32 %v924, 0.0
  %v1189 = vmax.f32 %v929, 0.0
  %v1190 = vmax.f32 %v932, 0.0
  %v1191 = vmax.f32 %v937, 0.0
  %v1192 = vmax.f32 %v940, 0.0
  %v1193 = vmax.f32 %v945, 0.0
  %v1194 = vmax.f32 %v948, 0.0
  %v1195 = vmax.f32 %v953, 0.0
  %v1196 = vmax.f32 %v956, 0.0
  %v1197 = vmax.f32 %v961, 0.0
  %v1198 = vmax.f32 %v964, 0.0
  %v1199 = vmax.f32 %v969, 0.0
  %v1200 = vmax.f32 %v972, 0.0
  %v1201 = vmax.f32 %v977, 0.0
  %v1202 = vmax.f32 %v980, 0.0
  %v1203 = vmax.f32 %v985, 0.0
  %v1204 = vmax.f32 %v988, 0.0
  %v1205 = vmax.f32 %v993, 0.0
  %v1206 = vmax.f32 %v996, 0.0
  %v1207 = vmax.f32 %v1001, 0.0
  %v1208 = vmax.f32 %v1004, 0.0
  %v1209 = vmax.f32 %v1009, 0.0
  %v1210 = vmax.f32 %v1012, 0.0
  %v1211 = vmax.f32 %v1017, 0.0
  %v1212 = vmax.f32 %v1020, 0.0
  %v1213 = vmax.f32 %v1025, 0.0
  %v1214 = vmax.f32 %v1028, 0.0
  %v1215 = vmax.f32 %v1033, 0.0
  %v1216 = vmax.f32 %v1036, 0.0
  %v1217 = vmax.f32 %v1041, 0.0
  %v1218 = vmax.f32 %v1044, 0.0
  %v1219 = vmax.f32 %v1049, 0.0
  %v1220 = vmax.f32 %v1052, 0.0
  %v1221 = vmax.f32 %v1057, 0.0
  %v1222 = vmax.f32 %v1060, 0.0
  %v1223 = vmax.f32 %v1065, 0.0
  %v1224 = vmax.f32 %v1068, 0.0
  %v1225 = vmax.f32 %v1073, 0.0
  %v1226 = vmax.f32 %v1076, 0.0
  %v1227 = vmax.f32 %v1081, 0.0
  %v1228 = vmax.f32 %v1084, 0.0
  %v1229 = vmax.f32 %v1089, 0.0
  %v1230 = vmax.f32 %v1092, 0.0
  %v1231 = vmax.f32 %v1097, 0.0
  %v1232 = vmax.f32 %v1100, 0.0
  %v1233 = vmax.f32 %v1105, 0.0
  %v1234 = vmax.f32 %v1108, 0.0
  %v1235 = vpack.c.bf16 %v1112, %v1111
  %v1236 = vpack.c.bf16 %v1114, %v1113
  %v1237 = vpack.c.bf16 %v1116, %v1115
  %v1238 = vpack.c.bf16 %v1118, %v1117
  %v1239 = vpack.c.bf16 %v1120, %v1119
  %v1240 = vpack.c.bf16 %v1122, %v1121
  %v1241 = vpack.c.bf16 %v1124, %v1123
  %v1242 = vpack.c.bf16 %v1126, %v1125
  %v1243 = vpack.c.bf16 %v1128, %v1127
  %v1244 = vpack.c.bf16 %v1130, %v1129
  %v1245 = vpack.c.bf16 %v1132, %v1131
  %v1246 = vpack.c.bf16 %v1134, %v1133
  %v1247 = vpack.c.bf16 %v1136, %v1135
  %v1248 = vpack.c.bf16 %v1138, %v1137
  %v1249 = vpack.c.bf16 %v1140, %v1139
  %v1250 = vpack.c.bf16 %v1142, %v1141
  %v1251 = vpack.c.bf16 %v1144, %v1143
  %v1252 = vpack.c.bf16 %v1146, %v1145
  %v1253 = vpack.c.bf16 %v1148, %v1147
  %v1254 = vpack.c.bf16 %v1150, %v1149
  %v1255 = vpack.c.bf16 %v1152, %v1151
  %v1256 = vpack.c.bf16 %v1154, %v1153
  %v1257 = vpack.c.bf16 %v1156, %v1155
  %v1258 = vpack.c.bf16 %v1158, %v1157
  %v1259 = vpack.c.bf16 %v1160, %v1159
  %v1260 = vpack.c.bf16 %v1162, %v1161
  %v1261 = vpack.c.bf16 %v1164, %v1163
  %v1262 = vpack.c.bf16 %v1166, %v1165
  %v1263 = vpack.c.bf16 %v1168, %v1167
  %v1264 = vpack.c.bf16 %v1170, %v1169
  %v1265 = vpack.c.bf16 %v1172, %v1171
  %v1266 = vpack.c.bf16 %v1174, %v1173
  %v1267 = vpack.c.bf16 %v1176, %v1175
  %v1268 = vpack.c.bf16 %v1178, %v1177
  %v1269 = vpack.c.bf16 %v1180, %v1179
  %v1270 = vpack.c.bf16 %v1182, %v1181
  %v1271 = vpack.c.bf16 %v1184, %v1183
  %v1272 = vpack.c.bf16 %v1186, %v1185
  %v1273 = vpack.c.bf16 %v1188, %v1187
  %v1274 = vpack.c.bf16 %v1190, %v1189
  %v1275 = vpack.c.bf16 %v1192, %v1191
  %v1276 = vpack.c.bf16 %v1194, %v1193
  %v1277 = vpack.c.bf16 %v1196, %v1195
  %v1278 = vpack.c.bf16 %v1198, %v1197
  %v1279 = vpack.c.bf16 %v1200, %v1199
  %v1280 = vpack.c.bf16 %v1202, %v1201
  %v1281 = vpack.c.bf16 %v1204, %v1203
  %v1282 = vpack.c.bf16 %v1206, %v1205
  %v1283 = vpack.c.bf16 %v1208, %v1207
  %v1284 = vpack.c.bf16 %v1210, %v1209
  %v1285 = vpack.c.bf16 %v1212, %v1211
  %v1286 = vpack.c.bf16 %v1214, %v1213
  %v1287 = vpack.c.bf16 %v1216, %v1215
  %v1288 = vpack.c.bf16 %v1218, %v1217
  %v1289 = vpack.c.bf16 %v1220, %v1219
  %v1290 = vpack.c.bf16 %v1222, %v1221
  %v1291 = vpack.c.bf16 %v1224, %v1223
  %v1292 = vpack.c.bf16 %v1226, %v1225
  %v1293 = vpack.c.bf16 %v1228, %v1227
  %v1294 = vpack.c.bf16 %v1230, %v1229
  %v1295 = vpack.c.bf16 %v1232, %v1231
  %v1296 = vpack.c.bf16 %v1234, %v1233
  %v1359 = vunpack.c.l.b16 %v1235
  %v1360 = vunpack.c.h.b16 %v1235
  %v1361 = vunpack.c.l.b16 %v1236
  %v1362 = vunpack.c.h.b16 %v1236
  %v1363 = vunpack.c.l.b16 %v1237
  %v1364 = vunpack.c.h.b16 %v1237
  %v1365 = vunpack.c.l.b16 %v1238
  %v1366 = vunpack.c.h.b16 %v1238
  %v1367 = vunpack.c.l.b16 %v1239
  %v1368 = vunpack.c.h.b16 %v1239
  %v1369 = vunpack.c.l.b16 %v1240
  %v1370 = vunpack.c.h.b16 %v1240
  %v1371 = vunpack.c.l.b16 %v1241
  %v1372 = vunpack.c.h.b16 %v1241
  %v1373 = vunpack.c.l.b16 %v1242
  %v1374 = vunpack.c.h.b16 %v1242
  %v1375 = vunpack.c.l.b16 %v1243
  %v1376 = vunpack.c.h.b16 %v1243
  %v1377 = vunpack.c.l.b16 %v1244
  %v1378 = vunpack.c.h.b16 %v1244
  %v1379 = vunpack.c.l.b16 %v1245
  %v1380 = vunpack.c.h.b16 %v1245
  %v1381 = vunpack.c.l.b16 %v1246
  %v1382 = vunpack.c.h.b16 %v1246
  %v1383 = vunpack.c.l.b16 %v1247
  %v1384 = vunpack.c.h.b16 %v1247
  %v1385 = vunpack.c.l.b16 %v1248
  %v1386 = vunpack.c.h.b16 %v1248
  %v1387 = vunpack.c.l.b16 %v1249
  %v1388 = vunpack.c.h.b16 %v1249
  %v1389 = vunpack.c.l.b16 %v1250
  %v1390 = vunpack.c.h.b16 %v1250
  %v1391 = vunpack.c.l.b16 %v1251
  %v1392 = vunpack.c.h.b16 %v1251
  %v1393 = vunpack.c.l.b16 %v1252
  %v1394 = vunpack.c.h.b16 %v1252
  %v1395 = vunpack.c.l.b16 %v1253
  %v1396 = vunpack.c.h.b16 %v1253
  %v1397 = vunpack.c.l.b16 %v1254
  %v1398 = vunpack.c.h.b16 %v1254
  %v1399 = vunpack.c.l.b16 %v1255
  %v1400 = vunpack.c.h.b16 %v1255
  %v1401 = vunpack.c.l.b16 %v1256
  %v1402 = vunpack.c.h.b16 %v1256
  %v1403 = vunpack.c.l.b16 %v1257
  %v1404 = vunpack.c.h.b16 %v1257
  %v1405 = vunpack.c.l.b16 %v1258
  %v1406 = vunpack.c.h.b16 %v1258
  %v1407 = vunpack.c.l.b16 %v1259
  %v1408 = vunpack.c.h.b16 %v1259
  %v1409 = vunpack.c.l.b16 %v1260
  %v1410 = vunpack.c.h.b16 %v1260
  %v1411 = vunpack.c.l.b16 %v1261
  %v1412 = vunpack.c.h.b16 %v1261
  %v1413 = vunpack.c.l.b16 %v1262
  %v1414 = vunpack.c.h.b16 %v1262
  %v1415 = vunpack.c.l.b16 %v1263
  %v1416 = vunpack.c.h.b16 %v1263
  %v1417 = vunpack.c.l.b16 %v1264
  %v1418 = vunpack.c.h.b16 %v1264
  %v1419 = vunpack.c.l.b16 %v1265
  %v1420 = vunpack.c.h.b16 %v1265
  %v1421 = vunpack.c.l.b16 %v1266
  %v1422 = vunpack.c.h.b16 %v1266
  %v1423 = vunpack.c.l.b16 %v1267
  %v1424 = vunpack.c.h.b16 %v1267
  %v1425 = vunpack.c.l.b16 %v1268
  %v1426 = vunpack.c.h.b16 %v1268
  %v1427 = vunpack.c.l.b16 %v1269
  %v1428 = vunpack.c.h.b16 %v1269
  %v1429 = vunpack.c.l.b16 %v1270
  %v1430 = vunpack.c.h.b16 %v1270
  %v1431 = vunpack.c.l.b16 %v1271
  %v1432 = vunpack.c.h.b16 %v1271
  %v1433 = vunpack.c.l.b16 %v1272
  %v1434 = vunpack.c.h.b16 %v1272
  %v1435 = vunpack.c.l.b16 %v1273
  %v1436 = vunpack.c.h.b16 %v1273
  %v1437 = vunpack.c.l.b16 %v1274
  %v1438 = vunpack.c.h.b16 %v1274
  %v1439 = vunpack.c.l.b16 %v1275
  %v1440 = vunpack.c.h.b16 %v1275
  %v1441 = vunpack.c.l.b16 %v1276
  %v1442 = vunpack.c.h.b16 %v1276
  %v1443 = vunpack.c.l.b16 %v1277
  %v1444 = vunpack.c.h.b16 %v1277
  %v1445 = vunpack.c.l.b16 %v1278
  %v1446 = vunpack.c.h.b16 %v1278
  %v1447 = vunpack.c.l.b16 %v1279
  %v1448 = vunpack.c.h.b16 %v1279
  %v1449 = vunpack.c.l.b16 %v1280
  %v1450 = vunpack.c.h.b16 %v1280
  %v1451 = vunpack.c.l.b16 %v1281
  %v1452 = vunpack.c.h.b16 %v1281
  %v1453 = vunpack.c.l.b16 %v1282
  %v1454 = vunpack.c.h.b16 %v1282
  %v1455 = vunpack.c.l.b16 %v1283
  %v1456 = vunpack.c.h.b16 %v1283
  %v1457 = vunpack.c.l.b16 %v1284
  %v1458 = vunpack.c.h.b16 %v1284
  %v1459 = vunpack.c.l.b16 %v1285
  %v1460 = vunpack.c.h.b16 %v1285
  %v1461 = vunpack.c.l.b16 %v1286
  %v1462 = vunpack.c.h.b16 %v1286
  %v1463 = vunpack.c.l.b16 %v1287
  %v1464 = vunpack.c.h.b16 %v1287
  %v1465 = vunpack.c.l.b16 %v1288
  %v1466 = vunpack.c.h.b16 %v1288
  %v1467 = vunpack.c.l.b16 %v1289
  %v1468 = vunpack.c.h.b16 %v1289
  %v1469 = vunpack.c.l.b16 %v1290
  %v1470 = vunpack.c.h.b16 %v1290
  %v1471 = vunpack.c.l.b16 %v1291
  %v1472 = vunpack.c.h.b16 %v1291
  %v1473 = vunpack.c.l.b16 %v1292
  %v1474 = vunpack.c.h.b16 %v1292
  %v1475 = vunpack.c.l.b16 %v1293
  %v1476 = vunpack.c.h.b16 %v1293
  %v1477 = vunpack.c.l.b16 %v1294
  %v1478 = vunpack.c.h.b16 %v1294
  %v1479 = vunpack.c.l.b16 %v1295
  %v1480 = vunpack.c.h.b16 %v1295
  %v1481 = vunpack.c.l.b16 %v1296
  %v1482 = vunpack.c.h.b16 %v1296
  %v1483 = vpack.c.b16 %v1359, %v1359
  %v1484 = vpack.c.b16 %v1360, %v1360
  %v1485 = vpack.c.b16 %v1361, %v1361
  %v1486 = vpack.c.b16 %v1362, %v1362
  %v1487 = vpack.c.b16 %v1363, %v1363
  %v1488 = vpack.c.b16 %v1364, %v1364
  %v1489 = vpack.c.b16 %v1365, %v1365
  %v1490 = vpack.c.b16 %v1366, %v1366
  %v1491 = vpack.c.b16 %v1367, %v1367
  %v1492 = vpack.c.b16 %v1368, %v1368
  %v1493 = vpack.c.b16 %v1369, %v1369
  %v1494 = vpack.c.b16 %v1370, %v1370
  %v1495 = vpack.c.b16 %v1371, %v1371
  %v1496 = vpack.c.b16 %v1372, %v1372
  %v1497 = vpack.c.b16 %v1373, %v1373
  %v1498 = vpack.c.b16 %v1374, %v1374
  %v1499 = vpack.c.b16 %v1375, %v1375
  %v1500 = vpack.c.b16 %v1376, %v1376
  %v1501 = vpack.c.b16 %v1377, %v1377
  %v1502 = vpack.c.b16 %v1378, %v1378
  %v1503 = vpack.c.b16 %v1379, %v1379
  %v1504 = vpack.c.b16 %v1380, %v1380
  %v1505 = vpack.c.b16 %v1381, %v1381
  %v1506 = vpack.c.b16 %v1382, %v1382
  %v1507 = vpack.c.b16 %v1383, %v1383
  %v1508 = vpack.c.b16 %v1384, %v1384
  %v1509 = vpack.c.b16 %v1385, %v1385
  %v1510 = vpack.c.b16 %v1386, %v1386
  %v1511 = vpack.c.b16 %v1387, %v1387
  %v1512 = vpack.c.b16 %v1388, %v1388
  %v1513 = vpack.c.b16 %v1389, %v1389
  %v1514 = vpack.c.b16 %v1390, %v1390
  %v1515 = vpack.c.b16 %v1391, %v1391
  %v1516 = vpack.c.b16 %v1392, %v1392
  %v1517 = vpack.c.b16 %v1393, %v1393
  %v1518 = vpack.c.b16 %v1394, %v1394
  %v1519 = vpack.c.b16 %v1395, %v1395
  %v1520 = vpack.c.b16 %v1396, %v1396
  %v1521 = vpack.c.b16 %v1397, %v1397
  %v1522 = vpack.c.b16 %v1398, %v1398
  %v1523 = vpack.c.b16 %v1399, %v1399
  %v1524 = vpack.c.b16 %v1400, %v1400
  %v1525 = vpack.c.b16 %v1401, %v1401
  %v1526 = vpack.c.b16 %v1402, %v1402
  %v1527 = vpack.c.b16 %v1403, %v1403
  %v1528 = vpack.c.b16 %v1404, %v1404
  %v1529 = vpack.c.b16 %v1405, %v1405
  %v1530 = vpack.c.b16 %v1406, %v1406
  %v1531 = vpack.c.b16 %v1407, %v1407
  %v1532 = vpack.c.b16 %v1408, %v1408
  %v1533 = vpack.c.b16 %v1409, %v1409
  %v1534 = vpack.c.b16 %v1410, %v1410
  %v1535 = vpack.c.b16 %v1411, %v1411
  %v1536 = vpack.c.b16 %v1412, %v1412
  %v1537 = vpack.c.b16 %v1413, %v1413
  %v1538 = vpack.c.b16 %v1414, %v1414
  %v1539 = vpack.c.b16 %v1415, %v1415
  %v1540 = vpack.c.b16 %v1416, %v1416
  %v1541 = vpack.c.b16 %v1417, %v1417
  %v1542 = vpack.c.b16 %v1418, %v1418
  %v1543 = vpack.c.b16 %v1419, %v1419
  %v1544 = vpack.c.b16 %v1420, %v1420
  %v1545 = vpack.c.b16 %v1421, %v1421
  %v1546 = vpack.c.b16 %v1422, %v1422
  %v1547 = vpack.c.b16 %v1423, %v1423
  %v1548 = vpack.c.b16 %v1424, %v1424
  %v1549 = vpack.c.b16 %v1425, %v1425
  %v1550 = vpack.c.b16 %v1426, %v1426
  %v1551 = vpack.c.b16 %v1427, %v1427
  %v1552 = vpack.c.b16 %v1428, %v1428
  %v1553 = vpack.c.b16 %v1429, %v1429
  %v1554 = vpack.c.b16 %v1430, %v1430
  %v1555 = vpack.c.b16 %v1431, %v1431
  %v1556 = vpack.c.b16 %v1432, %v1432
  %v1557 = vpack.c.b16 %v1433, %v1433
  %v1558 = vpack.c.b16 %v1434, %v1434
  %v1559 = vpack.c.b16 %v1435, %v1435
  %v1560 = vpack.c.b16 %v1436, %v1436
  %v1561 = vpack.c.b16 %v1437, %v1437
  %v1562 = vpack.c.b16 %v1438, %v1438
  %v1563 = vpack.c.b16 %v1439, %v1439
  %v1564 = vpack.c.b16 %v1440, %v1440
  %v1565 = vpack.c.b16 %v1441, %v1441
  %v1566 = vpack.c.b16 %v1442, %v1442
  %v1567 = vpack.c.b16 %v1443, %v1443
  %v1568 = vpack.c.b16 %v1444, %v1444
  %v1569 = vpack.c.b16 %v1445, %v1445
  %v1570 = vpack.c.b16 %v1446, %v1446
  %v1571 = vpack.c.b16 %v1447, %v1447
  %v1572 = vpack.c.b16 %v1448, %v1448
  %v1573 = vpack.c.b16 %v1449, %v1449
  %v1574 = vpack.c.b16 %v1450, %v1450
  %v1575 = vpack.c.b16 %v1451, %v1451
  %v1576 = vpack.c.b16 %v1452, %v1452
  %v1577 = vpack.c.b16 %v1453, %v1453
  %v1578 = vpack.c.b16 %v1454, %v1454
  %v1579 = vpack.c.b16 %v1455, %v1455
  %v1580 = vpack.c.b16 %v1456, %v1456
  %v1581 = vpack.c.b16 %v1457, %v1457
  %v1582 = vpack.c.b16 %v1458, %v1458
  %v1583 = vpack.c.b16 %v1459, %v1459
  %v1584 = vpack.c.b16 %v1460, %v1460
  %v1585 = vpack.c.b16 %v1461, %v1461
  %v1586 = vpack.c.b16 %v1462, %v1462
  %v1587 = vpack.c.b16 %v1463, %v1463
  %v1588 = vpack.c.b16 %v1464, %v1464
  %v1589 = vpack.c.b16 %v1465, %v1465
  %v1590 = vpack.c.b16 %v1466, %v1466
  %v1591 = vpack.c.b16 %v1467, %v1467
  %v1592 = vpack.c.b16 %v1468, %v1468
  %v1593 = vpack.c.b16 %v1469, %v1469
  %v1594 = vpack.c.b16 %v1470, %v1470
  %v1595 = vpack.c.b16 %v1471, %v1471
  %v1596 = vpack.c.b16 %v1472, %v1472
  %v1597 = vpack.c.b16 %v1473, %v1473
  %v1598 = vpack.c.b16 %v1474, %v1474
  %v1599 = vpack.c.b16 %v1475, %v1475
  %v1600 = vpack.c.b16 %v1476, %v1476
  %v1601 = vpack.c.b16 %v1477, %v1477
  %v1602 = vpack.c.b16 %v1478, %v1478
  %v1603 = vpack.c.b16 %v1479, %v1479
  %v1604 = vpack.c.b16 %v1480, %v1480
  %v1605 = vpack.c.b16 %v1481, %v1481
  %v1606 = vpack.c.b16 %v1482, %v1482
  %vm1731 = vcmask 257024
  %1732 = vst.msk [vmem:[%s3] sm:$0xf] %vm1731, %v1483
  %1733 = vst.msk [vmem:[%s3 + $0x4] sm:$0xf] %vm1731, %v1484
  %1734 = vst.msk [vmem:[%s3 + $0x8] sm:$0xf] %vm1731, %v1485
  %1735 = vst.msk [vmem:[%s3 + $0xc] sm:$0xf] %vm1731, %v1486
  %1736 = vst.msk [vmem:[%s3 + $0x10] sm:$0xf] %vm1731, %v1487
  %1737 = vst.msk [vmem:[%s3 + $0x14] sm:$0xf] %vm1731, %v1488
  %1738 = vst.msk [vmem:[%s3 + $0x18] sm:$0xf] %vm1731, %v1489
  %1739 = vst.msk [vmem:[%s3 + $0x1c] sm:$0xf] %vm1731, %v1490
  %1740 = vst.msk [vmem:[%s3 + $0x20] sm:$0xf] %vm1731, %v1491
  %1741 = vst.msk [vmem:[%s3 + $0x24] sm:$0xf] %vm1731, %v1492
  %1742 = vst.msk [vmem:[%s3 + $0x28] sm:$0xf] %vm1731, %v1493
  %1743 = vst.msk [vmem:[%s3 + $0x2c] sm:$0xf] %vm1731, %v1494
  %1744 = vst.msk [vmem:[%s3 + $0x30] sm:$0xf] %vm1731, %v1495
  %1745 = vst.msk [vmem:[%s3 + $0x34] sm:$0xf] %vm1731, %v1496
  %1746 = vst.msk [vmem:[%s3 + $0x38] sm:$0xf] %vm1731, %v1497
  %1747 = vst.msk [vmem:[%s3 + $0x3c] sm:$0xf] %vm1731, %v1498
  %1748 = vst.msk [vmem:[%s3 + $0x40] sm:$0xf] %vm1731, %v1499
  %1749 = vst.msk [vmem:[%s3 + $0x44] sm:$0xf] %vm1731, %v1500
  %1750 = vst.msk [vmem:[%s3 + $0x48] sm:$0xf] %vm1731, %v1501
  %1751 = vst.msk [vmem:[%s3 + $0x4c] sm:$0xf] %vm1731, %v1502
  %1752 = vst.msk [vmem:[%s3 + $0x50] sm:$0xf] %vm1731, %v1503
  %1753 = vst.msk [vmem:[%s3 + $0x54] sm:$0xf] %vm1731, %v1504
  %1754 = vst.msk [vmem:[%s3 + $0x58] sm:$0xf] %vm1731, %v1505
  %1755 = vst.msk [vmem:[%s3 + $0x5c] sm:$0xf] %vm1731, %v1506
  %1756 = vst.msk [vmem:[%s3 + $0x60] sm:$0xf] %vm1731, %v1507
  %1757 = vst.msk [vmem:[%s3 + $0x64] sm:$0xf] %vm1731, %v1508
  %1758 = vst.msk [vmem:[%s3 + $0x68] sm:$0xf] %vm1731, %v1509
  %1759 = vst.msk [vmem:[%s3 + $0x6c] sm:$0xf] %vm1731, %v1510
  %1760 = vst.msk [vmem:[%s3 + $0x70] sm:$0xf] %vm1731, %v1511
  %1761 = vst.msk [vmem:[%s3 + $0x74] sm:$0xf] %vm1731, %v1512
  %1762 = vst.msk [vmem:[%s3 + $0x78] sm:$0xf] %vm1731, %v1513
  %1763 = vst.msk [vmem:[%s3 + $0x7c] sm:$0xf] %vm1731, %v1514
  %1764 = vst.msk [vmem:[%s3 + $0x80] sm:$0xf] %vm1731, %v1515
  %1765 = vst.msk [vmem:[%s3 + $0x84] sm:$0xf] %vm1731, %v1516
  %1766 = vst.msk [vmem:[%s3 + $0x88] sm:$0xf] %vm1731, %v1517
  %1767 = vst.msk [vmem:[%s3 + $0x8c] sm:$0xf] %vm1731, %v1518
  %1768 = vst.msk [vmem:[%s3 + $0x90] sm:$0xf] %vm1731, %v1519
  %1769 = vst.msk [vmem:[%s3 + $0x94] sm:$0xf] %vm1731, %v1520
  %1770 = vst.msk [vmem:[%s3 + $0x98] sm:$0xf] %vm1731, %v1521
  %1771 = vst.msk [vmem:[%s3 + $0x9c] sm:$0xf] %vm1731, %v1522
  %1772 = vst.msk [vmem:[%s3 + $0xa0] sm:$0xf] %vm1731, %v1523
  %1773 = vst.msk [vmem:[%s3 + $0xa4] sm:$0xf] %vm1731, %v1524
  %1774 = vst.msk [vmem:[%s3 + $0xa8] sm:$0xf] %vm1731, %v1525
  %1775 = vst.msk [vmem:[%s3 + $0xac] sm:$0xf] %vm1731, %v1526
  %1776 = vst.msk [vmem:[%s3 + $0xb0] sm:$0xf] %vm1731, %v1527
  %1777 = vst.msk [vmem:[%s3 + $0xb4] sm:$0xf] %vm1731, %v1528
  %1778 = vst.msk [vmem:[%s3 + $0xb8] sm:$0xf] %vm1731, %v1529
  %1779 = vst.msk [vmem:[%s3 + $0xbc] sm:$0xf] %vm1731, %v1530
  %1780 = vst.msk [vmem:[%s3 + $0xc0] sm:$0xf] %vm1731, %v1531
  %1781 = vst.msk [vmem:[%s3 + $0xc4] sm:$0xf] %vm1731, %v1532
  %1782 = vst.msk [vmem:[%s3 + $0xc8] sm:$0xf] %vm1731, %v1533
  %1783 = vst.msk [vmem:[%s3 + $0xcc] sm:$0xf] %vm1731, %v1534
  %1784 = vst.msk [vmem:[%s3 + $0xd0] sm:$0xf] %vm1731, %v1535
  %1785 = vst.msk [vmem:[%s3 + $0xd4] sm:$0xf] %vm1731, %v1536
  %1786 = vst.msk [vmem:[%s3 + $0xd8] sm:$0xf] %vm1731, %v1537
  %1787 = vst.msk [vmem:[%s3 + $0xdc] sm:$0xf] %vm1731, %v1538
  %1788 = vst.msk [vmem:[%s3 + $0xe0] sm:$0xf] %vm1731, %v1539
  %1789 = vst.msk [vmem:[%s3 + $0xe4] sm:$0xf] %vm1731, %v1540
  %1790 = vst.msk [vmem:[%s3 + $0xe8] sm:$0xf] %vm1731, %v1541
  %1791 = vst.msk [vmem:[%s3 + $0xec] sm:$0xf] %vm1731, %v1542
  %1792 = vst.msk [vmem:[%s3 + $0xf0] sm:$0xf] %vm1731, %v1543
  %1793 = vst.msk [vmem:[%s3 + $0xf4] sm:$0xf] %vm1731, %v1544
  %1794 = vst.msk [vmem:[%s3 + $0xf8] sm:$0xf] %vm1731, %v1545
  %1795 = vst.msk [vmem:[%s3 + $0xfc] sm:$0xf] %vm1731, %v1546
  %1796 = vst.msk [vmem:[%s3 + $0x100] sm:$0xf] %vm1731, %v1547
  %1797 = vst.msk [vmem:[%s3 + $0x104] sm:$0xf] %vm1731, %v1548
  %1798 = vst.msk [vmem:[%s3 + $0x108] sm:$0xf] %vm1731, %v1549
  %1799 = vst.msk [vmem:[%s3 + $0x10c] sm:$0xf] %vm1731, %v1550
  %1800 = vst.msk [vmem:[%s3 + $0x110] sm:$0xf] %vm1731, %v1551
  %1801 = vst.msk [vmem:[%s3 + $0x114] sm:$0xf] %vm1731, %v1552
  %1802 = vst.msk [vmem:[%s3 + $0x118] sm:$0xf] %vm1731, %v1553
  %1803 = vst.msk [vmem:[%s3 + $0x11c] sm:$0xf] %vm1731, %v1554
  %1804 = vst.msk [vmem:[%s3 + $0x120] sm:$0xf] %vm1731, %v1555
  %1805 = vst.msk [vmem:[%s3 + $0x124] sm:$0xf] %vm1731, %v1556
  %1806 = vst.msk [vmem:[%s3 + $0x128] sm:$0xf] %vm1731, %v1557
  %1807 = vst.msk [vmem:[%s3 + $0x12c] sm:$0xf] %vm1731, %v1558
  %1808 = vst.msk [vmem:[%s3 + $0x130] sm:$0xf] %vm1731, %v1559
  %1809 = vst.msk [vmem:[%s3 + $0x134] sm:$0xf] %vm1731, %v1560
  %1810 = vst.msk [vmem:[%s3 + $0x138] sm:$0xf] %vm1731, %v1561
  %1811 = vst.msk [vmem:[%s3 + $0x13c] sm:$0xf] %vm1731, %v1562
  %1812 = vst.msk [vmem:[%s3 + $0x140] sm:$0xf] %vm1731, %v1563
  %1813 = vst.msk [vmem:[%s3 + $0x144] sm:$0xf] %vm1731, %v1564
  %1814 = vst.msk [vmem:[%s3 + $0x148] sm:$0xf] %vm1731, %v1565
  %1815 = vst.msk [vmem:[%s3 + $0x14c] sm:$0xf] %vm1731, %v1566
  %1816 = vst.msk [vmem:[%s3 + $0x150] sm:$0xf] %vm1731, %v1567
  %1817 = vst.msk [vmem:[%s3 + $0x154] sm:$0xf] %vm1731, %v1568
  %1818 = vst.msk [vmem:[%s3 + $0x158] sm:$0xf] %vm1731, %v1569
  %1819 = vst.msk [vmem:[%s3 + $0x15c] sm:$0xf] %vm1731, %v1570
  %1820 = vst.msk [vmem:[%s3 + $0x160] sm:$0xf] %vm1731, %v1571
  %1821 = vst.msk [vmem:[%s3 + $0x164] sm:$0xf] %vm1731, %v1572
  %1822 = vst.msk [vmem:[%s3 + $0x168] sm:$0xf] %vm1731, %v1573
  %1823 = vst.msk [vmem:[%s3 + $0x16c] sm:$0xf] %vm1731, %v1574
  %1824 = vst.msk [vmem:[%s3 + $0x170] sm:$0xf] %vm1731, %v1575
  %1825 = vst.msk [vmem:[%s3 + $0x174] sm:$0xf] %vm1731, %v1576
  %1826 = vst.msk [vmem:[%s3 + $0x178] sm:$0xf] %vm1731, %v1577
  %1827 = vst.msk [vmem:[%s3 + $0x17c] sm:$0xf] %vm1731, %v1578
  %1828 = vst.msk [vmem:[%s3 + $0x180] sm:$0xf] %vm1731, %v1579
  %1829 = vst.msk [vmem:[%s3 + $0x184] sm:$0xf] %vm1731, %v1580
  %1830 = vst.msk [vmem:[%s3 + $0x188] sm:$0xf] %vm1731, %v1581
  %1831 = vst.msk [vmem:[%s3 + $0x18c] sm:$0xf] %vm1731, %v1582
  %1832 = vst.msk [vmem:[%s3 + $0x190] sm:$0xf] %vm1731, %v1583
  %1833 = vst.msk [vmem:[%s3 + $0x194] sm:$0xf] %vm1731, %v1584
  %1834 = vst.msk [vmem:[%s3 + $0x198] sm:$0xf] %vm1731, %v1585
  %1835 = vst.msk [vmem:[%s3 + $0x19c] sm:$0xf] %vm1731, %v1586
  %1836 = vst.msk [vmem:[%s3 + $0x1a0] sm:$0xf] %vm1731, %v1587
  %1837 = vst.msk [vmem:[%s3 + $0x1a4] sm:$0xf] %vm1731, %v1588
  %1838 = vst.msk [vmem:[%s3 + $0x1a8] sm:$0xf] %vm1731, %v1589
  %1839 = vst.msk [vmem:[%s3 + $0x1ac] sm:$0xf] %vm1731, %v1590
  %1840 = vst.msk [vmem:[%s3 + $0x1b0] sm:$0xf] %vm1731, %v1591
  %1841 = vst.msk [vmem:[%s3 + $0x1b4] sm:$0xf] %vm1731, %v1592
  %1842 = vst.msk [vmem:[%s3 + $0x1b8] sm:$0xf] %vm1731, %v1593
  %1843 = vst.msk [vmem:[%s3 + $0x1bc] sm:$0xf] %vm1731, %v1594
  %1844 = vst.msk [vmem:[%s3 + $0x1c0] sm:$0xf] %vm1731, %v1595
  %1845 = vst.msk [vmem:[%s3 + $0x1c4] sm:$0xf] %vm1731, %v1596
  %1846 = vst.msk [vmem:[%s3 + $0x1c8] sm:$0xf] %vm1731, %v1597
  %1847 = vst.msk [vmem:[%s3 + $0x1cc] sm:$0xf] %vm1731, %v1598
  %1848 = vst.msk [vmem:[%s3 + $0x1d0] sm:$0xf] %vm1731, %v1599
  %1849 = vst.msk [vmem:[%s3 + $0x1d4] sm:$0xf] %vm1731, %v1600
  %1850 = vst.msk [vmem:[%s3 + $0x1d8] sm:$0xf] %vm1731, %v1601
  %1851 = vst.msk [vmem:[%s3 + $0x1dc] sm:$0xf] %vm1731, %v1602
  %1852 = vst.msk [vmem:[%s3 + $0x1e0] sm:$0xf] %vm1731, %v1603
  %1853 = vst.msk [vmem:[%s3 + $0x1e4] sm:$0xf] %vm1731, %v1604
  %1854 = vst.msk [vmem:[%s3 + $0x1e8] sm:$0xf] %vm1731, %v1605
  %vm1855 = vcmask 253952
  %1856 = vst.msk [vmem:[%s3 + $0x1ec] sm:$0x1] %vm1855, %v1606
  // Predicated region
  $region14: #{m18_forward.5} parent=0 // pred_check
    _
  $region15: #{m18_forward.5} parent=0 // pred_check_branch
    %1858 = sbr.rel (0) target = $region17
  $region16: #{m18_forward.5} parent=0 // pred_region
    _
  $region17: #{m18_forward.5} parent=0 // pred_fallthru
    _
  // Predicated region
  $region18: #{m18_forward.5} parent=0 // pred_check
    _
  $region19: #{m18_forward.5} parent=0 // pred_check_branch
    %1860 = sbr.rel (0) target = $region21
  $region20: #{m18_forward.5} parent=0 // pred_region
    _
  $region21: #{m18_forward.5} parent=0 // pred_fallthru
    _

// kernel: m18_forward.7
$region0: #{m18_forward.7}
  #allocation0 [shape = 'u32[]', space=smem, size = 0x4, offset = 0x4, fixed_abs, tag = 'smem constant byte address 0x4 - core index']
  #allocation1 [shape = 'u32[144,128]{1,0:T(1,128)}', space=vmem, size = 0x12000, scoped, tag = 'internal scratch']
  #allocation2 [shape = 'f32[46,64]{1,0:T(8,128)}', space=vmem, size = 0x6000, scoped, tag = 'scratch operand']
  %s0 = inlined_call_operand.vmem [shape: bf16[2,30,32], index: 0, kind: input, shape index: {}]
  %s1 = inlined_call_operand.vmem [shape: bf16[3,32,64], index: 1, kind: input, shape index: {}]
  %s2 = inlined_call_operand.vmem [shape: f32[1,64], index: 2, kind: input, shape index: {}]
  %s3 = inlined_call_operand.vmem [shape: bf16[3,64,64], index: 3, kind: input, shape index: {}]
  %s4 = inlined_call_operand.vmem [shape: f32[1,64], index: 4, kind: input, shape index: {}]
  %s5 = inlined_call_operand.vmem [shape: bf16[3,64,64], index: 5, kind: input, shape index: {}]
  %s6 = inlined_call_operand.vmem [shape: f32[1,64], index: 6, kind: input, shape index: {}]
  %s7 = inlined_call_operand.vmem [shape: bf16[3,64,64], index: 7, kind: input, shape index: {}]
  %s8 = inlined_call_operand.vmem [shape: f32[1,64], index: 8, kind: input, shape index: {}]
  %s9 = inlined_call_operand.vmem [shape: bf16[2,30,64], index: 9, kind: output, shape index: {}]
  %s10 = sld [smem:[#allocation0]]
  $region69: #{m18_forward.7} parent=0
    _
  %s12 = ssub.s32 1, %s10
  %s13 = scalar_select 0, %s12, %s10
  loop: start=0, step=1, limit=4
  $region2: #{m18_forward.7} parent=0 // loop_pre_header
    _
  $region3: #{m18_forward.7} parent=0 // loop_header
    %s15 = sphi 0, %s19
    %p16 = scmp.ge.s32.totalorder %s15, 4
    %s25 = sphi 0, %s27
    %s28 = sphi 0, %s25
    %s29 = sphi 0, %s28
    %s45 = sphi 0, %s29
    %s49 = sphi 0, %s49
    %s51 = sphi 0, %s49
    %s52 = sphi 0, %s51
    %s66 = sphi 0, %s52
    %s70 = sphi 0, %s70
    %s72 = sphi 0, %s70
    %s73 = sphi 0, %s72
    %s87 = sphi 0, %s73
    %s91 = sphi 0, %s91
    %s93 = sphi 0, %s91
    %s94 = sphi 0, %s93
    %s108 = sphi 0, %s94
    %s112 = sphi 0, %s112
    %s114 = sphi 0, %s112
    %s115 = sphi 0, %s114
    %s129 = sphi 0, %s115
    %s133 = sphi 0, %s133
    %s135 = sphi 0, %s133
    %s136 = sphi 0, %s135
    %s150 = sphi 0, %s136
    %s154 = sphi 0, %s154
    %s156 = sphi 0, %s154
    %s157 = sphi 0, %s156
    %s171 = sphi 0, %s157
    %s175 = sphi 0, %s175
    %s177 = sphi 0, %s175
    %s178 = sphi 0, %s177
    %s192 = sphi 0, %s178
    %s196 = sphi 0, %s196
    %s198 = sphi 0, %s196
    %s199 = sphi 0, %s198
    %s213 = sphi 0, %s199
    %s219 = sphi 0, %s221
    %s222 = sphi 0, %s219
    %s223 = sphi 0, %s222
    %s239 = sphi 0, %s223
  $region4: #{m18_forward.7} parent=0 // loop_header_branch
    %18 = sbr.rel (%p16) target = $region8
  $region5: #{m18_forward.7} parent=0 // loop_body
    %s20 = ssub.s32 %s15, 1
    %s21 = ssub.s32 %s15, 2
    %s22 = sadd.s32 %s15, 1
    %s23 = ssub.s32 %s15, %s22
    %p24 = scmp.eq.s32.totalorder %s23, 0
    %s26 = sadd.s32 %s25, 1
    %s27 = scalar_select %p24, %s25, %s26
    %p30 = pneg %p24
    %p31 = scmp.eq.s32.totalorder %s15, 1
    %p32 = por %p30, %p31
    %p33 = scmp.ne.s32.totalorder %s25, %s28
    %p34 = scmp.eq.s32.totalorder %s15, 0
    %p35 = por %p33, %p34
    %p36 = scmp.ne.s32.totalorder %s25, %s28
    %p37 = scmp.eq.s32.totalorder %s20, 1
    %p38 = por %p36, %p37
    %p39 = scmp.ne.s32.totalorder %s28, %s29
    %p40 = scmp.eq.s32.totalorder %s20, 0
    %p41 = por %p39, %p40
    %p42 = scmp.ne.s32.totalorder %s28, %s29
    %p43 = scmp.eq.s32.totalorder %s21, 1
    %p44 = por %p42, %p43
    %p46 = scmp.ne.s32.totalorder %s29, %s45
    %p47 = scmp.eq.s32.totalorder %s21, 0
    %p48 = por %p46, %p47
    %s50 = sadd.s32 %s49, 1
    %p53 = scmp.eq.s32.totalorder %s15, 1
    %p54 = scmp.ne.s32.totalorder %s49, %s51
    %p55 = scmp.eq.s32.totalorder %s15, 0
    %p56 = por %p54, %p55
    %p57 = scmp.ne.s32.totalorder %s49, %s51
    %p58 = scmp.eq.s32.totalorder %s20, 1
    %p59 = por %p57, %p58
    %p60 = scmp.ne.s32.totalorder %s51, %s52
    %p61 = scmp.eq.s32.totalorder %s20, 0
    %p62 = por %p60, %p61
    %p63 = scmp.ne.s32.totalorder %s51, %s52
    %p64 = scmp.eq.s32.totalorder %s21, 1
    %p65 = por %p63, %p64
    %p67 = scmp.ne.s32.totalorder %s52, %s66
    %p68 = scmp.eq.s32.totalorder %s21, 0
    %p69 = por %p67, %p68
    %s71 = sadd.s32 %s70, 1
    %p74 = scmp.eq.s32.totalorder %s15, 1
    %p75 = scmp.ne.s32.totalorder %s70, %s72
    %p76 = scmp.eq.s32.totalorder %s15, 0
    %p77 = por %p75, %p76
    %p78 = scmp.ne.s32.totalorder %s70, %s72
    %p79 = scmp.eq.s32.totalorder %s20, 1
    %p80 = por %p78, %p79
    %p81 = scmp.ne.s32.totalorder %s72, %s73
    %p82 = scmp.eq.s32.totalorder %s20, 0
    %p83 = por %p81, %p82
    %p84 = scmp.ne.s32.totalorder %s72, %s73
    %p85 = scmp.eq.s32.totalorder %s21, 1
    %p86 = por %p84, %p85
    %p88 = scmp.ne.s32.totalorder %s73, %s87
    %p89 = scmp.eq.s32.totalorder %s21, 0
    %p90 = por %p88, %p89
    %s92 = sadd.s32 %s91, 1
    %p95 = scmp.eq.s32.totalorder %s15, 1
    %p96 = scmp.ne.s32.totalorder %s91, %s93
    %p97 = scmp.eq.s32.totalorder %s15, 0
    %p98 = por %p96, %p97
    %p99 = scmp.ne.s32.totalorder %s91, %s93
    %p100 = scmp.eq.s32.totalorder %s20, 1
    %p101 = por %p99, %p100
    %p102 = scmp.ne.s32.totalorder %s93, %s94
    %p103 = scmp.eq.s32.totalorder %s20, 0
    %p104 = por %p102, %p103
    %p105 = scmp.ne.s32.totalorder %s93, %s94
    %p106 = scmp.eq.s32.totalorder %s21, 1
    %p107 = por %p105, %p106
    %p109 = scmp.ne.s32.totalorder %s94, %s108
    %p110 = scmp.eq.s32.totalorder %s21, 0
    %p111 = por %p109, %p110
    %s113 = sadd.s32 %s112, 1
    %p116 = scmp.eq.s32.totalorder %s15, 1
    %p117 = scmp.ne.s32.totalorder %s112, %s114
    %p118 = scmp.eq.s32.totalorder %s15, 0
    %p119 = por %p117, %p118
    %p120 = scmp.ne.s32.totalorder %s112, %s114
    %p121 = scmp.eq.s32.totalorder %s20, 1
    %p122 = por %p120, %p121
    %p123 = scmp.ne.s32.totalorder %s114, %s115
    %p124 = scmp.eq.s32.totalorder %s20, 0
    %p125 = por %p123, %p124
    %p126 = scmp.ne.s32.totalorder %s114, %s115
    %p127 = scmp.eq.s32.totalorder %s21, 1
    %p128 = por %p126, %p127
    %p130 = scmp.ne.s32.totalorder %s115, %s129
    %p131 = scmp.eq.s32.totalorder %s21, 0
    %p132 = por %p130, %p131
    %s134 = sadd.s32 %s133, 1
    %p137 = scmp.eq.s32.totalorder %s15, 1
    %p138 = scmp.ne.s32.totalorder %s133, %s135
    %p139 = scmp.eq.s32.totalorder %s15, 0
    %p140 = por %p138, %p139
    %p141 = scmp.ne.s32.totalorder %s133, %s135
    %p142 = scmp.eq.s32.totalorder %s20, 1
    %p143 = por %p141, %p142
    %p144 = scmp.ne.s32.totalorder %s135, %s136
    %p145 = scmp.eq.s32.totalorder %s20, 0
    %p146 = por %p144, %p145
    %p147 = scmp.ne.s32.totalorder %s135, %s136
    %p148 = scmp.eq.s32.totalorder %s21, 1
    %p149 = por %p147, %p148
    %p151 = scmp.ne.s32.totalorder %s136, %s150
    %p152 = scmp.eq.s32.totalorder %s21, 0
    %p153 = por %p151, %p152
    %s155 = sadd.s32 %s154, 1
    %p158 = scmp.eq.s32.totalorder %s15, 1
    %p159 = scmp.ne.s32.totalorder %s154, %s156
    %p160 = scmp.eq.s32.totalorder %s15, 0
    %p161 = por %p159, %p160
    %p162 = scmp.ne.s32.totalorder %s154, %s156
    %p163 = scmp.eq.s32.totalorder %s20, 1
    %p164 = por %p162, %p163
    %p165 = scmp.ne.s32.totalorder %s156, %s157
    %p166 = scmp.eq.s32.totalorder %s20, 0
    %p167 = por %p165, %p166
    %p168 = scmp.ne.s32.totalorder %s156, %s157
    %p169 = scmp.eq.s32.totalorder %s21, 1
    %p170 = por %p168, %p169
    %p172 = scmp.ne.s32.totalorder %s157, %s171
    %p173 = scmp.eq.s32.totalorder %s21, 0
    %p174 = por %p172, %p173
    %s176 = sadd.s32 %s175, 1
    %p179 = scmp.eq.s32.totalorder %s15, 1
    %p180 = scmp.ne.s32.totalorder %s175, %s177
    %p181 = scmp.eq.s32.totalorder %s15, 0
    %p182 = por %p180, %p181
    %p183 = scmp.ne.s32.totalorder %s175, %s177
    %p184 = scmp.eq.s32.totalorder %s20, 1
    %p185 = por %p183, %p184
    %p186 = scmp.ne.s32.totalorder %s177, %s178
    %p187 = scmp.eq.s32.totalorder %s20, 0
    %p188 = por %p186, %p187
    %p189 = scmp.ne.s32.totalorder %s177, %s178
    %p190 = scmp.eq.s32.totalorder %s21, 1
    %p191 = por %p189, %p190
    %p193 = scmp.ne.s32.totalorder %s178, %s192
    %p194 = scmp.eq.s32.totalorder %s21, 0
    %p195 = por %p193, %p194
    %s197 = sadd.s32 %s196, 1
    %p200 = scmp.eq.s32.totalorder %s15, 1
    %p201 = scmp.ne.s32.totalorder %s196, %s198
    %p202 = scmp.eq.s32.totalorder %s15, 0
    %p203 = por %p201, %p202
    %p204 = scmp.ne.s32.totalorder %s196, %s198
    %p205 = scmp.eq.s32.totalorder %s20, 1
    %p206 = por %p204, %p205
    %p207 = scmp.ne.s32.totalorder %s198, %s199
    %p208 = scmp.eq.s32.totalorder %s20, 0
    %p209 = por %p207, %p208
    %p210 = scmp.ne.s32.totalorder %s198, %s199
    %p211 = scmp.eq.s32.totalorder %s21, 1
    %p212 = por %p210, %p211
    %p214 = scmp.ne.s32.totalorder %s199, %s213
    %p215 = scmp.eq.s32.totalorder %s21, 0
    %p216 = por %p214, %p215
    %s217 = ssub.s32 %s15, %s22
    %p218 = scmp.eq.s32.totalorder %s217, 0
    %s220 = sadd.s32 %s219, 1
    %s221 = scalar_select %p218, %s219, %s220
    %p224 = pneg %p218
    %p225 = scmp.eq.s32.totalorder %s15, 1
    %p226 = por %p224, %p225
    %p227 = scmp.ne.s32.totalorder %s219, %s222
    %p228 = scmp.eq.s32.totalorder %s15, 0
    %p229 = por %p227, %p228
    %p230 = scmp.ne.s32.totalorder %s219, %s222
    %p231 = scmp.eq.s32.totalorder %s20, 1
    %p232 = por %p230, %p231
    %p233 = scmp.ne.s32.totalorder %s222, %s223
    %p234 = scmp.eq.s32.totalorder %s20, 0
    %p235 = por %p233, %p234
    %p236 = scmp.ne.s32.totalorder %s222, %s223
    %p237 = scmp.eq.s32.totalorder %s21, 1
    %p238 = por %p236, %p237
    %p240 = scmp.ne.s32.totalorder %s223, %s239
    %p241 = scmp.eq.s32.totalorder %s21, 0
    %p242 = por %p240, %p241
    %p243 = scmp.le.s32.totalorder 1, %s15
    %p244 = scmp.lt.s32.totalorder %s15, 3
    %p245 = pnand %p243, %p244
    %p246 = pneg %p245
    // Predicated region
    $region9: #{m18_forward.7} parent=5 // pred_check
      _
    $region10: #{m18_forward.7} parent=5 // pred_check_branch
      %248 = sbr.rel (%p245) target = $region12
    $region11: #{m18_forward.7} parent=5 // pred_region
      %s249 = ssub.s32 %s15, 1
      // Predicated region
      $region13: #{m18_forward.7} parent=11 // pred_check
        %p250 = pneg %p62
      $region14: #{m18_forward.7} parent=11 // pred_check_branch
        %252 = sbr.rel (%p250) target = $region16
      $region15: #{m18_forward.7} parent=11 // pred_region
        _
      $region16: #{m18_forward.7} parent=11 // pred_fallthru
        _
      // Predicated region
      $region17: #{m18_forward.7} parent=11 // pred_check
        %p253 = pneg %p83
      $region18: #{m18_forward.7} parent=11 // pred_check_branch
        %255 = sbr.rel (%p253) target = $region20
      $region19: #{m18_forward.7} parent=11 // pred_region
        _
      $region20: #{m18_forward.7} parent=11 // pred_fallthru
        _
      // Predicated region
      $region21: #{m18_forward.7} parent=11 // pred_check
        %p256 = pneg %p104
      $region22: #{m18_forward.7} parent=11 // pred_check_branch
        %258 = sbr.rel (%p256) target = $region24
      $region23: #{m18_forward.7} parent=11 // pred_region
        _
      $region24: #{m18_forward.7} parent=11 // pred_fallthru
        _
      // Predicated region
      $region25: #{m18_forward.7} parent=11 // pred_check
        %p259 = pneg %p125
      $region26: #{m18_forward.7} parent=11 // pred_check_branch
        %261 = sbr.rel (%p259) target = $region28
      $region27: #{m18_forward.7} parent=11 // pred_region
        _
      $region28: #{m18_forward.7} parent=11 // pred_fallthru
        _
      // Predicated region
      $region29: #{m18_forward.7} parent=11 // pred_check
        %p262 = pneg %p146
      $region30: #{m18_forward.7} parent=11 // pred_check_branch
        %264 = sbr.rel (%p262) target = $region32
      $region31: #{m18_forward.7} parent=11 // pred_region
        _
      $region32: #{m18_forward.7} parent=11 // pred_fallthru
        _
      // Predicated region
      $region33: #{m18_forward.7} parent=11 // pred_check
        %p265 = pneg %p167
      $region34: #{m18_forward.7} parent=11 // pred_check_branch
        %267 = sbr.rel (%p265) target = $region36
      $region35: #{m18_forward.7} parent=11 // pred_region
        _
      $region36: #{m18_forward.7} parent=11 // pred_fallthru
        _
      // Predicated region
      $region37: #{m18_forward.7} parent=11 // pred_check
        %p268 = pneg %p188
      $region38: #{m18_forward.7} parent=11 // pred_check_branch
        %270 = sbr.rel (%p268) target = $region40
      $region39: #{m18_forward.7} parent=11 // pred_region
        _
      $region40: #{m18_forward.7} parent=11 // pred_fallthru
        _
      // Predicated region
      $region41: #{m18_forward.7} parent=11 // pred_check
        %p271 = pneg %p209
      $region42: #{m18_forward.7} parent=11 // pred_check_branch
        %273 = sbr.rel (%p271) target = $region44
      $region43: #{m18_forward.7} parent=11 // pred_region
        _
      $region44: #{m18_forward.7} parent=11 // pred_fallthru
        _
    $region12: #{m18_forward.7} parent=5 // pred_fallthru
      _
    %p274 = scmp.lt.s32.totalorder %s15, 2
    // Predicated region
    $region45: #{m18_forward.7} parent=5 // pred_check
      %p275 = pneg %p274
    $region46: #{m18_forward.7} parent=5 // pred_check_branch
      %277 = sbr.rel (%p275) target = $region48
    $region47: #{m18_forward.7} parent=5 // pred_region
      // Predicated region
      $region49: #{m18_forward.7} parent=47 // pred_check
        %p278 = pneg %p35
      $region50: #{m18_forward.7} parent=47 // pred_check_branch
        %280 = sbr.rel (%p278) target = $region52
      $region51: #{m18_forward.7} parent=47 // pred_region
        %p281 = scmp.lt.s32.totalorder %s15, 1
        %s282 = scalar_select %p281, %s15, 1
        %s283 = smul.addr %s282, 4
        %s284 = smul.addr %s283, 4
        %s285 = scalar_lea.vmem %s0, %s284
      $region52: #{m18_forward.7} parent=47 // pred_fallthru
        _
    $region48: #{m18_forward.7} parent=5 // pred_fallthru
      _
    %p286 = scmp.le.s32.totalorder 1, %s15
    %p287 = scmp.lt.s32.totalorder %s15, 3
    %p288 = pnand %p286, %p287
    %p289 = pneg %p288
    // Predicated region
    $region53: #{m18_forward.7} parent=5 // pred_check
      _
    $region54: #{m18_forward.7} parent=5 // pred_check_branch
      %291 = sbr.rel (%p288) target = $region56
    $region55: #{m18_forward.7} parent=5 // pred_region
      %s292 = ssub.s32 %s15, 1
      %p293 = scmp.lt.s32.totalorder %s20, 1
      %s294 = scalar_select %p293, %s20, 1
      %s295 = smul.addr %s294, 4
      %s296 = smul.addr %s295, 4
      %s297 = scalar_lea.vmem %s0, %s296
      %p298 = pneg %p41
      %p299 = pneg %p38
      %p300 = pneg %p62
      %p301 = pneg %p59
      %p302 = pneg %p83
      %p303 = pneg %p80
      %p304 = pneg %p104
      %p305 = pneg %p101
      %p306 = pneg %p125
      %p307 = pneg %p122
      %p308 = pneg %p146
      %p309 = pneg %p143
      %p310 = pneg %p167
      %p311 = pneg %p164
      %p312 = pneg %p188
      %p313 = pneg %p185
      %p314 = pneg %p209
      %p315 = pneg %p206
      %p316 = pneg %p235
      %p317 = pneg %p232
      %p318 = scmp.lt.s32.totalorder %s20, 1
      %s319 = scalar_select %p318, %s20, 1
      %s320 = smul.addr %s319, 4
      %s321 = smul.addr %s320, 4
      %s322 = scalar_lea.vmem %s9, %s321
      %p323 = scmp.lt.s32.totalorder %s20, 1
      %s324 = scalar_select %p323, %s20, 1
      %s325 = smul.addr %s324, 4
      %s326 = smul.addr %s325, 4
      %s327 = scalar_lea.vmem %s0, %s326
      %p328 = scmp.lt.s32.totalorder %s20, 1
      %s329 = scalar_select %p328, %s20, 1
      %s330 = smul.addr %s329, 4
      %s331 = smul.addr %s330, 4
      %s332 = scalar_lea.vmem %s9, %s331
      %vm334 = vcmask 523264
      %335 = vst.msk [vmem:[#allocation2] sm:$0xff] %vm334, 0.0
      %336 = vst.msk [vmem:[#allocation2 + $0x8] sm:$0xff] %vm334, 0.0
      %337 = vst.msk [vmem:[#allocation2 + $0x10] sm:$0xff] %vm334, 0.0
      %338 = vst.msk [vmem:[#allocation2 + $0x18] sm:$0xff] %vm334, 0.0
      %339 = vst.msk [vmem:[#allocation2 + $0x20] sm:$0xff] %vm334, 0.0
      %vm340 = vcmask 521216
      %341 = vst.msk [vmem:[#allocation2 + $0x28] sm:$0x3f] %vm340, 0.0
      %v342 = vld [vmem:[%s327] sm:$0xf]
      %v343 = vld [vmem:[%s327 + $0x4] sm:$0xf]
      %v344 = vld [vmem:[%s327 + $0x8] sm:$0xf]
      %v345 = vld [vmem:[%s327 + $0xc] sm:$0x7]
      %v346 = vunpack.c.l.bf16 %v342
      %v347 = vunpack.c.l.bf16 %v343
      %v348 = vunpack.c.l.bf16 %v344
      %v349 = vunpack.c.l.bf16 %v345
      %vm350 = vcmask 261120
      %351 = vst.msk [vmem:[#allocation2 + $0x8] sm:$0xff] %vm350, %v346
      %352 = vst.msk [vmem:[#allocation2 + $0x10] sm:$0xff] %vm350, %v347
      %353 = vst.msk [vmem:[#allocation2 + $0x18] sm:$0xff] %vm350, %v348
      %vm354 = vcmask 259072
      %355 = vst.msk [vmem:[#allocation2 + $0x20] sm:$0x3f] %vm354, %v349
      %v356 = vld [vmem:[#allocation2 + $0x7] sm:$0xff]
      %v357 = vld [vmem:[#allocation2 + $0xf] sm:$0xff]
      %v358 = vld [vmem:[#allocation2 + $0x17] sm:$0xff]
      %v359 = vld [vmem:[#allocation2 + $0x1f] sm:$0x3f]
      %v360 = vpack.c.bf16 %v357, %v356
      %v361 = vpack.c.bf16 %v359, %v358
      %v362 = vld [vmem:[#allocation2 + $0x9] sm:$0xff]
      %v363 = vld [vmem:[#allocation2 + $0x11] sm:$0xff]
      %v364 = vld [vmem:[#allocation2 + $0x19] sm:$0xff]
      %v365 = vld [vmem:[#allocation2 + $0x21] sm:$0x3f]
      %v366 = vpack.c.bf16 %v363, %v362
      %v367 = vpack.c.bf16 %v365, %v364
      %v368 = vld [vmem:[%s1] sm:$0xf]
      %v369 = vld [vmem:[%s1 + $0x4] sm:$0xf]
      %v370 = vld [vmem:[%s1 + $0x8] sm:$0xf]
      %v371 = vld [vmem:[%s1 + $0xc] sm:$0xf]
      %s372 = scalar_lea.vmem %s1, 16
      %v373 = vld [vmem:[%s372] sm:$0xf]
      %v374 = vld [vmem:[%s372 + $0x4] sm:$0xf]
      %v375 = vld [vmem:[%s372 + $0x8] sm:$0xf]
      %v376 = vld [vmem:[%s372 + $0xc] sm:$0xf]
      %v381 = vunpack.c.l.b16 %v342
      %v382 = vunpack.c.l.b16 %v343
      %v383 = vunpack.c.l.b16 %v344
      %v384 = vunpack.c.l.b16 %v345
      %v385 = vpack.c.b16 %v382, %v381
      %v386 = vpack.c.b16 %v384, %v383
      %v391 = vunpack.c.l.b16 %v373
      %v392 = vunpack.c.l.b16 %v374
      %v393 = vunpack.c.l.b16 %v375
      %v394 = vunpack.c.l.b16 %v376
      %v395 = vpack.c.b16 %v392, %v391
      %v396 = vpack.c.b16 %v394, %v393
      %v400 = vsel %vm350, %v385, 0
      %v403 = vsel %vm350, %v386, 0
      %405 = vmatprep.subr.bf16.mxu0 0
      %406 = vmatpush1.bf16.msra.mxu0 %v395
      %407 = vmatprep.subr.bf16.mxu0 0
      %408 = vmatpush1.bf16.msra.mxu0 %v396
      %409 = vmatprep.subr.bf16.mxu0 0
      %410 = vmatpush1.bf16.msra.mxu0 0
      %411 = vmatprep.subr.bf16.mxu0 0
      %412 = vmatpush1.bf16.msra.mxu0 0
      %413 = vmatprep.subr.bf16.mxu0 0
      %414 = vmatpush1.bf16.msra.mxu0 0
      %415 = vmatprep.subr.bf16.mxu0 0
      %416 = vmatpush1.bf16.msra.mxu0 0
      %417 = vmatprep.subr.bf16.mxu0 0
      %418 = vmatpush1.bf16.msra.mxu0 0
      %419 = vmatprep.subr.bf16.mxu0 0
      %420 = vmatpush1.bf16.msra.mxu0 0
      %421 = vmatprep.subr.bf16.mxu0 0
      %422 = vmatpush1.bf16.msra.mxu0 0
      %423 = vmatprep.subr.bf16.mxu0 0
      %424 = vmatpush1.bf16.msra.mxu0 0
      %425 = vmatprep.subr.bf16.mxu0 0
      %426 = vmatpush1.bf16.msra.mxu0 0
      %427 = vmatprep.subr.bf16.mxu0 0
      %428 = vmatpush1.bf16.msra.mxu0 0
      %429 = vmatprep.subr.bf16.mxu0 0
      %430 = vmatpush1.bf16.msra.mxu0 0
      %431 = vmatprep.subr.bf16.mxu0 0
      %432 = vmatpush1.bf16.msra.mxu0 0
      %433 = vmatprep.subr.bf16.mxu0 0
      %434 = vmatpush1.bf16.msra.mxu0 0
      %435 = vmatprep.subr.bf16.mxu0 0
      %436 = vmatpush1.bf16.msra.mxu0 0
      %437 = vmatprep.mubr.bf16.mxu0 0
      %438 = vmatmul.mubr.bf16.gmra.mrb[0].mxu0 %v400
      %v439 = vpop.f32.mrb[0].mxu0
      %v440 = vadd.f32 0.0, %v439
      %v441 = vpop.f32.mrb[0].mxu0
      %v442 = vpop.f32.mrb[0].mxu0
      %v443 = vadd.f32 0.0, %v442
      %v444 = vpop.f32.mrb[0].mxu0
      %445 = vmatprep.mubr.bf16.mxu0 0
      %446 = vmatmul.mubr.bf16.gmra.mrb[0].mxu0 %v403
      %v447 = vpop.f32.mrb[0].mxu0
      %v448 = vadd.f32 0.0, %v447
      %v449 = vpop.f32.mrb[0].mxu0
      %v450 = vpop.f32.mrb[0].mxu0
      %v451 = vadd.f32 0.0, %v450
      %v452 = vpop.f32.mrb[0].mxu0
      %453 = vdwg.mxu0
      %v458 = vunpack.c.l.b16 %v368
      %v459 = vunpack.c.l.b16 %v369
      %v460 = vunpack.c.l.b16 %v370
      %v461 = vunpack.c.l.b16 %v371
      %v462 = vpack.c.b16 %v459, %v458
      %v463 = vpack.c.b16 %v461, %v460
      %v467 = vsel %vm350, %v360, 0
      %v470 = vsel %vm350, %v361, 0
      %472 = vmatprep.subr.bf16.mxu0 0
      %473 = vmatpush1.bf16.msra.mxu0 %v462
      %474 = vmatprep.subr.bf16.mxu0 0
      %475 = vmatpush1.bf16.msra.mxu0 %v463
      %476 = vmatprep.subr.bf16.mxu0 0
      %477 = vmatpush1.bf16.msra.mxu0 0
      %478 = vmatprep.subr.bf16.mxu0 0
      %479 = vmatpush1.bf16.msra.mxu0 0
      %480 = vmatprep.subr.bf16.mxu0 0
      %481 = vmatpush1.bf16.msra.mxu0 0
      %482 = vmatprep.subr.bf16.mxu0 0
      %483 = vmatpush1.bf16.msra.mxu0 0
      %484 = vmatprep.subr.bf16.mxu0 0
      %485 = vmatpush1.bf16.msra.mxu0 0
      %486 = vmatprep.subr.bf16.mxu0 0
      %487 = vmatpush1.bf16.msra.mxu0 0
      %488 = vmatprep.subr.bf16.mxu0 0
      %489 = vmatpush1.bf16.msra.mxu0 0
      %490 = vmatprep.subr.bf16.mxu0 0
      %491 = vmatpush1.bf16.msra.mxu0 0
      %492 = vmatprep.subr.bf16.mxu0 0
      %493 = vmatpush1.bf16.msra.mxu0 0
      %494 = vmatprep.subr.bf16.mxu0 0
      %495 = vmatpush1.bf16.msra.mxu0 0
      %496 = vmatprep.subr.bf16.mxu0 0
      %497 = vmatpush1.bf16.msra.mxu0 0
      %498 = vmatprep.subr.bf16.mxu0 0
      %499 = vmatpush1.bf16.msra.mxu0 0
      %500 = vmatprep.subr.bf16.mxu0 0
      %501 = vmatpush1.bf16.msra.mxu0 0
      %502 = vmatprep.subr.bf16.mxu0 0
      %503 = vmatpush1.bf16.msra.mxu0 0
      %504 = vmatprep.mubr.bf16.mxu0 0
      %505 = vmatmul.mubr.bf16.gmra.mrb[0].mxu0 %v467
      %v506 = vpop.f32.mrb[0].mxu0
      %v507 = vadd.f32 %v440, %v506
      %v508 = vpop.f32.mrb[0].mxu0
      %v509 = vpop.f32.mrb[0].mxu0
      %v510 = vadd.f32 %v443, %v509
      %v511 = vpop.f32.mrb[0].mxu0
      %512 = vmatprep.mubr.bf16.mxu0 0
      %513 = vmatmul.mubr.bf16.gmra.mrb[0].mxu0 %v470
      %v514 = vpop.f32.mrb[0].mxu0
      %v515 = vadd.f32 %v448, %v514
      %v516 = vpop.f32.mrb[0].mxu0
      %v517 = vpop.f32.mrb[0].mxu0
      %v518 = vadd.f32 %v451, %v517
      %v519 = vpop.f32.mrb[0].mxu0
      %520 = vdwg.mxu0
      %s521 = scalar_lea.vmem %s1, 32
      %v522 = vld [vmem:[%s521] sm:$0xf]
      %v523 = vld [vmem:[%s521 + $0x4] sm:$0xf]
      %v524 = vld [vmem:[%s521 + $0x8] sm:$0xf]
      %v525 = vld [vmem:[%s521 + $0xc] sm:$0xf]
      %v530 = vunpack.c.l.b16 %v522
      %v531 = vunpack.c.l.b16 %v523
      %v532 = vunpack.c.l.b16 %v524
      %v533 = vunpack.c.l.b16 %v525
      %v534 = vpack.c.b16 %v531, %v530
      %v535 = vpack.c.b16 %v533, %v532
      %v539 = vsel %vm350, %v366, 0
      %v542 = vsel %vm350, %v367, 0
      %544 = vmatprep.subr.bf16.mxu0 0
      %545 = vmatpush1.bf16.msra.mxu0 %v534
      %546 = vmatprep.subr.bf16.mxu0 0
      %547 = vmatpush1.bf16.msra.mxu0 %v535
      %548 = vmatprep.subr.bf16.mxu0 0
      %549 = vmatpush1.bf16.msra.mxu0 0
      %550 = vmatprep.subr.bf16.mxu0 0
      %551 = vmatpush1.bf16.msra.mxu0 0
      %552 = vmatprep.subr.bf16.mxu0 0
      %553 = vmatpush1.bf16.msra.mxu0 0
      %554 = vmatprep.subr.bf16.mxu0 0
      %555 = vmatpush1.bf16.msra.mxu0 0
      %556 = vmatprep.subr.bf16.mxu0 0
      %557 = vmatpush1.bf16.msra.mxu0 0
      %558 = vmatprep.subr.bf16.mxu0 0
      %559 = vmatpush1.bf16.msra.mxu0 0
      %560 = vmatprep.subr.bf16.mxu0 0
      %561 = vmatpush1.bf16.msra.mxu0 0
      %562 = vmatprep.subr.bf16.mxu0 0
      %563 = vmatpush1.bf16.msra.mxu0 0
      %564 = vmatprep.subr.bf16.mxu0 0
      %565 = vmatpush1.bf16.msra.mxu0 0
      %566 = vmatprep.subr.bf16.mxu0 0
      %567 = vmatpush1.bf16.msra.mxu0 0
      %568 = vmatprep.subr.bf16.mxu0 0
      %569 = vmatpush1.bf16.msra.mxu0 0
      %570 = vmatprep.subr.bf16.mxu0 0
      %571 = vmatpush1.bf16.msra.mxu0 0
      %572 = vmatprep.subr.bf16.mxu0 0
      %573 = vmatpush1.bf16.msra.mxu0 0
      %574 = vmatprep.subr.bf16.mxu0 0
      %575 = vmatpush1.bf16.msra.mxu0 0
      %576 = vmatprep.mubr.bf16.mxu0 0
      %577 = vmatmul.mubr.bf16.gmra.mrb[0].mxu0 %v539
      %v578 = vpop.f32.mrb[0].mxu0
      %v579 = vadd.f32 0.0, %v578
      %v580 = vpop.f32.mrb[0].mxu0
      %v581 = vpop.f32.mrb[0].mxu0
      %v582 = vadd.f32 0.0, %v581
      %v583 = vpop.f32.mrb[0].mxu0
      %584 = vmatprep.mubr.bf16.mxu0 0
      %585 = vmatmul.mubr.bf16.gmra.mrb[0].mxu0 %v542
      %v586 = vpop.f32.mrb[0].mxu0
      %v587 = vadd.f32 0.0, %v586
      %v588 = vpop.f32.mrb[0].mxu0
      %v589 = vpop.f32.mrb[0].mxu0
      %v590 = vadd.f32 0.0, %v589
      %v591 = vpop.f32.mrb[0].mxu0
      %592 = vdwg.mxu0
      %v593 = vadd.f32 %v507, %v579
      %v594 = vadd.f32 %v510, %v582
      %v595 = vadd.f32 %v515, %v587
      %v596 = vadd.f32 %v518, %v590
      %v597 = vld [vmem:[%s2] sm:$0x1]
      %v599 = vlaneseq
      %v600 = vshrl.u32 %v599, 7
      %v601 = vsub.s32 0, %v600
      %v602 = vrot.slane %v597, %v601
      %v604 = vadd.f32 %v593, %v602
      %v605 = vadd.f32 %v594, %v602
      %v606 = vadd.f32 %v595, %v602
      %v607 = vadd.f32 %v596, %v602
      %v608 = vmax.f32 %v604, 0.0
      %v609 = vmax.f32 %v605, 0.0
      %v610 = vmax.f32 %v606, 0.0
      %v611 = vmax.f32 %v607, 0.0
      %612 = vst.msk [vmem:[#allocation2 + $0x8] sm:$0xff] %vm334, %v608
      %613 = vst.msk [vmem:[#allocation2 + $0x10] sm:$0xff] %vm334, %v609
      %614 = vst.msk [vmem:[#allocation2 + $0x18] sm:$0xff] %vm334, %v610
      %615 = vst.msk [vmem:[#allocation2 + $0x20] sm:$0x3f] %vm340, %v611
      %v616 = vld [vmem:[#allocation2 + $0x7] sm:$0xff]
      %v617 = vld [vmem:[#allocation2 + $0xf] sm:$0xff]
      %v618 = vld [vmem:[#allocation2 + $0x17] sm:$0xff]
      %v619 = vld [vmem:[#allocation2 + $0x1f] sm:$0x3f]
      %v620 = vpack.c.bf16 %v617, %v616
      %v621 = vpack.c.bf16 %v619, %v618
      %v622 = vld [vmem:[#allocation2 + $0x9] sm:$0xff]
      %v623 = vld [vmem:[#allocation2 + $0x11] sm:$0xff]
      %v624 = vld [vmem:[#allocation2 + $0x19] sm:$0xff]
      %v625 = vld [vmem:[#allocation2 + $0x21] sm:$0x3f]
      %v626 = vpack.c.bf16 %v623, %v622
      %v627 = vpack.c.bf16 %v625, %v624
      %v628 = vpack.c.bf16 %v609, %v608
      %v629 = vpack.c.bf16 %v611, %v610
      %v630 = vld [vmem:[%s3] sm:$0xf]
      %v631 = vld [vmem:[%s3 + $0x4] sm:$0xf]
      %v632 = vld [vmem:[%s3 + $0x8] sm:$0xf]
      %v633 = vld [vmem:[%s3 + $0xc] sm:$0xf]
      %v634 = vld [vmem:[%s3 + $0x10] sm:$0xf]
      %v635 = vld [vmem:[%s3 + $0x14] sm:$0xf]
      %v636 = vld [vmem:[%s3 + $0x18] sm:$0xf]
      %v637 = vld [vmem:[%s3 + $0x1c] sm:$0xf]
      %s638 = scalar_lea.vmem %s3, 32
      %v639 = vld [vmem:[%s638] sm:$0xf]
      %v640 = vld [vmem:[%s638 + $0x4] sm:$0xf]
      %v641 = vld [vmem:[%s638 + $0x8] sm:$0xf]
      %v642 = vld [vmem:[%s638 + $0xc] sm:$0xf]
      %v643 = vld [vmem:[%s638 + $0x10] sm:$0xf]
      %v644 = vld [vmem:[%s638 + $0x14] sm:$0xf]
      %v645 = vld [vmem:[%s638 + $0x18] sm:$0xf]
      %v646 = vld [vmem:[%s638 + $0x1c] sm:$0xf]
      %v655 = vunpack.c.l.b16 %v639
      %v656 = vunpack.c.l.b16 %v640
      %v657 = vunpack.c.l.b16 %v641
      %v658 = vunpack.c.l.b16 %v642
      %v659 = vunpack.c.l.b16 %v643
      %v660 = vunpack.c.l.b16 %v644
      %v661 = vunpack.c.l.b16 %v645
      %v662 = vunpack.c.l.b16 %v646
      %v663 = vpack.c.b16 %v656, %v655
      %v664 = vpack.c.b16 %v658, %v657
      %v665 = vpack.c.b16 %v660, %v659
      %v666 = vpack.c.b16 %v662, %v661
      %v672 = vsel %vm334, %v628, 0
      %v675 = vsel %vm334, %v629, 0
      %677 = vmatprep.subr.bf16.mxu0 0
      %678 = vmatpush1.bf16.msra.mxu0 %v663
      %679 = vmatprep.subr.bf16.mxu0 0
      %680 = vmatpush1.bf16.msra.mxu0 %v664
      %681 = vmatprep.subr.bf16.mxu0 0
      %682 = vmatpush1.bf16.msra.mxu0 %v665
      %683 = vmatprep.subr.bf16.mxu0 0
      %684 = vmatpush1.bf16.msra.mxu0 %v666
      %685 = vmatprep.subr.bf16.mxu0 0
      %686 = vmatpush1.bf16.msra.mxu0 0
      %687 = vmatprep.subr.bf16.mxu0 0
      %688 = vmatpush1.bf16.msra.mxu0 0
      %689 = vmatprep.subr.bf16.mxu0 0
      %690 = vmatpush1.bf16.msra.mxu0 0
      %691 = vmatprep.subr.bf16.mxu0 0
      %692 = vmatpush1.bf16.msra.mxu0 0
      %693 = vmatprep.subr.bf16.mxu0 0
      %694 = vmatpush1.bf16.msra.mxu0 0
      %695 = vmatprep.subr.bf16.mxu0 0
      %696 = vmatpush1.bf16.msra.mxu0 0
      %697 = vmatprep.subr.bf16.mxu0 0
      %698 = vmatpush1.bf16.msra.mxu0 0
      %699 = vmatprep.subr.bf16.mxu0 0
      %700 = vmatpush1.bf16.msra.mxu0 0
      %701 = vmatprep.subr.bf16.mxu0 0
      %702 = vmatpush1.bf16.msra.mxu0 0
      %703 = vmatprep.subr.bf16.mxu0 0
      %704 = vmatpush1.bf16.msra.mxu0 0
      %705 = vmatprep.subr.bf16.mxu0 0
      %706 = vmatpush1.bf16.msra.mxu0 0
      %707 = vmatprep.subr.bf16.mxu0 0
      %708 = vmatpush1.bf16.msra.mxu0 0
      %709 = vmatprep.mubr.bf16.mxu0 0
      %710 = vmatmul.mubr.bf16.gmra.mrb[0].mxu0 %v672
      %v711 = vpop.f32.mrb[0].mxu0
      %v712 = vadd.f32 0.0, %v711
      %v713 = vpop.f32.mrb[0].mxu0
      %v714 = vpop.f32.mrb[0].mxu0
      %v715 = vadd.f32 0.0, %v714
      %v716 = vpop.f32.mrb[0].mxu0
      %717 = vmatprep.mubr.bf16.mxu0 0
      %718 = vmatmul.mubr.bf16.gmra.mrb[0].mxu0 %v675
      %v719 = vpop.f32.mrb[0].mxu0
      %v720 = vadd.f32 0.0, %v719
      %v721 = vpop.f32.mrb[0].mxu0
      %v722 = vpop.f32.mrb[0].mxu0
      %v723 = vadd.f32 0.0, %v722
      %v724 = vpop.f32.mrb[0].mxu0
      %725 = vdwg.mxu0
      %v734 = vunpack.c.l.b16 %v630
      %v735 = vunpack.c.l.b16 %v631
      %v736 = vunpack.c.l.b16 %v632
      %v737 = vunpack.c.l.b16 %v633
      %v738 = vunpack.c.l.b16 %v634
      %v739 = vunpack.c.l.b16 %v635
      %v740 = vunpack.c.l.b16 %v636
      %v741 = vunpack.c.l.b16 %v637
      %v742 = vpack.c.b16 %v735, %v734
      %v743 = vpack.c.b16 %v737, %v736
      %v744 = vpack.c.b16 %v739, %v738
      %v745 = vpack.c.b16 %v741, %v740
      %v751 = vsel %vm334, %v620, 0
      %v754 = vsel %vm334, %v621, 0
      %756 = vmatprep.subr.bf16.mxu0 0
      %757 = vmatpush1.bf16.msra.mxu0 %v742
      %758 = vmatprep.subr.bf16.mxu0 0
      %759 = vmatpush1.bf16.msra.mxu0 %v743
      %760 = vmatprep.subr.bf16.mxu0 0
      %761 = vmatpush1.bf16.msra.mxu0 %v744
      %762 = vmatprep.subr.bf16.mxu0 0
      %763 = vmatpush1.bf16.msra.mxu0 %v745
      %764 = vmatprep.subr.bf16.mxu0 0
      %765 = vmatpush1.bf16.msra.mxu0 0
      %766 = vmatprep.subr.bf16.mxu0 0
      %767 = vmatpush1.bf16.msra.mxu0 0
      %768 = vmatprep.subr.bf16.mxu0 0
      %769 = vmatpush1.bf16.msra.mxu0 0
      %770 = vmatprep.subr.bf16.mxu0 0
      %771 = vmatpush1.bf16.msra.mxu0 0
      %772 = vmatprep.subr.bf16.mxu0 0
      %773 = vmatpush1.bf16.msra.mxu0 0
      %774 = vmatprep.subr.bf16.mxu0 0
      %775 = vmatpush1.bf16.msra.mxu0 0
      %776 = vmatprep.subr.bf16.mxu0 0
      %777 = vmatpush1.bf16.msra.mxu0 0
      %778 = vmatprep.subr.bf16.mxu0 0
      %779 = vmatpush1.bf16.msra.mxu0 0
      %780 = vmatprep.subr.bf16.mxu0 0
      %781 = vmatpush1.bf16.msra.mxu0 0
      %782 = vmatprep.subr.bf16.mxu0 0
      %783 = vmatpush1.bf16.msra.mxu0 0
      %784 = vmatprep.subr.bf16.mxu0 0
      %785 = vmatpush1.bf16.msra.mxu0 0
      %786 = vmatprep.subr.bf16.mxu0 0
      %787 = vmatpush1.bf16.msra.mxu0 0
      %788 = vmatprep.mubr.bf16.mxu0 0
      %789 = vmatmul.mubr.bf16.gmra.mrb[0].mxu0 %v751
      %v790 = vpop.f32.mrb[0].mxu0
      %v791 = vadd.f32 %v712, %v790
      %v792 = vpop.f32.mrb[0].mxu0
      %v793 = vpop.f32.mrb[0].mxu0
      %v794 = vadd.f32 %v715, %v793
      %v795 = vpop.f32.mrb[0].mxu0
      %796 = vmatprep.mubr.bf16.mxu0 0
      %797 = vmatmul.mubr.bf16.gmra.mrb[0].mxu0 %v754
      %v798 = vpop.f32.mrb[0].mxu0
      %v799 = vadd.f32 %v720, %v798
      %v800 = vpop.f32.mrb[0].mxu0
      %v801 = vpop.f32.mrb[0].mxu0
      %v802 = vadd.f32 %v723, %v801
      %v803 = vpop.f32.mrb[0].mxu0
      %804 = vdwg.mxu0
      %s805 = scalar_lea.vmem %s3, 64
      %v806 = vld [vmem:[%s805] sm:$0xf]
      %v807 = vld [vmem:[%s805 + $0x4] sm:$0xf]
      %v808 = vld [vmem:[%s805 + $0x8] sm:$0xf]
      %v809 = vld [vmem:[%s805 + $0xc] sm:$0xf]
      %v810 = vld [vmem:[%s805 + $0x10] sm:$0xf]
      %v811 = vld [vmem:[%s805 + $0x14] sm:$0xf]
      %v812 = vld [vmem:[%s805 + $0x18] sm:$0xf]
      %v813 = vld [vmem:[%s805 + $0x1c] sm:$0xf]
      %v822 = vunpack.c.l.b16 %v806
      %v823 = vunpack.c.l.b16 %v807
      %v824 = vunpack.c.l.b16 %v808
      %v825 = vunpack.c.l.b16 %v809
      %v826 = vunpack.c.l.b16 %v810
      %v827 = vunpack.c.l.b16 %v811
      %v828 = vunpack.c.l.b16 %v812
      %v829 = vunpack.c.l.b16 %v813
      %v830 = vpack.c.b16 %v823, %v822
      %v831 = vpack.c.b16 %v825, %v824
      %v832 = vpack.c.b16 %v827, %v826
      %v833 = vpack.c.b16 %v829, %v828
      %v839 = vsel %vm334, %v626, 0
      %v842 = vsel %vm334, %v627, 0
      %844 = vmatprep.subr.bf16.mxu0 0
      %845 = vmatpush1.bf16.msra.mxu0 %v830
      %846 = vmatprep.subr.bf16.mxu0 0
      %847 = vmatpush1.bf16.msra.mxu0 %v831
      %848 = vmatprep.subr.bf16.mxu0 0
      %849 = vmatpush1.bf16.msra.mxu0 %v832
      %850 = vmatprep.subr.bf16.mxu0 0
      %851 = vmatpush1.bf16.msra.mxu0 %v833
      %852 = vmatprep.subr.bf16.mxu0 0
      %853 = vmatpush1.bf16.msra.mxu0 0
      %854 = vmatprep.subr.bf16.mxu0 0
      %855 = vmatpush1.bf16.msra.mxu0 0
      %856 = vmatprep.subr.bf16.mxu0 0
      %857 = vmatpush1.bf16.msra.mxu0 0
      %858 = vmatprep.subr.bf16.mxu0 0
      %859 = vmatpush1.bf16.msra.mxu0 0
      %860 = vmatprep.subr.bf16.mxu0 0
      %861 = vmatpush1.bf16.msra.mxu0 0
      %862 = vmatprep.subr.bf16.mxu0 0
      %863 = vmatpush1.bf16.msra.mxu0 0
      %864 = vmatprep.subr.bf16.mxu0 0
      %865 = vmatpush1.bf16.msra.mxu0 0
      %866 = vmatprep.subr.bf16.mxu0 0
      %867 = vmatpush1.bf16.msra.mxu0 0
      %868 = vmatprep.subr.bf16.mxu0 0
      %869 = vmatpush1.bf16.msra.mxu0 0
      %870 = vmatprep.subr.bf16.mxu0 0
      %871 = vmatpush1.bf16.msra.mxu0 0
      %872 = vmatprep.subr.bf16.mxu0 0
      %873 = vmatpush1.bf16.msra.mxu0 0
      %874 = vmatprep.subr.bf16.mxu0 0
      %875 = vmatpush1.bf16.msra.mxu0 0
      %876 = vmatprep.mubr.bf16.mxu0 0
      %877 = vmatmul.mubr.bf16.gmra.mrb[0].mxu0 %v839
      %v878 = vpop.f32.mrb[0].mxu0
      %v879 = vadd.f32 0.0, %v878
      %v880 = vpop.f32.mrb[0].mxu0
      %v881 = vpop.f32.mrb[0].mxu0
      %v882 = vadd.f32 0.0, %v881
      %v883 = vpop.f32.mrb[0].mxu0
      %884 = vmatprep.mubr.bf16.mxu0 0
      %885 = vmatmul.mubr.bf16.gmra.mrb[0].mxu0 %v842
      %v886 = vpop.f32.mrb[0].mxu0
      %v887 = vadd.f32 0.0, %v886
      %v888 = vpop.f32.mrb[0].mxu0
      %v889 = vpop.f32.mrb[0].mxu0
      %v890 = vadd.f32 0.0, %v889
      %v891 = vpop.f32.mrb[0].mxu0
      %892 = vdwg.mxu0
      %v893 = vadd.f32 %v791, %v879
      %v894 = vadd.f32 %v794, %v882
      %v895 = vadd.f32 %v799, %v887
      %v896 = vadd.f32 %v802, %v890
      %v897 = vld [vmem:[%s4] sm:$0x1]
      %v899 = vlaneseq
      %v900 = vshrl.u32 %v899, 7
      %v901 = vsub.s32 0, %v900
      %v902 = vrot.slane %v897, %v901
      %v904 = vadd.f32 %v893, %v902
      %v905 = vadd.f32 %v894, %v902
      %v906 = vadd.f32 %v895, %v902
      %v907 = vadd.f32 %v896, %v902
      %v908 = vmax.f32 %v904, 0.0
      %v909 = vmax.f32 %v905, 0.0
      %v910 = vmax.f32 %v906, 0.0
      %v911 = vmax.f32 %v907, 0.0
      %912 = vst.msk [vmem:[#allocation2 + $0x8] sm:$0xff] %vm334, %v908
      %913 = vst.msk [vmem:[#allocation2 + $0x10] sm:$0xff] %vm334, %v909
      %914 = vst.msk [vmem:[#allocation2 + $0x18] sm:$0xff] %vm334, %v910
      %915 = vst.msk [vmem:[#allocation2 + $0x20] sm:$0x3f] %vm340, %v911
      %v916 = vld [vmem:[#allocation2 + $0x7] sm:$0xff]
      %v917 = vld [vmem:[#allocation2 + $0xf] sm:$0xff]
      %v918 = vld [vmem:[#allocation2 + $0x17] sm:$0xff]
      %v919 = vld [vmem:[#allocation2 + $0x1f] sm:$0x3f]
      %v920 = vpack.c.bf16 %v917, %v916
      %v921 = vpack.c.bf16 %v919, %v918
      %v922 = vld [vmem:[#allocation2 + $0x9] sm:$0xff]
      %v923 = vld [vmem:[#allocation2 + $0x11] sm:$0xff]
      %v924 = vld [vmem:[#allocation2 + $0x19] sm:$0xff]
      %v925 = vld [vmem:[#allocation2 + $0x21] sm:$0x3f]
      %v926 = vpack.c.bf16 %v923, %v922
      %v927 = vpack.c.bf16 %v925, %v924
      %v928 = vpack.c.bf16 %v909, %v908
      %v929 = vpack.c.bf16 %v911, %v910
      %v930 = vld [vmem:[%s5] sm:$0xf]
      %v931 = vld [vmem:[%s5 + $0x4] sm:$0xf]
      %v932 = vld [vmem:[%s5 + $0x8] sm:$0xf]
      %v933 = vld [vmem:[%s5 + $0xc] sm:$0xf]
      %v934 = vld [vmem:[%s5 + $0x10] sm:$0xf]
      %v935 = vld [vmem:[%s5 + $0x14] sm:$0xf]
      %v936 = vld [vmem:[%s5 + $0x18] sm:$0xf]
      %v937 = vld [vmem:[%s5 + $0x1c] sm:$0xf]
      %s938 = scalar_lea.vmem %s5, 32
      %v939 = vld [vmem:[%s938] sm:$0xf]
      %v940 = vld [vmem:[%s938 + $0x4] sm:$0xf]
      %v941 = vld [vmem:[%s938 + $0x8] sm:$0xf]
      %v942 = vld [vmem:[%s938 + $0xc] sm:$0xf]
      %v943 = vld [vmem:[%s938 + $0x10] sm:$0xf]
      %v944 = vld [vmem:[%s938 + $0x14] sm:$0xf]
      %v945 = vld [vmem:[%s938 + $0x18] sm:$0xf]
      %v946 = vld [vmem:[%s938 + $0x1c] sm:$0xf]
      %v955 = vunpack.c.l.b16 %v939
      %v956 = vunpack.c.l.b16 %v940
      %v957 = vunpack.c.l.b16 %v941
      %v958 = vunpack.c.l.b16 %v942
      %v959 = vunpack.c.l.b16 %v943
      %v960 = vunpack.c.l.b16 %v944
      %v961 = vunpack.c.l.b16 %v945
      %v962 = vunpack.c.l.b16 %v946
      %v963 = vpack.c.b16 %v956, %v955
      %v964 = vpack.c.b16 %v958, %v957
      %v965 = vpack.c.b16 %v960, %v959
      %v966 = vpack.c.b16 %v962, %v961
      %v972 = vsel %vm334, %v928, 0
      %v975 = vsel %vm334, %v929, 0
      %977 = vmatprep.subr.bf16.mxu0 0
      %978 = vmatpush1.bf16.msra.mxu0 %v963
      %979 = vmatprep.subr.bf16.mxu0 0
      %980 = vmatpush1.bf16.msra.mxu0 %v964
      %981 = vmatprep.subr.bf16.mxu0 0
      %982 = vmatpush1.bf16.msra.mxu0 %v965
      %983 = vmatprep.subr.bf16.mxu0 0
      %984 = vmatpush1.bf16.msra.mxu0 %v966
      %985 = vmatprep.subr.bf16.mxu0 0
      %986 = vmatpush1.bf16.msra.mxu0 0
      %987 = vmatprep.subr.bf16.mxu0 0
      %988 = vmatpush1.bf16.msra.mxu0 0
      %989 = vmatprep.subr.bf16.mxu0 0
      %990 = vmatpush1.bf16.msra.mxu0 0
      %991 = vmatprep.subr.bf16.mxu0 0
      %992 = vmatpush1.bf16.msra.mxu0 0
      %993 = vmatprep.subr.bf16.mxu0 0
      %994 = vmatpush1.bf16.msra.mxu0 0
      %995 = vmatprep.subr.bf16.mxu0 0
      %996 = vmatpush1.bf16.msra.mxu0 0
      %997 = vmatprep.subr.bf16.mxu0 0
      %998 = vmatpush1.bf16.msra.mxu0 0
      %999 = vmatprep.subr.bf16.mxu0 0
      %1000 = vmatpush1.bf16.msra.mxu0 0
      %1001 = vmatprep.subr.bf16.mxu0 0
      %1002 = vmatpush1.bf16.msra.mxu0 0
      %1003 = vmatprep.subr.bf16.mxu0 0
      %1004 = vmatpush1.bf16.msra.mxu0 0
      %1005 = vmatprep.subr.bf16.mxu0 0
      %1006 = vmatpush1.bf16.msra.mxu0 0
      %1007 = vmatprep.subr.bf16.mxu0 0
      %1008 = vmatpush1.bf16.msra.mxu0 0
      %1009 = vmatprep.mubr.bf16.mxu0 0
      %1010 = vmatmul.mubr.bf16.gmra.mrb[0].mxu0 %v972
      %v1011 = vpop.f32.mrb[0].mxu0
      %v1012 = vadd.f32 0.0, %v1011
      %v1013 = vpop.f32.mrb[0].mxu0
      %v1014 = vpop.f32.mrb[0].mxu0
      %v1015 = vadd.f32 0.0, %v1014
      %v1016 = vpop.f32.mrb[0].mxu0
      %1017 = vmatprep.mubr.bf16.mxu0 0
      %1018 = vmatmul.mubr.bf16.gmra.mrb[0].mxu0 %v975
      %v1019 = vpop.f32.mrb[0].mxu0
      %v1020 = vadd.f32 0.0, %v1019
      %v1021 = vpop.f32.mrb[0].mxu0
      %v1022 = vpop.f32.mrb[0].mxu0
      %v1023 = vadd.f32 0.0, %v1022
      %v1024 = vpop.f32.mrb[0].mxu0
      %1025 = vdwg.mxu0
      %v1034 = vunpack.c.l.b16 %v930
      %v1035 = vunpack.c.l.b16 %v931
      %v1036 = vunpack.c.l.b16 %v932
      %v1037 = vunpack.c.l.b16 %v933
      %v1038 = vunpack.c.l.b16 %v934
      %v1039 = vunpack.c.l.b16 %v935
      %v1040 = vunpack.c.l.b16 %v936
      %v1041 = vunpack.c.l.b16 %v937
      %v1042 = vpack.c.b16 %v1035, %v1034
      %v1043 = vpack.c.b16 %v1037, %v1036
      %v1044 = vpack.c.b16 %v1039, %v1038
      %v1045 = vpack.c.b16 %v1041, %v1040
      %v1051 = vsel %vm334, %v920, 0
      %v1054 = vsel %vm334, %v921, 0
      %1056 = vmatprep.subr.bf16.mxu0 0
      %1057 = vmatpush1.bf16.msra.mxu0 %v1042
      %1058 = vmatprep.subr.bf16.mxu0 0
      %1059 = vmatpush1.bf16.msra.mxu0 %v1043
      %1060 = vmatprep.subr.bf16.mxu0 0
      %1061 = vmatpush1.bf16.msra.mxu0 %v1044
      %1062 = vmatprep.subr.bf16.mxu0 0
      %1063 = vmatpush1.bf16.msra.mxu0 %v1045
      %1064 = vmatprep.subr.bf16.mxu0 0
      %1065 = vmatpush1.bf16.msra.mxu0 0
      %1066 = vmatprep.subr.bf16.mxu0 0
      %1067 = vmatpush1.bf16.msra.mxu0 0
      %1068 = vmatprep.subr.bf16.mxu0 0
      %1069 = vmatpush1.bf16.msra.mxu0 0
      %1070 = vmatprep.subr.bf16.mxu0 0
      %1071 = vmatpush1.bf16.msra.mxu0 0
      %1072 = vmatprep.subr.bf16.mxu0 0
      %1073 = vmatpush1.bf16.msra.mxu0 0
      %1074 = vmatprep.subr.bf16.mxu0 0
      %1075 = vmatpush1.bf16.msra.mxu0 0
      %1076 = vmatprep.subr.bf16.mxu0 0
      %1077 = vmatpush1.bf16.msra.mxu0 0
      %1078 = vmatprep.subr.bf16.mxu0 0
      %1079 = vmatpush1.bf16.msra.mxu0 0
      %1080 = vmatprep.subr.bf16.mxu0 0
      %1081 = vmatpush1.bf16.msra.mxu0 0
      %1082 = vmatprep.subr.bf16.mxu0 0
      %1083 = vmatpush1.bf16.msra.mxu0 0
      %1084 = vmatprep.subr.bf16.mxu0 0
      %1085 = vmatpush1.bf16.msra.mxu0 0
      %1086 = vmatprep.subr.bf16.mxu0 0
      %1087 = vmatpush1.bf16.msra.mxu0 0
      %1088 = vmatprep.mubr.bf16.mxu0 0
      %1089 = vmatmul.mubr.bf16.gmra.mrb[0].mxu0 %v1051
      %v1090 = vpop.f32.mrb[0].mxu0
      %v1091 = vadd.f32 %v1012, %v1090
      %v1092 = vpop.f32.mrb[0].mxu0
      %v1093 = vpop.f32.mrb[0].mxu0
      %v1094 = vadd.f32 %v1015, %v1093
      %v1095 = vpop.f32.mrb[0].mxu0
      %1096 = vmatprep.mubr.bf16.mxu0 0
      %1097 = vmatmul.mubr.bf16.gmra.mrb[0].mxu0 %v1054
      %v1098 = vpop.f32.mrb[0].mxu0
      %v1099 = vadd.f32 %v1020, %v1098
      %v1100 = vpop.f32.mrb[0].mxu0
      %v1101 = vpop.f32.mrb[0].mxu0
      %v1102 = vadd.f32 %v1023, %v1101
      %v1103 = vpop.f32.mrb[0].mxu0
      %1104 = vdwg.mxu0
      %s1105 = scalar_lea.vmem %s5, 64
      %v1106 = vld [vmem:[%s1105] sm:$0xf]
      %v1107 = vld [vmem:[%s1105 + $0x4] sm:$0xf]
      %v1108 = vld [vmem:[%s1105 + $0x8] sm:$0xf]
      %v1109 = vld [vmem:[%s1105 + $0xc] sm:$0xf]
      %v1110 = vld [vmem:[%s1105 + $0x10] sm:$0xf]
      %v1111 = vld [vmem:[%s1105 + $0x14] sm:$0xf]
      %v1112 = vld [vmem:[%s1105 + $0x18] sm:$0xf]
      %v1113 = vld [vmem:[%s1105 + $0x1c] sm:$0xf]
      %v1122 = vunpack.c.l.b16 %v1106
      %v1123 = vunpack.c.l.b16 %v1107
      %v1124 = vunpack.c.l.b16 %v1108
      %v1125 = vunpack.c.l.b16 %v1109
      %v1126 = vunpack.c.l.b16 %v1110
      %v1127 = vunpack.c.l.b16 %v1111
      %v1128 = vunpack.c.l.b16 %v1112
      %v1129 = vunpack.c.l.b16 %v1113
      %v1130 = vpack.c.b16 %v1123, %v1122
      %v1131 = vpack.c.b16 %v1125, %v1124
      %v1132 = vpack.c.b16 %v1127, %v1126
      %v1133 = vpack.c.b16 %v1129, %v1128
      %v1139 = vsel %vm334, %v926, 0
      %v1142 = vsel %vm334, %v927, 0
      %1144 = vmatprep.subr.bf16.mxu0 0
      %1145 = vmatpush1.bf16.msra.mxu0 %v1130
      %1146 = vmatprep.subr.bf16.mxu0 0
      %1147 = vmatpush1.bf16.msra.mxu0 %v1131
      %1148 = vmatprep.subr.bf16.mxu0 0
      %1149 = vmatpush1.bf16.msra.mxu0 %v1132
      %1150 = vmatprep.subr.bf16.mxu0 0
      %1151 = vmatpush1.bf16.msra.mxu0 %v1133
      %1152 = vmatprep.subr.bf16.mxu0 0
      %1153 = vmatpush1.bf16.msra.mxu0 0
      %1154 = vmatprep.subr.bf16.mxu0 0
      %1155 = vmatpush1.bf16.msra.mxu0 0
      %1156 = vmatprep.subr.bf16.mxu0 0
      %1157 = vmatpush1.bf16.msra.mxu0 0
      %1158 = vmatprep.subr.bf16.mxu0 0
      %1159 = vmatpush1.bf16.msra.mxu0 0
      %1160 = vmatprep.subr.bf16.mxu0 0
      %1161 = vmatpush1.bf16.msra.mxu0 0
      %1162 = vmatprep.subr.bf16.mxu0 0
      %1163 = vmatpush1.bf16.msra.mxu0 0
      %1164 = vmatprep.subr.bf16.mxu0 0
      %1165 = vmatpush1.bf16.msra.mxu0 0
      %1166 = vmatprep.subr.bf16.mxu0 0
      %1167 = vmatpush1.bf16.msra.mxu0 0
      %1168 = vmatprep.subr.bf16.mxu0 0
      %1169 = vmatpush1.bf16.msra.mxu0 0
      %1170 = vmatprep.subr.bf16.mxu0 0
      %1171 = vmatpush1.bf16.msra.mxu0 0
      %1172 = vmatprep.subr.bf16.mxu0 0
      %1173 = vmatpush1.bf16.msra.mxu0 0
      %1174 = vmatprep.subr.bf16.mxu0 0
      %1175 = vmatpush1.bf16.msra.mxu0 0
      %1176 = vmatprep.mubr.bf16.mxu0 0
      %1177 = vmatmul.mubr.bf16.gmra.mrb[0].mxu0 %v1139
      %v1178 = vpop.f32.mrb[0].mxu0
      %v1179 = vadd.f32 0.0, %v1178
      %v1180 = vpop.f32.mrb[0].mxu0
      %v1181 = vpop.f32.mrb[0].mxu0
      %v1182 = vadd.f32 0.0, %v1181
      %v1183 = vpop.f32.mrb[0].mxu0
      %1184 = vmatprep.mubr.bf16.mxu0 0
      %1185 = vmatmul.mubr.bf16.gmra.mrb[0].mxu0 %v1142
      %v1186 = vpop.f32.mrb[0].mxu0
      %v1187 = vadd.f32 0.0, %v1186
      %v1188 = vpop.f32.mrb[0].mxu0
      %v1189 = vpop.f32.mrb[0].mxu0
      %v1190 = vadd.f32 0.0, %v1189
      %v1191 = vpop.f32.mrb[0].mxu0
      %1192 = vdwg.mxu0
      %v1193 = vadd.f32 %v1091, %v1179
      %v1194 = vadd.f32 %v1094, %v1182
      %v1195 = vadd.f32 %v1099, %v1187
      %v1196 = vadd.f32 %v1102, %v1190
      %v1197 = vld [vmem:[%s6] sm:$0x1]
      %v1199 = vlaneseq
      %v1200 = vshrl.u32 %v1199, 7
      %v1201 = vsub.s32 0, %v1200
      %v1202 = vrot.slane %v1197, %v1201
      %v1204 = vadd.f32 %v1193, %v1202
      %v1205 = vadd.f32 %v1194, %v1202
      %v1206 = vadd.f32 %v1195, %v1202
      %v1207 = vadd.f32 %v1196, %v1202
      %v1208 = vmax.f32 %v1204, 0.0
      %v1209 = vmax.f32 %v1205, 0.0
      %v1210 = vmax.f32 %v1206, 0.0
      %v1211 = vmax.f32 %v1207, 0.0
      %1212 = vst.msk [vmem:[#allocation2 + $0x8] sm:$0xff] %vm334, %v1208
      %1213 = vst.msk [vmem:[#allocation2 + $0x10] sm:$0xff] %vm334, %v1209
      %1214 = vst.msk [vmem:[#allocation2 + $0x18] sm:$0xff] %vm334, %v1210
      %1215 = vst.msk [vmem:[#allocation2 + $0x20] sm:$0x3f] %vm340, %v1211
      %v1216 = vld [vmem:[#allocation2 + $0x7] sm:$0xff]
      %v1217 = vld [vmem:[#allocation2 + $0xf] sm:$0xff]
      %v1218 = vld [vmem:[#allocation2 + $0x17] sm:$0xff]
      %v1219 = vld [vmem:[#allocation2 + $0x1f] sm:$0x3f]
      %v1220 = vpack.c.bf16 %v1217, %v1216
      %v1221 = vpack.c.bf16 %v1219, %v1218
      %v1222 = vld [vmem:[#allocation2 + $0x9] sm:$0xff]
      %v1223 = vld [vmem:[#allocation2 + $0x11] sm:$0xff]
      %v1224 = vld [vmem:[#allocation2 + $0x19] sm:$0xff]
      %v1225 = vld [vmem:[#allocation2 + $0x21] sm:$0x3f]
      %v1226 = vpack.c.bf16 %v1223, %v1222
      %v1227 = vpack.c.bf16 %v1225, %v1224
      %v1228 = vpack.c.bf16 %v1209, %v1208
      %v1229 = vpack.c.bf16 %v1211, %v1210
      %v1230 = vld [vmem:[%s7] sm:$0xf]
      %v1231 = vld [vmem:[%s7 + $0x4] sm:$0xf]
      %v1232 = vld [vmem:[%s7 + $0x8] sm:$0xf]
      %v1233 = vld [vmem:[%s7 + $0xc] sm:$0xf]
      %v1234 = vld [vmem:[%s7 + $0x10] sm:$0xf]
      %v1235 = vld [vmem:[%s7 + $0x14] sm:$0xf]
      %v1236 = vld [vmem:[%s7 + $0x18] sm:$0xf]
      %v1237 = vld [vmem:[%s7 + $0x1c] sm:$0xf]
      %s1238 = scalar_lea.vmem %s7, 32
      %v1239 = vld [vmem:[%s1238] sm:$0xf]
      %v1240 = vld [vmem:[%s1238 + $0x4] sm:$0xf]
      %v1241 = vld [vmem:[%s1238 + $0x8] sm:$0xf]
      %v1242 = vld [vmem:[%s1238 + $0xc] sm:$0xf]
      %v1243 = vld [vmem:[%s1238 + $0x10] sm:$0xf]
      %v1244 = vld [vmem:[%s1238 + $0x14] sm:$0xf]
      %v1245 = vld [vmem:[%s1238 + $0x18] sm:$0xf]
      %v1246 = vld [vmem:[%s1238 + $0x1c] sm:$0xf]
      %v1255 = vunpack.c.l.b16 %v1239
      %v1256 = vunpack.c.l.b16 %v1240
      %v1257 = vunpack.c.l.b16 %v1241
      %v1258 = vunpack.c.l.b16 %v1242
      %v1259 = vunpack.c.l.b16 %v1243
      %v1260 = vunpack.c.l.b16 %v1244
      %v1261 = vunpack.c.l.b16 %v1245
      %v1262 = vunpack.c.l.b16 %v1246
      %v1263 = vpack.c.b16 %v1256, %v1255
      %v1264 = vpack.c.b16 %v1258, %v1257
      %v1265 = vpack.c.b16 %v1260, %v1259
      %v1266 = vpack.c.b16 %v1262, %v1261
      %v1272 = vsel %vm334, %v1228, 0
      %v1275 = vsel %vm334, %v1229, 0
      %1277 = vmatprep.subr.bf16.mxu0 0
      %1278 = vmatpush1.bf16.msra.mxu0 %v1263
      %1279 = vmatprep.subr.bf16.mxu0 0
      %1280 = vmatpush1.bf16.msra.mxu0 %v1264
      %1281 = vmatprep.subr.bf16.mxu0 0
      %1282 = vmatpush1.bf16.msra.mxu0 %v1265
      %1283 = vmatprep.subr.bf16.mxu0 0
      %1284 = vmatpush1.bf16.msra.mxu0 %v1266
      %1285 = vmatprep.subr.bf16.mxu0 0
      %1286 = vmatpush1.bf16.msra.mxu0 0
      %1287 = vmatprep.subr.bf16.mxu0 0
      %1288 = vmatpush1.bf16.msra.mxu0 0
      %1289 = vmatprep.subr.bf16.mxu0 0
      %1290 = vmatpush1.bf16.msra.mxu0 0
      %1291 = vmatprep.subr.bf16.mxu0 0
      %1292 = vmatpush1.bf16.msra.mxu0 0
      %1293 = vmatprep.subr.bf16.mxu0 0
      %1294 = vmatpush1.bf16.msra.mxu0 0
      %1295 = vmatprep.subr.bf16.mxu0 0
      %1296 = vmatpush1.bf16.msra.mxu0 0
      %1297 = vmatprep.subr.bf16.mxu0 0
      %1298 = vmatpush1.bf16.msra.mxu0 0
      %1299 = vmatprep.subr.bf16.mxu0 0
      %1300 = vmatpush1.bf16.msra.mxu0 0
      %1301 = vmatprep.subr.bf16.mxu0 0
      %1302 = vmatpush1.bf16.msra.mxu0 0
      %1303 = vmatprep.subr.bf16.mxu0 0
      %1304 = vmatpush1.bf16.msra.mxu0 0
      %1305 = vmatprep.subr.bf16.mxu0 0
      %1306 = vmatpush1.bf16.msra.mxu0 0
      %1307 = vmatprep.subr.bf16.mxu0 0
      %1308 = vmatpush1.bf16.msra.mxu0 0
      %1309 = vmatprep.mubr.bf16.mxu0 0
      %1310 = vmatmul.mubr.bf16.gmra.mrb[0].mxu0 %v1272
      %v1311 = vpop.f32.mrb[0].mxu0
      %v1312 = vadd.f32 0.0, %v1311
      %v1313 = vpop.f32.mrb[0].mxu0
      %v1314 = vpop.f32.mrb[0].mxu0
      %v1315 = vadd.f32 0.0, %v1314
      %v1316 = vpop.f32.mrb[0].mxu0
      %1317 = vmatprep.mubr.bf16.mxu0 0
      %1318 = vmatmul.mubr.bf16.gmra.mrb[0].mxu0 %v1275
      %v1319 = vpop.f32.mrb[0].mxu0
      %v1320 = vadd.f32 0.0, %v1319
      %v1321 = vpop.f32.mrb[0].mxu0
      %v1322 = vpop.f32.mrb[0].mxu0
      %v1323 = vadd.f32 0.0, %v1322
      %v1324 = vpop.f32.mrb[0].mxu0
      %1325 = vdwg.mxu0
      %v1334 = vunpack.c.l.b16 %v1230
      %v1335 = vunpack.c.l.b16 %v1231
      %v1336 = vunpack.c.l.b16 %v1232
      %v1337 = vunpack.c.l.b16 %v1233
      %v1338 = vunpack.c.l.b16 %v1234
      %v1339 = vunpack.c.l.b16 %v1235
      %v1340 = vunpack.c.l.b16 %v1236
      %v1341 = vunpack.c.l.b16 %v1237
      %v1342 = vpack.c.b16 %v1335, %v1334
      %v1343 = vpack.c.b16 %v1337, %v1336
      %v1344 = vpack.c.b16 %v1339, %v1338
      %v1345 = vpack.c.b16 %v1341, %v1340
      %v1351 = vsel %vm334, %v1220, 0
      %v1354 = vsel %vm334, %v1221, 0
      %1356 = vmatprep.subr.bf16.mxu0 0
      %1357 = vmatpush1.bf16.msra.mxu0 %v1342
      %1358 = vmatprep.subr.bf16.mxu0 0
      %1359 = vmatpush1.bf16.msra.mxu0 %v1343
      %1360 = vmatprep.subr.bf16.mxu0 0
      %1361 = vmatpush1.bf16.msra.mxu0 %v1344
      %1362 = vmatprep.subr.bf16.mxu0 0
      %1363 = vmatpush1.bf16.msra.mxu0 %v1345
      %1364 = vmatprep.subr.bf16.mxu0 0
      %1365 = vmatpush1.bf16.msra.mxu0 0
      %1366 = vmatprep.subr.bf16.mxu0 0
      %1367 = vmatpush1.bf16.msra.mxu0 0
      %1368 = vmatprep.subr.bf16.mxu0 0
      %1369 = vmatpush1.bf16.msra.mxu0 0
      %1370 = vmatprep.subr.bf16.mxu0 0
      %1371 = vmatpush1.bf16.msra.mxu0 0
      %1372 = vmatprep.subr.bf16.mxu0 0
      %1373 = vmatpush1.bf16.msra.mxu0 0
      %1374 = vmatprep.subr.bf16.mxu0 0
      %1375 = vmatpush1.bf16.msra.mxu0 0
      %1376 = vmatprep.subr.bf16.mxu0 0
      %1377 = vmatpush1.bf16.msra.mxu0 0
      %1378 = vmatprep.subr.bf16.mxu0 0
      %1379 = vmatpush1.bf16.msra.mxu0 0
      %1380 = vmatprep.subr.bf16.mxu0 0
      %1381 = vmatpush1.bf16.msra.mxu0 0
      %1382 = vmatprep.subr.bf16.mxu0 0
      %1383 = vmatpush1.bf16.msra.mxu0 0
      %1384 = vmatprep.subr.bf16.mxu0 0
      %1385 = vmatpush1.bf16.msra.mxu0 0
      %1386 = vmatprep.subr.bf16.mxu0 0
      %1387 = vmatpush1.bf16.msra.mxu0 0
      %1388 = vmatprep.mubr.bf16.mxu0 0
      %1389 = vmatmul.mubr.bf16.gmra.mrb[0].mxu0 %v1351
      %v1390 = vpop.f32.mrb[0].mxu0
      %v1391 = vadd.f32 %v1312, %v1390
      %v1392 = vpop.f32.mrb[0].mxu0
      %v1393 = vpop.f32.mrb[0].mxu0
      %v1394 = vadd.f32 %v1315, %v1393
      %v1395 = vpop.f32.mrb[0].mxu0
      %1396 = vmatprep.mubr.bf16.mxu0 0
      %1397 = vmatmul.mubr.bf16.gmra.mrb[0].mxu0 %v1354
      %v1398 = vpop.f32.mrb[0].mxu0
      %v1399 = vadd.f32 %v1320, %v1398
      %v1400 = vpop.f32.mrb[0].mxu0
      %v1401 = vpop.f32.mrb[0].mxu0
      %v1402 = vadd.f32 %v1323, %v1401
      %v1403 = vpop.f32.mrb[0].mxu0
      %1404 = vdwg.mxu0
      %s1405 = scalar_lea.vmem %s7, 64
      %v1406 = vld [vmem:[%s1405] sm:$0xf]
      %v1407 = vld [vmem:[%s1405 + $0x4] sm:$0xf]
      %v1408 = vld [vmem:[%s1405 + $0x8] sm:$0xf]
      %v1409 = vld [vmem:[%s1405 + $0xc] sm:$0xf]
      %v1410 = vld [vmem:[%s1405 + $0x10] sm:$0xf]
      %v1411 = vld [vmem:[%s1405 + $0x14] sm:$0xf]
      %v1412 = vld [vmem:[%s1405 + $0x18] sm:$0xf]
      %v1413 = vld [vmem:[%s1405 + $0x1c] sm:$0xf]
      %v1422 = vunpack.c.l.b16 %v1406
      %v1423 = vunpack.c.l.b16 %v1407
      %v1424 = vunpack.c.l.b16 %v1408
      %v1425 = vunpack.c.l.b16 %v1409
      %v1426 = vunpack.c.l.b16 %v1410
      %v1427 = vunpack.c.l.b16 %v1411
      %v1428 = vunpack.c.l.b16 %v1412
      %v1429 = vunpack.c.l.b16 %v1413
      %v1430 = vpack.c.b16 %v1423, %v1422
      %v1431 = vpack.c.b16 %v1425, %v1424
      %v1432 = vpack.c.b16 %v1427, %v1426
      %v1433 = vpack.c.b16 %v1429, %v1428
      %v1439 = vsel %vm334, %v1226, 0
      %v1442 = vsel %vm334, %v1227, 0
      %1444 = vmatprep.subr.bf16.mxu0 0
      %1445 = vmatpush1.bf16.msra.mxu0 %v1430
      %1446 = vmatprep.subr.bf16.mxu0 0
      %1447 = vmatpush1.bf16.msra.mxu0 %v1431
      %1448 = vmatprep.subr.bf16.mxu0 0
      %1449 = vmatpush1.bf16.msra.mxu0 %v1432
      %1450 = vmatprep.subr.bf16.mxu0 0
      %1451 = vmatpush1.bf16.msra.mxu0 %v1433
      %1452 = vmatprep.subr.bf16.mxu0 0
      %1453 = vmatpush1.bf16.msra.mxu0 0
      %1454 = vmatprep.subr.bf16.mxu0 0
      %1455 = vmatpush1.bf16.msra.mxu0 0
      %1456 = vmatprep.subr.bf16.mxu0 0
      %1457 = vmatpush1.bf16.msra.mxu0 0
      %1458 = vmatprep.subr.bf16.mxu0 0
      %1459 = vmatpush1.bf16.msra.mxu0 0
      %1460 = vmatprep.subr.bf16.mxu0 0
      %1461 = vmatpush1.bf16.msra.mxu0 0
      %1462 = vmatprep.subr.bf16.mxu0 0
      %1463 = vmatpush1.bf16.msra.mxu0 0
      %1464 = vmatprep.subr.bf16.mxu0 0
      %1465 = vmatpush1.bf16.msra.mxu0 0
      %1466 = vmatprep.subr.bf16.mxu0 0
      %1467 = vmatpush1.bf16.msra.mxu0 0
      %1468 = vmatprep.subr.bf16.mxu0 0
      %1469 = vmatpush1.bf16.msra.mxu0 0
      %1470 = vmatprep.subr.bf16.mxu0 0
      %1471 = vmatpush1.bf16.msra.mxu0 0
      %1472 = vmatprep.subr.bf16.mxu0 0
      %1473 = vmatpush1.bf16.msra.mxu0 0
      %1474 = vmatprep.subr.bf16.mxu0 0
      %1475 = vmatpush1.bf16.msra.mxu0 0
      %1476 = vmatprep.mubr.bf16.mxu0 0
      %1477 = vmatmul.mubr.bf16.gmra.mrb[0].mxu0 %v1439
      %v1478 = vpop.f32.mrb[0].mxu0
      %v1479 = vadd.f32 0.0, %v1478
      %v1480 = vpop.f32.mrb[0].mxu0
      %v1481 = vpop.f32.mrb[0].mxu0
      %v1482 = vadd.f32 0.0, %v1481
      %v1483 = vpop.f32.mrb[0].mxu0
      %1484 = vmatprep.mubr.bf16.mxu0 0
      %1485 = vmatmul.mubr.bf16.gmra.mrb[0].mxu0 %v1442
      %v1486 = vpop.f32.mrb[0].mxu0
      %v1487 = vadd.f32 0.0, %v1486
      %v1488 = vpop.f32.mrb[0].mxu0
      %v1489 = vpop.f32.mrb[0].mxu0
      %v1490 = vadd.f32 0.0, %v1489
      %v1491 = vpop.f32.mrb[0].mxu0
      %1492 = vdwg.mxu0
      %v1493 = vadd.f32 %v1391, %v1479
      %v1494 = vadd.f32 %v1394, %v1482
      %v1495 = vadd.f32 %v1399, %v1487
      %v1496 = vadd.f32 %v1402, %v1490
      %v1497 = vld [vmem:[%s8] sm:$0x1]
      %v1499 = vlaneseq
      %v1500 = vshrl.u32 %v1499, 7
      %v1501 = vsub.s32 0, %v1500
      %v1502 = vrot.slane %v1497, %v1501
      %v1504 = vadd.f32 %v1493, %v1502
      %v1505 = vadd.f32 %v1494, %v1502
      %v1506 = vadd.f32 %v1495, %v1502
      %v1507 = vadd.f32 %v1496, %v1502
      %v1508 = vmax.f32 %v1504, 0.0
      %v1509 = vmax.f32 %v1505, 0.0
      %v1510 = vmax.f32 %v1506, 0.0
      %v1511 = vmax.f32 %v1507, 0.0
      %v1512 = vpack.c.bf16 %v1509, %v1508
      %v1513 = vpack.c.bf16 %v1511, %v1510
      %v1516 = vunpack.c.l.b16 %v1512
      %v1517 = vunpack.c.h.b16 %v1512
      %v1518 = vunpack.c.l.b16 %v1513
      %v1519 = vunpack.c.h.b16 %v1513
      %v1520 = vpack.c.b16 %v1516, %v1516
      %v1521 = vpack.c.b16 %v1517, %v1517
      %v1522 = vpack.c.b16 %v1518, %v1518
      %v1523 = vpack.c.b16 %v1519, %v1519
      %vm1528 = vcmask 519168
      %1529 = vst.msk [vmem:[%s332] sm:$0xf] %vm1528, %v1520
      %1530 = vst.msk [vmem:[%s332 + $0x4] sm:$0xf] %vm1528, %v1521
      %1531 = vst.msk [vmem:[%s332 + $0x8] sm:$0xf] %vm1528, %v1522
      %vm1532 = vcmask 518144
      %1533 = vst.msk [vmem:[%s332 + $0xc] sm:$0x7] %vm1532, %v1523
      %p1534 = scmp.lt.s32.totalorder %s20, 1
      %s1535 = scalar_select %p1534, %s20, 1
      %s1536 = smul.addr %s1535, 4
      %s1537 = smul.addr %s1536, 4
      %s1538 = scalar_lea.vmem %s9, %s1537
      // Predicated region
      $region57: #{m18_forward.7} parent=55 // pred_check
        %p1539 = pneg %p232
      $region58: #{m18_forward.7} parent=55 // pred_check_branch
        %1541 = sbr.rel (%p1539) target = $region60
      $region59: #{m18_forward.7} parent=55 // pred_region
        _
      $region60: #{m18_forward.7} parent=55 // pred_fallthru
        _
    $region56: #{m18_forward.7} parent=5 // pred_fallthru
      _
    %p1542 = scmp.le.s32.totalorder 2, %s15
    // Predicated region
    $region61: #{m18_forward.7} parent=5 // pred_check
      %p1543 = pneg %p1542
    $region62: #{m18_forward.7} parent=5 // pred_check_branch
      %1545 = sbr.rel (%p1543) target = $region64
    $region63: #{m18_forward.7} parent=5 // pred_region
      %s1546 = ssub.s32 %s15, 2
      // Predicated region
      $region65: #{m18_forward.7} parent=63 // pred_check
        %p1547 = pneg %p238
      $region66: #{m18_forward.7} parent=63 // pred_check_branch
        %1549 = sbr.rel (%p1547) target = $region68
      $region67: #{m18_forward.7} parent=63 // pred_region
        %p1550 = scmp.lt.s32.totalorder %s21, 1
        %s1551 = scalar_select %p1550, %s21, 1
        %s1552 = smul.addr %s1551, 4
        %s1553 = smul.addr %s1552, 4
        %s1554 = scalar_lea.vmem %s9, %s1553
      $region68: #{m18_forward.7} parent=63 // pred_fallthru
        _
    $region64: #{m18_forward.7} parent=5 // pred_fallthru
      _
  $region6: #{m18_forward.7} parent=0 // loop_footer
    %s19 = sadd.s32 1, %s15
  $region7: #{m18_forward.7} parent=0 // loop_footer_branch
    %14 = sbr.rel target = $region3
  $region8: #{m18_forward.7} parent=0 // loop_exit
    _

// kernel: m18_forward.6
$region0: #{m18_forward.6}
  #allocation0 [shape = 'u32[]', space=smem, size = 0x4, offset = 0x4, fixed_abs, tag = 'smem constant byte address 0x4 - core index']
  #allocation1 [shape = 'u32[144,128]{1,0:T(1,128)}', space=vmem, size = 0x12000, scoped, tag = 'internal scratch']
  #allocation2 [shape = 'f32[139,32]{1,0:T(8,128)}', space=vmem, size = 0x12000, scoped, tag = 'scratch operand']
  %s0 = inlined_call_operand.vmem [shape: bf16[2,123,32], index: 0, kind: input, shape index: {}]
  %s1 = inlined_call_operand.vmem [shape: bf16[3,32,32], index: 1, kind: input, shape index: {}]
  %s2 = inlined_call_operand.vmem [shape: f32[1,32], index: 2, kind: input, shape index: {}]
  %s3 = inlined_call_operand.vmem [shape: bf16[3,32,32], index: 3, kind: input, shape index: {}]
  %s4 = inlined_call_operand.vmem [shape: f32[1,32], index: 4, kind: input, shape index: {}]
  %s5 = inlined_call_operand.vmem [shape: bf16[3,32,32], index: 5, kind: input, shape index: {}]
  %s6 = inlined_call_operand.vmem [shape: f32[1,32], index: 6, kind: input, shape index: {}]
  %s7 = inlined_call_operand.vmem [shape: bf16[3,32,32], index: 7, kind: input, shape index: {}]
  %s8 = inlined_call_operand.vmem [shape: f32[1,32], index: 8, kind: input, shape index: {}]
  %s9 = inlined_call_operand.vmem [shape: bf16[2,123,32], index: 9, kind: output, shape index: {}]
  %s10 = sld [smem:[#allocation0]]
  $region69: #{m18_forward.6} parent=0
    _
  %s12 = ssub.s32 1, %s10
  %s13 = scalar_select 0, %s12, %s10
  loop: start=0, step=1, limit=4
  $region2: #{m18_forward.6} parent=0 // loop_pre_header
    _
  $region3: #{m18_forward.6} parent=0 // loop_header
    %s15 = sphi 0, %s19
    %p16 = scmp.ge.s32.totalorder %s15, 4
    %s25 = sphi 0, %s27
    %s28 = sphi 0, %s25
    %s29 = sphi 0, %s28
    %s45 = sphi 0, %s29
    %s49 = sphi 0, %s49
    %s51 = sphi 0, %s49
    %s52 = sphi 0, %s51
    %s66 = sphi 0, %s52
    %s70 = sphi 0, %s70
    %s72 = sphi 0, %s70
    %s73 = sphi 0, %s72
    %s87 = sphi 0, %s73
    %s91 = sphi 0, %s91
    %s93 = sphi 0, %s91
    %s94 = sphi 0, %s93
    %s108 = sphi 0, %s94
    %s112 = sphi 0, %s112
    %s114 = sphi 0, %s112
    %s115 = sphi 0, %s114
    %s129 = sphi 0, %s115
    %s133 = sphi 0, %s133
    %s135 = sphi 0, %s133
    %s136 = sphi 0, %s135
    %s150 = sphi 0, %s136
    %s154 = sphi 0, %s154
    %s156 = sphi 0, %s154
    %s157 = sphi 0, %s156
    %s171 = sphi 0, %s157
    %s175 = sphi 0, %s175
    %s177 = sphi 0, %s175
    %s178 = sphi 0, %s177
    %s192 = sphi 0, %s178
    %s196 = sphi 0, %s196
    %s198 = sphi 0, %s196
    %s199 = sphi 0, %s198
    %s213 = sphi 0, %s199
    %s219 = sphi 0, %s221
    %s222 = sphi 0, %s219
    %s223 = sphi 0, %s222
    %s239 = sphi 0, %s223
  $region4: #{m18_forward.6} parent=0 // loop_header_branch
    %18 = sbr.rel (%p16) target = $region8
  $region5: #{m18_forward.6} parent=0 // loop_body
    %s20 = ssub.s32 %s15, 1
    %s21 = ssub.s32 %s15, 2
    %s22 = sadd.s32 %s15, 1
    %s23 = ssub.s32 %s15, %s22
    %p24 = scmp.eq.s32.totalorder %s23, 0
    %s26 = sadd.s32 %s25, 1
    %s27 = scalar_select %p24, %s25, %s26
    %p30 = pneg %p24
    %p31 = scmp.eq.s32.totalorder %s15, 1
    %p32 = por %p30, %p31
    %p33 = scmp.ne.s32.totalorder %s25, %s28
    %p34 = scmp.eq.s32.totalorder %s15, 0
    %p35 = por %p33, %p34
    %p36 = scmp.ne.s32.totalorder %s25, %s28
    %p37 = scmp.eq.s32.totalorder %s20, 1
    %p38 = por %p36, %p37
    %p39 = scmp.ne.s32.totalorder %s28, %s29
    %p40 = scmp.eq.s32.totalorder %s20, 0
    %p41 = por %p39, %p40
    %p42 = scmp.ne.s32.totalorder %s28, %s29
    %p43 = scmp.eq.s32.totalorder %s21, 1
    %p44 = por %p42, %p43
    %p46 = scmp.ne.s32.totalorder %s29, %s45
    %p47 = scmp.eq.s32.totalorder %s21, 0
    %p48 = por %p46, %p47
    %s50 = sadd.s32 %s49, 1
    %p53 = scmp.eq.s32.totalorder %s15, 1
    %p54 = scmp.ne.s32.totalorder %s49, %s51
    %p55 = scmp.eq.s32.totalorder %s15, 0
    %p56 = por %p54, %p55
    %p57 = scmp.ne.s32.totalorder %s49, %s51
    %p58 = scmp.eq.s32.totalorder %s20, 1
    %p59 = por %p57, %p58
    %p60 = scmp.ne.s32.totalorder %s51, %s52
    %p61 = scmp.eq.s32.totalorder %s20, 0
    %p62 = por %p60, %p61
    %p63 = scmp.ne.s32.totalorder %s51, %s52
    %p64 = scmp.eq.s32.totalorder %s21, 1
    %p65 = por %p63, %p64
    %p67 = scmp.ne.s32.totalorder %s52, %s66
    %p68 = scmp.eq.s32.totalorder %s21, 0
    %p69 = por %p67, %p68
    %s71 = sadd.s32 %s70, 1
    %p74 = scmp.eq.s32.totalorder %s15, 1
    %p75 = scmp.ne.s32.totalorder %s70, %s72
    %p76 = scmp.eq.s32.totalorder %s15, 0
    %p77 = por %p75, %p76
    %p78 = scmp.ne.s32.totalorder %s70, %s72
    %p79 = scmp.eq.s32.totalorder %s20, 1
    %p80 = por %p78, %p79
    %p81 = scmp.ne.s32.totalorder %s72, %s73
    %p82 = scmp.eq.s32.totalorder %s20, 0
    %p83 = por %p81, %p82
    %p84 = scmp.ne.s32.totalorder %s72, %s73
    %p85 = scmp.eq.s32.totalorder %s21, 1
    %p86 = por %p84, %p85
    %p88 = scmp.ne.s32.totalorder %s73, %s87
    %p89 = scmp.eq.s32.totalorder %s21, 0
    %p90 = por %p88, %p89
    %s92 = sadd.s32 %s91, 1
    %p95 = scmp.eq.s32.totalorder %s15, 1
    %p96 = scmp.ne.s32.totalorder %s91, %s93
    %p97 = scmp.eq.s32.totalorder %s15, 0
    %p98 = por %p96, %p97
    %p99 = scmp.ne.s32.totalorder %s91, %s93
    %p100 = scmp.eq.s32.totalorder %s20, 1
    %p101 = por %p99, %p100
    %p102 = scmp.ne.s32.totalorder %s93, %s94
    %p103 = scmp.eq.s32.totalorder %s20, 0
    %p104 = por %p102, %p103
    %p105 = scmp.ne.s32.totalorder %s93, %s94
    %p106 = scmp.eq.s32.totalorder %s21, 1
    %p107 = por %p105, %p106
    %p109 = scmp.ne.s32.totalorder %s94, %s108
    %p110 = scmp.eq.s32.totalorder %s21, 0
    %p111 = por %p109, %p110
    %s113 = sadd.s32 %s112, 1
    %p116 = scmp.eq.s32.totalorder %s15, 1
    %p117 = scmp.ne.s32.totalorder %s112, %s114
    %p118 = scmp.eq.s32.totalorder %s15, 0
    %p119 = por %p117, %p118
    %p120 = scmp.ne.s32.totalorder %s112, %s114
    %p121 = scmp.eq.s32.totalorder %s20, 1
    %p122 = por %p120, %p121
    %p123 = scmp.ne.s32.totalorder %s114, %s115
    %p124 = scmp.eq.s32.totalorder %s20, 0
    %p125 = por %p123, %p124
    %p126 = scmp.ne.s32.totalorder %s114, %s115
    %p127 = scmp.eq.s32.totalorder %s21, 1
    %p128 = por %p126, %p127
    %p130 = scmp.ne.s32.totalorder %s115, %s129
    %p131 = scmp.eq.s32.totalorder %s21, 0
    %p132 = por %p130, %p131
    %s134 = sadd.s32 %s133, 1
    %p137 = scmp.eq.s32.totalorder %s15, 1
    %p138 = scmp.ne.s32.totalorder %s133, %s135
    %p139 = scmp.eq.s32.totalorder %s15, 0
    %p140 = por %p138, %p139
    %p141 = scmp.ne.s32.totalorder %s133, %s135
    %p142 = scmp.eq.s32.totalorder %s20, 1
    %p143 = por %p141, %p142
    %p144 = scmp.ne.s32.totalorder %s135, %s136
    %p145 = scmp.eq.s32.totalorder %s20, 0
    %p146 = por %p144, %p145
    %p147 = scmp.ne.s32.totalorder %s135, %s136
    %p148 = scmp.eq.s32.totalorder %s21, 1
    %p149 = por %p147, %p148
    %p151 = scmp.ne.s32.totalorder %s136, %s150
    %p152 = scmp.eq.s32.totalorder %s21, 0
    %p153 = por %p151, %p152
    %s155 = sadd.s32 %s154, 1
    %p158 = scmp.eq.s32.totalorder %s15, 1
    %p159 = scmp.ne.s32.totalorder %s154, %s156
    %p160 = scmp.eq.s32.totalorder %s15, 0
    %p161 = por %p159, %p160
    %p162 = scmp.ne.s32.totalorder %s154, %s156
    %p163 = scmp.eq.s32.totalorder %s20, 1
    %p164 = por %p162, %p163
    %p165 = scmp.ne.s32.totalorder %s156, %s157
    %p166 = scmp.eq.s32.totalorder %s20, 0
    %p167 = por %p165, %p166
    %p168 = scmp.ne.s32.totalorder %s156, %s157
    %p169 = scmp.eq.s32.totalorder %s21, 1
    %p170 = por %p168, %p169
    %p172 = scmp.ne.s32.totalorder %s157, %s171
    %p173 = scmp.eq.s32.totalorder %s21, 0
    %p174 = por %p172, %p173
    %s176 = sadd.s32 %s175, 1
    %p179 = scmp.eq.s32.totalorder %s15, 1
    %p180 = scmp.ne.s32.totalorder %s175, %s177
    %p181 = scmp.eq.s32.totalorder %s15, 0
    %p182 = por %p180, %p181
    %p183 = scmp.ne.s32.totalorder %s175, %s177
    %p184 = scmp.eq.s32.totalorder %s20, 1
    %p185 = por %p183, %p184
    %p186 = scmp.ne.s32.totalorder %s177, %s178
    %p187 = scmp.eq.s32.totalorder %s20, 0
    %p188 = por %p186, %p187
    %p189 = scmp.ne.s32.totalorder %s177, %s178
    %p190 = scmp.eq.s32.totalorder %s21, 1
    %p191 = por %p189, %p190
    %p193 = scmp.ne.s32.totalorder %s178, %s192
    %p194 = scmp.eq.s32.totalorder %s21, 0
    %p195 = por %p193, %p194
    %s197 = sadd.s32 %s196, 1
    %p200 = scmp.eq.s32.totalorder %s15, 1
    %p201 = scmp.ne.s32.totalorder %s196, %s198
    %p202 = scmp.eq.s32.totalorder %s15, 0
    %p203 = por %p201, %p202
    %p204 = scmp.ne.s32.totalorder %s196, %s198
    %p205 = scmp.eq.s32.totalorder %s20, 1
    %p206 = por %p204, %p205
    %p207 = scmp.ne.s32.totalorder %s198, %s199
    %p208 = scmp.eq.s32.totalorder %s20, 0
    %p209 = por %p207, %p208
    %p210 = scmp.ne.s32.totalorder %s198, %s199
    %p211 = scmp.eq.s32.totalorder %s21, 1
    %p212 = por %p210, %p211
    %p214 = scmp.ne.s32.totalorder %s199, %s213
    %p215 = scmp.eq.s32.totalorder %s21, 0
    %p216 = por %p214, %p215
    %s217 = ssub.s32 %s15, %s22
    %p218 = scmp.eq.s32.totalorder %s217, 0
    %s220 = sadd.s32 %s219, 1
    %s221 = scalar_select %p218, %s219, %s220
    %p224 = pneg %p218
    %p225 = scmp.eq.s32.totalorder %s15, 1
    %p226 = por %p224, %p225
    %p227 = scmp.ne.s32.totalorder %s219, %s222
    %p228 = scmp.eq.s32.totalorder %s15, 0
    %p229 = por %p227, %p228
    %p230 = scmp.ne.s32.totalorder %s219, %s222
    %p231 = scmp.eq.s32.totalorder %s20, 1
    %p232 = por %p230, %p231
    %p233 = scmp.ne.s32.totalorder %s222, %s223
    %p234 = scmp.eq.s32.totalorder %s20, 0
    %p235 = por %p233, %p234
    %p236 = scmp.ne.s32.totalorder %s222, %s223
    %p237 = scmp.eq.s32.totalorder %s21, 1
    %p238 = por %p236, %p237
    %p240 = scmp.ne.s32.totalorder %s223, %s239
    %p241 = scmp.eq.s32.totalorder %s21, 0
    %p242 = por %p240, %p241
    %p243 = scmp.le.s32.totalorder 1, %s15
    %p244 = scmp.lt.s32.totalorder %s15, 3
    %p245 = pnand %p243, %p244
    %p246 = pneg %p245
    // Predicated region
    $region9: #{m18_forward.6} parent=5 // pred_check
      _
    $region10: #{m18_forward.6} parent=5 // pred_check_branch
      %248 = sbr.rel (%p245) target = $region12
    $region11: #{m18_forward.6} parent=5 // pred_region
      %s249 = ssub.s32 %s15, 1
      // Predicated region
      $region13: #{m18_forward.6} parent=11 // pred_check
        %p250 = pneg %p62
      $region14: #{m18_forward.6} parent=11 // pred_check_branch
        %252 = sbr.rel (%p250) target = $region16
      $region15: #{m18_forward.6} parent=11 // pred_region
        _
      $region16: #{m18_forward.6} parent=11 // pred_fallthru
        _
      // Predicated region
      $region17: #{m18_forward.6} parent=11 // pred_check
        %p253 = pneg %p83
      $region18: #{m18_forward.6} parent=11 // pred_check_branch
        %255 = sbr.rel (%p253) target = $region20
      $region19: #{m18_forward.6} parent=11 // pred_region
        _
      $region20: #{m18_forward.6} parent=11 // pred_fallthru
        _
      // Predicated region
      $region21: #{m18_forward.6} parent=11 // pred_check
        %p256 = pneg %p104
      $region22: #{m18_forward.6} parent=11 // pred_check_branch
        %258 = sbr.rel (%p256) target = $region24
      $region23: #{m18_forward.6} parent=11 // pred_region
        _
      $region24: #{m18_forward.6} parent=11 // pred_fallthru
        _
      // Predicated region
      $region25: #{m18_forward.6} parent=11 // pred_check
        %p259 = pneg %p125
      $region26: #{m18_forward.6} parent=11 // pred_check_branch
        %261 = sbr.rel (%p259) target = $region28
      $region27: #{m18_forward.6} parent=11 // pred_region
        _
      $region28: #{m18_forward.6} parent=11 // pred_fallthru
        _
      // Predicated region
      $region29: #{m18_forward.6} parent=11 // pred_check
        %p262 = pneg %p146
      $region30: #{m18_forward.6} parent=11 // pred_check_branch
        %264 = sbr.rel (%p262) target = $region32
      $region31: #{m18_forward.6} parent=11 // pred_region
        _
      $region32: #{m18_forward.6} parent=11 // pred_fallthru
        _
      // Predicated region
      $region33: #{m18_forward.6} parent=11 // pred_check
        %p265 = pneg %p167
      $region34: #{m18_forward.6} parent=11 // pred_check_branch
        %267 = sbr.rel (%p265) target = $region36
      $region35: #{m18_forward.6} parent=11 // pred_region
        _
      $region36: #{m18_forward.6} parent=11 // pred_fallthru
        _
      // Predicated region
      $region37: #{m18_forward.6} parent=11 // pred_check
        %p268 = pneg %p188
      $region38: #{m18_forward.6} parent=11 // pred_check_branch
        %270 = sbr.rel (%p268) target = $region40
      $region39: #{m18_forward.6} parent=11 // pred_region
        _
      $region40: #{m18_forward.6} parent=11 // pred_fallthru
        _
      // Predicated region
      $region41: #{m18_forward.6} parent=11 // pred_check
        %p271 = pneg %p209
      $region42: #{m18_forward.6} parent=11 // pred_check_branch
        %273 = sbr.rel (%p271) target = $region44
      $region43: #{m18_forward.6} parent=11 // pred_region
        _
      $region44: #{m18_forward.6} parent=11 // pred_fallthru
        _
    $region12: #{m18_forward.6} parent=5 // pred_fallthru
      _
    %p274 = scmp.lt.s32.totalorder %s15, 2
    // Predicated region
    $region45: #{m18_forward.6} parent=5 // pred_check
      %p275 = pneg %p274
    $region46: #{m18_forward.6} parent=5 // pred_check_branch
      %277 = sbr.rel (%p275) target = $region48
    $region47: #{m18_forward.6} parent=5 // pred_region
      // Predicated region
      $region49: #{m18_forward.6} parent=47 // pred_check
        %p278 = pneg %p35
      $region50: #{m18_forward.6} parent=47 // pred_check_branch
        %280 = sbr.rel (%p278) target = $region52
      $region51: #{m18_forward.6} parent=47 // pred_region
        %p281 = scmp.lt.s32.totalorder %s15, 1
        %s282 = scalar_select %p281, %s15, 1
        %s283 = smul.addr %s282, 16
        %s284 = smul.addr %s283, 4
        %s285 = scalar_lea.vmem %s0, %s284
      $region52: #{m18_forward.6} parent=47 // pred_fallthru
        _
    $region48: #{m18_forward.6} parent=5 // pred_fallthru
      _
    %p286 = scmp.le.s32.totalorder 1, %s15
    %p287 = scmp.lt.s32.totalorder %s15, 3
    %p288 = pnand %p286, %p287
    %p289 = pneg %p288
    // Predicated region
    $region53: #{m18_forward.6} parent=5 // pred_check
      _
    $region54: #{m18_forward.6} parent=5 // pred_check_branch
      %291 = sbr.rel (%p288) target = $region56
    $region55: #{m18_forward.6} parent=5 // pred_region
      %s292 = ssub.s32 %s15, 1
      %p293 = scmp.lt.s32.totalorder %s20, 1
      %s294 = scalar_select %p293, %s20, 1
      %s295 = smul.addr %s294, 16
      %s296 = smul.addr %s295, 4
      %s297 = scalar_lea.vmem %s0, %s296
      %p298 = pneg %p41
      %p299 = pneg %p38
      %p300 = pneg %p62
      %p301 = pneg %p59
      %p302 = pneg %p83
      %p303 = pneg %p80
      %p304 = pneg %p104
      %p305 = pneg %p101
      %p306 = pneg %p125
      %p307 = pneg %p122
      %p308 = pneg %p146
      %p309 = pneg %p143
      %p310 = pneg %p167
      %p311 = pneg %p164
      %p312 = pneg %p188
      %p313 = pneg %p185
      %p314 = pneg %p209
      %p315 = pneg %p206
      %p316 = pneg %p235
      %p317 = pneg %p232
      %p318 = scmp.lt.s32.totalorder %s20, 1
      %s319 = scalar_select %p318, %s20, 1
      %s320 = smul.addr %s319, 16
      %s321 = smul.addr %s320, 4
      %s322 = scalar_lea.vmem %s9, %s321
      %p323 = scmp.lt.s32.totalorder %s20, 1
      %s324 = scalar_select %p323, %s20, 1
      %s325 = smul.addr %s324, 16
      %s326 = smul.addr %s325, 4
      %s327 = scalar_lea.vmem %s0, %s326
      %p328 = scmp.lt.s32.totalorder %s20, 1
      %s329 = scalar_select %p328, %s20, 1
      %s330 = smul.addr %s329, 16
      %s331 = smul.addr %s330, 4
      %s332 = scalar_lea.vmem %s9, %s331
      %vm334 = vcmask 261120
      %335 = vst.msk [vmem:[#allocation2] sm:$0xff] %vm334, 0.0
      %336 = vst.msk [vmem:[#allocation2 + $0x8] sm:$0xff] %vm334, 0.0
      %337 = vst.msk [vmem:[#allocation2 + $0x10] sm:$0xff] %vm334, 0.0
      %338 = vst.msk [vmem:[#allocation2 + $0x18] sm:$0xff] %vm334, 0.0
      %339 = vst.msk [vmem:[#allocation2 + $0x20] sm:$0xff] %vm334, 0.0
      %340 = vst.msk [vmem:[#allocation2 + $0x28] sm:$0xff] %vm334, 0.0
      %341 = vst.msk [vmem:[#allocation2 + $0x30] sm:$0xff] %vm334, 0.0
      %342 = vst.msk [vmem:[#allocation2 + $0x38] sm:$0xff] %vm334, 0.0
      %343 = vst.msk [vmem:[#allocation2 + $0x40] sm:$0xff] %vm334, 0.0
      %344 = vst.msk [vmem:[#allocation2 + $0x48] sm:$0xff] %vm334, 0.0
      %345 = vst.msk [vmem:[#allocation2 + $0x50] sm:$0xff] %vm334, 0.0
      %346 = vst.msk [vmem:[#allocation2 + $0x58] sm:$0xff] %vm334, 0.0
      %347 = vst.msk [vmem:[#allocation2 + $0x60] sm:$0xff] %vm334, 0.0
      %348 = vst.msk [vmem:[#allocation2 + $0x68] sm:$0xff] %vm334, 0.0
      %349 = vst.msk [vmem:[#allocation2 + $0x70] sm:$0xff] %vm334, 0.0
      %350 = vst.msk [vmem:[#allocation2 + $0x78] sm:$0xff] %vm334, 0.0
      %351 = vst.msk [vmem:[#allocation2 + $0x80] sm:$0xff] %vm334, 0.0
      %vm352 = vcmask 256000
      %353 = vst.msk [vmem:[#allocation2 + $0x88] sm:$0x7] %vm352, 0.0
      %v354 = vld [vmem:[%s327] sm:$0xf]
      %v355 = vld [vmem:[%s327 + $0x4] sm:$0xf]
      %v356 = vld [vmem:[%s327 + $0x8] sm:$0xf]
      %v357 = vld [vmem:[%s327 + $0xc] sm:$0xf]
      %v358 = vld [vmem:[%s327 + $0x10] sm:$0xf]
      %v359 = vld [vmem:[%s327 + $0x14] sm:$0xf]
      %v360 = vld [vmem:[%s327 + $0x18] sm:$0xf]
      %v361 = vld [vmem:[%s327 + $0x1c] sm:$0xf]
      %v362 = vld [vmem:[%s327 + $0x20] sm:$0xf]
      %v363 = vld [vmem:[%s327 + $0x24] sm:$0xf]
      %v364 = vld [vmem:[%s327 + $0x28] sm:$0xf]
      %v365 = vld [vmem:[%s327 + $0x2c] sm:$0xf]
      %v366 = vld [vmem:[%s327 + $0x30] sm:$0xf]
      %v367 = vld [vmem:[%s327 + $0x34] sm:$0xf]
      %v368 = vld [vmem:[%s327 + $0x38] sm:$0xf]
      %v369 = vld [vmem:[%s327 + $0x3c] sm:$0x3]
      %v370 = vunpack.c.l.bf16 %v354
      %v371 = vunpack.c.l.bf16 %v355
      %v372 = vunpack.c.l.bf16 %v356
      %v373 = vunpack.c.l.bf16 %v357
      %v374 = vunpack.c.l.bf16 %v358
      %v375 = vunpack.c.l.bf16 %v359
      %v376 = vunpack.c.l.bf16 %v360
      %v377 = vunpack.c.l.bf16 %v361
      %v378 = vunpack.c.l.bf16 %v362
      %v379 = vunpack.c.l.bf16 %v363
      %v380 = vunpack.c.l.bf16 %v364
      %v381 = vunpack.c.l.bf16 %v365
      %v382 = vunpack.c.l.bf16 %v366
      %v383 = vunpack.c.l.bf16 %v367
      %v384 = vunpack.c.l.bf16 %v368
      %v385 = vunpack.c.l.bf16 %v369
      %386 = vst.msk [vmem:[#allocation2 + $0x8] sm:$0xff] %vm334, %v370
      %387 = vst.msk [vmem:[#allocation2 + $0x10] sm:$0xff] %vm334, %v371
      %388 = vst.msk [vmem:[#allocation2 + $0x18] sm:$0xff] %vm334, %v372
      %389 = vst.msk [vmem:[#allocation2 + $0x20] sm:$0xff] %vm334, %v373
      %390 = vst.msk [vmem:[#allocation2 + $0x28] sm:$0xff] %vm334, %v374
      %391 = vst.msk [vmem:[#allocation2 + $0x30] sm:$0xff] %vm334, %v375
      %392 = vst.msk [vmem:[#allocation2 + $0x38] sm:$0xff] %vm334, %v376
      %393 = vst.msk [vmem:[#allocation2 + $0x40] sm:$0xff] %vm334, %v377
      %394 = vst.msk [vmem:[#allocation2 + $0x48] sm:$0xff] %vm334, %v378
      %395 = vst.msk [vmem:[#allocation2 + $0x50] sm:$0xff] %vm334, %v379
      %396 = vst.msk [vmem:[#allocation2 + $0x58] sm:$0xff] %vm334, %v380
      %397 = vst.msk [vmem:[#allocation2 + $0x60] sm:$0xff] %vm334, %v381
      %398 = vst.msk [vmem:[#allocation2 + $0x68] sm:$0xff] %vm334, %v382
      %399 = vst.msk [vmem:[#allocation2 + $0x70] sm:$0xff] %vm334, %v383
      %400 = vst.msk [vmem:[#allocation2 + $0x78] sm:$0xff] %vm334, %v384
      %401 = vst.msk [vmem:[#allocation2 + $0x80] sm:$0x7] %vm352, %v385
      %v402 = vld [vmem:[#allocation2 + $0x7] sm:$0xff]
      %v403 = vld [vmem:[#allocation2 + $0xf] sm:$0xff]
      %v404 = vld [vmem:[#allocation2 + $0x17] sm:$0xff]
      %v405 = vld [vmem:[#allocation2 + $0x1f] sm:$0xff]
      %v406 = vld [vmem:[#allocation2 + $0x27] sm:$0xff]
      %v407 = vld [vmem:[#allocation2 + $0x2f] sm:$0xff]
      %v408 = vld [vmem:[#allocation2 + $0x37] sm:$0xff]
      %v409 = vld [vmem:[#allocation2 + $0x3f] sm:$0xff]
      %v410 = vld [vmem:[#allocation2 + $0x47] sm:$0xff]
      %v411 = vld [vmem:[#allocation2 + $0x4f] sm:$0xff]
      %v412 = vld [vmem:[#allocation2 + $0x57] sm:$0xff]
      %v413 = vld [vmem:[#allocation2 + $0x5f] sm:$0xff]
      %v414 = vld [vmem:[#allocation2 + $0x67] sm:$0xff]
      %v415 = vld [vmem:[#allocation2 + $0x6f] sm:$0xff]
      %v416 = vld [vmem:[#allocation2 + $0x77] sm:$0xff]
      %v417 = vld [vmem:[#allocation2 + $0x7f] sm:$0x7]
      %v418 = vpack.c.bf16 %v403, %v402
      %v419 = vpack.c.bf16 %v405, %v404
      %v420 = vpack.c.bf16 %v407, %v406
      %v421 = vpack.c.bf16 %v409, %v408
      %v422 = vpack.c.bf16 %v411, %v410
      %v423 = vpack.c.bf16 %v413, %v412
      %v424 = vpack.c.bf16 %v415, %v414
      %v425 = vpack.c.bf16 %v417, %v416
      %v426 = vld [vmem:[#allocation2 + $0x9] sm:$0xff]
      %v427 = vld [vmem:[#allocation2 + $0x11] sm:$0xff]
      %v428 = vld [vmem:[#allocation2 + $0x19] sm:$0xff]
      %v429 = vld [vmem:[#allocation2 + $0x21] sm:$0xff]
      %v430 = vld [vmem:[#allocation2 + $0x29] sm:$0xff]
      %v431 = vld [vmem:[#allocation2 + $0x31] sm:$0xff]
      %v432 = vld [vmem:[#allocation2 + $0x39] sm:$0xff]
      %v433 = vld [vmem:[#allocation2 + $0x41] sm:$0xff]
      %v434 = vld [vmem:[#allocation2 + $0x49] sm:$0xff]
      %v435 = vld [vmem:[#allocation2 + $0x51] sm:$0xff]
      %v436 = vld [vmem:[#allocation2 + $0x59] sm:$0xff]
      %v437 = vld [vmem:[#allocation2 + $0x61] sm:$0xff]
      %v438 = vld [vmem:[#allocation2 + $0x69] sm:$0xff]
      %v439 = vld [vmem:[#allocation2 + $0x71] sm:$0xff]
      %v440 = vld [vmem:[#allocation2 + $0x79] sm:$0xff]
      %v441 = vld [vmem:[#allocation2 + $0x81] sm:$0x7]
      %v442 = vpack.c.bf16 %v427, %v426
      %v443 = vpack.c.bf16 %v429, %v428
      %v444 = vpack.c.bf16 %v431, %v430
      %v445 = vpack.c.bf16 %v433, %v432
      %v446 = vpack.c.bf16 %v435, %v434
      %v447 = vpack.c.bf16 %v437, %v436
      %v448 = vpack.c.bf16 %v439, %v438
      %v449 = vpack.c.bf16 %v441, %v440
      %v450 = vld [vmem:[%s1] sm:$0xf]
      %v451 = vld [vmem:[%s1 + $0x4] sm:$0xf]
      %v452 = vld [vmem:[%s1 + $0x8] sm:$0xf]
      %v453 = vld [vmem:[%s1 + $0xc] sm:$0xf]
      %s454 = scalar_lea.vmem %s1, 16
      %v455 = vld [vmem:[%s454] sm:$0xf]
      %v456 = vld [vmem:[%s454 + $0x4] sm:$0xf]
      %v457 = vld [vmem:[%s454 + $0x8] sm:$0xf]
      %v458 = vld [vmem:[%s454 + $0xc] sm:$0xf]
      %v475 = vunpack.c.l.b16 %v354
      %v476 = vunpack.c.l.b16 %v355
      %v477 = vunpack.c.l.b16 %v356
      %v478 = vunpack.c.l.b16 %v357
      %v479 = vunpack.c.l.b16 %v358
      %v480 = vunpack.c.l.b16 %v359
      %v481 = vunpack.c.l.b16 %v360
      %v482 = vunpack.c.l.b16 %v361
      %v483 = vunpack.c.l.b16 %v362
      %v484 = vunpack.c.l.b16 %v363
      %v485 = vunpack.c.l.b16 %v364
      %v486 = vunpack.c.l.b16 %v365
      %v487 = vunpack.c.l.b16 %v366
      %v488 = vunpack.c.l.b16 %v367
      %v489 = vunpack.c.l.b16 %v368
      %v490 = vunpack.c.l.b16 %v369
      %v491 = vpack.c.b16 %v476, %v475
      %v492 = vpack.c.b16 %v478, %v477
      %v493 = vpack.c.b16 %v480, %v479
      %v494 = vpack.c.b16 %v482, %v481
      %v495 = vpack.c.b16 %v484, %v483
      %v496 = vpack.c.b16 %v486, %v485
      %v497 = vpack.c.b16 %v488, %v487
      %v498 = vpack.c.b16 %v490, %v489
      %v503 = vunpack.c.l.b16 %v455
      %v504 = vunpack.c.l.b16 %v456
      %v505 = vunpack.c.l.b16 %v457
      %v506 = vunpack.c.l.b16 %v458
      %v507 = vpack.c.b16 %v504, %v503
      %v508 = vpack.c.b16 %v506, %v505
      %v512 = vsel %vm334, %v491, 0
      %v515 = vsel %vm334, %v492, 0
      %v518 = vsel %vm334, %v493, 0
      %v521 = vsel %vm334, %v494, 0
      %v524 = vsel %vm334, %v495, 0
      %v527 = vsel %vm334, %v496, 0
      %v530 = vsel %vm334, %v497, 0
      %v533 = vsel %vm334, %v498, 0
      %535 = vmatprep.subr.bf16.mxu0 0
      %536 = vmatpush1.bf16.msra.mxu0 %v507
      %537 = vmatprep.subr.bf16.mxu0 0
      %538 = vmatpush1.bf16.msra.mxu0 %v508
      %539 = vmatprep.subr.bf16.mxu0 0
      %540 = vmatpush1.bf16.msra.mxu0 0
      %541 = vmatprep.subr.bf16.mxu0 0
      %542 = vmatpush1.bf16.msra.mxu0 0
      %543 = vmatprep.subr.bf16.mxu0 0
      %544 = vmatpush1.bf16.msra.mxu0 0
      %545 = vmatprep.subr.bf16.mxu0 0
      %546 = vmatpush1.bf16.msra.mxu0 0
      %547 = vmatprep.subr.bf16.mxu0 0
      %548 = vmatpush1.bf16.msra.mxu0 0
      %549 = vmatprep.subr.bf16.mxu0 0
      %550 = vmatpush1.bf16.msra.mxu0 0
      %551 = vmatprep.subr.bf16.mxu0 0
      %552 = vmatpush1.bf16.msra.mxu0 0
      %553 = vmatprep.subr.bf16.mxu0 0
      %554 = vmatpush1.bf16.msra.mxu0 0
      %555 = vmatprep.subr.bf16.mxu0 0
      %556 = vmatpush1.bf16.msra.mxu0 0
      %557 = vmatprep.subr.bf16.mxu0 0
      %558 = vmatpush1.bf16.msra.mxu0 0
      %559 = vmatprep.subr.bf16.mxu0 0
      %560 = vmatpush1.bf16.msra.mxu0 0
      %561 = vmatprep.subr.bf16.mxu0 0
      %562 = vmatpush1.bf16.msra.mxu0 0
      %563 = vmatprep.subr.bf16.mxu0 0
      %564 = vmatpush1.bf16.msra.mxu0 0
      %565 = vmatprep.subr.bf16.mxu0 0
      %566 = vmatpush1.bf16.msra.mxu0 0
      %567 = vmatprep.mubr.bf16.mxu0 0
      %568 = vmatmul.mubr.bf16.gmra.mrb[0].mxu0 %v512
      %v569 = vpop.f32.mrb[0].mxu0
      %v570 = vadd.f32 0.0, %v569
      %v571 = vpop.f32.mrb[0].mxu0
      %v572 = vpop.f32.mrb[0].mxu0
      %v573 = vadd.f32 0.0, %v572
      %v574 = vpop.f32.mrb[0].mxu0
      %575 = vmatprep.mubr.bf16.mxu0 0
      %576 = vmatmul.mubr.bf16.gmra.mrb[0].mxu0 %v515
      %v577 = vpop.f32.mrb[0].mxu0
      %v578 = vadd.f32 0.0, %v577
      %v579 = vpop.f32.mrb[0].mxu0
      %v580 = vpop.f32.mrb[0].mxu0
      %v581 = vadd.f32 0.0, %v580
      %v582 = vpop.f32.mrb[0].mxu0
      %583 = vmatprep.mubr.bf16.mxu0 0
      %584 = vmatmul.mubr.bf16.gmra.mrb[0].mxu0 %v518
      %v585 = vpop.f32.mrb[0].mxu0
      %v586 = vadd.f32 0.0, %v585
      %v587 = vpop.f32.mrb[0].mxu0
      %v588 = vpop.f32.mrb[0].mxu0
      %v589 = vadd.f32 0.0, %v588
      %v590 = vpop.f32.mrb[0].mxu0
      %591 = vmatprep.mubr.bf16.mxu0 0
      %592 = vmatmul.mubr.bf16.gmra.mrb[0].mxu0 %v521
      %v593 = vpop.f32.mrb[0].mxu0
      %v594 = vadd.f32 0.0, %v593
      %v595 = vpop.f32.mrb[0].mxu0
      %v596 = vpop.f32.mrb[0].mxu0
      %v597 = vadd.f32 0.0, %v596
      %v598 = vpop.f32.mrb[0].mxu0
      %599 = vmatprep.mubr.bf16.mxu0 0
      %600 = vmatmul.mubr.bf16.gmra.mrb[0].mxu0 %v524
      %v601 = vpop.f32.mrb[0].mxu0
      %v602 = vadd.f32 0.0, %v601
      %v603 = vpop.f32.mrb[0].mxu0
      %v604 = vpop.f32.mrb[0].mxu0
      %v605 = vadd.f32 0.0, %v604
      %v606 = vpop.f32.mrb[0].mxu0
      %607 = vmatprep.mubr.bf16.mxu0 0
      %608 = vmatmul.mubr.bf16.gmra.mrb[0].mxu0 %v527
      %v609 = vpop.f32.mrb[0].mxu0
      %v610 = vadd.f32 0.0, %v609
      %v611 = vpop.f32.mrb[0].mxu0
      %v612 = vpop.f32.mrb[0].mxu0
      %v613 = vadd.f32 0.0, %v612
      %v614 = vpop.f32.mrb[0].mxu0
      %615 = vmatprep.mubr.bf16.mxu0 0
      %616 = vmatmul.mubr.bf16.gmra.mrb[0].mxu0 %v530
      %v617 = vpop.f32.mrb[0].mxu0
      %v618 = vadd.f32 0.0, %v617
      %v619 = vpop.f32.mrb[0].mxu0
      %v620 = vpop.f32.mrb[0].mxu0
      %v621 = vadd.f32 0.0, %v620
      %v622 = vpop.f32.mrb[0].mxu0
      %623 = vmatprep.mubr.bf16.mxu0 0
      %624 = vmatmul.mubr.bf16.gmra.mrb[0].mxu0 %v533
      %v625 = vpop.f32.mrb[0].mxu0
      %v626 = vadd.f32 0.0, %v625
      %v627 = vpop.f32.mrb[0].mxu0
      %v628 = vpop.f32.mrb[0].mxu0
      %v629 = vadd.f32 0.0, %v628
      %v630 = vpop.f32.mrb[0].mxu0
      %631 = vdwg.mxu0
      %v636 = vunpack.c.l.b16 %v450
      %v637 = vunpack.c.l.b16 %v451
      %v638 = vunpack.c.l.b16 %v452
      %v639 = vunpack.c.l.b16 %v453
      %v640 = vpack.c.b16 %v637, %v636
      %v641 = vpack.c.b16 %v639, %v638
      %v645 = vsel %vm334, %v418, 0
      %v648 = vsel %vm334, %v419, 0
      %v651 = vsel %vm334, %v420, 0
      %v654 = vsel %vm334, %v421, 0
      %v657 = vsel %vm334, %v422, 0
      %v660 = vsel %vm334, %v423, 0
      %v663 = vsel %vm334, %v424, 0
      %v666 = vsel %vm334, %v425, 0
      %668 = vmatprep.subr.bf16.mxu0 0
      %669 = vmatpush1.bf16.msra.mxu0 %v640
      %670 = vmatprep.subr.bf16.mxu0 0
      %671 = vmatpush1.bf16.msra.mxu0 %v641
      %672 = vmatprep.subr.bf16.mxu0 0
      %673 = vmatpush1.bf16.msra.mxu0 0
      %674 = vmatprep.subr.bf16.mxu0 0
      %675 = vmatpush1.bf16.msra.mxu0 0
      %676 = vmatprep.subr.bf16.mxu0 0
      %677 = vmatpush1.bf16.msra.mxu0 0
      %678 = vmatprep.subr.bf16.mxu0 0
      %679 = vmatpush1.bf16.msra.mxu0 0
      %680 = vmatprep.subr.bf16.mxu0 0
      %681 = vmatpush1.bf16.msra.mxu0 0
      %682 = vmatprep.subr.bf16.mxu0 0
      %683 = vmatpush1.bf16.msra.mxu0 0
      %684 = vmatprep.subr.bf16.mxu0 0
      %685 = vmatpush1.bf16.msra.mxu0 0
      %686 = vmatprep.subr.bf16.mxu0 0
      %687 = vmatpush1.bf16.msra.mxu0 0
      %688 = vmatprep.subr.bf16.mxu0 0
      %689 = vmatpush1.bf16.msra.mxu0 0
      %690 = vmatprep.subr.bf16.mxu0 0
      %691 = vmatpush1.bf16.msra.mxu0 0
      %692 = vmatprep.subr.bf16.mxu0 0
      %693 = vmatpush1.bf16.msra.mxu0 0
      %694 = vmatprep.subr.bf16.mxu0 0
      %695 = vmatpush1.bf16.msra.mxu0 0
      %696 = vmatprep.subr.bf16.mxu0 0
      %697 = vmatpush1.bf16.msra.mxu0 0
      %698 = vmatprep.subr.bf16.mxu0 0
      %699 = vmatpush1.bf16.msra.mxu0 0
      %700 = vmatprep.mubr.bf16.mxu0 0
      %701 = vmatmul.mubr.bf16.gmra.mrb[0].mxu0 %v645
      %v702 = vpop.f32.mrb[0].mxu0
      %v703 = vadd.f32 %v570, %v702
      %v704 = vpop.f32.mrb[0].mxu0
      %v705 = vpop.f32.mrb[0].mxu0
      %v706 = vadd.f32 %v573, %v705
      %v707 = vpop.f32.mrb[0].mxu0
      %708 = vmatprep.mubr.bf16.mxu0 0
      %709 = vmatmul.mubr.bf16.gmra.mrb[0].mxu0 %v648
      %v710 = vpop.f32.mrb[0].mxu0
      %v711 = vadd.f32 %v578, %v710
      %v712 = vpop.f32.mrb[0].mxu0
      %v713 = vpop.f32.mrb[0].mxu0
      %v714 = vadd.f32 %v581, %v713
      %v715 = vpop.f32.mrb[0].mxu0
      %716 = vmatprep.mubr.bf16.mxu0 0
      %717 = vmatmul.mubr.bf16.gmra.mrb[0].mxu0 %v651
      %v718 = vpop.f32.mrb[0].mxu0
      %v719 = vadd.f32 %v586, %v718
      %v720 = vpop.f32.mrb[0].mxu0
      %v721 = vpop.f32.mrb[0].mxu0
      %v722 = vadd.f32 %v589, %v721
      %v723 = vpop.f32.mrb[0].mxu0
      %724 = vmatprep.mubr.bf16.mxu0 0
      %725 = vmatmul.mubr.bf16.gmra.mrb[0].mxu0 %v654
      %v726 = vpop.f32.mrb[0].mxu0
      %v727 = vadd.f32 %v594, %v726
      %v728 = vpop.f32.mrb[0].mxu0
      %v729 = vpop.f32.mrb[0].mxu0
      %v730 = vadd.f32 %v597, %v729
      %v731 = vpop.f32.mrb[0].mxu0
      %732 = vmatprep.mubr.bf16.mxu0 0
      %733 = vmatmul.mubr.bf16.gmra.mrb[0].mxu0 %v657
      %v734 = vpop.f32.mrb[0].mxu0
      %v735 = vadd.f32 %v602, %v734
      %v736 = vpop.f32.mrb[0].mxu0
      %v737 = vpop.f32.mrb[0].mxu0
      %v738 = vadd.f32 %v605, %v737
      %v739 = vpop.f32.mrb[0].mxu0
      %740 = vmatprep.mubr.bf16.mxu0 0
      %741 = vmatmul.mubr.bf16.gmra.mrb[0].mxu0 %v660
      %v742 = vpop.f32.mrb[0].mxu0
      %v743 = vadd.f32 %v610, %v742
      %v744 = vpop.f32.mrb[0].mxu0
      %v745 = vpop.f32.mrb[0].mxu0
      %v746 = vadd.f32 %v613, %v745
      %v747 = vpop.f32.mrb[0].mxu0
      %748 = vmatprep.mubr.bf16.mxu0 0
      %749 = vmatmul.mubr.bf16.gmra.mrb[0].mxu0 %v663
      %v750 = vpop.f32.mrb[0].mxu0
      %v751 = vadd.f32 %v618, %v750
      %v752 = vpop.f32.mrb[0].mxu0
      %v753 = vpop.f32.mrb[0].mxu0
      %v754 = vadd.f32 %v621, %v753
      %v755 = vpop.f32.mrb[0].mxu0
      %756 = vmatprep.mubr.bf16.mxu0 0
      %757 = vmatmul.mubr.bf16.gmra.mrb[0].mxu0 %v666
      %v758 = vpop.f32.mrb[0].mxu0
      %v759 = vadd.f32 %v626, %v758
      %v760 = vpop.f32.mrb[0].mxu0
      %v761 = vpop.f32.mrb[0].mxu0
      %v762 = vadd.f32 %v629, %v761
      %v763 = vpop.f32.mrb[0].mxu0
      %764 = vdwg.mxu0
      %s765 = scalar_lea.vmem %s1, 32
      %v766 = vld [vmem:[%s765] sm:$0xf]
      %v767 = vld [vmem:[%s765 + $0x4] sm:$0xf]
      %v768 = vld [vmem:[%s765 + $0x8] sm:$0xf]
      %v769 = vld [vmem:[%s765 + $0xc] sm:$0xf]
      %v774 = vunpack.c.l.b16 %v766
      %v775 = vunpack.c.l.b16 %v767
      %v776 = vunpack.c.l.b16 %v768
      %v777 = vunpack.c.l.b16 %v769
      %v778 = vpack.c.b16 %v775, %v774
      %v779 = vpack.c.b16 %v777, %v776
      %v783 = vsel %vm334, %v442, 0
      %v786 = vsel %vm334, %v443, 0
      %v789 = vsel %vm334, %v444, 0
      %v792 = vsel %vm334, %v445, 0
      %v795 = vsel %vm334, %v446, 0
      %v798 = vsel %vm334, %v447, 0
      %v801 = vsel %vm334, %v448, 0
      %v804 = vsel %vm334, %v449, 0
      %806 = vmatprep.subr.bf16.mxu0 0
      %807 = vmatpush1.bf16.msra.mxu0 %v778
      %808 = vmatprep.subr.bf16.mxu0 0
      %809 = vmatpush1.bf16.msra.mxu0 %v779
      %810 = vmatprep.subr.bf16.mxu0 0
      %811 = vmatpush1.bf16.msra.mxu0 0
      %812 = vmatprep.subr.bf16.mxu0 0
      %813 = vmatpush1.bf16.msra.mxu0 0
      %814 = vmatprep.subr.bf16.mxu0 0
      %815 = vmatpush1.bf16.msra.mxu0 0
      %816 = vmatprep.subr.bf16.mxu0 0
      %817 = vmatpush1.bf16.msra.mxu0 0
      %818 = vmatprep.subr.bf16.mxu0 0
      %819 = vmatpush1.bf16.msra.mxu0 0
      %820 = vmatprep.subr.bf16.mxu0 0
      %821 = vmatpush1.bf16.msra.mxu0 0
      %822 = vmatprep.subr.bf16.mxu0 0
      %823 = vmatpush1.bf16.msra.mxu0 0
      %824 = vmatprep.subr.bf16.mxu0 0
      %825 = vmatpush1.bf16.msra.mxu0 0
      %826 = vmatprep.subr.bf16.mxu0 0
      %827 = vmatpush1.bf16.msra.mxu0 0
      %828 = vmatprep.subr.bf16.mxu0 0
      %829 = vmatpush1.bf16.msra.mxu0 0
      %830 = vmatprep.subr.bf16.mxu0 0
      %831 = vmatpush1.bf16.msra.mxu0 0
      %832 = vmatprep.subr.bf16.mxu0 0
      %833 = vmatpush1.bf16.msra.mxu0 0
      %834 = vmatprep.subr.bf16.mxu0 0
      %835 = vmatpush1.bf16.msra.mxu0 0
      %836 = vmatprep.subr.bf16.mxu0 0
      %837 = vmatpush1.bf16.msra.mxu0 0
      %838 = vmatprep.mubr.bf16.mxu0 0
      %839 = vmatmul.mubr.bf16.gmra.mrb[0].mxu0 %v783
      %v840 = vpop.f32.mrb[0].mxu0
      %v841 = vadd.f32 0.0, %v840
      %v842 = vpop.f32.mrb[0].mxu0
      %v843 = vpop.f32.mrb[0].mxu0
      %v844 = vadd.f32 0.0, %v843
      %v845 = vpop.f32.mrb[0].mxu0
      %846 = vmatprep.mubr.bf16.mxu0 0
      %847 = vmatmul.mubr.bf16.gmra.mrb[0].mxu0 %v786
      %v848 = vpop.f32.mrb[0].mxu0
      %v849 = vadd.f32 0.0, %v848
      %v850 = vpop.f32.mrb[0].mxu0
      %v851 = vpop.f32.mrb[0].mxu0
      %v852 = vadd.f32 0.0, %v851
      %v853 = vpop.f32.mrb[0].mxu0
      %854 = vmatprep.mubr.bf16.mxu0 0
      %855 = vmatmul.mubr.bf16.gmra.mrb[0].mxu0 %v789
      %v856 = vpop.f32.mrb[0].mxu0
      %v857 = vadd.f32 0.0, %v856
      %v858 = vpop.f32.mrb[0].mxu0
      %v859 = vpop.f32.mrb[0].mxu0
      %v860 = vadd.f32 0.0, %v859
      %v861 = vpop.f32.mrb[0].mxu0
      %862 = vmatprep.mubr.bf16.mxu0 0
      %863 = vmatmul.mubr.bf16.gmra.mrb[0].mxu0 %v792
      %v864 = vpop.f32.mrb[0].mxu0
      %v865 = vadd.f32 0.0, %v864
      %v866 = vpop.f32.mrb[0].mxu0
      %v867 = vpop.f32.mrb[0].mxu0
      %v868 = vadd.f32 0.0, %v867
      %v869 = vpop.f32.mrb[0].mxu0
      %870 = vmatprep.mubr.bf16.mxu0 0
      %871 = vmatmul.mubr.bf16.gmra.mrb[0].mxu0 %v795
      %v872 = vpop.f32.mrb[0].mxu0
      %v873 = vadd.f32 0.0, %v872
      %v874 = vpop.f32.mrb[0].mxu0
      %v875 = vpop.f32.mrb[0].mxu0
      %v876 = vadd.f32 0.0, %v875
      %v877 = vpop.f32.mrb[0].mxu0
      %878 = vmatprep.mubr.bf16.mxu0 0
      %879 = vmatmul.mubr.bf16.gmra.mrb[0].mxu0 %v798
      %v880 = vpop.f32.mrb[0].mxu0
      %v881 = vadd.f32 0.0, %v880
      %v882 = vpop.f32.mrb[0].mxu0
      %v883 = vpop.f32.mrb[0].mxu0
      %v884 = vadd.f32 0.0, %v883
      %v885 = vpop.f32.mrb[0].mxu0
      %886 = vmatprep.mubr.bf16.mxu0 0
      %887 = vmatmul.mubr.bf16.gmra.mrb[0].mxu0 %v801
      %v888 = vpop.f32.mrb[0].mxu0
      %v889 = vadd.f32 0.0, %v888
      %v890 = vpop.f32.mrb[0].mxu0
      %v891 = vpop.f32.mrb[0].mxu0
      %v892 = vadd.f32 0.0, %v891
      %v893 = vpop.f32.mrb[0].mxu0
      %894 = vmatprep.mubr.bf16.mxu0 0
      %895 = vmatmul.mubr.bf16.gmra.mrb[0].mxu0 %v804
      %v896 = vpop.f32.mrb[0].mxu0
      %v897 = vadd.f32 0.0, %v896
      %v898 = vpop.f32.mrb[0].mxu0
      %v899 = vpop.f32.mrb[0].mxu0
      %v900 = vadd.f32 0.0, %v899
      %v901 = vpop.f32.mrb[0].mxu0
      %902 = vdwg.mxu0
      %v903 = vadd.f32 %v703, %v841
      %v904 = vadd.f32 %v706, %v844
      %v905 = vadd.f32 %v711, %v849
      %v906 = vadd.f32 %v714, %v852
      %v907 = vadd.f32 %v719, %v857
      %v908 = vadd.f32 %v722, %v860
      %v909 = vadd.f32 %v727, %v865
      %v910 = vadd.f32 %v730, %v868
      %v911 = vadd.f32 %v735, %v873
      %v912 = vadd.f32 %v738, %v876
      %v913 = vadd.f32 %v743, %v881
      %v914 = vadd.f32 %v746, %v884
      %v915 = vadd.f32 %v751, %v889
      %v916 = vadd.f32 %v754, %v892
      %v917 = vadd.f32 %v759, %v897
      %v918 = vadd.f32 %v762, %v900
      %v919 = vld [vmem:[%s2] sm:$0x1]
      %v921 = vlaneseq
      %v922 = vshrl.u32 %v921, 7
      %v923 = vsub.s32 0, %v922
      %v924 = vrot.slane %v919, %v923
      %v926 = vadd.f32 %v903, %v924
      %v927 = vadd.f32 %v904, %v924
      %v928 = vadd.f32 %v905, %v924
      %v929 = vadd.f32 %v906, %v924
      %v930 = vadd.f32 %v907, %v924
      %v931 = vadd.f32 %v908, %v924
      %v932 = vadd.f32 %v909, %v924
      %v933 = vadd.f32 %v910, %v924
      %v934 = vadd.f32 %v911, %v924
      %v935 = vadd.f32 %v912, %v924
      %v936 = vadd.f32 %v913, %v924
      %v937 = vadd.f32 %v914, %v924
      %v938 = vadd.f32 %v915, %v924
      %v939 = vadd.f32 %v916, %v924
      %v940 = vadd.f32 %v917, %v924
      %v941 = vadd.f32 %v918, %v924
      %v942 = vmax.f32 %v926, 0.0
      %v943 = vmax.f32 %v927, 0.0
      %v944 = vmax.f32 %v928, 0.0
      %v945 = vmax.f32 %v929, 0.0
      %v946 = vmax.f32 %v930, 0.0
      %v947 = vmax.f32 %v931, 0.0
      %v948 = vmax.f32 %v932, 0.0
      %v949 = vmax.f32 %v933, 0.0
      %v950 = vmax.f32 %v934, 0.0
      %v951 = vmax.f32 %v935, 0.0
      %v952 = vmax.f32 %v936, 0.0
      %v953 = vmax.f32 %v937, 0.0
      %v954 = vmax.f32 %v938, 0.0
      %v955 = vmax.f32 %v939, 0.0
      %v956 = vmax.f32 %v940, 0.0
      %v957 = vmax.f32 %v941, 0.0
      %958 = vst.msk [vmem:[#allocation2 + $0x8] sm:$0xff] %vm334, %v942
      %959 = vst.msk [vmem:[#allocation2 + $0x10] sm:$0xff] %vm334, %v943
      %960 = vst.msk [vmem:[#allocation2 + $0x18] sm:$0xff] %vm334, %v944
      %961 = vst.msk [vmem:[#allocation2 + $0x20] sm:$0xff] %vm334, %v945
      %962 = vst.msk [vmem:[#allocation2 + $0x28] sm:$0xff] %vm334, %v946
      %963 = vst.msk [vmem:[#allocation2 + $0x30] sm:$0xff] %vm334, %v947
      %964 = vst.msk [vmem:[#allocation2 + $0x38] sm:$0xff] %vm334, %v948
      %965 = vst.msk [vmem:[#allocation2 + $0x40] sm:$0xff] %vm334, %v949
      %966 = vst.msk [vmem:[#allocation2 + $0x48] sm:$0xff] %vm334, %v950
      %967 = vst.msk [vmem:[#allocation2 + $0x50] sm:$0xff] %vm334, %v951
      %968 = vst.msk [vmem:[#allocation2 + $0x58] sm:$0xff] %vm334, %v952
      %969 = vst.msk [vmem:[#allocation2 + $0x60] sm:$0xff] %vm334, %v953
      %970 = vst.msk [vmem:[#allocation2 + $0x68] sm:$0xff] %vm334, %v954
      %971 = vst.msk [vmem:[#allocation2 + $0x70] sm:$0xff] %vm334, %v955
      %972 = vst.msk [vmem:[#allocation2 + $0x78] sm:$0xff] %vm334, %v956
      %973 = vst.msk [vmem:[#allocation2 + $0x80] sm:$0x7] %vm352, %v957
      %v974 = vld [vmem:[#allocation2 + $0x7] sm:$0xff]
      %v975 = vld [vmem:[#allocation2 + $0xf] sm:$0xff]
      %v976 = vld [vmem:[#allocation2 + $0x17] sm:$0xff]
      %v977 = vld [vmem:[#allocation2 + $0x1f] sm:$0xff]
      %v978 = vld [vmem:[#allocation2 + $0x27] sm:$0xff]
      %v979 = vld [vmem:[#allocation2 + $0x2f] sm:$0xff]
      %v980 = vld [vmem:[#allocation2 + $0x37] sm:$0xff]
      %v981 = vld [vmem:[#allocation2 + $0x3f] sm:$0xff]
      %v982 = vld [vmem:[#allocation2 + $0x47] sm:$0xff]
      %v983 = vld [vmem:[#allocation2 + $0x4f] sm:$0xff]
      %v984 = vld [vmem:[#allocation2 + $0x57] sm:$0xff]
      %v985 = vld [vmem:[#allocation2 + $0x5f] sm:$0xff]
      %v986 = vld [vmem:[#allocation2 + $0x67] sm:$0xff]
      %v987 = vld [vmem:[#allocation2 + $0x6f] sm:$0xff]
      %v988 = vld [vmem:[#allocation2 + $0x77] sm:$0xff]
      %v989 = vld [vmem:[#allocation2 + $0x7f] sm:$0x7]
      %v990 = vpack.c.bf16 %v975, %v974
      %v991 = vpack.c.bf16 %v977, %v976
      %v992 = vpack.c.bf16 %v979, %v978
      %v993 = vpack.c.bf16 %v981, %v980
      %v994 = vpack.c.bf16 %v983, %v982
      %v995 = vpack.c.bf16 %v985, %v984
      %v996 = vpack.c.bf16 %v987, %v986
      %v997 = vpack.c.bf16 %v989, %v988
      %v998 = vld [vmem:[#allocation2 + $0x9] sm:$0xff]
      %v999 = vld [vmem:[#allocation2 + $0x11] sm:$0xff]
      %v1000 = vld [vmem:[#allocation2 + $0x19] sm:$0xff]
      %v1001 = vld [vmem:[#allocation2 + $0x21] sm:$0xff]
      %v1002 = vld [vmem:[#allocation2 + $0x29] sm:$0xff]
      %v1003 = vld [vmem:[#allocation2 + $0x31] sm:$0xff]
      %v1004 = vld [vmem:[#allocation2 + $0x39] sm:$0xff]
      %v1005 = vld [vmem:[#allocation2 + $0x41] sm:$0xff]
      %v1006 = vld [vmem:[#allocation2 + $0x49] sm:$0xff]
      %v1007 = vld [vmem:[#allocation2 + $0x51] sm:$0xff]
      %v1008 = vld [vmem:[#allocation2 + $0x59] sm:$0xff]
      %v1009 = vld [vmem:[#allocation2 + $0x61] sm:$0xff]
      %v1010 = vld [vmem:[#allocation2 + $0x69] sm:$0xff]
      %v1011 = vld [vmem:[#allocation2 + $0x71] sm:$0xff]
      %v1012 = vld [vmem:[#allocation2 + $0x79] sm:$0xff]
      %v1013 = vld [vmem:[#allocation2 + $0x81] sm:$0x7]
      %v1014 = vpack.c.bf16 %v999, %v998
      %v1015 = vpack.c.bf16 %v1001, %v1000
      %v1016 = vpack.c.bf16 %v1003, %v1002
      %v1017 = vpack.c.bf16 %v1005, %v1004
      %v1018 = vpack.c.bf16 %v1007, %v1006
      %v1019 = vpack.c.bf16 %v1009, %v1008
      %v1020 = vpack.c.bf16 %v1011, %v1010
      %v1021 = vpack.c.bf16 %v1013, %v1012
      %v1022 = vpack.c.bf16 %v943, %v942
      %v1023 = vpack.c.bf16 %v945, %v944
      %v1024 = vpack.c.bf16 %v947, %v946
      %v1025 = vpack.c.bf16 %v949, %v948
      %v1026 = vpack.c.bf16 %v951, %v950
      %v1027 = vpack.c.bf16 %v953, %v952
      %v1028 = vpack.c.bf16 %v955, %v954
      %v1029 = vpack.c.bf16 %v957, %v956
      %v1030 = vld [vmem:[%s3] sm:$0xf]
      %v1031 = vld [vmem:[%s3 + $0x4] sm:$0xf]
      %v1032 = vld [vmem:[%s3 + $0x8] sm:$0xf]
      %v1033 = vld [vmem:[%s3 + $0xc] sm:$0xf]
      %s1034 = scalar_lea.vmem %s3, 16
      %v1035 = vld [vmem:[%s1034] sm:$0xf]
      %v1036 = vld [vmem:[%s1034 + $0x4] sm:$0xf]
      %v1037 = vld [vmem:[%s1034 + $0x8] sm:$0xf]
      %v1038 = vld [vmem:[%s1034 + $0xc] sm:$0xf]
      %v1043 = vunpack.c.l.b16 %v1035
      %v1044 = vunpack.c.l.b16 %v1036
      %v1045 = vunpack.c.l.b16 %v1037
      %v1046 = vunpack.c.l.b16 %v1038
      %v1047 = vpack.c.b16 %v1044, %v1043
      %v1048 = vpack.c.b16 %v1046, %v1045
      %v1052 = vsel %vm334, %v1022, 0
      %v1055 = vsel %vm334, %v1023, 0
      %v1058 = vsel %vm334, %v1024, 0
      %v1061 = vsel %vm334, %v1025, 0
      %v1064 = vsel %vm334, %v1026, 0
      %v1067 = vsel %vm334, %v1027, 0
      %v1070 = vsel %vm334, %v1028, 0
      %v1073 = vsel %vm334, %v1029, 0
      %1075 = vmatprep.subr.bf16.mxu0 0
      %1076 = vmatpush1.bf16.msra.mxu0 %v1047
      %1077 = vmatprep.subr.bf16.mxu0 0
      %1078 = vmatpush1.bf16.msra.mxu0 %v1048
      %1079 = vmatprep.subr.bf16.mxu0 0
      %1080 = vmatpush1.bf16.msra.mxu0 0
      %1081 = vmatprep.subr.bf16.mxu0 0
      %1082 = vmatpush1.bf16.msra.mxu0 0
      %1083 = vmatprep.subr.bf16.mxu0 0
      %1084 = vmatpush1.bf16.msra.mxu0 0
      %1085 = vmatprep.subr.bf16.mxu0 0
      %1086 = vmatpush1.bf16.msra.mxu0 0
      %1087 = vmatprep.subr.bf16.mxu0 0
      %1088 = vmatpush1.bf16.msra.mxu0 0
      %1089 = vmatprep.subr.bf16.mxu0 0
      %1090 = vmatpush1.bf16.msra.mxu0 0
      %1091 = vmatprep.subr.bf16.mxu0 0
      %1092 = vmatpush1.bf16.msra.mxu0 0
      %1093 = vmatprep.subr.bf16.mxu0 0
      %1094 = vmatpush1.bf16.msra.mxu0 0
      %1095 = vmatprep.subr.bf16.mxu0 0
      %1096 = vmatpush1.bf16.msra.mxu0 0
      %1097 = vmatprep.subr.bf16.mxu0 0
      %1098 = vmatpush1.bf16.msra.mxu0 0
      %1099 = vmatprep.subr.bf16.mxu0 0
      %1100 = vmatpush1.bf16.msra.mxu0 0
      %1101 = vmatprep.subr.bf16.mxu0 0
      %1102 = vmatpush1.bf16.msra.mxu0 0
      %1103 = vmatprep.subr.bf16.mxu0 0
      %1104 = vmatpush1.bf16.msra.mxu0 0
      %1105 = vmatprep.subr.bf16.mxu0 0
      %1106 = vmatpush1.bf16.msra.mxu0 0
      %1107 = vmatprep.mubr.bf16.mxu0 0
      %1108 = vmatmul.mubr.bf16.gmra.mrb[0].mxu0 %v1052
      %v1109 = vpop.f32.mrb[0].mxu0
      %v1110 = vadd.f32 0.0, %v1109
      %v1111 = vpop.f32.mrb[0].mxu0
      %v1112 = vpop.f32.mrb[0].mxu0
      %v1113 = vadd.f32 0.0, %v1112
      %v1114 = vpop.f32.mrb[0].mxu0
      %1115 = vmatprep.mubr.bf16.mxu0 0
      %1116 = vmatmul.mubr.bf16.gmra.mrb[0].mxu0 %v1055
      %v1117 = vpop.f32.mrb[0].mxu0
      %v1118 = vadd.f32 0.0, %v1117
      %v1119 = vpop.f32.mrb[0].mxu0
      %v1120 = vpop.f32.mrb[0].mxu0
      %v1121 = vadd.f32 0.0, %v1120
      %v1122 = vpop.f32.mrb[0].mxu0
      %1123 = vmatprep.mubr.bf16.mxu0 0
      %1124 = vmatmul.mubr.bf16.gmra.mrb[0].mxu0 %v1058
      %v1125 = vpop.f32.mrb[0].mxu0
      %v1126 = vadd.f32 0.0, %v1125
      %v1127 = vpop.f32.mrb[0].mxu0
      %v1128 = vpop.f32.mrb[0].mxu0
      %v1129 = vadd.f32 0.0, %v1128
      %v1130 = vpop.f32.mrb[0].mxu0
      %1131 = vmatprep.mubr.bf16.mxu0 0
      %1132 = vmatmul.mubr.bf16.gmra.mrb[0].mxu0 %v1061
      %v1133 = vpop.f32.mrb[0].mxu0
      %v1134 = vadd.f32 0.0, %v1133
      %v1135 = vpop.f32.mrb[0].mxu0
      %v1136 = vpop.f32.mrb[0].mxu0
      %v1137 = vadd.f32 0.0, %v1136
      %v1138 = vpop.f32.mrb[0].mxu0
      %1139 = vmatprep.mubr.bf16.mxu0 0
      %1140 = vmatmul.mubr.bf16.gmra.mrb[0].mxu0 %v1064
      %v1141 = vpop.f32.mrb[0].mxu0
      %v1142 = vadd.f32 0.0, %v1141
      %v1143 = vpop.f32.mrb[0].mxu0
      %v1144 = vpop.f32.mrb[0].mxu0
      %v1145 = vadd.f32 0.0, %v1144
      %v1146 = vpop.f32.mrb[0].mxu0
      %1147 = vmatprep.mubr.bf16.mxu0 0
      %1148 = vmatmul.mubr.bf16.gmra.mrb[0].mxu0 %v1067
      %v1149 = vpop.f32.mrb[0].mxu0
      %v1150 = vadd.f32 0.0, %v1149
      %v1151 = vpop.f32.mrb[0].mxu0
      %v1152 = vpop.f32.mrb[0].mxu0
      %v1153 = vadd.f32 0.0, %v1152
      %v1154 = vpop.f32.mrb[0].mxu0
      %1155 = vmatprep.mubr.bf16.mxu0 0
      %1156 = vmatmul.mubr.bf16.gmra.mrb[0].mxu0 %v1070
      %v1157 = vpop.f32.mrb[0].mxu0
      %v1158 = vadd.f32 0.0, %v1157
      %v1159 = vpop.f32.mrb[0].mxu0
      %v1160 = vpop.f32.mrb[0].mxu0
      %v1161 = vadd.f32 0.0, %v1160
      %v1162 = vpop.f32.mrb[0].mxu0
      %1163 = vmatprep.mubr.bf16.mxu0 0
      %1164 = vmatmul.mubr.bf16.gmra.mrb[0].mxu0 %v1073
      %v1165 = vpop.f32.mrb[0].mxu0
      %v1166 = vadd.f32 0.0, %v1165
      %v1167 = vpop.f32.mrb[0].mxu0
      %v1168 = vpop.f32.mrb[0].mxu0
      %v1169 = vadd.f32 0.0, %v1168
      %v1170 = vpop.f32.mrb[0].mxu0
      %1171 = vdwg.mxu0
      %v1176 = vunpack.c.l.b16 %v1030
      %v1177 = vunpack.c.l.b16 %v1031
      %v1178 = vunpack.c.l.b16 %v1032
      %v1179 = vunpack.c.l.b16 %v1033
      %v1180 = vpack.c.b16 %v1177, %v1176
      %v1181 = vpack.c.b16 %v1179, %v1178
      %v1185 = vsel %vm334, %v990, 0
      %v1188 = vsel %vm334, %v991, 0
      %v1191 = vsel %vm334, %v992, 0
      %v1194 = vsel %vm334, %v993, 0
      %v1197 = vsel %vm334, %v994, 0
      %v1200 = vsel %vm334, %v995, 0
      %v1203 = vsel %vm334, %v996, 0
      %v1206 = vsel %vm334, %v997, 0
      %1208 = vmatprep.subr.bf16.mxu0 0
      %1209 = vmatpush1.bf16.msra.mxu0 %v1180
      %1210 = vmatprep.subr.bf16.mxu0 0
      %1211 = vmatpush1.bf16.msra.mxu0 %v1181
      %1212 = vmatprep.subr.bf16.mxu0 0
      %1213 = vmatpush1.bf16.msra.mxu0 0
      %1214 = vmatprep.subr.bf16.mxu0 0
      %1215 = vmatpush1.bf16.msra.mxu0 0
      %1216 = vmatprep.subr.bf16.mxu0 0
      %1217 = vmatpush1.bf16.msra.mxu0 0
      %1218 = vmatprep.subr.bf16.mxu0 0
      %1219 = vmatpush1.bf16.msra.mxu0 0
      %1220 = vmatprep.subr.bf16.mxu0 0
      %1221 = vmatpush1.bf16.msra.mxu0 0
      %1222 = vmatprep.subr.bf16.mxu0 0
      %1223 = vmatpush1.bf16.msra.mxu0 0
      %1224 = vmatprep.subr.bf16.mxu0 0
      %1225 = vmatpush1.bf16.msra.mxu0 0
      %1226 = vmatprep.subr.bf16.mxu0 0
      %1227 = vmatpush1.bf16.msra.mxu0 0
      %1228 = vmatprep.subr.bf16.mxu0 0
      %1229 = vmatpush1.bf16.msra.mxu0 0
      %1230 = vmatprep.subr.bf16.mxu0 0
      %1231 = vmatpush1.bf16.msra.mxu0 0
      %1232 = vmatprep.subr.bf16.mxu0 0
      %1233 = vmatpush1.bf16.msra.mxu0 0
      %1234 = vmatprep.subr.bf16.mxu0 0
      %1235 = vmatpush1.bf16.msra.mxu0 0
      %1236 = vmatprep.subr.bf16.mxu0 0
      %1237 = vmatpush1.bf16.msra.mxu0 0
      %1238 = vmatprep.subr.bf16.mxu0 0
      %1239 = vmatpush1.bf16.msra.mxu0 0
      %1240 = vmatprep.mubr.bf16.mxu0 0
      %1241 = vmatmul.mubr.bf16.gmra.mrb[0].mxu0 %v1185
      %v1242 = vpop.f32.mrb[0].mxu0
      %v1243 = vadd.f32 %v1110, %v1242
      %v1244 = vpop.f32.mrb[0].mxu0
      %v1245 = vpop.f32.mrb[0].mxu0
      %v1246 = vadd.f32 %v1113, %v1245
      %v1247 = vpop.f32.mrb[0].mxu0
      %1248 = vmatprep.mubr.bf16.mxu0 0
      %1249 = vmatmul.mubr.bf16.gmra.mrb[0].mxu0 %v1188
      %v1250 = vpop.f32.mrb[0].mxu0
      %v1251 = vadd.f32 %v1118, %v1250
      %v1252 = vpop.f32.mrb[0].mxu0
      %v1253 = vpop.f32.mrb[0].mxu0
      %v1254 = vadd.f32 %v1121, %v1253
      %v1255 = vpop.f32.mrb[0].mxu0
      %1256 = vmatprep.mubr.bf16.mxu0 0
      %1257 = vmatmul.mubr.bf16.gmra.mrb[0].mxu0 %v1191
      %v1258 = vpop.f32.mrb[0].mxu0
      %v1259 = vadd.f32 %v1126, %v1258
      %v1260 = vpop.f32.mrb[0].mxu0
      %v1261 = vpop.f32.mrb[0].mxu0
      %v1262 = vadd.f32 %v1129, %v1261
      %v1263 = vpop.f32.mrb[0].mxu0
      %1264 = vmatprep.mubr.bf16.mxu0 0
      %1265 = vmatmul.mubr.bf16.gmra.mrb[0].mxu0 %v1194
      %v1266 = vpop.f32.mrb[0].mxu0
      %v1267 = vadd.f32 %v1134, %v1266
      %v1268 = vpop.f32.mrb[0].mxu0
      %v1269 = vpop.f32.mrb[0].mxu0
      %v1270 = vadd.f32 %v1137, %v1269
      %v1271 = vpop.f32.mrb[0].mxu0
      %1272 = vmatprep.mubr.bf16.mxu0 0
      %1273 = vmatmul.mubr.bf16.gmra.mrb[0].mxu0 %v1197
      %v1274 = vpop.f32.mrb[0].mxu0
      %v1275 = vadd.f32 %v1142, %v1274
      %v1276 = vpop.f32.mrb[0].mxu0
      %v1277 = vpop.f32.mrb[0].mxu0
      %v1278 = vadd.f32 %v1145, %v1277
      %v1279 = vpop.f32.mrb[0].mxu0
      %1280 = vmatprep.mubr.bf16.mxu0 0
      %1281 = vmatmul.mubr.bf16.gmra.mrb[0].mxu0 %v1200
      %v1282 = vpop.f32.mrb[0].mxu0
      %v1283 = vadd.f32 %v1150, %v1282
      %v1284 = vpop.f32.mrb[0].mxu0
      %v1285 = vpop.f32.mrb[0].mxu0
      %v1286 = vadd.f32 %v1153, %v1285
      %v1287 = vpop.f32.mrb[0].mxu0
      %1288 = vmatprep.mubr.bf16.mxu0 0
      %1289 = vmatmul.mubr.bf16.gmra.mrb[0].mxu0 %v1203
      %v1290 = vpop.f32.mrb[0].mxu0
      %v1291 = vadd.f32 %v1158, %v1290
      %v1292 = vpop.f32.mrb[0].mxu0
      %v1293 = vpop.f32.mrb[0].mxu0
      %v1294 = vadd.f32 %v1161, %v1293
      %v1295 = vpop.f32.mrb[0].mxu0
      %1296 = vmatprep.mubr.bf16.mxu0 0
      %1297 = vmatmul.mubr.bf16.gmra.mrb[0].mxu0 %v1206
      %v1298 = vpop.f32.mrb[0].mxu0
      %v1299 = vadd.f32 %v1166, %v1298
      %v1300 = vpop.f32.mrb[0].mxu0
      %v1301 = vpop.f32.mrb[0].mxu0
      %v1302 = vadd.f32 %v1169, %v1301
      %v1303 = vpop.f32.mrb[0].mxu0
      %1304 = vdwg.mxu0
      %s1305 = scalar_lea.vmem %s3, 32
      %v1306 = vld [vmem:[%s1305] sm:$0xf]
      %v1307 = vld [vmem:[%s1305 + $0x4] sm:$0xf]
      %v1308 = vld [vmem:[%s1305 + $0x8] sm:$0xf]
      %v1309 = vld [vmem:[%s1305 + $0xc] sm:$0xf]
      %v1314 = vunpack.c.l.b16 %v1306
      %v1315 = vunpack.c.l.b16 %v1307
      %v1316 = vunpack.c.l.b16 %v1308
      %v1317 = vunpack.c.l.b16 %v1309
      %v1318 = vpack.c.b16 %v1315, %v1314
      %v1319 = vpack.c.b16 %v1317, %v1316
      %v1323 = vsel %vm334, %v1014, 0
      %v1326 = vsel %vm334, %v1015, 0
      %v1329 = vsel %vm334, %v1016, 0
      %v1332 = vsel %vm334, %v1017, 0
      %v1335 = vsel %vm334, %v1018, 0
      %v1338 = vsel %vm334, %v1019, 0
      %v1341 = vsel %vm334, %v1020, 0
      %v1344 = vsel %vm334, %v1021, 0
      %1346 = vmatprep.subr.bf16.mxu0 0
      %1347 = vmatpush1.bf16.msra.mxu0 %v1318
      %1348 = vmatprep.subr.bf16.mxu0 0
      %1349 = vmatpush1.bf16.msra.mxu0 %v1319
      %1350 = vmatprep.subr.bf16.mxu0 0
      %1351 = vmatpush1.bf16.msra.mxu0 0
      %1352 = vmatprep.subr.bf16.mxu0 0
      %1353 = vmatpush1.bf16.msra.mxu0 0
      %1354 = vmatprep.subr.bf16.mxu0 0
      %1355 = vmatpush1.bf16.msra.mxu0 0
      %1356 = vmatprep.subr.bf16.mxu0 0
      %1357 = vmatpush1.bf16.msra.mxu0 0
      %1358 = vmatprep.subr.bf16.mxu0 0
      %1359 = vmatpush1.bf16.msra.mxu0 0
      %1360 = vmatprep.subr.bf16.mxu0 0
      %1361 = vmatpush1.bf16.msra.mxu0 0
      %1362 = vmatprep.subr.bf16.mxu0 0
      %1363 = vmatpush1.bf16.msra.mxu0 0
      %1364 = vmatprep.subr.bf16.mxu0 0
      %1365 = vmatpush1.bf16.msra.mxu0 0
      %1366 = vmatprep.subr.bf16.mxu0 0
      %1367 = vmatpush1.bf16.msra.mxu0 0
      %1368 = vmatprep.subr.bf16.mxu0 0
      %1369 = vmatpush1.bf16.msra.mxu0 0
      %1370 = vmatprep.subr.bf16.mxu0 0
      %1371 = vmatpush1.bf16.msra.mxu0 0
      %1372 = vmatprep.subr.bf16.mxu0 0
      %1373 = vmatpush1.bf16.msra.mxu0 0
      %1374 = vmatprep.subr.bf16.mxu0 0
      %1375 = vmatpush1.bf16.msra.mxu0 0
      %1376 = vmatprep.subr.bf16.mxu0 0
      %1377 = vmatpush1.bf16.msra.mxu0 0
      %1378 = vmatprep.mubr.bf16.mxu0 0
      %1379 = vmatmul.mubr.bf16.gmra.mrb[0].mxu0 %v1323
      %v1380 = vpop.f32.mrb[0].mxu0
      %v1381 = vadd.f32 0.0, %v1380
      %v1382 = vpop.f32.mrb[0].mxu0
      %v1383 = vpop.f32.mrb[0].mxu0
      %v1384 = vadd.f32 0.0, %v1383
      %v1385 = vpop.f32.mrb[0].mxu0
      %1386 = vmatprep.mubr.bf16.mxu0 0
      %1387 = vmatmul.mubr.bf16.gmra.mrb[0].mxu0 %v1326
      %v1388 = vpop.f32.mrb[0].mxu0
      %v1389 = vadd.f32 0.0, %v1388
      %v1390 = vpop.f32.mrb[0].mxu0
      %v1391 = vpop.f32.mrb[0].mxu0
      %v1392 = vadd.f32 0.0, %v1391
      %v1393 = vpop.f32.mrb[0].mxu0
      %1394 = vmatprep.mubr.bf16.mxu0 0
      %1395 = vmatmul.mubr.bf16.gmra.mrb[0].mxu0 %v1329
      %v1396 = vpop.f32.mrb[0].mxu0
      %v1397 = vadd.f32 0.0, %v1396
      %v1398 = vpop.f32.mrb[0].mxu0
      %v1399 = vpop.f32.mrb[0].mxu0
      %v1400 = vadd.f32 0.0, %v1399
      %v1401 = vpop.f32.mrb[0].mxu0
      %1402 = vmatprep.mubr.bf16.mxu0 0
      %1403 = vmatmul.mubr.bf16.gmra.mrb[0].mxu0 %v1332
      %v1404 = vpop.f32.mrb[0].mxu0
      %v1405 = vadd.f32 0.0, %v1404
      %v1406 = vpop.f32.mrb[0].mxu0
      %v1407 = vpop.f32.mrb[0].mxu0
      %v1408 = vadd.f32 0.0, %v1407
      %v1409 = vpop.f32.mrb[0].mxu0
      %1410 = vmatprep.mubr.bf16.mxu0 0
      %1411 = vmatmul.mubr.bf16.gmra.mrb[0].mxu0 %v1335
      %v1412 = vpop.f32.mrb[0].mxu0
      %v1413 = vadd.f32 0.0, %v1412
      %v1414 = vpop.f32.mrb[0].mxu0
      %v1415 = vpop.f32.mrb[0].mxu0
      %v1416 = vadd.f32 0.0, %v1415
      %v1417 = vpop.f32.mrb[0].mxu0
      %1418 = vmatprep.mubr.bf16.mxu0 0
      %1419 = vmatmul.mubr.bf16.gmra.mrb[0].mxu0 %v1338
      %v1420 = vpop.f32.mrb[0].mxu0
      %v1421 = vadd.f32 0.0, %v1420
      %v1422 = vpop.f32.mrb[0].mxu0
      %v1423 = vpop.f32.mrb[0].mxu0
      %v1424 = vadd.f32 0.0, %v1423
      %v1425 = vpop.f32.mrb[0].mxu0
      %1426 = vmatprep.mubr.bf16.mxu0 0
      %1427 = vmatmul.mubr.bf16.gmra.mrb[0].mxu0 %v1341
      %v1428 = vpop.f32.mrb[0].mxu0
      %v1429 = vadd.f32 0.0, %v1428
      %v1430 = vpop.f32.mrb[0].mxu0
      %v1431 = vpop.f32.mrb[0].mxu0
      %v1432 = vadd.f32 0.0, %v1431
      %v1433 = vpop.f32.mrb[0].mxu0
      %1434 = vmatprep.mubr.bf16.mxu0 0
      %1435 = vmatmul.mubr.bf16.gmra.mrb[0].mxu0 %v1344
      %v1436 = vpop.f32.mrb[0].mxu0
      %v1437 = vadd.f32 0.0, %v1436
      %v1438 = vpop.f32.mrb[0].mxu0
      %v1439 = vpop.f32.mrb[0].mxu0
      %v1440 = vadd.f32 0.0, %v1439
      %v1441 = vpop.f32.mrb[0].mxu0
      %1442 = vdwg.mxu0
      %v1443 = vadd.f32 %v1243, %v1381
      %v1444 = vadd.f32 %v1246, %v1384
      %v1445 = vadd.f32 %v1251, %v1389
      %v1446 = vadd.f32 %v1254, %v1392
      %v1447 = vadd.f32 %v1259, %v1397
      %v1448 = vadd.f32 %v1262, %v1400
      %v1449 = vadd.f32 %v1267, %v1405
      %v1450 = vadd.f32 %v1270, %v1408
      %v1451 = vadd.f32 %v1275, %v1413
      %v1452 = vadd.f32 %v1278, %v1416
      %v1453 = vadd.f32 %v1283, %v1421
      %v1454 = vadd.f32 %v1286, %v1424
      %v1455 = vadd.f32 %v1291, %v1429
      %v1456 = vadd.f32 %v1294, %v1432
      %v1457 = vadd.f32 %v1299, %v1437
      %v1458 = vadd.f32 %v1302, %v1440
      %v1459 = vld [vmem:[%s4] sm:$0x1]
      %v1461 = vlaneseq
      %v1462 = vshrl.u32 %v1461, 7
      %v1463 = vsub.s32 0, %v1462
      %v1464 = vrot.slane %v1459, %v1463
      %v1466 = vadd.f32 %v1443, %v1464
      %v1467 = vadd.f32 %v1444, %v1464
      %v1468 = vadd.f32 %v1445, %v1464
      %v1469 = vadd.f32 %v1446, %v1464
      %v1470 = vadd.f32 %v1447, %v1464
      %v1471 = vadd.f32 %v1448, %v1464
      %v1472 = vadd.f32 %v1449, %v1464
      %v1473 = vadd.f32 %v1450, %v1464
      %v1474 = vadd.f32 %v1451, %v1464
      %v1475 = vadd.f32 %v1452, %v1464
      %v1476 = vadd.f32 %v1453, %v1464
      %v1477 = vadd.f32 %v1454, %v1464
      %v1478 = vadd.f32 %v1455, %v1464
      %v1479 = vadd.f32 %v1456, %v1464
      %v1480 = vadd.f32 %v1457, %v1464
      %v1481 = vadd.f32 %v1458, %v1464
      %v1482 = vmax.f32 %v1466, 0.0
      %v1483 = vmax.f32 %v1467, 0.0
      %v1484 = vmax.f32 %v1468, 0.0
      %v1485 = vmax.f32 %v1469, 0.0
      %v1486 = vmax.f32 %v1470, 0.0
      %v1487 = vmax.f32 %v1471, 0.0
      %v1488 = vmax.f32 %v1472, 0.0
      %v1489 = vmax.f32 %v1473, 0.0
      %v1490 = vmax.f32 %v1474, 0.0
      %v1491 = vmax.f32 %v1475, 0.0
      %v1492 = vmax.f32 %v1476, 0.0
      %v1493 = vmax.f32 %v1477, 0.0
      %v1494 = vmax.f32 %v1478, 0.0
      %v1495 = vmax.f32 %v1479, 0.0
      %v1496 = vmax.f32 %v1480, 0.0
      %v1497 = vmax.f32 %v1481, 0.0
      %1498 = vst.msk [vmem:[#allocation2 + $0x8] sm:$0xff] %vm334, %v1482
      %1499 = vst.msk [vmem:[#allocation2 + $0x10] sm:$0xff] %vm334, %v1483
      %1500 = vst.msk [vmem:[#allocation2 + $0x18] sm:$0xff] %vm334, %v1484
      %1501 = vst.msk [vmem:[#allocation2 + $0x20] sm:$0xff] %vm334, %v1485
      %1502 = vst.msk [vmem:[#allocation2 + $0x28] sm:$0xff] %vm334, %v1486
      %1503 = vst.msk [vmem:[#allocation2 + $0x30] sm:$0xff] %vm334, %v1487
      %1504 = vst.msk [vmem:[#allocation2 + $0x38] sm:$0xff] %vm334, %v1488
      %1505 = vst.msk [vmem:[#allocation2 + $0x40] sm:$0xff] %vm334, %v1489
      %1506 = vst.msk [vmem:[#allocation2 + $0x48] sm:$0xff] %vm334, %v1490
      %1507 = vst.msk [vmem:[#allocation2 + $0x50] sm:$0xff] %vm334, %v1491
      %1508 = vst.msk [vmem:[#allocation2 + $0x58] sm:$0xff] %vm334, %v1492
      %1509 = vst.msk [vmem:[#allocation2 + $0x60] sm:$0xff] %vm334, %v1493
      %1510 = vst.msk [vmem:[#allocation2 + $0x68] sm:$0xff] %vm334, %v1494
      %1511 = vst.msk [vmem:[#allocation2 + $0x70] sm:$0xff] %vm334, %v1495
      %1512 = vst.msk [vmem:[#allocation2 + $0x78] sm:$0xff] %vm334, %v1496
      %1513 = vst.msk [vmem:[#allocation2 + $0x80] sm:$0x7] %vm352, %v1497
      %v1514 = vld [vmem:[#allocation2 + $0x7] sm:$0xff]
      %v1515 = vld [vmem:[#allocation2 + $0xf] sm:$0xff]
      %v1516 = vld [vmem:[#allocation2 + $0x17] sm:$0xff]
      %v1517 = vld [vmem:[#allocation2 + $0x1f] sm:$0xff]
      %v1518 = vld [vmem:[#allocation2 + $0x27] sm:$0xff]
      %v1519 = vld [vmem:[#allocation2 + $0x2f] sm:$0xff]
      %v1520 = vld [vmem:[#allocation2 + $0x37] sm:$0xff]
      %v1521 = vld [vmem:[#allocation2 + $0x3f] sm:$0xff]
      %v1522 = vld [vmem:[#allocation2 + $0x47] sm:$0xff]
      %v1523 = vld [vmem:[#allocation2 + $0x4f] sm:$0xff]
      %v1524 = vld [vmem:[#allocation2 + $0x57] sm:$0xff]
      %v1525 = vld [vmem:[#allocation2 + $0x5f] sm:$0xff]
      %v1526 = vld [vmem:[#allocation2 + $0x67] sm:$0xff]
      %v1527 = vld [vmem:[#allocation2 + $0x6f] sm:$0xff]
      %v1528 = vld [vmem:[#allocation2 + $0x77] sm:$0xff]
      %v1529 = vld [vmem:[#allocation2 + $0x7f] sm:$0x7]
      %v1530 = vpack.c.bf16 %v1515, %v1514
      %v1531 = vpack.c.bf16 %v1517, %v1516
      %v1532 = vpack.c.bf16 %v1519, %v1518
      %v1533 = vpack.c.bf16 %v1521, %v1520
      %v1534 = vpack.c.bf16 %v1523, %v1522
      %v1535 = vpack.c.bf16 %v1525, %v1524
      %v1536 = vpack.c.bf16 %v1527, %v1526
      %v1537 = vpack.c.bf16 %v1529, %v1528
      %v1538 = vld [vmem:[#allocation2 + $0x9] sm:$0xff]
      %v1539 = vld [vmem:[#allocation2 + $0x11] sm:$0xff]
      %v1540 = vld [vmem:[#allocation2 + $0x19] sm:$0xff]
      %v1541 = vld [vmem:[#allocation2 + $0x21] sm:$0xff]
      %v1542 = vld [vmem:[#allocation2 + $0x29] sm:$0xff]
      %v1543 = vld [vmem:[#allocation2 + $0x31] sm:$0xff]
      %v1544 = vld [vmem:[#allocation2 + $0x39] sm:$0xff]
      %v1545 = vld [vmem:[#allocation2 + $0x41] sm:$0xff]
      %v1546 = vld [vmem:[#allocation2 + $0x49] sm:$0xff]
      %v1547 = vld [vmem:[#allocation2 + $0x51] sm:$0xff]
      %v1548 = vld [vmem:[#allocation2 + $0x59] sm:$0xff]
      %v1549 = vld [vmem:[#allocation2 + $0x61] sm:$0xff]
      %v1550 = vld [vmem:[#allocation2 + $0x69] sm:$0xff]
      %v1551 = vld [vmem:[#allocation2 + $0x71] sm:$0xff]
      %v1552 = vld [vmem:[#allocation2 + $0x79] sm:$0xff]
      %v1553 = vld [vmem:[#allocation2 + $0x81] sm:$0x7]
      %v1554 = vpack.c.bf16 %v1539, %v1538
      %v1555 = vpack.c.bf16 %v1541, %v1540
      %v1556 = vpack.c.bf16 %v1543, %v1542
      %v1557 = vpack.c.bf16 %v1545, %v1544
      %v1558 = vpack.c.bf16 %v1547, %v1546
      %v1559 = vpack.c.bf16 %v1549, %v1548
      %v1560 = vpack.c.bf16 %v1551, %v1550
      %v1561 = vpack.c.bf16 %v1553, %v1552
      %v1562 = vpack.c.bf16 %v1483, %v1482
      %v1563 = vpack.c.bf16 %v1485, %v1484
      %v1564 = vpack.c.bf16 %v1487, %v1486
      %v1565 = vpack.c.bf16 %v1489, %v1488
      %v1566 = vpack.c.bf16 %v1491, %v1490
      %v1567 = vpack.c.bf16 %v1493, %v1492
      %v1568 = vpack.c.bf16 %v1495, %v1494
      %v1569 = vpack.c.bf16 %v1497, %v1496
      %v1570 = vld [vmem:[%s5] sm:$0xf]
      %v1571 = vld [vmem:[%s5 + $0x4] sm:$0xf]
      %v1572 = vld [vmem:[%s5 + $0x8] sm:$0xf]
      %v1573 = vld [vmem:[%s5 + $0xc] sm:$0xf]
      %s1574 = scalar_lea.vmem %s5, 16
      %v1575 = vld [vmem:[%s1574] sm:$0xf]
      %v1576 = vld [vmem:[%s1574 + $0x4] sm:$0xf]
      %v1577 = vld [vmem:[%s1574 + $0x8] sm:$0xf]
      %v1578 = vld [vmem:[%s1574 + $0xc] sm:$0xf]
      %v1583 = vunpack.c.l.b16 %v1575
      %v1584 = vunpack.c.l.b16 %v1576
      %v1585 = vunpack.c.l.b16 %v1577
      %v1586 = vunpack.c.l.b16 %v1578
      %v1587 = vpack.c.b16 %v1584, %v1583
      %v1588 = vpack.c.b16 %v1586, %v1585
      %v1592 = vsel %vm334, %v1562, 0
      %v1595 = vsel %vm334, %v1563, 0
      %v1598 = vsel %vm334, %v1564, 0
      %v1601 = vsel %vm334, %v1565, 0
      %v1604 = vsel %vm334, %v1566, 0
      %v1607 = vsel %vm334, %v1567, 0
      %v1610 = vsel %vm334, %v1568, 0
      %v1613 = vsel %vm334, %v1569, 0
      %1615 = vmatprep.subr.bf16.mxu0 0
      %1616 = vmatpush1.bf16.msra.mxu0 %v1587
      %1617 = vmatprep.subr.bf16.mxu0 0
      %1618 = vmatpush1.bf16.msra.mxu0 %v1588
      %1619 = vmatprep.subr.bf16.mxu0 0
      %1620 = vmatpush1.bf16.msra.mxu0 0
      %1621 = vmatprep.subr.bf16.mxu0 0
      %1622 = vmatpush1.bf16.msra.mxu0 0
      %1623 = vmatprep.subr.bf16.mxu0 0
      %1624 = vmatpush1.bf16.msra.mxu0 0
      %1625 = vmatprep.subr.bf16.mxu0 0
      %1626 = vmatpush1.bf16.msra.mxu0 0
      %1627 = vmatprep.subr.bf16.mxu0 0
      %1628 = vmatpush1.bf16.msra.mxu0 0
      %1629 = vmatprep.subr.bf16.mxu0 0
      %1630 = vmatpush1.bf16.msra.mxu0 0
      %1631 = vmatprep.subr.bf16.mxu0 0
      %1632 = vmatpush1.bf16.msra.mxu0 0
      %1633 = vmatprep.subr.bf16.mxu0 0
      %1634 = vmatpush1.bf16.msra.mxu0 0
      %1635 = vmatprep.subr.bf16.mxu0 0
      %1636 = vmatpush1.bf16.msra.mxu0 0
      %1637 = vmatprep.subr.bf16.mxu0 0
      %1638 = vmatpush1.bf16.msra.mxu0 0
      %1639 = vmatprep.subr.bf16.mxu0 0
      %1640 = vmatpush1.bf16.msra.mxu0 0
      %1641 = vmatprep.subr.bf16.mxu0 0
      %1642 = vmatpush1.bf16.msra.mxu0 0
      %1643 = vmatprep.subr.bf16.mxu0 0
      %1644 = vmatpush1.bf16.msra.mxu0 0
      %1645 = vmatprep.subr.bf16.mxu0 0
      %1646 = vmatpush1.bf16.msra.mxu0 0
      %1647 = vmatprep.mubr.bf16.mxu0 0
      %1648 = vmatmul.mubr.bf16.gmra.mrb[0].mxu0 %v1592
      %v1649 = vpop.f32.mrb[0].mxu0
      %v1650 = vadd.f32 0.0, %v1649
      %v1651 = vpop.f32.mrb[0].mxu0
      %v1652 = vpop.f32.mrb[0].mxu0
      %v1653 = vadd.f32 0.0, %v1652
      %v1654 = vpop.f32.mrb[0].mxu0
      %1655 = vmatprep.mubr.bf16.mxu0 0
      %1656 = vmatmul.mubr.bf16.gmra.mrb[0].mxu0 %v1595
      %v1657 = vpop.f32.mrb[0].mxu0
      %v1658 = vadd.f32 0.0, %v1657
      %v1659 = vpop.f32.mrb[0].mxu0
      %v1660 = vpop.f32.mrb[0].mxu0
      %v1661 = vadd.f32 0.0, %v1660
      %v1662 = vpop.f32.mrb[0].mxu0
      %1663 = vmatprep.mubr.bf16.mxu0 0
      %1664 = vmatmul.mubr.bf16.gmra.mrb[0].mxu0 %v1598
      %v1665 = vpop.f32.mrb[0].mxu0
      %v1666 = vadd.f32 0.0, %v1665
      %v1667 = vpop.f32.mrb[0].mxu0
      %v1668 = vpop.f32.mrb[0].mxu0
      %v1669 = vadd.f32 0.0, %v1668
      %v1670 = vpop.f32.mrb[0].mxu0
      %1671 = vmatprep.mubr.bf16.mxu0 0
      %1672 = vmatmul.mubr.bf16.gmra.mrb[0].mxu0 %v1601
      %v1673 = vpop.f32.mrb[0].mxu0
      %v1674 = vadd.f32 0.0, %v1673
      %v1675 = vpop.f32.mrb[0].mxu0
      %v1676 = vpop.f32.mrb[0].mxu0
      %v1677 = vadd.f32 0.0, %v1676
      %v1678 = vpop.f32.mrb[0].mxu0
      %1679 = vmatprep.mubr.bf16.mxu0 0
      %1680 = vmatmul.mubr.bf16.gmra.mrb[0].mxu0 %v1604
      %v1681 = vpop.f32.mrb[0].mxu0
      %v1682 = vadd.f32 0.0, %v1681
      %v1683 = vpop.f32.mrb[0].mxu0
      %v1684 = vpop.f32.mrb[0].mxu0
      %v1685 = vadd.f32 0.0, %v1684
      %v1686 = vpop.f32.mrb[0].mxu0
      %1687 = vmatprep.mubr.bf16.mxu0 0
      %1688 = vmatmul.mubr.bf16.gmra.mrb[0].mxu0 %v1607
      %v1689 = vpop.f32.mrb[0].mxu0
      %v1690 = vadd.f32 0.0, %v1689
      %v1691 = vpop.f32.mrb[0].mxu0
      %v1692 = vpop.f32.mrb[0].mxu0
      %v1693 = vadd.f32 0.0, %v1692
      %v1694 = vpop.f32.mrb[0].mxu0
      %1695 = vmatprep.mubr.bf16.mxu0 0
      %1696 = vmatmul.mubr.bf16.gmra.mrb[0].mxu0 %v1610
      %v1697 = vpop.f32.mrb[0].mxu0
      %v1698 = vadd.f32 0.0, %v1697
      %v1699 = vpop.f32.mrb[0].mxu0
      %v1700 = vpop.f32.mrb[0].mxu0
      %v1701 = vadd.f32 0.0, %v1700
      %v1702 = vpop.f32.mrb[0].mxu0
      %1703 = vmatprep.mubr.bf16.mxu0 0
      %1704 = vmatmul.mubr.bf16.gmra.mrb[0].mxu0 %v1613
      %v1705 = vpop.f32.mrb[0].mxu0
      %v1706 = vadd.f32 0.0, %v1705
      %v1707 = vpop.f32.mrb[0].mxu0
      %v1708 = vpop.f32.mrb[0].mxu0
      %v1709 = vadd.f32 0.0, %v1708
      %v1710 = vpop.f32.mrb[0].mxu0
      %1711 = vdwg.mxu0
      %v1716 = vunpack.c.l.b16 %v1570
      %v1717 = vunpack.c.l.b16 %v1571
      %v1718 = vunpack.c.l.b16 %v1572
      %v1719 = vunpack.c.l.b16 %v1573
      %v1720 = vpack.c.b16 %v1717, %v1716
      %v1721 = vpack.c.b16 %v1719, %v1718
      %v1725 = vsel %vm334, %v1530, 0
      %v1728 = vsel %vm334, %v1531, 0
      %v1731 = vsel %vm334, %v1532, 0
      %v1734 = vsel %vm334, %v1533, 0
      %v1737 = vsel %vm334, %v1534, 0
      %v1740 = vsel %vm334, %v1535, 0
      %v1743 = vsel %vm334, %v1536, 0
      %v1746 = vsel %vm334, %v1537, 0
      %1748 = vmatprep.subr.bf16.mxu0 0
      %1749 = vmatpush1.bf16.msra.mxu0 %v1720
      %1750 = vmatprep.subr.bf16.mxu0 0
      %1751 = vmatpush1.bf16.msra.mxu0 %v1721
      %1752 = vmatprep.subr.bf16.mxu0 0
      %1753 = vmatpush1.bf16.msra.mxu0 0
      %1754 = vmatprep.subr.bf16.mxu0 0
      %1755 = vmatpush1.bf16.msra.mxu0 0
      %1756 = vmatprep.subr.bf16.mxu0 0
      %1757 = vmatpush1.bf16.msra.mxu0 0
      %1758 = vmatprep.subr.bf16.mxu0 0
      %1759 = vmatpush1.bf16.msra.mxu0 0
      %1760 = vmatprep.subr.bf16.mxu0 0
      %1761 = vmatpush1.bf16.msra.mxu0 0
      %1762 = vmatprep.subr.bf16.mxu0 0
      %1763 = vmatpush1.bf16.msra.mxu0 0
      %1764 = vmatprep.subr.bf16.mxu0 0
      %1765 = vmatpush1.bf16.msra.mxu0 0
      %1766 = vmatprep.subr.bf16.mxu0 0
      %1767 = vmatpush1.bf16.msra.mxu0 0
      %1768 = vmatprep.subr.bf16.mxu0 0
      %1769 = vmatpush1.bf16.msra.mxu0 0
      %1770 = vmatprep.subr.bf16.mxu0 0
      %1771 = vmatpush1.bf16.msra.mxu0 0
      %1772 = vmatprep.subr.bf16.mxu0 0
      %1773 = vmatpush1.bf16.msra.mxu0 0
      %1774 = vmatprep.subr.bf16.mxu0 0
      %1775 = vmatpush1.bf16.msra.mxu0 0
      %1776 = vmatprep.subr.bf16.mxu0 0
      %1777 = vmatpush1.bf16.msra.mxu0 0
      %1778 = vmatprep.subr.bf16.mxu0 0
      %1779 = vmatpush1.bf16.msra.mxu0 0
      %1780 = vmatprep.mubr.bf16.mxu0 0
      %1781 = vmatmul.mubr.bf16.gmra.mrb[0].mxu0 %v1725
      %v1782 = vpop.f32.mrb[0].mxu0
      %v1783 = vadd.f32 %v1650, %v1782
      %v1784 = vpop.f32.mrb[0].mxu0
      %v1785 = vpop.f32.mrb[0].mxu0
      %v1786 = vadd.f32 %v1653, %v1785
      %v1787 = vpop.f32.mrb[0].mxu0
      %1788 = vmatprep.mubr.bf16.mxu0 0
      %1789 = vmatmul.mubr.bf16.gmra.mrb[0].mxu0 %v1728
      %v1790 = vpop.f32.mrb[0].mxu0
      %v1791 = vadd.f32 %v1658, %v1790
      %v1792 = vpop.f32.mrb[0].mxu0
      %v1793 = vpop.f32.mrb[0].mxu0
      %v1794 = vadd.f32 %v1661, %v1793
      %v1795 = vpop.f32.mrb[0].mxu0
      %1796 = vmatprep.mubr.bf16.mxu0 0
      %1797 = vmatmul.mubr.bf16.gmra.mrb[0].mxu0 %v1731
      %v1798 = vpop.f32.mrb[0].mxu0
      %v1799 = vadd.f32 %v1666, %v1798
      %v1800 = vpop.f32.mrb[0].mxu0
      %v1801 = vpop.f32.mrb[0].mxu0
      %v1802 = vadd.f32 %v1669, %v1801
      %v1803 = vpop.f32.mrb[0].mxu0
      %1804 = vmatprep.mubr.bf16.mxu0 0
      %1805 = vmatmul.mubr.bf16.gmra.mrb[0].mxu0 %v1734
      %v1806 = vpop.f32.mrb[0].mxu0
      %v1807 = vadd.f32 %v1674, %v1806
      %v1808 = vpop.f32.mrb[0].mxu0
      %v1809 = vpop.f32.mrb[0].mxu0
      %v1810 = vadd.f32 %v1677, %v1809
      %v1811 = vpop.f32.mrb[0].mxu0
      %1812 = vmatprep.mubr.bf16.mxu0 0
      %1813 = vmatmul.mubr.bf16.gmra.mrb[0].mxu0 %v1737
      %v1814 = vpop.f32.mrb[0].mxu0
      %v1815 = vadd.f32 %v1682, %v1814
      %v1816 = vpop.f32.mrb[0].mxu0
      %v1817 = vpop.f32.mrb[0].mxu0
      %v1818 = vadd.f32 %v1685, %v1817
      %v1819 = vpop.f32.mrb[0].mxu0
      %1820 = vmatprep.mubr.bf16.mxu0 0
      %1821 = vmatmul.mubr.bf16.gmra.mrb[0].mxu0 %v1740
      %v1822 = vpop.f32.mrb[0].mxu0
      %v1823 = vadd.f32 %v1690, %v1822
      %v1824 = vpop.f32.mrb[0].mxu0
      %v1825 = vpop.f32.mrb[0].mxu0
      %v1826 = vadd.f32 %v1693, %v1825
      %v1827 = vpop.f32.mrb[0].mxu0
      %1828 = vmatprep.mubr.bf16.mxu0 0
      %1829 = vmatmul.mubr.bf16.gmra.mrb[0].mxu0 %v1743
      %v1830 = vpop.f32.mrb[0].mxu0
      %v1831 = vadd.f32 %v1698, %v1830
      %v1832 = vpop.f32.mrb[0].mxu0
      %v1833 = vpop.f32.mrb[0].mxu0
      %v1834 = vadd.f32 %v1701, %v1833
      %v1835 = vpop.f32.mrb[0].mxu0
      %1836 = vmatprep.mubr.bf16.mxu0 0
      %1837 = vmatmul.mubr.bf16.gmra.mrb[0].mxu0 %v1746
      %v1838 = vpop.f32.mrb[0].mxu0
      %v1839 = vadd.f32 %v1706, %v1838
      %v1840 = vpop.f32.mrb[0].mxu0
      %v1841 = vpop.f32.mrb[0].mxu0
      %v1842 = vadd.f32 %v1709, %v1841
      %v1843 = vpop.f32.mrb[0].mxu0
      %1844 = vdwg.mxu0
      %s1845 = scalar_lea.vmem %s5, 32
      %v1846 = vld [vmem:[%s1845] sm:$0xf]
      %v1847 = vld [vmem:[%s1845 + $0x4] sm:$0xf]
      %v1848 = vld [vmem:[%s1845 + $0x8] sm:$0xf]
      %v1849 = vld [vmem:[%s1845 + $0xc] sm:$0xf]
      %v1854 = vunpack.c.l.b16 %v1846
      %v1855 = vunpack.c.l.b16 %v1847
      %v1856 = vunpack.c.l.b16 %v1848
      %v1857 = vunpack.c.l.b16 %v1849
      %v1858 = vpack.c.b16 %v1855, %v1854
      %v1859 = vpack.c.b16 %v1857, %v1856
      %v1863 = vsel %vm334, %v1554, 0
      %v1866 = vsel %vm334, %v1555, 0
      %v1869 = vsel %vm334, %v1556, 0
      %v1872 = vsel %vm334, %v1557, 0
      %v1875 = vsel %vm334, %v1558, 0
      %v1878 = vsel %vm334, %v1559, 0
      %v1881 = vsel %vm334, %v1560, 0
      %v1884 = vsel %vm334, %v1561, 0
      %1886 = vmatprep.subr.bf16.mxu0 0
      %1887 = vmatpush1.bf16.msra.mxu0 %v1858
      %1888 = vmatprep.subr.bf16.mxu0 0
      %1889 = vmatpush1.bf16.msra.mxu0 %v1859
      %1890 = vmatprep.subr.bf16.mxu0 0
      %1891 = vmatpush1.bf16.msra.mxu0 0
      %1892 = vmatprep.subr.bf16.mxu0 0
      %1893 = vmatpush1.bf16.msra.mxu0 0
      %1894 = vmatprep.subr.bf16.mxu0 0
      %1895 = vmatpush1.bf16.msra.mxu0 0
      %1896 = vmatprep.subr.bf16.mxu0 0
      %1897 = vmatpush1.bf16.msra.mxu0 0
      %1898 = vmatprep.subr.bf16.mxu0 0
      %1899 = vmatpush1.bf16.msra.mxu0 0
      %1900 = vmatprep.subr.bf16.mxu0 0
      %1901 = vmatpush1.bf16.msra.mxu0 0
      %1902 = vmatprep.subr.bf16.mxu0 0
      %1903 = vmatpush1.bf16.msra.mxu0 0
      %1904 = vmatprep.subr.bf16.mxu0 0
      %1905 = vmatpush1.bf16.msra.mxu0 0
      %1906 = vmatprep.subr.bf16.mxu0 0
      %1907 = vmatpush1.bf16.msra.mxu0 0
      %1908 = vmatprep.subr.bf16.mxu0 0
      %1909 = vmatpush1.bf16.msra.mxu0 0
      %1910 = vmatprep.subr.bf16.mxu0 0
      %1911 = vmatpush1.bf16.msra.mxu0 0
      %1912 = vmatprep.subr.bf16.mxu0 0
      %1913 = vmatpush1.bf16.msra.mxu0 0
      %1914 = vmatprep.subr.bf16.mxu0 0
      %1915 = vmatpush1.bf16.msra.mxu0 0
      %1916 = vmatprep.subr.bf16.mxu0 0
      %1917 = vmatpush1.bf16.msra.mxu0 0
      %1918 = vmatprep.mubr.bf16.mxu0 0
      %1919 = vmatmul.mubr.bf16.gmra.mrb[0].mxu0 %v1863
      %v1920 = vpop.f32.mrb[0].mxu0
      %v1921 = vadd.f32 0.0, %v1920
      %v1922 = vpop.f32.mrb[0].mxu0
      %v1923 = vpop.f32.mrb[0].mxu0
      %v1924 = vadd.f32 0.0, %v1923
      %v1925 = vpop.f32.mrb[0].mxu0
      %1926 = vmatprep.mubr.bf16.mxu0 0
      %1927 = vmatmul.mubr.bf16.gmra.mrb[0].mxu0 %v1866
      %v1928 = vpop.f32.mrb[0].mxu0
      %v1929 = vadd.f32 0.0, %v1928
      %v1930 = vpop.f32.mrb[0].mxu0
      %v1931 = vpop.f32.mrb[0].mxu0
      %v1932 = vadd.f32 0.0, %v1931
      %v1933 = vpop.f32.mrb[0].mxu0
      %1934 = vmatprep.mubr.bf16.mxu0 0
      %1935 = vmatmul.mubr.bf16.gmra.mrb[0].mxu0 %v1869
      %v1936 = vpop.f32.mrb[0].mxu0
      %v1937 = vadd.f32 0.0, %v1936
      %v1938 = vpop.f32.mrb[0].mxu0
      %v1939 = vpop.f32.mrb[0].mxu0
      %v1940 = vadd.f32 0.0, %v1939
      %v1941 = vpop.f32.mrb[0].mxu0
      %1942 = vmatprep.mubr.bf16.mxu0 0
      %1943 = vmatmul.mubr.bf16.gmra.mrb[0].mxu0 %v1872
      %v1944 = vpop.f32.mrb[0].mxu0
      %v1945 = vadd.f32 0.0, %v1944
      %v1946 = vpop.f32.mrb[0].mxu0
      %v1947 = vpop.f32.mrb[0].mxu0
      %v1948 = vadd.f32 0.0, %v1947
      %v1949 = vpop.f32.mrb[0].mxu0
      %1950 = vmatprep.mubr.bf16.mxu0 0
      %1951 = vmatmul.mubr.bf16.gmra.mrb[0].mxu0 %v1875
      %v1952 = vpop.f32.mrb[0].mxu0
      %v1953 = vadd.f32 0.0, %v1952
      %v1954 = vpop.f32.mrb[0].mxu0
      %v1955 = vpop.f32.mrb[0].mxu0
      %v1956 = vadd.f32 0.0, %v1955
      %v1957 = vpop.f32.mrb[0].mxu0
      %1958 = vmatprep.mubr.bf16.mxu0 0
      %1959 = vmatmul.mubr.bf16.gmra.mrb[0].mxu0 %v1878
      %v1960 = vpop.f32.mrb[0].mxu0
      %v1961 = vadd.f32 0.0, %v1960
      %v1962 = vpop.f32.mrb[0].mxu0
      %v1963 = vpop.f32.mrb[0].mxu0
      %v1964 = vadd.f32 0.0, %v1963
      %v1965 = vpop.f32.mrb[0].mxu0
      %1966 = vmatprep.mubr.bf16.mxu0 0
      %1967 = vmatmul.mubr.bf16.gmra.mrb[0].mxu0 %v1881
      %v1968 = vpop.f32.mrb[0].mxu0
      %v1969 = vadd.f32 0.0, %v1968
      %v1970 = vpop.f32.mrb[0].mxu0
      %v1971 = vpop.f32.mrb[0].mxu0
      %v1972 = vadd.f32 0.0, %v1971
      %v1973 = vpop.f32.mrb[0].mxu0
      %1974 = vmatprep.mubr.bf16.mxu0 0
      %1975 = vmatmul.mubr.bf16.gmra.mrb[0].mxu0 %v1884
      %v1976 = vpop.f32.mrb[0].mxu0
      %v1977 = vadd.f32 0.0, %v1976
      %v1978 = vpop.f32.mrb[0].mxu0
      %v1979 = vpop.f32.mrb[0].mxu0
      %v1980 = vadd.f32 0.0, %v1979
      %v1981 = vpop.f32.mrb[0].mxu0
      %1982 = vdwg.mxu0
      %v1983 = vadd.f32 %v1783, %v1921
      %v1984 = vadd.f32 %v1786, %v1924
      %v1985 = vadd.f32 %v1791, %v1929
      %v1986 = vadd.f32 %v1794, %v1932
      %v1987 = vadd.f32 %v1799, %v1937
      %v1988 = vadd.f32 %v1802, %v1940
      %v1989 = vadd.f32 %v1807, %v1945
      %v1990 = vadd.f32 %v1810, %v1948
      %v1991 = vadd.f32 %v1815, %v1953
      %v1992 = vadd.f32 %v1818, %v1956
      %v1993 = vadd.f32 %v1823, %v1961
      %v1994 = vadd.f32 %v1826, %v1964
      %v1995 = vadd.f32 %v1831, %v1969
      %v1996 = vadd.f32 %v1834, %v1972
      %v1997 = vadd.f32 %v1839, %v1977
      %v1998 = vadd.f32 %v1842, %v1980
      %v1999 = vld [vmem:[%s6] sm:$0x1]
      %v2001 = vlaneseq
      %v2002 = vshrl.u32 %v2001, 7
      %v2003 = vsub.s32 0, %v2002
      %v2004 = vrot.slane %v1999, %v2003
      %v2006 = vadd.f32 %v1983, %v2004
      %v2007 = vadd.f32 %v1984, %v2004
      %v2008 = vadd.f32 %v1985, %v2004
      %v2009 = vadd.f32 %v1986, %v2004
      %v2010 = vadd.f32 %v1987, %v2004
      %v2011 = vadd.f32 %v1988, %v2004
      %v2012 = vadd.f32 %v1989, %v2004
      %v2013 = vadd.f32 %v1990, %v2004
      %v2014 = vadd.f32 %v1991, %v2004
      %v2015 = vadd.f32 %v1992, %v2004
      %v2016 = vadd.f32 %v1993, %v2004
      %v2017 = vadd.f32 %v1994, %v2004
      %v2018 = vadd.f32 %v1995, %v2004
      %v2019 = vadd.f32 %v1996, %v2004
      %v2020 = vadd.f32 %v1997, %v2004
      %v2021 = vadd.f32 %v1998, %v2004
      %v2022 = vmax.f32 %v2006, 0.0
      %v2023 = vmax.f32 %v2007, 0.0
      %v2024 = vmax.f32 %v2008, 0.0
      %v2025 = vmax.f32 %v2009, 0.0
      %v2026 = vmax.f32 %v2010, 0.0
      %v2027 = vmax.f32 %v2011, 0.0
      %v2028 = vmax.f32 %v2012, 0.0
      %v2029 = vmax.f32 %v2013, 0.0
      %v2030 = vmax.f32 %v2014, 0.0
      %v2031 = vmax.f32 %v2015, 0.0
      %v2032 = vmax.f32 %v2016, 0.0
      %v2033 = vmax.f32 %v2017, 0.0
      %v2034 = vmax.f32 %v2018, 0.0
      %v2035 = vmax.f32 %v2019, 0.0
      %v2036 = vmax.f32 %v2020, 0.0
      %v2037 = vmax.f32 %v2021, 0.0
      %2038 = vst.msk [vmem:[#allocation2 + $0x8] sm:$0xff] %vm334, %v2022
      %2039 = vst.msk [vmem:[#allocation2 + $0x10] sm:$0xff] %vm334, %v2023
      %2040 = vst.msk [vmem:[#allocation2 + $0x18] sm:$0xff] %vm334, %v2024
      %2041 = vst.msk [vmem:[#allocation2 + $0x20] sm:$0xff] %vm334, %v2025
      %2042 = vst.msk [vmem:[#allocation2 + $0x28] sm:$0xff] %vm334, %v2026
      %2043 = vst.msk [vmem:[#allocation2 + $0x30] sm:$0xff] %vm334, %v2027
      %2044 = vst.msk [vmem:[#allocation2 + $0x38] sm:$0xff] %vm334, %v2028
      %2045 = vst.msk [vmem:[#allocation2 + $0x40] sm:$0xff] %vm334, %v2029
      %2046 = vst.msk [vmem:[#allocation2 + $0x48] sm:$0xff] %vm334, %v2030
      %2047 = vst.msk [vmem:[#allocation2 + $0x50] sm:$0xff] %vm334, %v2031
      %2048 = vst.msk [vmem:[#allocation2 + $0x58] sm:$0xff] %vm334, %v2032
      %2049 = vst.msk [vmem:[#allocation2 + $0x60] sm:$0xff] %vm334, %v2033
      %2050 = vst.msk [vmem:[#allocation2 + $0x68] sm:$0xff] %vm334, %v2034
      %2051 = vst.msk [vmem:[#allocation2 + $0x70] sm:$0xff] %vm334, %v2035
      %2052 = vst.msk [vmem:[#allocation2 + $0x78] sm:$0xff] %vm334, %v2036
      %2053 = vst.msk [vmem:[#allocation2 + $0x80] sm:$0x7] %vm352, %v2037
      %v2054 = vld [vmem:[#allocation2 + $0x7] sm:$0xff]
      %v2055 = vld [vmem:[#allocation2 + $0xf] sm:$0xff]
      %v2056 = vld [vmem:[#allocation2 + $0x17] sm:$0xff]
      %v2057 = vld [vmem:[#allocation2 + $0x1f] sm:$0xff]
      %v2058 = vld [vmem:[#allocation2 + $0x27] sm:$0xff]
      %v2059 = vld [vmem:[#allocation2 + $0x2f] sm:$0xff]
      %v2060 = vld [vmem:[#allocation2 + $0x37] sm:$0xff]
      %v2061 = vld [vmem:[#allocation2 + $0x3f] sm:$0xff]
      %v2062 = vld [vmem:[#allocation2 + $0x47] sm:$0xff]
      %v2063 = vld [vmem:[#allocation2 + $0x4f] sm:$0xff]
      %v2064 = vld [vmem:[#allocation2 + $0x57] sm:$0xff]
      %v2065 = vld [vmem:[#allocation2 + $0x5f] sm:$0xff]
      %v2066 = vld [vmem:[#allocation2 + $0x67] sm:$0xff]
      %v2067 = vld [vmem:[#allocation2 + $0x6f] sm:$0xff]
      %v2068 = vld [vmem:[#allocation2 + $0x77] sm:$0xff]
      %v2069 = vld [vmem:[#allocation2 + $0x7f] sm:$0x7]
      %v2070 = vpack.c.bf16 %v2055, %v2054
      %v2071 = vpack.c.bf16 %v2057, %v2056
      %v2072 = vpack.c.bf16 %v2059, %v2058
      %v2073 = vpack.c.bf16 %v2061, %v2060
      %v2074 = vpack.c.bf16 %v2063, %v2062
      %v2075 = vpack.c.bf16 %v2065, %v2064
      %v2076 = vpack.c.bf16 %v2067, %v2066
      %v2077 = vpack.c.bf16 %v2069, %v2068
      %v2078 = vld [vmem:[#allocation2 + $0x9] sm:$0xff]
      %v2079 = vld [vmem:[#allocation2 + $0x11] sm:$0xff]
      %v2080 = vld [vmem:[#allocation2 + $0x19] sm:$0xff]
      %v2081 = vld [vmem:[#allocation2 + $0x21] sm:$0xff]
      %v2082 = vld [vmem:[#allocation2 + $0x29] sm:$0xff]
      %v2083 = vld [vmem:[#allocation2 + $0x31] sm:$0xff]
      %v2084 = vld [vmem:[#allocation2 + $0x39] sm:$0xff]
      %v2085 = vld [vmem:[#allocation2 + $0x41] sm:$0xff]
      %v2086 = vld [vmem:[#allocation2 + $0x49] sm:$0xff]
      %v2087 = vld [vmem:[#allocation2 + $0x51] sm:$0xff]
      %v2088 = vld [vmem:[#allocation2 + $0x59] sm:$0xff]
      %v2089 = vld [vmem:[#allocation2 + $0x61] sm:$0xff]
      %v2090 = vld [vmem:[#allocation2 + $0x69] sm:$0xff]
      %v2091 = vld [vmem:[#allocation2 + $0x71] sm:$0xff]
      %v2092 = vld [vmem:[#allocation2 + $0x79] sm:$0xff]
      %v2093 = vld [vmem:[#allocation2 + $0x81] sm:$0x7]
      %v2094 = vpack.c.bf16 %v2079, %v2078
      %v2095 = vpack.c.bf16 %v2081, %v2080
      %v2096 = vpack.c.bf16 %v2083, %v2082
      %v2097 = vpack.c.bf16 %v2085, %v2084
      %v2098 = vpack.c.bf16 %v2087, %v2086
      %v2099 = vpack.c.bf16 %v2089, %v2088
      %v2100 = vpack.c.bf16 %v2091, %v2090
      %v2101 = vpack.c.bf16 %v2093, %v2092
      %v2102 = vpack.c.bf16 %v2023, %v2022
      %v2103 = vpack.c.bf16 %v2025, %v2024
      %v2104 = vpack.c.bf16 %v2027, %v2026
      %v2105 = vpack.c.bf16 %v2029, %v2028
      %v2106 = vpack.c.bf16 %v2031, %v2030
      %v2107 = vpack.c.bf16 %v2033, %v2032
      %v2108 = vpack.c.bf16 %v2035, %v2034
      %v2109 = vpack.c.bf16 %v2037, %v2036
      %v2110 = vld [vmem:[%s7] sm:$0xf]
      %v2111 = vld [vmem:[%s7 + $0x4] sm:$0xf]
      %v2112 = vld [vmem:[%s7 + $0x8] sm:$0xf]
      %v2113 = vld [vmem:[%s7 + $0xc] sm:$0xf]
      %s2114 = scalar_lea.vmem %s7, 16
      %v2115 = vld [vmem:[%s2114] sm:$0xf]
      %v2116 = vld [vmem:[%s2114 + $0x4] sm:$0xf]
      %v2117 = vld [vmem:[%s2114 + $0x8] sm:$0xf]
      %v2118 = vld [vmem:[%s2114 + $0xc] sm:$0xf]
      %v2123 = vunpack.c.l.b16 %v2115
      %v2124 = vunpack.c.l.b16 %v2116
      %v2125 = vunpack.c.l.b16 %v2117
      %v2126 = vunpack.c.l.b16 %v2118
      %v2127 = vpack.c.b16 %v2124, %v2123
      %v2128 = vpack.c.b16 %v2126, %v2125
      %v2132 = vsel %vm334, %v2102, 0
      %v2135 = vsel %vm334, %v2103, 0
      %v2138 = vsel %vm334, %v2104, 0
      %v2141 = vsel %vm334, %v2105, 0
      %v2144 = vsel %vm334, %v2106, 0
      %v2147 = vsel %vm334, %v2107, 0
      %v2150 = vsel %vm334, %v2108, 0
      %v2153 = vsel %vm334, %v2109, 0
      %2155 = vmatprep.subr.bf16.mxu0 0
      %2156 = vmatpush1.bf16.msra.mxu0 %v2127
      %2157 = vmatprep.subr.bf16.mxu0 0
      %2158 = vmatpush1.bf16.msra.mxu0 %v2128
      %2159 = vmatprep.subr.bf16.mxu0 0
      %2160 = vmatpush1.bf16.msra.mxu0 0
      %2161 = vmatprep.subr.bf16.mxu0 0
      %2162 = vmatpush1.bf16.msra.mxu0 0
      %2163 = vmatprep.subr.bf16.mxu0 0
      %2164 = vmatpush1.bf16.msra.mxu0 0
      %2165 = vmatprep.subr.bf16.mxu0 0
      %2166 = vmatpush1.bf16.msra.mxu0 0
      %2167 = vmatprep.subr.bf16.mxu0 0
      %2168 = vmatpush1.bf16.msra.mxu0 0
      %2169 = vmatprep.subr.bf16.mxu0 0
      %2170 = vmatpush1.bf16.msra.mxu0 0
      %2171 = vmatprep.subr.bf16.mxu0 0
      %2172 = vmatpush1.bf16.msra.mxu0 0
      %2173 = vmatprep.subr.bf16.mxu0 0
      %2174 = vmatpush1.bf16.msra.mxu0 0
      %2175 = vmatprep.subr.bf16.mxu0 0
      %2176 = vmatpush1.bf16.msra.mxu0 0
      %2177 = vmatprep.subr.bf16.mxu0 0
      %2178 = vmatpush1.bf16.msra.mxu0 0
      %2179 = vmatprep.subr.bf16.mxu0 0
      %2180 = vmatpush1.bf16.msra.mxu0 0
      %2181 = vmatprep.subr.bf16.mxu0 0
      %2182 = vmatpush1.bf16.msra.mxu0 0
      %2183 = vmatprep.subr.bf16.mxu0 0
      %2184 = vmatpush1.bf16.msra.mxu0 0
      %2185 = vmatprep.subr.bf16.mxu0 0
      %2186 = vmatpush1.bf16.msra.mxu0 0
      %2187 = vmatprep.mubr.bf16.mxu0 0
      %2188 = vmatmul.mubr.bf16.gmra.mrb[0].mxu0 %v2132
      %v2189 = vpop.f32.mrb[0].mxu0
      %v2190 = vadd.f32 0.0, %v2189
      %v2191 = vpop.f32.mrb[0].mxu0
      %v2192 = vpop.f32.mrb[0].mxu0
      %v2193 = vadd.f32 0.0, %v2192
      %v2194 = vpop.f32.mrb[0].mxu0
      %2195 = vmatprep.mubr.bf16.mxu0 0
      %2196 = vmatmul.mubr.bf16.gmra.mrb[0].mxu0 %v2135
      %v2197 = vpop.f32.mrb[0].mxu0
      %v2198 = vadd.f32 0.0, %v2197
      %v2199 = vpop.f32.mrb[0].mxu0
      %v2200 = vpop.f32.mrb[0].mxu0
      %v2201 = vadd.f32 0.0, %v2200
      %v2202 = vpop.f32.mrb[0].mxu0
      %2203 = vmatprep.mubr.bf16.mxu0 0
      %2204 = vmatmul.mubr.bf16.gmra.mrb[0].mxu0 %v2138
      %v2205 = vpop.f32.mrb[0].mxu0
      %v2206 = vadd.f32 0.0, %v2205
      %v2207 = vpop.f32.mrb[0].mxu0
      %v2208 = vpop.f32.mrb[0].mxu0
      %v2209 = vadd.f32 0.0, %v2208
      %v2210 = vpop.f32.mrb[0].mxu0
      %2211 = vmatprep.mubr.bf16.mxu0 0
      %2212 = vmatmul.mubr.bf16.gmra.mrb[0].mxu0 %v2141
      %v2213 = vpop.f32.mrb[0].mxu0
      %v2214 = vadd.f32 0.0, %v2213
      %v2215 = vpop.f32.mrb[0].mxu0
      %v2216 = vpop.f32.mrb[0].mxu0
      %v2217 = vadd.f32 0.0, %v2216
      %v2218 = vpop.f32.mrb[0].mxu0
      %2219 = vmatprep.mubr.bf16.mxu0 0
      %2220 = vmatmul.mubr.bf16.gmra.mrb[0].mxu0 %v2144
      %v2221 = vpop.f32.mrb[0].mxu0
      %v2222 = vadd.f32 0.0, %v2221
      %v2223 = vpop.f32.mrb[0].mxu0
      %v2224 = vpop.f32.mrb[0].mxu0
      %v2225 = vadd.f32 0.0, %v2224
      %v2226 = vpop.f32.mrb[0].mxu0
      %2227 = vmatprep.mubr.bf16.mxu0 0
      %2228 = vmatmul.mubr.bf16.gmra.mrb[0].mxu0 %v2147
      %v2229 = vpop.f32.mrb[0].mxu0
      %v2230 = vadd.f32 0.0, %v2229
      %v2231 = vpop.f32.mrb[0].mxu0
      %v2232 = vpop.f32.mrb[0].mxu0
      %v2233 = vadd.f32 0.0, %v2232
      %v2234 = vpop.f32.mrb[0].mxu0
      %2235 = vmatprep.mubr.bf16.mxu0 0
      %2236 = vmatmul.mubr.bf16.gmra.mrb[0].mxu0 %v2150
      %v2237 = vpop.f32.mrb[0].mxu0
      %v2238 = vadd.f32 0.0, %v2237
      %v2239 = vpop.f32.mrb[0].mxu0
      %v2240 = vpop.f32.mrb[0].mxu0
      %v2241 = vadd.f32 0.0, %v2240
      %v2242 = vpop.f32.mrb[0].mxu0
      %2243 = vmatprep.mubr.bf16.mxu0 0
      %2244 = vmatmul.mubr.bf16.gmra.mrb[0].mxu0 %v2153
      %v2245 = vpop.f32.mrb[0].mxu0
      %v2246 = vadd.f32 0.0, %v2245
      %v2247 = vpop.f32.mrb[0].mxu0
      %v2248 = vpop.f32.mrb[0].mxu0
      %v2249 = vadd.f32 0.0, %v2248
      %v2250 = vpop.f32.mrb[0].mxu0
      %2251 = vdwg.mxu0
      %v2256 = vunpack.c.l.b16 %v2110
      %v2257 = vunpack.c.l.b16 %v2111
      %v2258 = vunpack.c.l.b16 %v2112
      %v2259 = vunpack.c.l.b16 %v2113
      %v2260 = vpack.c.b16 %v2257, %v2256
      %v2261 = vpack.c.b16 %v2259, %v2258
      %v2265 = vsel %vm334, %v2070, 0
      %v2268 = vsel %vm334, %v2071, 0
      %v2271 = vsel %vm334, %v2072, 0
      %v2274 = vsel %vm334, %v2073, 0
      %v2277 = vsel %vm334, %v2074, 0
      %v2280 = vsel %vm334, %v2075, 0
      %v2283 = vsel %vm334, %v2076, 0
      %v2286 = vsel %vm334, %v2077, 0
      %2288 = vmatprep.subr.bf16.mxu0 0
      %2289 = vmatpush1.bf16.msra.mxu0 %v2260
      %2290 = vmatprep.subr.bf16.mxu0 0
      %2291 = vmatpush1.bf16.msra.mxu0 %v2261
      %2292 = vmatprep.subr.bf16.mxu0 0
      %2293 = vmatpush1.bf16.msra.mxu0 0
      %2294 = vmatprep.subr.bf16.mxu0 0
      %2295 = vmatpush1.bf16.msra.mxu0 0
      %2296 = vmatprep.subr.bf16.mxu0 0
      %2297 = vmatpush1.bf16.msra.mxu0 0
      %2298 = vmatprep.subr.bf16.mxu0 0
      %2299 = vmatpush1.bf16.msra.mxu0 0
      %2300 = vmatprep.subr.bf16.mxu0 0
      %2301 = vmatpush1.bf16.msra.mxu0 0
      %2302 = vmatprep.subr.bf16.mxu0 0
      %2303 = vmatpush1.bf16.msra.mxu0 0
      %2304 = vmatprep.subr.bf16.mxu0 0
      %2305 = vmatpush1.bf16.msra.mxu0 0
      %2306 = vmatprep.subr.bf16.mxu0 0
      %2307 = vmatpush1.bf16.msra.mxu0 0
      %2308 = vmatprep.subr.bf16.mxu0 0
      %2309 = vmatpush1.bf16.msra.mxu0 0
      %2310 = vmatprep.subr.bf16.mxu0 0
      %2311 = vmatpush1.bf16.msra.mxu0 0
      %2312 = vmatprep.subr.bf16.mxu0 0
      %2313 = vmatpush1.bf16.msra.mxu0 0
      %2314 = vmatprep.subr.bf16.mxu0 0
      %2315 = vmatpush1.bf16.msra.mxu0 0
      %2316 = vmatprep.subr.bf16.mxu0 0
      %2317 = vmatpush1.bf16.msra.mxu0 0
      %2318 = vmatprep.subr.bf16.mxu0 0
      %2319 = vmatpush1.bf16.msra.mxu0 0
      %2320 = vmatprep.mubr.bf16.mxu0 0
      %2321 = vmatmul.mubr.bf16.gmra.mrb[0].mxu0 %v2265
      %v2322 = vpop.f32.mrb[0].mxu0
      %v2323 = vadd.f32 %v2190, %v2322
      %v2324 = vpop.f32.mrb[0].mxu0
      %v2325 = vpop.f32.mrb[0].mxu0
      %v2326 = vadd.f32 %v2193, %v2325
      %v2327 = vpop.f32.mrb[0].mxu0
      %2328 = vmatprep.mubr.bf16.mxu0 0
      %2329 = vmatmul.mubr.bf16.gmra.mrb[0].mxu0 %v2268
      %v2330 = vpop.f32.mrb[0].mxu0
      %v2331 = vadd.f32 %v2198, %v2330
      %v2332 = vpop.f32.mrb[0].mxu0
      %v2333 = vpop.f32.mrb[0].mxu0
      %v2334 = vadd.f32 %v2201, %v2333
      %v2335 = vpop.f32.mrb[0].mxu0
      %2336 = vmatprep.mubr.bf16.mxu0 0
      %2337 = vmatmul.mubr.bf16.gmra.mrb[0].mxu0 %v2271
      %v2338 = vpop.f32.mrb[0].mxu0
      %v2339 = vadd.f32 %v2206, %v2338
      %v2340 = vpop.f32.mrb[0].mxu0
      %v2341 = vpop.f32.mrb[0].mxu0
      %v2342 = vadd.f32 %v2209, %v2341
      %v2343 = vpop.f32.mrb[0].mxu0
      %2344 = vmatprep.mubr.bf16.mxu0 0
      %2345 = vmatmul.mubr.bf16.gmra.mrb[0].mxu0 %v2274
      %v2346 = vpop.f32.mrb[0].mxu0
      %v2347 = vadd.f32 %v2214, %v2346
      %v2348 = vpop.f32.mrb[0].mxu0
      %v2349 = vpop.f32.mrb[0].mxu0
      %v2350 = vadd.f32 %v2217, %v2349
      %v2351 = vpop.f32.mrb[0].mxu0
      %2352 = vmatprep.mubr.bf16.mxu0 0
      %2353 = vmatmul.mubr.bf16.gmra.mrb[0].mxu0 %v2277
      %v2354 = vpop.f32.mrb[0].mxu0
      %v2355 = vadd.f32 %v2222, %v2354
      %v2356 = vpop.f32.mrb[0].mxu0
      %v2357 = vpop.f32.mrb[0].mxu0
      %v2358 = vadd.f32 %v2225, %v2357
      %v2359 = vpop.f32.mrb[0].mxu0
      %2360 = vmatprep.mubr.bf16.mxu0 0
      %2361 = vmatmul.mubr.bf16.gmra.mrb[0].mxu0 %v2280
      %v2362 = vpop.f32.mrb[0].mxu0
      %v2363 = vadd.f32 %v2230, %v2362
      %v2364 = vpop.f32.mrb[0].mxu0
      %v2365 = vpop.f32.mrb[0].mxu0
      %v2366 = vadd.f32 %v2233, %v2365
      %v2367 = vpop.f32.mrb[0].mxu0
      %2368 = vmatprep.mubr.bf16.mxu0 0
      %2369 = vmatmul.mubr.bf16.gmra.mrb[0].mxu0 %v2283
      %v2370 = vpop.f32.mrb[0].mxu0
      %v2371 = vadd.f32 %v2238, %v2370
      %v2372 = vpop.f32.mrb[0].mxu0
      %v2373 = vpop.f32.mrb[0].mxu0
      %v2374 = vadd.f32 %v2241, %v2373
      %v2375 = vpop.f32.mrb[0].mxu0
      %2376 = vmatprep.mubr.bf16.mxu0 0
      %2377 = vmatmul.mubr.bf16.gmra.mrb[0].mxu0 %v2286
      %v2378 = vpop.f32.mrb[0].mxu0
      %v2379 = vadd.f32 %v2246, %v2378
      %v2380 = vpop.f32.mrb[0].mxu0
      %v2381 = vpop.f32.mrb[0].mxu0
      %v2382 = vadd.f32 %v2249, %v2381
      %v2383 = vpop.f32.mrb[0].mxu0
      %2384 = vdwg.mxu0
      %s2385 = scalar_lea.vmem %s7, 32
      %v2386 = vld [vmem:[%s2385] sm:$0xf]
      %v2387 = vld [vmem:[%s2385 + $0x4] sm:$0xf]
      %v2388 = vld [vmem:[%s2385 + $0x8] sm:$0xf]
      %v2389 = vld [vmem:[%s2385 + $0xc] sm:$0xf]
      %v2394 = vunpack.c.l.b16 %v2386
      %v2395 = vunpack.c.l.b16 %v2387
      %v2396 = vunpack.c.l.b16 %v2388
      %v2397 = vunpack.c.l.b16 %v2389
      %v2398 = vpack.c.b16 %v2395, %v2394
      %v2399 = vpack.c.b16 %v2397, %v2396
      %v2403 = vsel %vm334, %v2094, 0
      %v2406 = vsel %vm334, %v2095, 0
      %v2409 = vsel %vm334, %v2096, 0
      %v2412 = vsel %vm334, %v2097, 0
      %v2415 = vsel %vm334, %v2098, 0
      %v2418 = vsel %vm334, %v2099, 0
      %v2421 = vsel %vm334, %v2100, 0
      %v2424 = vsel %vm334, %v2101, 0
      %2426 = vmatprep.subr.bf16.mxu0 0
      %2427 = vmatpush1.bf16.msra.mxu0 %v2398
      %2428 = vmatprep.subr.bf16.mxu0 0
      %2429 = vmatpush1.bf16.msra.mxu0 %v2399
      %2430 = vmatprep.subr.bf16.mxu0 0
      %2431 = vmatpush1.bf16.msra.mxu0 0
      %2432 = vmatprep.subr.bf16.mxu0 0
      %2433 = vmatpush1.bf16.msra.mxu0 0
      %2434 = vmatprep.subr.bf16.mxu0 0
      %2435 = vmatpush1.bf16.msra.mxu0 0
      %2436 = vmatprep.subr.bf16.mxu0 0
      %2437 = vmatpush1.bf16.msra.mxu0 0
      %2438 = vmatprep.subr.bf16.mxu0 0
      %2439 = vmatpush1.bf16.msra.mxu0 0
      %2440 = vmatprep.subr.bf16.mxu0 0
      %2441 = vmatpush1.bf16.msra.mxu0 0
      %2442 = vmatprep.subr.bf16.mxu0 0
      %2443 = vmatpush1.bf16.msra.mxu0 0
      %2444 = vmatprep.subr.bf16.mxu0 0
      %2445 = vmatpush1.bf16.msra.mxu0 0
      %2446 = vmatprep.subr.bf16.mxu0 0
      %2447 = vmatpush1.bf16.msra.mxu0 0
      %2448 = vmatprep.subr.bf16.mxu0 0
      %2449 = vmatpush1.bf16.msra.mxu0 0
      %2450 = vmatprep.subr.bf16.mxu0 0
      %2451 = vmatpush1.bf16.msra.mxu0 0
      %2452 = vmatprep.subr.bf16.mxu0 0
      %2453 = vmatpush1.bf16.msra.mxu0 0
      %2454 = vmatprep.subr.bf16.mxu0 0
      %2455 = vmatpush1.bf16.msra.mxu0 0
      %2456 = vmatprep.subr.bf16.mxu0 0
      %2457 = vmatpush1.bf16.msra.mxu0 0
      %2458 = vmatprep.mubr.bf16.mxu0 0
      %2459 = vmatmul.mubr.bf16.gmra.mrb[0].mxu0 %v2403
      %v2460 = vpop.f32.mrb[0].mxu0
      %v2461 = vadd.f32 0.0, %v2460
      %v2462 = vpop.f32.mrb[0].mxu0
      %v2463 = vpop.f32.mrb[0].mxu0
      %v2464 = vadd.f32 0.0, %v2463
      %v2465 = vpop.f32.mrb[0].mxu0
      %2466 = vmatprep.mubr.bf16.mxu0 0
      %2467 = vmatmul.mubr.bf16.gmra.mrb[0].mxu0 %v2406
      %v2468 = vpop.f32.mrb[0].mxu0
      %v2469 = vadd.f32 0.0, %v2468
      %v2470 = vpop.f32.mrb[0].mxu0
      %v2471 = vpop.f32.mrb[0].mxu0
      %v2472 = vadd.f32 0.0, %v2471
      %v2473 = vpop.f32.mrb[0].mxu0
      %2474 = vmatprep.mubr.bf16.mxu0 0
      %2475 = vmatmul.mubr.bf16.gmra.mrb[0].mxu0 %v2409
      %v2476 = vpop.f32.mrb[0].mxu0
      %v2477 = vadd.f32 0.0, %v2476
      %v2478 = vpop.f32.mrb[0].mxu0
      %v2479 = vpop.f32.mrb[0].mxu0
      %v2480 = vadd.f32 0.0, %v2479
      %v2481 = vpop.f32.mrb[0].mxu0
      %2482 = vmatprep.mubr.bf16.mxu0 0
      %2483 = vmatmul.mubr.bf16.gmra.mrb[0].mxu0 %v2412
      %v2484 = vpop.f32.mrb[0].mxu0
      %v2485 = vadd.f32 0.0, %v2484
      %v2486 = vpop.f32.mrb[0].mxu0
      %v2487 = vpop.f32.mrb[0].mxu0
      %v2488 = vadd.f32 0.0, %v2487
      %v2489 = vpop.f32.mrb[0].mxu0
      %2490 = vmatprep.mubr.bf16.mxu0 0
      %2491 = vmatmul.mubr.bf16.gmra.mrb[0].mxu0 %v2415
      %v2492 = vpop.f32.mrb[0].mxu0
      %v2493 = vadd.f32 0.0, %v2492
      %v2494 = vpop.f32.mrb[0].mxu0
      %v2495 = vpop.f32.mrb[0].mxu0
      %v2496 = vadd.f32 0.0, %v2495
      %v2497 = vpop.f32.mrb[0].mxu0
      %2498 = vmatprep.mubr.bf16.mxu0 0
      %2499 = vmatmul.mubr.bf16.gmra.mrb[0].mxu0 %v2418
      %v2500 = vpop.f32.mrb[0].mxu0
      %v2501 = vadd.f32 0.0, %v2500
      %v2502 = vpop.f32.mrb[0].mxu0
      %v2503 = vpop.f32.mrb[0].mxu0
      %v2504 = vadd.f32 0.0, %v2503
      %v2505 = vpop.f32.mrb[0].mxu0
      %2506 = vmatprep.mubr.bf16.mxu0 0
      %2507 = vmatmul.mubr.bf16.gmra.mrb[0].mxu0 %v2421
      %v2508 = vpop.f32.mrb[0].mxu0
      %v2509 = vadd.f32 0.0, %v2508
      %v2510 = vpop.f32.mrb[0].mxu0
      %v2511 = vpop.f32.mrb[0].mxu0
      %v2512 = vadd.f32 0.0, %v2511
      %v2513 = vpop.f32.mrb[0].mxu0
      %2514 = vmatprep.mubr.bf16.mxu0 0
      %2515 = vmatmul.mubr.bf16.gmra.mrb[0].mxu0 %v2424
      %v2516 = vpop.f32.mrb[0].mxu0
      %v2517 = vadd.f32 0.0, %v2516
      %v2518 = vpop.f32.mrb[0].mxu0
      %v2519 = vpop.f32.mrb[0].mxu0
      %v2520 = vadd.f32 0.0, %v2519
      %v2521 = vpop.f32.mrb[0].mxu0
      %2522 = vdwg.mxu0
      %v2523 = vadd.f32 %v2323, %v2461
      %v2524 = vadd.f32 %v2326, %v2464
      %v2525 = vadd.f32 %v2331, %v2469
      %v2526 = vadd.f32 %v2334, %v2472
      %v2527 = vadd.f32 %v2339, %v2477
      %v2528 = vadd.f32 %v2342, %v2480
      %v2529 = vadd.f32 %v2347, %v2485
      %v2530 = vadd.f32 %v2350, %v2488
      %v2531 = vadd.f32 %v2355, %v2493
      %v2532 = vadd.f32 %v2358, %v2496
      %v2533 = vadd.f32 %v2363, %v2501
      %v2534 = vadd.f32 %v2366, %v2504
      %v2535 = vadd.f32 %v2371, %v2509
      %v2536 = vadd.f32 %v2374, %v2512
      %v2537 = vadd.f32 %v2379, %v2517
      %v2538 = vadd.f32 %v2382, %v2520
      %v2539 = vld [vmem:[%s8] sm:$0x1]
      %v2541 = vlaneseq
      %v2542 = vshrl.u32 %v2541, 7
      %v2543 = vsub.s32 0, %v2542
      %v2544 = vrot.slane %v2539, %v2543
      %v2546 = vadd.f32 %v2523, %v2544
      %v2547 = vadd.f32 %v2524, %v2544
      %v2548 = vadd.f32 %v2525, %v2544
      %v2549 = vadd.f32 %v2526, %v2544
      %v2550 = vadd.f32 %v2527, %v2544
      %v2551 = vadd.f32 %v2528, %v2544
      %v2552 = vadd.f32 %v2529, %v2544
      %v2553 = vadd.f32 %v2530, %v2544
      %v2554 = vadd.f32 %v2531, %v2544
      %v2555 = vadd.f32 %v2532, %v2544
      %v2556 = vadd.f32 %v2533, %v2544
      %v2557 = vadd.f32 %v2534, %v2544
      %v2558 = vadd.f32 %v2535, %v2544
      %v2559 = vadd.f32 %v2536, %v2544
      %v2560 = vadd.f32 %v2537, %v2544
      %v2561 = vadd.f32 %v2538, %v2544
      %v2562 = vmax.f32 %v2546, 0.0
      %v2563 = vmax.f32 %v2547, 0.0
      %v2564 = vmax.f32 %v2548, 0.0
      %v2565 = vmax.f32 %v2549, 0.0
      %v2566 = vmax.f32 %v2550, 0.0
      %v2567 = vmax.f32 %v2551, 0.0
      %v2568 = vmax.f32 %v2552, 0.0
      %v2569 = vmax.f32 %v2553, 0.0
      %v2570 = vmax.f32 %v2554, 0.0
      %v2571 = vmax.f32 %v2555, 0.0
      %v2572 = vmax.f32 %v2556, 0.0
      %v2573 = vmax.f32 %v2557, 0.0
      %v2574 = vmax.f32 %v2558, 0.0
      %v2575 = vmax.f32 %v2559, 0.0
      %v2576 = vmax.f32 %v2560, 0.0
      %v2577 = vmax.f32 %v2561, 0.0
      %v2578 = vpack.c.bf16 %v2563, %v2562
      %v2579 = vpack.c.bf16 %v2565, %v2564
      %v2580 = vpack.c.bf16 %v2567, %v2566
      %v2581 = vpack.c.bf16 %v2569, %v2568
      %v2582 = vpack.c.bf16 %v2571, %v2570
      %v2583 = vpack.c.bf16 %v2573, %v2572
      %v2584 = vpack.c.bf16 %v2575, %v2574
      %v2585 = vpack.c.bf16 %v2577, %v2576
      %v2594 = vunpack.c.l.b16 %v2578
      %v2595 = vunpack.c.h.b16 %v2578
      %v2596 = vunpack.c.l.b16 %v2579
      %v2597 = vunpack.c.h.b16 %v2579
      %v2598 = vunpack.c.l.b16 %v2580
      %v2599 = vunpack.c.h.b16 %v2580
      %v2600 = vunpack.c.l.b16 %v2581
      %v2601 = vunpack.c.h.b16 %v2581
      %v2602 = vunpack.c.l.b16 %v2582
      %v2603 = vunpack.c.h.b16 %v2582
      %v2604 = vunpack.c.l.b16 %v2583
      %v2605 = vunpack.c.h.b16 %v2583
      %v2606 = vunpack.c.l.b16 %v2584
      %v2607 = vunpack.c.h.b16 %v2584
      %v2608 = vunpack.c.l.b16 %v2585
      %v2609 = vunpack.c.h.b16 %v2585
      %v2610 = vpack.c.b16 %v2594, %v2594
      %v2611 = vpack.c.b16 %v2595, %v2595
      %v2612 = vpack.c.b16 %v2596, %v2596
      %v2613 = vpack.c.b16 %v2597, %v2597
      %v2614 = vpack.c.b16 %v2598, %v2598
      %v2615 = vpack.c.b16 %v2599, %v2599
      %v2616 = vpack.c.b16 %v2600, %v2600
      %v2617 = vpack.c.b16 %v2601, %v2601
      %v2618 = vpack.c.b16 %v2602, %v2602
      %v2619 = vpack.c.b16 %v2603, %v2603
      %v2620 = vpack.c.b16 %v2604, %v2604
      %v2621 = vpack.c.b16 %v2605, %v2605
      %v2622 = vpack.c.b16 %v2606, %v2606
      %v2623 = vpack.c.b16 %v2607, %v2607
      %v2624 = vpack.c.b16 %v2608, %v2608
      %v2625 = vpack.c.b16 %v2609, %v2609
      %vm2642 = vcmask 257024
      %2643 = vst.msk [vmem:[%s332] sm:$0xf] %vm2642, %v2610
      %2644 = vst.msk [vmem:[%s332 + $0x4] sm:$0xf] %vm2642, %v2611
      %2645 = vst.msk [vmem:[%s332 + $0x8] sm:$0xf] %vm2642, %v2612
      %2646 = vst.msk [vmem:[%s332 + $0xc] sm:$0xf] %vm2642, %v2613
      %2647 = vst.msk [vmem:[%s332 + $0x10] sm:$0xf] %vm2642, %v2614
      %2648 = vst.msk [vmem:[%s332 + $0x14] sm:$0xf] %vm2642, %v2615
      %2649 = vst.msk [vmem:[%s332 + $0x18] sm:$0xf] %vm2642, %v2616
      %2650 = vst.msk [vmem:[%s332 + $0x1c] sm:$0xf] %vm2642, %v2617
      %2651 = vst.msk [vmem:[%s332 + $0x20] sm:$0xf] %vm2642, %v2618
      %2652 = vst.msk [vmem:[%s332 + $0x24] sm:$0xf] %vm2642, %v2619
      %2653 = vst.msk [vmem:[%s332 + $0x28] sm:$0xf] %vm2642, %v2620
      %2654 = vst.msk [vmem:[%s332 + $0x2c] sm:$0xf] %vm2642, %v2621
      %2655 = vst.msk [vmem:[%s332 + $0x30] sm:$0xf] %vm2642, %v2622
      %2656 = vst.msk [vmem:[%s332 + $0x34] sm:$0xf] %vm2642, %v2623
      %2657 = vst.msk [vmem:[%s332 + $0x38] sm:$0xf] %vm2642, %v2624
      %vm2658 = vcmask 254976
      %vm2659 = vsmask.f32 1280
      %vm2660 = vmand %vm2658, %vm2659
      %v2661 = vld [vmem:[%s332 + $0x3c] sm:$0x3]
      %v2662 = vsel %vm2660, %v2625, %v2661
      %2663 = vst [vmem:[%s332 + $0x3c] sm:$0x3] %v2662
      %p2664 = scmp.lt.s32.totalorder %s20, 1
      %s2665 = scalar_select %p2664, %s20, 1
      %s2666 = smul.addr %s2665, 16
      %s2667 = smul.addr %s2666, 4
      %s2668 = scalar_lea.vmem %s9, %s2667
      // Predicated region
      $region57: #{m18_forward.6} parent=55 // pred_check
        %p2669 = pneg %p232
      $region58: #{m18_forward.6} parent=55 // pred_check_branch
        %2671 = sbr.rel (%p2669) target = $region60
      $region59: #{m18_forward.6} parent=55 // pred_region
        _
      $region60: #{m18_forward.6} parent=55 // pred_fallthru
        _
    $region56: #{m18_forward.6} parent=5 // pred_fallthru
      _
    %p2672 = scmp.le.s32.totalorder 2, %s15
    // Predicated region
    $region61: #{m18_forward.6} parent=5 // pred_check
      %p2673 = pneg %p2672
    $region62: #{m18_forward.6} parent=5 // pred_check_branch
      %2675 = sbr.rel (%p2673) target = $region64
    $region63: #{m18_forward.6} parent=5 // pred_region
      %s2676 = ssub.s32 %s15, 2
      // Predicated region
      $region65: #{m18_forward.6} parent=63 // pred_check
        %p2677 = pneg %p238
      $region66: #{m18_forward.6} parent=63 // pred_check_branch
        %2679 = sbr.rel (%p2677) target = $region68
      $region67: #{m18_forward.6} parent=63 // pred_region
        %p2680 = scmp.lt.s32.totalorder %s21, 1
        %s2681 = scalar_select %p2680, %s21, 1
        %s2682 = smul.addr %s2681, 16
        %s2683 = smul.addr %s2682, 4
        %s2684 = scalar_lea.vmem %s9, %s2683
      $region68: #{m18_forward.6} parent=63 // pred_fallthru
        _
    $region64: #{m18_forward.6} parent=5 // pred_fallthru
      _
  $region6: #{m18_forward.6} parent=0 // loop_footer
    %s19 = sadd.s32 1, %s15
  $region7: #{m18_forward.6} parent=0 // loop_footer_branch
    %14 = sbr.rel target = $region3
  $region8: #{m18_forward.6} parent=0 // loop_exit
    _

// kernel: m18_forward.8
$region0: #{m18_forward.8}
  #allocation0 [shape = 'u32[]', space=smem, size = 0x4, offset = 0x4, fixed_abs, tag = 'smem constant byte address 0x4 - core index']
  #allocation1 [shape = 'u32[144,128]{1,0:T(1,128)}', space=vmem, size = 0x12000, scoped, tag = 'internal scratch']
  #allocation2 [shape = 'f32[23,128]{1,0:T(8,128)}', space=vmem, size = 0x3000, scoped, tag = 'scratch operand']
  %s0 = inlined_call_operand.vmem [shape: bf16[2,7,64], index: 0, kind: input, shape index: {}]
  %s1 = inlined_call_operand.vmem [shape: bf16[3,64,128], index: 1, kind: input, shape index: {}]
  %s2 = inlined_call_operand.vmem [shape: f32[1,128], index: 2, kind: input, shape index: {}]
  %s3 = inlined_call_operand.vmem [shape: bf16[3,128,128], index: 3, kind: input, shape index: {}]
  %s4 = inlined_call_operand.vmem [shape: f32[1,128], index: 4, kind: input, shape index: {}]
  %s5 = inlined_call_operand.vmem [shape: bf16[3,128,128], index: 5, kind: input, shape index: {}]
  %s6 = inlined_call_operand.vmem [shape: f32[1,128], index: 6, kind: input, shape index: {}]
  %s7 = inlined_call_operand.vmem [shape: bf16[3,128,128], index: 7, kind: input, shape index: {}]
  %s8 = inlined_call_operand.vmem [shape: f32[1,128], index: 8, kind: input, shape index: {}]
  %s9 = inlined_call_operand.vmem [shape: bf16[2,7,128], index: 9, kind: output, shape index: {}]
  %s10 = sld [smem:[#allocation0]]
  $region69: #{m18_forward.8} parent=0
    _
  %s12 = ssub.s32 1, %s10
  %s13 = scalar_select 0, %s12, %s10
  loop: start=0, step=1, limit=4
  $region2: #{m18_forward.8} parent=0 // loop_pre_header
    _
  $region3: #{m18_forward.8} parent=0 // loop_header
    %s15 = sphi 0, %s19
    %p16 = scmp.ge.s32.totalorder %s15, 4
    %s25 = sphi 0, %s27
    %s28 = sphi 0, %s25
    %s29 = sphi 0, %s28
    %s45 = sphi 0, %s29
    %s49 = sphi 0, %s49
    %s51 = sphi 0, %s49
    %s52 = sphi 0, %s51
    %s66 = sphi 0, %s52
    %s70 = sphi 0, %s70
    %s72 = sphi 0, %s70
    %s73 = sphi 0, %s72
    %s87 = sphi 0, %s73
    %s91 = sphi 0, %s91
    %s93 = sphi 0, %s91
    %s94 = sphi 0, %s93
    %s108 = sphi 0, %s94
    %s112 = sphi 0, %s112
    %s114 = sphi 0, %s112
    %s115 = sphi 0, %s114
    %s129 = sphi 0, %s115
    %s133 = sphi 0, %s133
    %s135 = sphi 0, %s133
    %s136 = sphi 0, %s135
    %s150 = sphi 0, %s136
    %s154 = sphi 0, %s154
    %s156 = sphi 0, %s154
    %s157 = sphi 0, %s156
    %s171 = sphi 0, %s157
    %s175 = sphi 0, %s175
    %s177 = sphi 0, %s175
    %s178 = sphi 0, %s177
    %s192 = sphi 0, %s178
    %s196 = sphi 0, %s196
    %s198 = sphi 0, %s196
    %s199 = sphi 0, %s198
    %s213 = sphi 0, %s199
    %s219 = sphi 0, %s221
    %s222 = sphi 0, %s219
    %s223 = sphi 0, %s222
    %s239 = sphi 0, %s223
  $region4: #{m18_forward.8} parent=0 // loop_header_branch
    %18 = sbr.rel (%p16) target = $region8
  $region5: #{m18_forward.8} parent=0 // loop_body
    %s20 = ssub.s32 %s15, 1
    %s21 = ssub.s32 %s15, 2
    %s22 = sadd.s32 %s15, 1
    %s23 = ssub.s32 %s15, %s22
    %p24 = scmp.eq.s32.totalorder %s23, 0
    %s26 = sadd.s32 %s25, 1
    %s27 = scalar_select %p24, %s25, %s26
    %p30 = pneg %p24
    %p31 = scmp.eq.s32.totalorder %s15, 1
    %p32 = por %p30, %p31
    %p33 = scmp.ne.s32.totalorder %s25, %s28
    %p34 = scmp.eq.s32.totalorder %s15, 0
    %p35 = por %p33, %p34
    %p36 = scmp.ne.s32.totalorder %s25, %s28
    %p37 = scmp.eq.s32.totalorder %s20, 1
    %p38 = por %p36, %p37
    %p39 = scmp.ne.s32.totalorder %s28, %s29
    %p40 = scmp.eq.s32.totalorder %s20, 0
    %p41 = por %p39, %p40
    %p42 = scmp.ne.s32.totalorder %s28, %s29
    %p43 = scmp.eq.s32.totalorder %s21, 1
    %p44 = por %p42, %p43
    %p46 = scmp.ne.s32.totalorder %s29, %s45
    %p47 = scmp.eq.s32.totalorder %s21, 0
    %p48 = por %p46, %p47
    %s50 = sadd.s32 %s49, 1
    %p53 = scmp.eq.s32.totalorder %s15, 1
    %p54 = scmp.ne.s32.totalorder %s49, %s51
    %p55 = scmp.eq.s32.totalorder %s15, 0
    %p56 = por %p54, %p55
    %p57 = scmp.ne.s32.totalorder %s49, %s51
    %p58 = scmp.eq.s32.totalorder %s20, 1
    %p59 = por %p57, %p58
    %p60 = scmp.ne.s32.totalorder %s51, %s52
    %p61 = scmp.eq.s32.totalorder %s20, 0
    %p62 = por %p60, %p61
    %p63 = scmp.ne.s32.totalorder %s51, %s52
    %p64 = scmp.eq.s32.totalorder %s21, 1
    %p65 = por %p63, %p64
    %p67 = scmp.ne.s32.totalorder %s52, %s66
    %p68 = scmp.eq.s32.totalorder %s21, 0
    %p69 = por %p67, %p68
    %s71 = sadd.s32 %s70, 1
    %p74 = scmp.eq.s32.totalorder %s15, 1
    %p75 = scmp.ne.s32.totalorder %s70, %s72
    %p76 = scmp.eq.s32.totalorder %s15, 0
    %p77 = por %p75, %p76
    %p78 = scmp.ne.s32.totalorder %s70, %s72
    %p79 = scmp.eq.s32.totalorder %s20, 1
    %p80 = por %p78, %p79
    %p81 = scmp.ne.s32.totalorder %s72, %s73
    %p82 = scmp.eq.s32.totalorder %s20, 0
    %p83 = por %p81, %p82
    %p84 = scmp.ne.s32.totalorder %s72, %s73
    %p85 = scmp.eq.s32.totalorder %s21, 1
    %p86 = por %p84, %p85
    %p88 = scmp.ne.s32.totalorder %s73, %s87
    %p89 = scmp.eq.s32.totalorder %s21, 0
    %p90 = por %p88, %p89
    %s92 = sadd.s32 %s91, 1
    %p95 = scmp.eq.s32.totalorder %s15, 1
    %p96 = scmp.ne.s32.totalorder %s91, %s93
    %p97 = scmp.eq.s32.totalorder %s15, 0
    %p98 = por %p96, %p97
    %p99 = scmp.ne.s32.totalorder %s91, %s93
    %p100 = scmp.eq.s32.totalorder %s20, 1
    %p101 = por %p99, %p100
    %p102 = scmp.ne.s32.totalorder %s93, %s94
    %p103 = scmp.eq.s32.totalorder %s20, 0
    %p104 = por %p102, %p103
    %p105 = scmp.ne.s32.totalorder %s93, %s94
    %p106 = scmp.eq.s32.totalorder %s21, 1
    %p107 = por %p105, %p106
    %p109 = scmp.ne.s32.totalorder %s94, %s108
    %p110 = scmp.eq.s32.totalorder %s21, 0
    %p111 = por %p109, %p110
    %s113 = sadd.s32 %s112, 1
    %p116 = scmp.eq.s32.totalorder %s15, 1
    %p117 = scmp.ne.s32.totalorder %s112, %s114
    %p118 = scmp.eq.s32.totalorder %s15, 0
    %p119 = por %p117, %p118
    %p120 = scmp.ne.s32.totalorder %s112, %s114
    %p121 = scmp.eq.s32.totalorder %s20, 1
    %p122 = por %p120, %p121
    %p123 = scmp.ne.s32.totalorder %s114, %s115
    %p124 = scmp.eq.s32.totalorder %s20, 0
    %p125 = por %p123, %p124
    %p126 = scmp.ne.s32.totalorder %s114, %s115
    %p127 = scmp.eq.s32.totalorder %s21, 1
    %p128 = por %p126, %p127
    %p130 = scmp.ne.s32.totalorder %s115, %s129
    %p131 = scmp.eq.s32.totalorder %s21, 0
    %p132 = por %p130, %p131
    %s134 = sadd.s32 %s133, 1
    %p137 = scmp.eq.s32.totalorder %s15, 1
    %p138 = scmp.ne.s32.totalorder %s133, %s135
    %p139 = scmp.eq.s32.totalorder %s15, 0
    %p140 = por %p138, %p139
    %p141 = scmp.ne.s32.totalorder %s133, %s135
    %p142 = scmp.eq.s32.totalorder %s20, 1
    %p143 = por %p141, %p142
    %p144 = scmp.ne.s32.totalorder %s135, %s136
    %p145 = scmp.eq.s32.totalorder %s20, 0
    %p146 = por %p144, %p145
    %p147 = scmp.ne.s32.totalorder %s135, %s136
    %p148 = scmp.eq.s32.totalorder %s21, 1
    %p149 = por %p147, %p148
    %p151 = scmp.ne.s32.totalorder %s136, %s150
    %p152 = scmp.eq.s32.totalorder %s21, 0
    %p153 = por %p151, %p152
    %s155 = sadd.s32 %s154, 1
    %p158 = scmp.eq.s32.totalorder %s15, 1
    %p159 = scmp.ne.s32.totalorder %s154, %s156
    %p160 = scmp.eq.s32.totalorder %s15, 0
    %p161 = por %p159, %p160
    %p162 = scmp.ne.s32.totalorder %s154, %s156
    %p163 = scmp.eq.s32.totalorder %s20, 1
    %p164 = por %p162, %p163
    %p165 = scmp.ne.s32.totalorder %s156, %s157
    %p166 = scmp.eq.s32.totalorder %s20, 0
    %p167 = por %p165, %p166
    %p168 = scmp.ne.s32.totalorder %s156, %s157
    %p169 = scmp.eq.s32.totalorder %s21, 1
    %p170 = por %p168, %p169
    %p172 = scmp.ne.s32.totalorder %s157, %s171
    %p173 = scmp.eq.s32.totalorder %s21, 0
    %p174 = por %p172, %p173
    %s176 = sadd.s32 %s175, 1
    %p179 = scmp.eq.s32.totalorder %s15, 1
    %p180 = scmp.ne.s32.totalorder %s175, %s177
    %p181 = scmp.eq.s32.totalorder %s15, 0
    %p182 = por %p180, %p181
    %p183 = scmp.ne.s32.totalorder %s175, %s177
    %p184 = scmp.eq.s32.totalorder %s20, 1
    %p185 = por %p183, %p184
    %p186 = scmp.ne.s32.totalorder %s177, %s178
    %p187 = scmp.eq.s32.totalorder %s20, 0
    %p188 = por %p186, %p187
    %p189 = scmp.ne.s32.totalorder %s177, %s178
    %p190 = scmp.eq.s32.totalorder %s21, 1
    %p191 = por %p189, %p190
    %p193 = scmp.ne.s32.totalorder %s178, %s192
    %p194 = scmp.eq.s32.totalorder %s21, 0
    %p195 = por %p193, %p194
    %s197 = sadd.s32 %s196, 1
    %p200 = scmp.eq.s32.totalorder %s15, 1
    %p201 = scmp.ne.s32.totalorder %s196, %s198
    %p202 = scmp.eq.s32.totalorder %s15, 0
    %p203 = por %p201, %p202
    %p204 = scmp.ne.s32.totalorder %s196, %s198
    %p205 = scmp.eq.s32.totalorder %s20, 1
    %p206 = por %p204, %p205
    %p207 = scmp.ne.s32.totalorder %s198, %s199
    %p208 = scmp.eq.s32.totalorder %s20, 0
    %p209 = por %p207, %p208
    %p210 = scmp.ne.s32.totalorder %s198, %s199
    %p211 = scmp.eq.s32.totalorder %s21, 1
    %p212 = por %p210, %p211
    %p214 = scmp.ne.s32.totalorder %s199, %s213
    %p215 = scmp.eq.s32.totalorder %s21, 0
    %p216 = por %p214, %p215
    %s217 = ssub.s32 %s15, %s22
    %p218 = scmp.eq.s32.totalorder %s217, 0
    %s220 = sadd.s32 %s219, 1
    %s221 = scalar_select %p218, %s219, %s220
    %p224 = pneg %p218
    %p225 = scmp.eq.s32.totalorder %s15, 1
    %p226 = por %p224, %p225
    %p227 = scmp.ne.s32.totalorder %s219, %s222
    %p228 = scmp.eq.s32.totalorder %s15, 0
    %p229 = por %p227, %p228
    %p230 = scmp.ne.s32.totalorder %s219, %s222
    %p231 = scmp.eq.s32.totalorder %s20, 1
    %p232 = por %p230, %p231
    %p233 = scmp.ne.s32.totalorder %s222, %s223
    %p234 = scmp.eq.s32.totalorder %s20, 0
    %p235 = por %p233, %p234
    %p236 = scmp.ne.s32.totalorder %s222, %s223
    %p237 = scmp.eq.s32.totalorder %s21, 1
    %p238 = por %p236, %p237
    %p240 = scmp.ne.s32.totalorder %s223, %s239
    %p241 = scmp.eq.s32.totalorder %s21, 0
    %p242 = por %p240, %p241
    %p243 = scmp.le.s32.totalorder 1, %s15
    %p244 = scmp.lt.s32.totalorder %s15, 3
    %p245 = pnand %p243, %p244
    %p246 = pneg %p245
    // Predicated region
    $region9: #{m18_forward.8} parent=5 // pred_check
      _
    $region10: #{m18_forward.8} parent=5 // pred_check_branch
      %248 = sbr.rel (%p245) target = $region12
    $region11: #{m18_forward.8} parent=5 // pred_region
      %s249 = ssub.s32 %s15, 1
      // Predicated region
      $region13: #{m18_forward.8} parent=11 // pred_check
        %p250 = pneg %p62
      $region14: #{m18_forward.8} parent=11 // pred_check_branch
        %252 = sbr.rel (%p250) target = $region16
      $region15: #{m18_forward.8} parent=11 // pred_region
        _
      $region16: #{m18_forward.8} parent=11 // pred_fallthru
        _
      // Predicated region
      $region17: #{m18_forward.8} parent=11 // pred_check
        %p253 = pneg %p83
      $region18: #{m18_forward.8} parent=11 // pred_check_branch
        %255 = sbr.rel (%p253) target = $region20
      $region19: #{m18_forward.8} parent=11 // pred_region
        _
      $region20: #{m18_forward.8} parent=11 // pred_fallthru
        _
      // Predicated region
      $region21: #{m18_forward.8} parent=11 // pred_check
        %p256 = pneg %p104
      $region22: #{m18_forward.8} parent=11 // pred_check_branch
        %258 = sbr.rel (%p256) target = $region24
      $region23: #{m18_forward.8} parent=11 // pred_region
        _
      $region24: #{m18_forward.8} parent=11 // pred_fallthru
        _
      // Predicated region
      $region25: #{m18_forward.8} parent=11 // pred_check
        %p259 = pneg %p125
      $region26: #{m18_forward.8} parent=11 // pred_check_branch
        %261 = sbr.rel (%p259) target = $region28
      $region27: #{m18_forward.8} parent=11 // pred_region
        _
      $region28: #{m18_forward.8} parent=11 // pred_fallthru
        _
      // Predicated region
      $region29: #{m18_forward.8} parent=11 // pred_check
        %p262 = pneg %p146
      $region30: #{m18_forward.8} parent=11 // pred_check_branch
        %264 = sbr.rel (%p262) target = $region32
      $region31: #{m18_forward.8} parent=11 // pred_region
        _
      $region32: #{m18_forward.8} parent=11 // pred_fallthru
        _
      // Predicated region
      $region33: #{m18_forward.8} parent=11 // pred_check
        %p265 = pneg %p167
      $region34: #{m18_forward.8} parent=11 // pred_check_branch
        %267 = sbr.rel (%p265) target = $region36
      $region35: #{m18_forward.8} parent=11 // pred_region
        _
      $region36: #{m18_forward.8} parent=11 // pred_fallthru
        _
      // Predicated region
      $region37: #{m18_forward.8} parent=11 // pred_check
        %p268 = pneg %p188
      $region38: #{m18_forward.8} parent=11 // pred_check_branch
        %270 = sbr.rel (%p268) target = $region40
      $region39: #{m18_forward.8} parent=11 // pred_region
        _
      $region40: #{m18_forward.8} parent=11 // pred_fallthru
        _
      // Predicated region
      $region41: #{m18_forward.8} parent=11 // pred_check
        %p271 = pneg %p209
      $region42: #{m18_forward.8} parent=11 // pred_check_branch
        %273 = sbr.rel (%p271) target = $region44
      $region43: #{m18_forward.8} parent=11 // pred_region
        _
      $region44: #{m18_forward.8} parent=11 // pred_fallthru
        _
    $region12: #{m18_forward.8} parent=5 // pred_fallthru
      _
    %p274 = scmp.lt.s32.totalorder %s15, 2
    // Predicated region
    $region45: #{m18_forward.8} parent=5 // pred_check
      %p275 = pneg %p274
    $region46: #{m18_forward.8} parent=5 // pred_check_branch
      %277 = sbr.rel (%p275) target = $region48
    $region47: #{m18_forward.8} parent=5 // pred_region
      // Predicated region
      $region49: #{m18_forward.8} parent=47 // pred_check
        %p278 = pneg %p35
      $region50: #{m18_forward.8} parent=47 // pred_check_branch
        %280 = sbr.rel (%p278) target = $region52
      $region51: #{m18_forward.8} parent=47 // pred_region
        %p281 = scmp.lt.s32.totalorder %s15, 1
        %s282 = scalar_select %p281, %s15, 1
        %s283 = smul.addr %s282, 4
        %s284 = scalar_lea.vmem %s0, %s283
      $region52: #{m18_forward.8} parent=47 // pred_fallthru
        _
    $region48: #{m18_forward.8} parent=5 // pred_fallthru
      _
    %p285 = scmp.le.s32.totalorder 1, %s15
    %p286 = scmp.lt.s32.totalorder %s15, 3
    %p287 = pnand %p285, %p286
    %p288 = pneg %p287
    // Predicated region
    $region53: #{m18_forward.8} parent=5 // pred_check
      _
    $region54: #{m18_forward.8} parent=5 // pred_check_branch
      %290 = sbr.rel (%p287) target = $region56
    $region55: #{m18_forward.8} parent=5 // pred_region
      %s291 = ssub.s32 %s15, 1
      %p292 = scmp.lt.s32.totalorder %s20, 1
      %s293 = scalar_select %p292, %s20, 1
      %s294 = smul.addr %s293, 4
      %s295 = scalar_lea.vmem %s0, %s294
      %p296 = pneg %p41
      %p297 = pneg %p38
      %p298 = pneg %p62
      %p299 = pneg %p59
      %p300 = pneg %p83
      %p301 = pneg %p80
      %p302 = pneg %p104
      %p303 = pneg %p101
      %p304 = pneg %p125
      %p305 = pneg %p122
      %p306 = pneg %p146
      %p307 = pneg %p143
      %p308 = pneg %p167
      %p309 = pneg %p164
      %p310 = pneg %p188
      %p311 = pneg %p185
      %p312 = pneg %p209
      %p313 = pneg %p206
      %p314 = pneg %p235
      %p315 = pneg %p232
      %p316 = scmp.lt.s32.totalorder %s20, 1
      %s317 = scalar_select %p316, %s20, 1
      %s318 = smul.addr %s317, 4
      %s319 = scalar_lea.vmem %s9, %s318
      %p320 = scmp.lt.s32.totalorder %s20, 1
      %s321 = scalar_select %p320, %s20, 1
      %s322 = smul.addr %s321, 4
      %s323 = scalar_lea.vmem %s0, %s322
      %p324 = scmp.lt.s32.totalorder %s20, 1
      %s325 = scalar_select %p324, %s20, 1
      %s326 = smul.addr %s325, 4
      %s327 = scalar_lea.vmem %s9, %s326
      %329 = vst [vmem:[#allocation2] sm:$0xff] 0.0
      %330 = vst [vmem:[#allocation2 + $0x8] sm:$0xff] 0.0
      %331 = vst [vmem:[#allocation2 + $0x10] sm:$0x7f] 0.0
      %v332 = vld [vmem:[%s323] sm:$0xf]
      %v333 = vunpack.c.l.bf16 %v332
      %vm334 = vcmask 522240
      %335 = vst.msk [vmem:[#allocation2 + $0x8] sm:$0x7f] %vm334, %v333
      %v336 = vld [vmem:[#allocation2 + $0x7] sm:$0x7f]
      %v337 = vpack.c.bf16 %v336, %v336
      %v338 = vld [vmem:[#allocation2 + $0x9] sm:$0x7f]
      %v339 = vpack.c.bf16 %v338, %v338
      %v340 = vld [vmem:[%s1] sm:$0xf]
      %v341 = vld [vmem:[%s1 + $0x4] sm:$0xf]
      %v342 = vld [vmem:[%s1 + $0x8] sm:$0xf]
      %v343 = vld [vmem:[%s1 + $0xc] sm:$0xf]
      %v344 = vld [vmem:[%s1 + $0x10] sm:$0xf]
      %v345 = vld [vmem:[%s1 + $0x14] sm:$0xf]
      %v346 = vld [vmem:[%s1 + $0x18] sm:$0xf]
      %v347 = vld [vmem:[%s1 + $0x1c] sm:$0xf]
      %s348 = scalar_lea.vmem %s1, 32
      %v349 = vld [vmem:[%s348] sm:$0xf]
      %v350 = vld [vmem:[%s348 + $0x4] sm:$0xf]
      %v351 = vld [vmem:[%s348 + $0x8] sm:$0xf]
      %v352 = vld [vmem:[%s348 + $0xc] sm:$0xf]
      %v353 = vld [vmem:[%s348 + $0x10] sm:$0xf]
      %v354 = vld [vmem:[%s348 + $0x14] sm:$0xf]
      %v355 = vld [vmem:[%s348 + $0x18] sm:$0xf]
      %v356 = vld [vmem:[%s348 + $0x1c] sm:$0xf]
      %v365 = vunpack.c.l.b16 %v349
      %v366 = vunpack.c.l.b16 %v350
      %v367 = vunpack.c.l.b16 %v351
      %v368 = vunpack.c.l.b16 %v352
      %v369 = vunpack.c.l.b16 %v353
      %v370 = vunpack.c.l.b16 %v354
      %v371 = vunpack.c.l.b16 %v355
      %v372 = vunpack.c.l.b16 %v356
      %v373 = vpack.c.b16 %v366, %v365
      %v374 = vpack.c.b16 %v368, %v367
      %v375 = vpack.c.b16 %v370, %v369
      %v376 = vpack.c.b16 %v372, %v371
      %vm381 = vcmask 523264
      %v383 = vsel %vm381, %v332, 0
      %385 = vmatprep.subr.bf16.mxu0 0
      %386 = vmatpush1.bf16.msra.mxu0 %v373
      %387 = vmatprep.subr.bf16.mxu0 0
      %388 = vmatpush1.bf16.msra.mxu0 %v374
      %389 = vmatprep.subr.bf16.mxu0 0
      %390 = vmatpush1.bf16.msra.mxu0 %v375
      %391 = vmatprep.subr.bf16.mxu0 0
      %392 = vmatpush1.bf16.msra.mxu0 %v376
      %393 = vmatprep.subr.bf16.mxu0 0
      %394 = vmatpush1.bf16.msra.mxu0 0
      %395 = vmatprep.subr.bf16.mxu0 0
      %396 = vmatpush1.bf16.msra.mxu0 0
      %397 = vmatprep.subr.bf16.mxu0 0
      %398 = vmatpush1.bf16.msra.mxu0 0
      %399 = vmatprep.subr.bf16.mxu0 0
      %400 = vmatpush1.bf16.msra.mxu0 0
      %401 = vmatprep.subr.bf16.mxu0 0
      %402 = vmatpush1.bf16.msra.mxu0 0
      %403 = vmatprep.subr.bf16.mxu0 0
      %404 = vmatpush1.bf16.msra.mxu0 0
      %405 = vmatprep.subr.bf16.mxu0 0
      %406 = vmatpush1.bf16.msra.mxu0 0
      %407 = vmatprep.subr.bf16.mxu0 0
      %408 = vmatpush1.bf16.msra.mxu0 0
      %409 = vmatprep.subr.bf16.mxu0 0
      %410 = vmatpush1.bf16.msra.mxu0 0
      %411 = vmatprep.subr.bf16.mxu0 0
      %412 = vmatpush1.bf16.msra.mxu0 0
      %413 = vmatprep.subr.bf16.mxu0 0
      %414 = vmatpush1.bf16.msra.mxu0 0
      %415 = vmatprep.subr.bf16.mxu0 0
      %416 = vmatpush1.bf16.msra.mxu0 0
      %417 = vmatprep.mubr.bf16.mxu0 0
      %418 = vmatmul.mubr.bf16.gmra.mrb[0].mxu0 %v383
      %v419 = vpop.f32.mrb[0].mxu0
      %v420 = vadd.f32 0.0, %v419
      %v421 = vpop.f32.mrb[0].mxu0
      %v422 = vpop.f32.mrb[0].mxu0
      %v423 = vpop.f32.mrb[0].mxu0
      %424 = vdwg.mxu0
      %v433 = vunpack.c.l.b16 %v340
      %v434 = vunpack.c.l.b16 %v341
      %v435 = vunpack.c.l.b16 %v342
      %v436 = vunpack.c.l.b16 %v343
      %v437 = vunpack.c.l.b16 %v344
      %v438 = vunpack.c.l.b16 %v345
      %v439 = vunpack.c.l.b16 %v346
      %v440 = vunpack.c.l.b16 %v347
      %v441 = vpack.c.b16 %v434, %v433
      %v442 = vpack.c.b16 %v436, %v435
      %v443 = vpack.c.b16 %v438, %v437
      %v444 = vpack.c.b16 %v440, %v439
      %v450 = vsel %vm381, %v337, 0
      %452 = vmatprep.subr.bf16.mxu0 0
      %453 = vmatpush1.bf16.msra.mxu0 %v441
      %454 = vmatprep.subr.bf16.mxu0 0
      %455 = vmatpush1.bf16.msra.mxu0 %v442
      %456 = vmatprep.subr.bf16.mxu0 0
      %457 = vmatpush1.bf16.msra.mxu0 %v443
      %458 = vmatprep.subr.bf16.mxu0 0
      %459 = vmatpush1.bf16.msra.mxu0 %v444
      %460 = vmatprep.subr.bf16.mxu0 0
      %461 = vmatpush1.bf16.msra.mxu0 0
      %462 = vmatprep.subr.bf16.mxu0 0
      %463 = vmatpush1.bf16.msra.mxu0 0
      %464 = vmatprep.subr.bf16.mxu0 0
      %465 = vmatpush1.bf16.msra.mxu0 0
      %466 = vmatprep.subr.bf16.mxu0 0
      %467 = vmatpush1.bf16.msra.mxu0 0
      %468 = vmatprep.subr.bf16.mxu0 0
      %469 = vmatpush1.bf16.msra.mxu0 0
      %470 = vmatprep.subr.bf16.mxu0 0
      %471 = vmatpush1.bf16.msra.mxu0 0
      %472 = vmatprep.subr.bf16.mxu0 0
      %473 = vmatpush1.bf16.msra.mxu0 0
      %474 = vmatprep.subr.bf16.mxu0 0
      %475 = vmatpush1.bf16.msra.mxu0 0
      %476 = vmatprep.subr.bf16.mxu0 0
      %477 = vmatpush1.bf16.msra.mxu0 0
      %478 = vmatprep.subr.bf16.mxu0 0
      %479 = vmatpush1.bf16.msra.mxu0 0
      %480 = vmatprep.subr.bf16.mxu0 0
      %481 = vmatpush1.bf16.msra.mxu0 0
      %482 = vmatprep.subr.bf16.mxu0 0
      %483 = vmatpush1.bf16.msra.mxu0 0
      %484 = vmatprep.mubr.bf16.mxu0 0
      %485 = vmatmul.mubr.bf16.gmra.mrb[0].mxu0 %v450
      %v486 = vpop.f32.mrb[0].mxu0
      %v487 = vadd.f32 %v420, %v486
      %v488 = vpop.f32.mrb[0].mxu0
      %v489 = vpop.f32.mrb[0].mxu0
      %v490 = vpop.f32.mrb[0].mxu0
      %491 = vdwg.mxu0
      %s492 = scalar_lea.vmem %s1, 64
      %v493 = vld [vmem:[%s492] sm:$0xf]
      %v494 = vld [vmem:[%s492 + $0x4] sm:$0xf]
      %v495 = vld [vmem:[%s492 + $0x8] sm:$0xf]
      %v496 = vld [vmem:[%s492 + $0xc] sm:$0xf]
      %v497 = vld [vmem:[%s492 + $0x10] sm:$0xf]
      %v498 = vld [vmem:[%s492 + $0x14] sm:$0xf]
      %v499 = vld [vmem:[%s492 + $0x18] sm:$0xf]
      %v500 = vld [vmem:[%s492 + $0x1c] sm:$0xf]
      %v509 = vunpack.c.l.b16 %v493
      %v510 = vunpack.c.l.b16 %v494
      %v511 = vunpack.c.l.b16 %v495
      %v512 = vunpack.c.l.b16 %v496
      %v513 = vunpack.c.l.b16 %v497
      %v514 = vunpack.c.l.b16 %v498
      %v515 = vunpack.c.l.b16 %v499
      %v516 = vunpack.c.l.b16 %v500
      %v517 = vpack.c.b16 %v510, %v509
      %v518 = vpack.c.b16 %v512, %v511
      %v519 = vpack.c.b16 %v514, %v513
      %v520 = vpack.c.b16 %v516, %v515
      %v526 = vsel %vm381, %v339, 0
      %528 = vmatprep.subr.bf16.mxu0 0
      %529 = vmatpush1.bf16.msra.mxu0 %v517
      %530 = vmatprep.subr.bf16.mxu0 0
      %531 = vmatpush1.bf16.msra.mxu0 %v518
      %532 = vmatprep.subr.bf16.mxu0 0
      %533 = vmatpush1.bf16.msra.mxu0 %v519
      %534 = vmatprep.subr.bf16.mxu0 0
      %535 = vmatpush1.bf16.msra.mxu0 %v520
      %536 = vmatprep.subr.bf16.mxu0 0
      %537 = vmatpush1.bf16.msra.mxu0 0
      %538 = vmatprep.subr.bf16.mxu0 0
      %539 = vmatpush1.bf16.msra.mxu0 0
      %540 = vmatprep.subr.bf16.mxu0 0
      %541 = vmatpush1.bf16.msra.mxu0 0
      %542 = vmatprep.subr.bf16.mxu0 0
      %543 = vmatpush1.bf16.msra.mxu0 0
      %544 = vmatprep.subr.bf16.mxu0 0
      %545 = vmatpush1.bf16.msra.mxu0 0
      %546 = vmatprep.subr.bf16.mxu0 0
      %547 = vmatpush1.bf16.msra.mxu0 0
      %548 = vmatprep.subr.bf16.mxu0 0
      %549 = vmatpush1.bf16.msra.mxu0 0
      %550 = vmatprep.subr.bf16.mxu0 0
      %551 = vmatpush1.bf16.msra.mxu0 0
      %552 = vmatprep.subr.bf16.mxu0 0
      %553 = vmatpush1.bf16.msra.mxu0 0
      %554 = vmatprep.subr.bf16.mxu0 0
      %555 = vmatpush1.bf16.msra.mxu0 0
      %556 = vmatprep.subr.bf16.mxu0 0
      %557 = vmatpush1.bf16.msra.mxu0 0
      %558 = vmatprep.subr.bf16.mxu0 0
      %559 = vmatpush1.bf16.msra.mxu0 0
      %560 = vmatprep.mubr.bf16.mxu0 0
      %561 = vmatmul.mubr.bf16.gmra.mrb[0].mxu0 %v526
      %v562 = vpop.f32.mrb[0].mxu0
      %v563 = vadd.f32 0.0, %v562
      %v564 = vpop.f32.mrb[0].mxu0
      %v565 = vpop.f32.mrb[0].mxu0
      %v566 = vpop.f32.mrb[0].mxu0
      %567 = vdwg.mxu0
      %v568 = vadd.f32 %v487, %v563
      %v569 = vld [vmem:[%s2] sm:$0x1]
      %v571 = vlaneseq
      %v572 = vshrl.u32 %v571, 7
      %v573 = vsub.s32 0, %v572
      %v574 = vrot.slane %v569, %v573
      %v576 = vadd.f32 %v568, %v574
      %v577 = vmax.f32 %v576, 0.0
      %578 = vst [vmem:[#allocation2 + $0x8] sm:$0x7f] %v577
      %v579 = vld [vmem:[#allocation2 + $0x7] sm:$0x7f]
      %v580 = vpack.c.bf16 %v579, %v579
      %v581 = vld [vmem:[#allocation2 + $0x9] sm:$0x7f]
      %v582 = vpack.c.bf16 %v581, %v581
      %v583 = vpack.c.bf16 %v577, %v577
      %v584 = vld [vmem:[%s3] sm:$0xf]
      %v585 = vld [vmem:[%s3 + $0x4] sm:$0xf]
      %v586 = vld [vmem:[%s3 + $0x8] sm:$0xf]
      %v587 = vld [vmem:[%s3 + $0xc] sm:$0xf]
      %v588 = vld [vmem:[%s3 + $0x10] sm:$0xf]
      %v589 = vld [vmem:[%s3 + $0x14] sm:$0xf]
      %v590 = vld [vmem:[%s3 + $0x18] sm:$0xf]
      %v591 = vld [vmem:[%s3 + $0x1c] sm:$0xf]
      %v592 = vld [vmem:[%s3 + $0x20] sm:$0xf]
      %v593 = vld [vmem:[%s3 + $0x24] sm:$0xf]
      %v594 = vld [vmem:[%s3 + $0x28] sm:$0xf]
      %v595 = vld [vmem:[%s3 + $0x2c] sm:$0xf]
      %v596 = vld [vmem:[%s3 + $0x30] sm:$0xf]
      %v597 = vld [vmem:[%s3 + $0x34] sm:$0xf]
      %v598 = vld [vmem:[%s3 + $0x38] sm:$0xf]
      %v599 = vld [vmem:[%s3 + $0x3c] sm:$0xf]
      %s600 = scalar_lea.vmem %s3, 64
      %v601 = vld [vmem:[%s600] sm:$0xf]
      %v602 = vld [vmem:[%s600 + $0x4] sm:$0xf]
      %v603 = vld [vmem:[%s600 + $0x8] sm:$0xf]
      %v604 = vld [vmem:[%s600 + $0xc] sm:$0xf]
      %v605 = vld [vmem:[%s600 + $0x10] sm:$0xf]
      %v606 = vld [vmem:[%s600 + $0x14] sm:$0xf]
      %v607 = vld [vmem:[%s600 + $0x18] sm:$0xf]
      %v608 = vld [vmem:[%s600 + $0x1c] sm:$0xf]
      %v609 = vld [vmem:[%s600 + $0x20] sm:$0xf]
      %v610 = vld [vmem:[%s600 + $0x24] sm:$0xf]
      %v611 = vld [vmem:[%s600 + $0x28] sm:$0xf]
      %v612 = vld [vmem:[%s600 + $0x2c] sm:$0xf]
      %v613 = vld [vmem:[%s600 + $0x30] sm:$0xf]
      %v614 = vld [vmem:[%s600 + $0x34] sm:$0xf]
      %v615 = vld [vmem:[%s600 + $0x38] sm:$0xf]
      %v616 = vld [vmem:[%s600 + $0x3c] sm:$0xf]
      %v633 = vunpack.c.l.b16 %v601
      %v634 = vunpack.c.l.b16 %v602
      %v635 = vunpack.c.l.b16 %v603
      %v636 = vunpack.c.l.b16 %v604
      %v637 = vunpack.c.l.b16 %v605
      %v638 = vunpack.c.l.b16 %v606
      %v639 = vunpack.c.l.b16 %v607
      %v640 = vunpack.c.l.b16 %v608
      %v641 = vunpack.c.l.b16 %v609
      %v642 = vunpack.c.l.b16 %v610
      %v643 = vunpack.c.l.b16 %v611
      %v644 = vunpack.c.l.b16 %v612
      %v645 = vunpack.c.l.b16 %v613
      %v646 = vunpack.c.l.b16 %v614
      %v647 = vunpack.c.l.b16 %v615
      %v648 = vunpack.c.l.b16 %v616
      %v649 = vpack.c.b16 %v634, %v633
      %v650 = vpack.c.b16 %v636, %v635
      %v651 = vpack.c.b16 %v638, %v637
      %v652 = vpack.c.b16 %v640, %v639
      %v653 = vpack.c.b16 %v642, %v641
      %v654 = vpack.c.b16 %v644, %v643
      %v655 = vpack.c.b16 %v646, %v645
      %v656 = vpack.c.b16 %v648, %v647
      %665 = vmatprep.subr.bf16.mxu0 0
      %666 = vmatpush1.bf16.msra.mxu0 %v649
      %667 = vmatprep.subr.bf16.mxu0 0
      %668 = vmatpush1.bf16.msra.mxu0 %v650
      %669 = vmatprep.subr.bf16.mxu0 0
      %670 = vmatpush1.bf16.msra.mxu0 %v651
      %671 = vmatprep.subr.bf16.mxu0 0
      %672 = vmatpush1.bf16.msra.mxu0 %v652
      %673 = vmatprep.subr.bf16.mxu0 0
      %674 = vmatpush1.bf16.msra.mxu0 %v653
      %675 = vmatprep.subr.bf16.mxu0 0
      %676 = vmatpush1.bf16.msra.mxu0 %v654
      %677 = vmatprep.subr.bf16.mxu0 0
      %678 = vmatpush1.bf16.msra.mxu0 %v655
      %679 = vmatprep.subr.bf16.mxu0 0
      %680 = vmatpush1.bf16.msra.mxu0 %v656
      %681 = vmatprep.subr.bf16.mxu0 0
      %682 = vmatpush1.bf16.msra.mxu0 0
      %683 = vmatprep.subr.bf16.mxu0 0
      %684 = vmatpush1.bf16.msra.mxu0 0
      %685 = vmatprep.subr.bf16.mxu0 0
      %686 = vmatpush1.bf16.msra.mxu0 0
      %687 = vmatprep.subr.bf16.mxu0 0
      %688 = vmatpush1.bf16.msra.mxu0 0
      %689 = vmatprep.subr.bf16.mxu0 0
      %690 = vmatpush1.bf16.msra.mxu0 0
      %691 = vmatprep.subr.bf16.mxu0 0
      %692 = vmatpush1.bf16.msra.mxu0 0
      %693 = vmatprep.subr.bf16.mxu0 0
      %694 = vmatpush1.bf16.msra.mxu0 0
      %695 = vmatprep.subr.bf16.mxu0 0
      %696 = vmatpush1.bf16.msra.mxu0 0
      %697 = vmatprep.mubr.bf16.mxu0 0
      %698 = vmatmul.mubr.bf16.gmra.mrb[0].mxu0 %v583
      %v699 = vpop.f32.mrb[0].mxu0
      %v700 = vadd.f32 0.0, %v699
      %v701 = vpop.f32.mrb[0].mxu0
      %v702 = vpop.f32.mrb[0].mxu0
      %v703 = vpop.f32.mrb[0].mxu0
      %704 = vdwg.mxu0
      %v721 = vunpack.c.l.b16 %v584
      %v722 = vunpack.c.l.b16 %v585
      %v723 = vunpack.c.l.b16 %v586
      %v724 = vunpack.c.l.b16 %v587
      %v725 = vunpack.c.l.b16 %v588
      %v726 = vunpack.c.l.b16 %v589
      %v727 = vunpack.c.l.b16 %v590
      %v728 = vunpack.c.l.b16 %v591
      %v729 = vunpack.c.l.b16 %v592
      %v730 = vunpack.c.l.b16 %v593
      %v731 = vunpack.c.l.b16 %v594
      %v732 = vunpack.c.l.b16 %v595
      %v733 = vunpack.c.l.b16 %v596
      %v734 = vunpack.c.l.b16 %v597
      %v735 = vunpack.c.l.b16 %v598
      %v736 = vunpack.c.l.b16 %v599
      %v737 = vpack.c.b16 %v722, %v721
      %v738 = vpack.c.b16 %v724, %v723
      %v739 = vpack.c.b16 %v726, %v725
      %v740 = vpack.c.b16 %v728, %v727
      %v741 = vpack.c.b16 %v730, %v729
      %v742 = vpack.c.b16 %v732, %v731
      %v743 = vpack.c.b16 %v734, %v733
      %v744 = vpack.c.b16 %v736, %v735
      %753 = vmatprep.subr.bf16.mxu0 0
      %754 = vmatpush1.bf16.msra.mxu0 %v737
      %755 = vmatprep.subr.bf16.mxu0 0
      %756 = vmatpush1.bf16.msra.mxu0 %v738
      %757 = vmatprep.subr.bf16.mxu0 0
      %758 = vmatpush1.bf16.msra.mxu0 %v739
      %759 = vmatprep.subr.bf16.mxu0 0
      %760 = vmatpush1.bf16.msra.mxu0 %v740
      %761 = vmatprep.subr.bf16.mxu0 0
      %762 = vmatpush1.bf16.msra.mxu0 %v741
      %763 = vmatprep.subr.bf16.mxu0 0
      %764 = vmatpush1.bf16.msra.mxu0 %v742
      %765 = vmatprep.subr.bf16.mxu0 0
      %766 = vmatpush1.bf16.msra.mxu0 %v743
      %767 = vmatprep.subr.bf16.mxu0 0
      %768 = vmatpush1.bf16.msra.mxu0 %v744
      %769 = vmatprep.subr.bf16.mxu0 0
      %770 = vmatpush1.bf16.msra.mxu0 0
      %771 = vmatprep.subr.bf16.mxu0 0
      %772 = vmatpush1.bf16.msra.mxu0 0
      %773 = vmatprep.subr.bf16.mxu0 0
      %774 = vmatpush1.bf16.msra.mxu0 0
      %775 = vmatprep.subr.bf16.mxu0 0
      %776 = vmatpush1.bf16.msra.mxu0 0
      %777 = vmatprep.subr.bf16.mxu0 0
      %778 = vmatpush1.bf16.msra.mxu0 0
      %779 = vmatprep.subr.bf16.mxu0 0
      %780 = vmatpush1.bf16.msra.mxu0 0
      %781 = vmatprep.subr.bf16.mxu0 0
      %782 = vmatpush1.bf16.msra.mxu0 0
      %783 = vmatprep.subr.bf16.mxu0 0
      %784 = vmatpush1.bf16.msra.mxu0 0
      %785 = vmatprep.mubr.bf16.mxu0 0
      %786 = vmatmul.mubr.bf16.gmra.mrb[0].mxu0 %v580
      %v787 = vpop.f32.mrb[0].mxu0
      %v788 = vadd.f32 %v700, %v787
      %v789 = vpop.f32.mrb[0].mxu0
      %v790 = vpop.f32.mrb[0].mxu0
      %v791 = vpop.f32.mrb[0].mxu0
      %792 = vdwg.mxu0
      %s793 = scalar_lea.vmem %s3, 128
      %v794 = vld [vmem:[%s793] sm:$0xf]
      %v795 = vld [vmem:[%s793 + $0x4] sm:$0xf]
      %v796 = vld [vmem:[%s793 + $0x8] sm:$0xf]
      %v797 = vld [vmem:[%s793 + $0xc] sm:$0xf]
      %v798 = vld [vmem:[%s793 + $0x10] sm:$0xf]
      %v799 = vld [vmem:[%s793 + $0x14] sm:$0xf]
      %v800 = vld [vmem:[%s793 + $0x18] sm:$0xf]
      %v801 = vld [vmem:[%s793 + $0x1c] sm:$0xf]
      %v802 = vld [vmem:[%s793 + $0x20] sm:$0xf]
      %v803 = vld [vmem:[%s793 + $0x24] sm:$0xf]
      %v804 = vld [vmem:[%s793 + $0x28] sm:$0xf]
      %v805 = vld [vmem:[%s793 + $0x2c] sm:$0xf]
      %v806 = vld [vmem:[%s793 + $0x30] sm:$0xf]
      %v807 = vld [vmem:[%s793 + $0x34] sm:$0xf]
      %v808 = vld [vmem:[%s793 + $0x38] sm:$0xf]
      %v809 = vld [vmem:[%s793 + $0x3c] sm:$0xf]
      %v826 = vunpack.c.l.b16 %v794
      %v827 = vunpack.c.l.b16 %v795
      %v828 = vunpack.c.l.b16 %v796
      %v829 = vunpack.c.l.b16 %v797
      %v830 = vunpack.c.l.b16 %v798
      %v831 = vunpack.c.l.b16 %v799
      %v832 = vunpack.c.l.b16 %v800
      %v833 = vunpack.c.l.b16 %v801
      %v834 = vunpack.c.l.b16 %v802
      %v835 = vunpack.c.l.b16 %v803
      %v836 = vunpack.c.l.b16 %v804
      %v837 = vunpack.c.l.b16 %v805
      %v838 = vunpack.c.l.b16 %v806
      %v839 = vunpack.c.l.b16 %v807
      %v840 = vunpack.c.l.b16 %v808
      %v841 = vunpack.c.l.b16 %v809
      %v842 = vpack.c.b16 %v827, %v826
      %v843 = vpack.c.b16 %v829, %v828
      %v844 = vpack.c.b16 %v831, %v830
      %v845 = vpack.c.b16 %v833, %v832
      %v846 = vpack.c.b16 %v835, %v834
      %v847 = vpack.c.b16 %v837, %v836
      %v848 = vpack.c.b16 %v839, %v838
      %v849 = vpack.c.b16 %v841, %v840
      %858 = vmatprep.subr.bf16.mxu0 0
      %859 = vmatpush1.bf16.msra.mxu0 %v842
      %860 = vmatprep.subr.bf16.mxu0 0
      %861 = vmatpush1.bf16.msra.mxu0 %v843
      %862 = vmatprep.subr.bf16.mxu0 0
      %863 = vmatpush1.bf16.msra.mxu0 %v844
      %864 = vmatprep.subr.bf16.mxu0 0
      %865 = vmatpush1.bf16.msra.mxu0 %v845
      %866 = vmatprep.subr.bf16.mxu0 0
      %867 = vmatpush1.bf16.msra.mxu0 %v846
      %868 = vmatprep.subr.bf16.mxu0 0
      %869 = vmatpush1.bf16.msra.mxu0 %v847
      %870 = vmatprep.subr.bf16.mxu0 0
      %871 = vmatpush1.bf16.msra.mxu0 %v848
      %872 = vmatprep.subr.bf16.mxu0 0
      %873 = vmatpush1.bf16.msra.mxu0 %v849
      %874 = vmatprep.subr.bf16.mxu0 0
      %875 = vmatpush1.bf16.msra.mxu0 0
      %876 = vmatprep.subr.bf16.mxu0 0
      %877 = vmatpush1.bf16.msra.mxu0 0
      %878 = vmatprep.subr.bf16.mxu0 0
      %879 = vmatpush1.bf16.msra.mxu0 0
      %880 = vmatprep.subr.bf16.mxu0 0
      %881 = vmatpush1.bf16.msra.mxu0 0
      %882 = vmatprep.subr.bf16.mxu0 0
      %883 = vmatpush1.bf16.msra.mxu0 0
      %884 = vmatprep.subr.bf16.mxu0 0
      %885 = vmatpush1.bf16.msra.mxu0 0
      %886 = vmatprep.subr.bf16.mxu0 0
      %887 = vmatpush1.bf16.msra.mxu0 0
      %888 = vmatprep.subr.bf16.mxu0 0
      %889 = vmatpush1.bf16.msra.mxu0 0
      %890 = vmatprep.mubr.bf16.mxu0 0
      %891 = vmatmul.mubr.bf16.gmra.mrb[0].mxu0 %v582
      %v892 = vpop.f32.mrb[0].mxu0
      %v893 = vadd.f32 0.0, %v892
      %v894 = vpop.f32.mrb[0].mxu0
      %v895 = vpop.f32.mrb[0].mxu0
      %v896 = vpop.f32.mrb[0].mxu0
      %897 = vdwg.mxu0
      %v898 = vadd.f32 %v788, %v893
      %v899 = vld [vmem:[%s4] sm:$0x1]
      %v901 = vlaneseq
      %v902 = vshrl.u32 %v901, 7
      %v903 = vsub.s32 0, %v902
      %v904 = vrot.slane %v899, %v903
      %v906 = vadd.f32 %v898, %v904
      %v907 = vmax.f32 %v906, 0.0
      %908 = vst [vmem:[#allocation2 + $0x8] sm:$0x7f] %v907
      %v909 = vld [vmem:[#allocation2 + $0x7] sm:$0x7f]
      %v910 = vpack.c.bf16 %v909, %v909
      %v911 = vld [vmem:[#allocation2 + $0x9] sm:$0x7f]
      %v912 = vpack.c.bf16 %v911, %v911
      %v913 = vpack.c.bf16 %v907, %v907
      %v914 = vld [vmem:[%s5] sm:$0xf]
      %v915 = vld [vmem:[%s5 + $0x4] sm:$0xf]
      %v916 = vld [vmem:[%s5 + $0x8] sm:$0xf]
      %v917 = vld [vmem:[%s5 + $0xc] sm:$0xf]
      %v918 = vld [vmem:[%s5 + $0x10] sm:$0xf]
      %v919 = vld [vmem:[%s5 + $0x14] sm:$0xf]
      %v920 = vld [vmem:[%s5 + $0x18] sm:$0xf]
      %v921 = vld [vmem:[%s5 + $0x1c] sm:$0xf]
      %v922 = vld [vmem:[%s5 + $0x20] sm:$0xf]
      %v923 = vld [vmem:[%s5 + $0x24] sm:$0xf]
      %v924 = vld [vmem:[%s5 + $0x28] sm:$0xf]
      %v925 = vld [vmem:[%s5 + $0x2c] sm:$0xf]
      %v926 = vld [vmem:[%s5 + $0x30] sm:$0xf]
      %v927 = vld [vmem:[%s5 + $0x34] sm:$0xf]
      %v928 = vld [vmem:[%s5 + $0x38] sm:$0xf]
      %v929 = vld [vmem:[%s5 + $0x3c] sm:$0xf]
      %s930 = scalar_lea.vmem %s5, 64
      %v931 = vld [vmem:[%s930] sm:$0xf]
      %v932 = vld [vmem:[%s930 + $0x4] sm:$0xf]
      %v933 = vld [vmem:[%s930 + $0x8] sm:$0xf]
      %v934 = vld [vmem:[%s930 + $0xc] sm:$0xf]
      %v935 = vld [vmem:[%s930 + $0x10] sm:$0xf]
      %v936 = vld [vmem:[%s930 + $0x14] sm:$0xf]
      %v937 = vld [vmem:[%s930 + $0x18] sm:$0xf]
      %v938 = vld [vmem:[%s930 + $0x1c] sm:$0xf]
      %v939 = vld [vmem:[%s930 + $0x20] sm:$0xf]
      %v940 = vld [vmem:[%s930 + $0x24] sm:$0xf]
      %v941 = vld [vmem:[%s930 + $0x28] sm:$0xf]
      %v942 = vld [vmem:[%s930 + $0x2c] sm:$0xf]
      %v943 = vld [vmem:[%s930 + $0x30] sm:$0xf]
      %v944 = vld [vmem:[%s930 + $0x34] sm:$0xf]
      %v945 = vld [vmem:[%s930 + $0x38] sm:$0xf]
      %v946 = vld [vmem:[%s930 + $0x3c] sm:$0xf]
      %v963 = vunpack.c.l.b16 %v931
      %v964 = vunpack.c.l.b16 %v932
      %v965 = vunpack.c.l.b16 %v933
      %v966 = vunpack.c.l.b16 %v934
      %v967 = vunpack.c.l.b16 %v935
      %v968 = vunpack.c.l.b16 %v936
      %v969 = vunpack.c.l.b16 %v937
      %v970 = vunpack.c.l.b16 %v938
      %v971 = vunpack.c.l.b16 %v939
      %v972 = vunpack.c.l.b16 %v940
      %v973 = vunpack.c.l.b16 %v941
      %v974 = vunpack.c.l.b16 %v942
      %v975 = vunpack.c.l.b16 %v943
      %v976 = vunpack.c.l.b16 %v944
      %v977 = vunpack.c.l.b16 %v945
      %v978 = vunpack.c.l.b16 %v946
      %v979 = vpack.c.b16 %v964, %v963
      %v980 = vpack.c.b16 %v966, %v965
      %v981 = vpack.c.b16 %v968, %v967
      %v982 = vpack.c.b16 %v970, %v969
      %v983 = vpack.c.b16 %v972, %v971
      %v984 = vpack.c.b16 %v974, %v973
      %v985 = vpack.c.b16 %v976, %v975
      %v986 = vpack.c.b16 %v978, %v977
      %995 = vmatprep.subr.bf16.mxu0 0
      %996 = vmatpush1.bf16.msra.mxu0 %v979
      %997 = vmatprep.subr.bf16.mxu0 0
      %998 = vmatpush1.bf16.msra.mxu0 %v980
      %999 = vmatprep.subr.bf16.mxu0 0
      %1000 = vmatpush1.bf16.msra.mxu0 %v981
      %1001 = vmatprep.subr.bf16.mxu0 0
      %1002 = vmatpush1.bf16.msra.mxu0 %v982
      %1003 = vmatprep.subr.bf16.mxu0 0
      %1004 = vmatpush1.bf16.msra.mxu0 %v983
      %1005 = vmatprep.subr.bf16.mxu0 0
      %1006 = vmatpush1.bf16.msra.mxu0 %v984
      %1007 = vmatprep.subr.bf16.mxu0 0
      %1008 = vmatpush1.bf16.msra.mxu0 %v985
      %1009 = vmatprep.subr.bf16.mxu0 0
      %1010 = vmatpush1.bf16.msra.mxu0 %v986
      %1011 = vmatprep.subr.bf16.mxu0 0
      %1012 = vmatpush1.bf16.msra.mxu0 0
      %1013 = vmatprep.subr.bf16.mxu0 0
      %1014 = vmatpush1.bf16.msra.mxu0 0
      %1015 = vmatprep.subr.bf16.mxu0 0
      %1016 = vmatpush1.bf16.msra.mxu0 0
      %1017 = vmatprep.subr.bf16.mxu0 0
      %1018 = vmatpush1.bf16.msra.mxu0 0
      %1019 = vmatprep.subr.bf16.mxu0 0
      %1020 = vmatpush1.bf16.msra.mxu0 0
      %1021 = vmatprep.subr.bf16.mxu0 0
      %1022 = vmatpush1.bf16.msra.mxu0 0
      %1023 = vmatprep.subr.bf16.mxu0 0
      %1024 = vmatpush1.bf16.msra.mxu0 0
      %1025 = vmatprep.subr.bf16.mxu0 0
      %1026 = vmatpush1.bf16.msra.mxu0 0
      %1027 = vmatprep.mubr.bf16.mxu0 0
      %1028 = vmatmul.mubr.bf16.gmra.mrb[0].mxu0 %v913
      %v1029 = vpop.f32.mrb[0].mxu0
      %v1030 = vadd.f32 0.0, %v1029
      %v1031 = vpop.f32.mrb[0].mxu0
      %v1032 = vpop.f32.mrb[0].mxu0
      %v1033 = vpop.f32.mrb[0].mxu0
      %1034 = vdwg.mxu0
      %v1051 = vunpack.c.l.b16 %v914
      %v1052 = vunpack.c.l.b16 %v915
      %v1053 = vunpack.c.l.b16 %v916
      %v1054 = vunpack.c.l.b16 %v917
      %v1055 = vunpack.c.l.b16 %v918
      %v1056 = vunpack.c.l.b16 %v919
      %v1057 = vunpack.c.l.b16 %v920
      %v1058 = vunpack.c.l.b16 %v921
      %v1059 = vunpack.c.l.b16 %v922
      %v1060 = vunpack.c.l.b16 %v923
      %v1061 = vunpack.c.l.b16 %v924
      %v1062 = vunpack.c.l.b16 %v925
      %v1063 = vunpack.c.l.b16 %v926
      %v1064 = vunpack.c.l.b16 %v927
      %v1065 = vunpack.c.l.b16 %v928
      %v1066 = vunpack.c.l.b16 %v929
      %v1067 = vpack.c.b16 %v1052, %v1051
      %v1068 = vpack.c.b16 %v1054, %v1053
      %v1069 = vpack.c.b16 %v1056, %v1055
      %v1070 = vpack.c.b16 %v1058, %v1057
      %v1071 = vpack.c.b16 %v1060, %v1059
      %v1072 = vpack.c.b16 %v1062, %v1061
      %v1073 = vpack.c.b16 %v1064, %v1063
      %v1074 = vpack.c.b16 %v1066, %v1065
      %1083 = vmatprep.subr.bf16.mxu0 0
      %1084 = vmatpush1.bf16.msra.mxu0 %v1067
      %1085 = vmatprep.subr.bf16.mxu0 0
      %1086 = vmatpush1.bf16.msra.mxu0 %v1068
      %1087 = vmatprep.subr.bf16.mxu0 0
      %1088 = vmatpush1.bf16.msra.mxu0 %v1069
      %1089 = vmatprep.subr.bf16.mxu0 0
      %1090 = vmatpush1.bf16.msra.mxu0 %v1070
      %1091 = vmatprep.subr.bf16.mxu0 0
      %1092 = vmatpush1.bf16.msra.mxu0 %v1071
      %1093 = vmatprep.subr.bf16.mxu0 0
      %1094 = vmatpush1.bf16.msra.mxu0 %v1072
      %1095 = vmatprep.subr.bf16.mxu0 0
      %1096 = vmatpush1.bf16.msra.mxu0 %v1073
      %1097 = vmatprep.subr.bf16.mxu0 0
      %1098 = vmatpush1.bf16.msra.mxu0 %v1074
      %1099 = vmatprep.subr.bf16.mxu0 0
      %1100 = vmatpush1.bf16.msra.mxu0 0
      %1101 = vmatprep.subr.bf16.mxu0 0
      %1102 = vmatpush1.bf16.msra.mxu0 0
      %1103 = vmatprep.subr.bf16.mxu0 0
      %1104 = vmatpush1.bf16.msra.mxu0 0
      %1105 = vmatprep.subr.bf16.mxu0 0
      %1106 = vmatpush1.bf16.msra.mxu0 0
      %1107 = vmatprep.subr.bf16.mxu0 0
      %1108 = vmatpush1.bf16.msra.mxu0 0
      %1109 = vmatprep.subr.bf16.mxu0 0
      %1110 = vmatpush1.bf16.msra.mxu0 0
      %1111 = vmatprep.subr.bf16.mxu0 0
      %1112 = vmatpush1.bf16.msra.mxu0 0
      %1113 = vmatprep.subr.bf16.mxu0 0
      %1114 = vmatpush1.bf16.msra.mxu0 0
      %1115 = vmatprep.mubr.bf16.mxu0 0
      %1116 = vmatmul.mubr.bf16.gmra.mrb[0].mxu0 %v910
      %v1117 = vpop.f32.mrb[0].mxu0
      %v1118 = vadd.f32 %v1030, %v1117
      %v1119 = vpop.f32.mrb[0].mxu0
      %v1120 = vpop.f32.mrb[0].mxu0
      %v1121 = vpop.f32.mrb[0].mxu0
      %1122 = vdwg.mxu0
      %s1123 = scalar_lea.vmem %s5, 128
      %v1124 = vld [vmem:[%s1123] sm:$0xf]
      %v1125 = vld [vmem:[%s1123 + $0x4] sm:$0xf]
      %v1126 = vld [vmem:[%s1123 + $0x8] sm:$0xf]
      %v1127 = vld [vmem:[%s1123 + $0xc] sm:$0xf]
      %v1128 = vld [vmem:[%s1123 + $0x10] sm:$0xf]
      %v1129 = vld [vmem:[%s1123 + $0x14] sm:$0xf]
      %v1130 = vld [vmem:[%s1123 + $0x18] sm:$0xf]
      %v1131 = vld [vmem:[%s1123 + $0x1c] sm:$0xf]
      %v1132 = vld [vmem:[%s1123 + $0x20] sm:$0xf]
      %v1133 = vld [vmem:[%s1123 + $0x24] sm:$0xf]
      %v1134 = vld [vmem:[%s1123 + $0x28] sm:$0xf]
      %v1135 = vld [vmem:[%s1123 + $0x2c] sm:$0xf]
      %v1136 = vld [vmem:[%s1123 + $0x30] sm:$0xf]
      %v1137 = vld [vmem:[%s1123 + $0x34] sm:$0xf]
      %v1138 = vld [vmem:[%s1123 + $0x38] sm:$0xf]
      %v1139 = vld [vmem:[%s1123 + $0x3c] sm:$0xf]
      %v1156 = vunpack.c.l.b16 %v1124
      %v1157 = vunpack.c.l.b16 %v1125
      %v1158 = vunpack.c.l.b16 %v1126
      %v1159 = vunpack.c.l.b16 %v1127
      %v1160 = vunpack.c.l.b16 %v1128
      %v1161 = vunpack.c.l.b16 %v1129
      %v1162 = vunpack.c.l.b16 %v1130
      %v1163 = vunpack.c.l.b16 %v1131
      %v1164 = vunpack.c.l.b16 %v1132
      %v1165 = vunpack.c.l.b16 %v1133
      %v1166 = vunpack.c.l.b16 %v1134
      %v1167 = vunpack.c.l.b16 %v1135
      %v1168 = vunpack.c.l.b16 %v1136
      %v1169 = vunpack.c.l.b16 %v1137
      %v1170 = vunpack.c.l.b16 %v1138
      %v1171 = vunpack.c.l.b16 %v1139
      %v1172 = vpack.c.b16 %v1157, %v1156
      %v1173 = vpack.c.b16 %v1159, %v1158
      %v1174 = vpack.c.b16 %v1161, %v1160
      %v1175 = vpack.c.b16 %v1163, %v1162
      %v1176 = vpack.c.b16 %v1165, %v1164
      %v1177 = vpack.c.b16 %v1167, %v1166
      %v1178 = vpack.c.b16 %v1169, %v1168
      %v1179 = vpack.c.b16 %v1171, %v1170
      %1188 = vmatprep.subr.bf16.mxu0 0
      %1189 = vmatpush1.bf16.msra.mxu0 %v1172
      %1190 = vmatprep.subr.bf16.mxu0 0
      %1191 = vmatpush1.bf16.msra.mxu0 %v1173
      %1192 = vmatprep.subr.bf16.mxu0 0
      %1193 = vmatpush1.bf16.msra.mxu0 %v1174
      %1194 = vmatprep.subr.bf16.mxu0 0
      %1195 = vmatpush1.bf16.msra.mxu0 %v1175
      %1196 = vmatprep.subr.bf16.mxu0 0
      %1197 = vmatpush1.bf16.msra.mxu0 %v1176
      %1198 = vmatprep.subr.bf16.mxu0 0
      %1199 = vmatpush1.bf16.msra.mxu0 %v1177
      %1200 = vmatprep.subr.bf16.mxu0 0
      %1201 = vmatpush1.bf16.msra.mxu0 %v1178
      %1202 = vmatprep.subr.bf16.mxu0 0
      %1203 = vmatpush1.bf16.msra.mxu0 %v1179
      %1204 = vmatprep.subr.bf16.mxu0 0
      %1205 = vmatpush1.bf16.msra.mxu0 0
      %1206 = vmatprep.subr.bf16.mxu0 0
      %1207 = vmatpush1.bf16.msra.mxu0 0
      %1208 = vmatprep.subr.bf16.mxu0 0
      %1209 = vmatpush1.bf16.msra.mxu0 0
      %1210 = vmatprep.subr.bf16.mxu0 0
      %1211 = vmatpush1.bf16.msra.mxu0 0
      %1212 = vmatprep.subr.bf16.mxu0 0
      %1213 = vmatpush1.bf16.msra.mxu0 0
      %1214 = vmatprep.subr.bf16.mxu0 0
      %1215 = vmatpush1.bf16.msra.mxu0 0
      %1216 = vmatprep.subr.bf16.mxu0 0
      %1217 = vmatpush1.bf16.msra.mxu0 0
      %1218 = vmatprep.subr.bf16.mxu0 0
      %1219 = vmatpush1.bf16.msra.mxu0 0
      %1220 = vmatprep.mubr.bf16.mxu0 0
      %1221 = vmatmul.mubr.bf16.gmra.mrb[0].mxu0 %v912
      %v1222 = vpop.f32.mrb[0].mxu0
      %v1223 = vadd.f32 0.0, %v1222
      %v1224 = vpop.f32.mrb[0].mxu0
      %v1225 = vpop.f32.mrb[0].mxu0
      %v1226 = vpop.f32.mrb[0].mxu0
      %1227 = vdwg.mxu0
      %v1228 = vadd.f32 %v1118, %v1223
      %v1229 = vld [vmem:[%s6] sm:$0x1]
      %v1231 = vlaneseq
      %v1232 = vshrl.u32 %v1231, 7
      %v1233 = vsub.s32 0, %v1232
      %v1234 = vrot.slane %v1229, %v1233
      %v1236 = vadd.f32 %v1228, %v1234
      %v1237 = vmax.f32 %v1236, 0.0
      %1238 = vst [vmem:[#allocation2 + $0x8] sm:$0x7f] %v1237
      %v1239 = vld [vmem:[#allocation2 + $0x7] sm:$0x7f]
      %v1240 = vpack.c.bf16 %v1239, %v1239
      %v1241 = vld [vmem:[#allocation2 + $0x9] sm:$0x7f]
      %v1242 = vpack.c.bf16 %v1241, %v1241
      %v1243 = vpack.c.bf16 %v1237, %v1237
      %v1244 = vld [vmem:[%s7] sm:$0xf]
      %v1245 = vld [vmem:[%s7 + $0x4] sm:$0xf]
      %v1246 = vld [vmem:[%s7 + $0x8] sm:$0xf]
      %v1247 = vld [vmem:[%s7 + $0xc] sm:$0xf]
      %v1248 = vld [vmem:[%s7 + $0x10] sm:$0xf]
      %v1249 = vld [vmem:[%s7 + $0x14] sm:$0xf]
      %v1250 = vld [vmem:[%s7 + $0x18] sm:$0xf]
      %v1251 = vld [vmem:[%s7 + $0x1c] sm:$0xf]
      %v1252 = vld [vmem:[%s7 + $0x20] sm:$0xf]
      %v1253 = vld [vmem:[%s7 + $0x24] sm:$0xf]
      %v1254 = vld [vmem:[%s7 + $0x28] sm:$0xf]
      %v1255 = vld [vmem:[%s7 + $0x2c] sm:$0xf]
      %v1256 = vld [vmem:[%s7 + $0x30] sm:$0xf]
      %v1257 = vld [vmem:[%s7 + $0x34] sm:$0xf]
      %v1258 = vld [vmem:[%s7 + $0x38] sm:$0xf]
      %v1259 = vld [vmem:[%s7 + $0x3c] sm:$0xf]
      %s1260 = scalar_lea.vmem %s7, 64
      %v1261 = vld [vmem:[%s1260] sm:$0xf]
      %v1262 = vld [vmem:[%s1260 + $0x4] sm:$0xf]
      %v1263 = vld [vmem:[%s1260 + $0x8] sm:$0xf]
      %v1264 = vld [vmem:[%s1260 + $0xc] sm:$0xf]
      %v1265 = vld [vmem:[%s1260 + $0x10] sm:$0xf]
      %v1266 = vld [vmem:[%s1260 + $0x14] sm:$0xf]
      %v1267 = vld [vmem:[%s1260 + $0x18] sm:$0xf]
      %v1268 = vld [vmem:[%s1260 + $0x1c] sm:$0xf]
      %v1269 = vld [vmem:[%s1260 + $0x20] sm:$0xf]
      %v1270 = vld [vmem:[%s1260 + $0x24] sm:$0xf]
      %v1271 = vld [vmem:[%s1260 + $0x28] sm:$0xf]
      %v1272 = vld [vmem:[%s1260 + $0x2c] sm:$0xf]
      %v1273 = vld [vmem:[%s1260 + $0x30] sm:$0xf]
      %v1274 = vld [vmem:[%s1260 + $0x34] sm:$0xf]
      %v1275 = vld [vmem:[%s1260 + $0x38] sm:$0xf]
      %v1276 = vld [vmem:[%s1260 + $0x3c] sm:$0xf]
      %v1293 = vunpack.c.l.b16 %v1261
      %v1294 = vunpack.c.l.b16 %v1262
      %v1295 = vunpack.c.l.b16 %v1263
      %v1296 = vunpack.c.l.b16 %v1264
      %v1297 = vunpack.c.l.b16 %v1265
      %v1298 = vunpack.c.l.b16 %v1266
      %v1299 = vunpack.c.l.b16 %v1267
      %v1300 = vunpack.c.l.b16 %v1268
      %v1301 = vunpack.c.l.b16 %v1269
      %v1302 = vunpack.c.l.b16 %v1270
      %v1303 = vunpack.c.l.b16 %v1271
      %v1304 = vunpack.c.l.b16 %v1272
      %v1305 = vunpack.c.l.b16 %v1273
      %v1306 = vunpack.c.l.b16 %v1274
      %v1307 = vunpack.c.l.b16 %v1275
      %v1308 = vunpack.c.l.b16 %v1276
      %v1309 = vpack.c.b16 %v1294, %v1293
      %v1310 = vpack.c.b16 %v1296, %v1295
      %v1311 = vpack.c.b16 %v1298, %v1297
      %v1312 = vpack.c.b16 %v1300, %v1299
      %v1313 = vpack.c.b16 %v1302, %v1301
      %v1314 = vpack.c.b16 %v1304, %v1303
      %v1315 = vpack.c.b16 %v1306, %v1305
      %v1316 = vpack.c.b16 %v1308, %v1307
      %1325 = vmatprep.subr.bf16.mxu0 0
      %1326 = vmatpush1.bf16.msra.mxu0 %v1309
      %1327 = vmatprep.subr.bf16.mxu0 0
      %1328 = vmatpush1.bf16.msra.mxu0 %v1310
      %1329 = vmatprep.subr.bf16.mxu0 0
      %1330 = vmatpush1.bf16.msra.mxu0 %v1311
      %1331 = vmatprep.subr.bf16.mxu0 0
      %1332 = vmatpush1.bf16.msra.mxu0 %v1312
      %1333 = vmatprep.subr.bf16.mxu0 0
      %1334 = vmatpush1.bf16.msra.mxu0 %v1313
      %1335 = vmatprep.subr.bf16.mxu0 0
      %1336 = vmatpush1.bf16.msra.mxu0 %v1314
      %1337 = vmatprep.subr.bf16.mxu0 0
      %1338 = vmatpush1.bf16.msra.mxu0 %v1315
      %1339 = vmatprep.subr.bf16.mxu0 0
      %1340 = vmatpush1.bf16.msra.mxu0 %v1316
      %1341 = vmatprep.subr.bf16.mxu0 0
      %1342 = vmatpush1.bf16.msra.mxu0 0
      %1343 = vmatprep.subr.bf16.mxu0 0
      %1344 = vmatpush1.bf16.msra.mxu0 0
      %1345 = vmatprep.subr.bf16.mxu0 0
      %1346 = vmatpush1.bf16.msra.mxu0 0
      %1347 = vmatprep.subr.bf16.mxu0 0
      %1348 = vmatpush1.bf16.msra.mxu0 0
      %1349 = vmatprep.subr.bf16.mxu0 0
      %1350 = vmatpush1.bf16.msra.mxu0 0
      %1351 = vmatprep.subr.bf16.mxu0 0
      %1352 = vmatpush1.bf16.msra.mxu0 0
      %1353 = vmatprep.subr.bf16.mxu0 0
      %1354 = vmatpush1.bf16.msra.mxu0 0
      %1355 = vmatprep.subr.bf16.mxu0 0
      %1356 = vmatpush1.bf16.msra.mxu0 0
      %1357 = vmatprep.mubr.bf16.mxu0 0
      %1358 = vmatmul.mubr.bf16.gmra.mrb[0].mxu0 %v1243
      %v1359 = vpop.f32.mrb[0].mxu0
      %v1360 = vadd.f32 0.0, %v1359
      %v1361 = vpop.f32.mrb[0].mxu0
      %v1362 = vpop.f32.mrb[0].mxu0
      %v1363 = vpop.f32.mrb[0].mxu0
      %1364 = vdwg.mxu0
      %v1381 = vunpack.c.l.b16 %v1244
      %v1382 = vunpack.c.l.b16 %v1245
      %v1383 = vunpack.c.l.b16 %v1246
      %v1384 = vunpack.c.l.b16 %v1247
      %v1385 = vunpack.c.l.b16 %v1248
      %v1386 = vunpack.c.l.b16 %v1249
      %v1387 = vunpack.c.l.b16 %v1250
      %v1388 = vunpack.c.l.b16 %v1251
      %v1389 = vunpack.c.l.b16 %v1252
      %v1390 = vunpack.c.l.b16 %v1253
      %v1391 = vunpack.c.l.b16 %v1254
      %v1392 = vunpack.c.l.b16 %v1255
      %v1393 = vunpack.c.l.b16 %v1256
      %v1394 = vunpack.c.l.b16 %v1257
      %v1395 = vunpack.c.l.b16 %v1258
      %v1396 = vunpack.c.l.b16 %v1259
      %v1397 = vpack.c.b16 %v1382, %v1381
      %v1398 = vpack.c.b16 %v1384, %v1383
      %v1399 = vpack.c.b16 %v1386, %v1385
      %v1400 = vpack.c.b16 %v1388, %v1387
      %v1401 = vpack.c.b16 %v1390, %v1389
      %v1402 = vpack.c.b16 %v1392, %v1391
      %v1403 = vpack.c.b16 %v1394, %v1393
      %v1404 = vpack.c.b16 %v1396, %v1395
      %1413 = vmatprep.subr.bf16.mxu0 0
      %1414 = vmatpush1.bf16.msra.mxu0 %v1397
      %1415 = vmatprep.subr.bf16.mxu0 0
      %1416 = vmatpush1.bf16.msra.mxu0 %v1398
      %1417 = vmatprep.subr.bf16.mxu0 0
      %1418 = vmatpush1.bf16.msra.mxu0 %v1399
      %1419 = vmatprep.subr.bf16.mxu0 0
      %1420 = vmatpush1.bf16.msra.mxu0 %v1400
      %1421 = vmatprep.subr.bf16.mxu0 0
      %1422 = vmatpush1.bf16.msra.mxu0 %v1401
      %1423 = vmatprep.subr.bf16.mxu0 0
      %1424 = vmatpush1.bf16.msra.mxu0 %v1402
      %1425 = vmatprep.subr.bf16.mxu0 0
      %1426 = vmatpush1.bf16.msra.mxu0 %v1403
      %1427 = vmatprep.subr.bf16.mxu0 0
      %1428 = vmatpush1.bf16.msra.mxu0 %v1404
      %1429 = vmatprep.subr.bf16.mxu0 0
      %1430 = vmatpush1.bf16.msra.mxu0 0
      %1431 = vmatprep.subr.bf16.mxu0 0
      %1432 = vmatpush1.bf16.msra.mxu0 0
      %1433 = vmatprep.subr.bf16.mxu0 0
      %1434 = vmatpush1.bf16.msra.mxu0 0
      %1435 = vmatprep.subr.bf16.mxu0 0
      %1436 = vmatpush1.bf16.msra.mxu0 0
      %1437 = vmatprep.subr.bf16.mxu0 0
      %1438 = vmatpush1.bf16.msra.mxu0 0
      %1439 = vmatprep.subr.bf16.mxu0 0
      %1440 = vmatpush1.bf16.msra.mxu0 0
      %1441 = vmatprep.subr.bf16.mxu0 0
      %1442 = vmatpush1.bf16.msra.mxu0 0
      %1443 = vmatprep.subr.bf16.mxu0 0
      %1444 = vmatpush1.bf16.msra.mxu0 0
      %1445 = vmatprep.mubr.bf16.mxu0 0
      %1446 = vmatmul.mubr.bf16.gmra.mrb[0].mxu0 %v1240
      %v1447 = vpop.f32.mrb[0].mxu0
      %v1448 = vadd.f32 %v1360, %v1447
      %v1449 = vpop.f32.mrb[0].mxu0
      %v1450 = vpop.f32.mrb[0].mxu0
      %v1451 = vpop.f32.mrb[0].mxu0
      %1452 = vdwg.mxu0
      %s1453 = scalar_lea.vmem %s7, 128
      %v1454 = vld [vmem:[%s1453] sm:$0xf]
      %v1455 = vld [vmem:[%s1453 + $0x4] sm:$0xf]
      %v1456 = vld [vmem:[%s1453 + $0x8] sm:$0xf]
      %v1457 = vld [vmem:[%s1453 + $0xc] sm:$0xf]
      %v1458 = vld [vmem:[%s1453 + $0x10] sm:$0xf]
      %v1459 = vld [vmem:[%s1453 + $0x14] sm:$0xf]
      %v1460 = vld [vmem:[%s1453 + $0x18] sm:$0xf]
      %v1461 = vld [vmem:[%s1453 + $0x1c] sm:$0xf]
      %v1462 = vld [vmem:[%s1453 + $0x20] sm:$0xf]
      %v1463 = vld [vmem:[%s1453 + $0x24] sm:$0xf]
      %v1464 = vld [vmem:[%s1453 + $0x28] sm:$0xf]
      %v1465 = vld [vmem:[%s1453 + $0x2c] sm:$0xf]
      %v1466 = vld [vmem:[%s1453 + $0x30] sm:$0xf]
      %v1467 = vld [vmem:[%s1453 + $0x34] sm:$0xf]
      %v1468 = vld [vmem:[%s1453 + $0x38] sm:$0xf]
      %v1469 = vld [vmem:[%s1453 + $0x3c] sm:$0xf]
      %v1486 = vunpack.c.l.b16 %v1454
      %v1487 = vunpack.c.l.b16 %v1455
      %v1488 = vunpack.c.l.b16 %v1456
      %v1489 = vunpack.c.l.b16 %v1457
      %v1490 = vunpack.c.l.b16 %v1458
      %v1491 = vunpack.c.l.b16 %v1459
      %v1492 = vunpack.c.l.b16 %v1460
      %v1493 = vunpack.c.l.b16 %v1461
      %v1494 = vunpack.c.l.b16 %v1462
      %v1495 = vunpack.c.l.b16 %v1463
      %v1496 = vunpack.c.l.b16 %v1464
      %v1497 = vunpack.c.l.b16 %v1465
      %v1498 = vunpack.c.l.b16 %v1466
      %v1499 = vunpack.c.l.b16 %v1467
      %v1500 = vunpack.c.l.b16 %v1468
      %v1501 = vunpack.c.l.b16 %v1469
      %v1502 = vpack.c.b16 %v1487, %v1486
      %v1503 = vpack.c.b16 %v1489, %v1488
      %v1504 = vpack.c.b16 %v1491, %v1490
      %v1505 = vpack.c.b16 %v1493, %v1492
      %v1506 = vpack.c.b16 %v1495, %v1494
      %v1507 = vpack.c.b16 %v1497, %v1496
      %v1508 = vpack.c.b16 %v1499, %v1498
      %v1509 = vpack.c.b16 %v1501, %v1500
      %1518 = vmatprep.subr.bf16.mxu0 0
      %1519 = vmatpush1.bf16.msra.mxu0 %v1502
      %1520 = vmatprep.subr.bf16.mxu0 0
      %1521 = vmatpush1.bf16.msra.mxu0 %v1503
      %1522 = vmatprep.subr.bf16.mxu0 0
      %1523 = vmatpush1.bf16.msra.mxu0 %v1504
      %1524 = vmatprep.subr.bf16.mxu0 0
      %1525 = vmatpush1.bf16.msra.mxu0 %v1505
      %1526 = vmatprep.subr.bf16.mxu0 0
      %1527 = vmatpush1.bf16.msra.mxu0 %v1506
      %1528 = vmatprep.subr.bf16.mxu0 0
      %1529 = vmatpush1.bf16.msra.mxu0 %v1507
      %1530 = vmatprep.subr.bf16.mxu0 0
      %1531 = vmatpush1.bf16.msra.mxu0 %v1508
      %1532 = vmatprep.subr.bf16.mxu0 0
      %1533 = vmatpush1.bf16.msra.mxu0 %v1509
      %1534 = vmatprep.subr.bf16.mxu0 0
      %1535 = vmatpush1.bf16.msra.mxu0 0
      %1536 = vmatprep.subr.bf16.mxu0 0
      %1537 = vmatpush1.bf16.msra.mxu0 0
      %1538 = vmatprep.subr.bf16.mxu0 0
      %1539 = vmatpush1.bf16.msra.mxu0 0
      %1540 = vmatprep.subr.bf16.mxu0 0
      %1541 = vmatpush1.bf16.msra.mxu0 0
      %1542 = vmatprep.subr.bf16.mxu0 0
      %1543 = vmatpush1.bf16.msra.mxu0 0
      %1544 = vmatprep.subr.bf16.mxu0 0
      %1545 = vmatpush1.bf16.msra.mxu0 0
      %1546 = vmatprep.subr.bf16.mxu0 0
      %1547 = vmatpush1.bf16.msra.mxu0 0
      %1548 = vmatprep.subr.bf16.mxu0 0
      %1549 = vmatpush1.bf16.msra.mxu0 0
      %1550 = vmatprep.mubr.bf16.mxu0 0
      %1551 = vmatmul.mubr.bf16.gmra.mrb[0].mxu0 %v1242
      %v1552 = vpop.f32.mrb[0].mxu0
      %v1553 = vadd.f32 0.0, %v1552
      %v1554 = vpop.f32.mrb[0].mxu0
      %v1555 = vpop.f32.mrb[0].mxu0
      %v1556 = vpop.f32.mrb[0].mxu0
      %1557 = vdwg.mxu0
      %v1558 = vadd.f32 %v1448, %v1553
      %v1559 = vld [vmem:[%s8] sm:$0x1]
      %v1561 = vlaneseq
      %v1562 = vshrl.u32 %v1561, 7
      %v1563 = vsub.s32 0, %v1562
      %v1564 = vrot.slane %v1559, %v1563
      %v1566 = vadd.f32 %v1558, %v1564
      %v1567 = vmax.f32 %v1566, 0.0
      %v1568 = vpack.c.bf16 %v1567, %v1567
      %vm1569 = vcmask 1043456
      %vm1570 = vsmask.f32 3328
      %vm1571 = vmand %vm1569, %vm1570
      %v1572 = vld [vmem:[%s327] sm:$0xf]
      %v1573 = vsel %vm1571, %v1568, %v1572
      %1574 = vst [vmem:[%s327] sm:$0xf] %v1573
      %p1575 = scmp.lt.s32.totalorder %s20, 1
      %s1576 = scalar_select %p1575, %s20, 1
      %s1577 = smul.addr %s1576, 4
      %s1578 = scalar_lea.vmem %s9, %s1577
      // Predicated region
      $region57: #{m18_forward.8} parent=55 // pred_check
        %p1579 = pneg %p232
      $region58: #{m18_forward.8} parent=55 // pred_check_branch
        %1581 = sbr.rel (%p1579) target = $region60
      $region59: #{m18_forward.8} parent=55 // pred_region
        _
      $region60: #{m18_forward.8} parent=55 // pred_fallthru
        _
    $region56: #{m18_forward.8} parent=5 // pred_fallthru
      _
    %p1582 = scmp.le.s32.totalorder 2, %s15
    // Predicated region
    $region61: #{m18_forward.8} parent=5 // pred_check
      %p1583 = pneg %p1582
    $region62: #{m18_forward.8} parent=5 // pred_check_branch
      %1585 = sbr.rel (%p1583) target = $region64
    $region63: #{m18_forward.8} parent=5 // pred_region
      %s1586 = ssub.s32 %s15, 2
      // Predicated region
      $region65: #{m18_forward.8} parent=63 // pred_check
        %p1587 = pneg %p238
      $region66: #{m18_forward.8} parent=63 // pred_check_branch
        %1589 = sbr.rel (%p1587) target = $region68
      $region67: #{m18_forward.8} parent=63 // pred_region
        %p1590 = scmp.lt.s32.totalorder %s21, 1
        %s1591 = scalar_select %p1590, %s21, 1
        %s1592 = smul.addr %s1591, 4
        %s1593 = scalar_lea.vmem %s9, %s1592
      $region68: #{m18_forward.8} parent=63 // pred_fallthru
        _
    $region64: #{m18_forward.8} parent=5 // pred_fallthru
      _
  $region6: #{m18_forward.8} parent=0 // loop_footer
    %s19 = sadd.s32 1, %s15
  $region7: #{m18_forward.8} parent=0 // loop_footer_branch
    %14 = sbr.rel target = $region3
  $region8: #{m18_forward.8} parent=0 // loop_exit
    _

// kernel: m18_forward.9
$region0: #{m18_forward.9}
  #allocation0 [shape = 'u32[]', space=smem, size = 0x4, offset = 0x4, fixed_abs, tag = 'smem constant byte address 0x4 - core index']
  #allocation1 [shape = 'u32[144,128]{1,0:T(1,128)}', space=vmem, size = 0x12000, scoped, tag = 'internal scratch']
  #allocation2 [shape = 'f32[17,256]{1,0:T(8,128)}', space=vmem, size = 0x6000, scoped, tag = 'scratch operand']
  %s0 = inlined_call_operand.vmem [shape: bf16[2,1,128], index: 0, kind: input, shape index: {}]
  %s1 = inlined_call_operand.vmem [shape: bf16[3,128,256], index: 1, kind: input, shape index: {}]
  %s2 = inlined_call_operand.vmem [shape: f32[1,256], index: 2, kind: input, shape index: {}]
  %s3 = inlined_call_operand.vmem [shape: bf16[3,256,256], index: 3, kind: input, shape index: {}]
  %s4 = inlined_call_operand.vmem [shape: f32[1,256], index: 4, kind: input, shape index: {}]
  %s5 = inlined_call_operand.vmem [shape: bf16[3,256,256], index: 5, kind: input, shape index: {}]
  %s6 = inlined_call_operand.vmem [shape: f32[1,256], index: 6, kind: input, shape index: {}]
  %s7 = inlined_call_operand.vmem [shape: bf16[3,256,256], index: 7, kind: input, shape index: {}]
  %s8 = inlined_call_operand.vmem [shape: f32[1,256], index: 8, kind: input, shape index: {}]
  %s9 = inlined_call_operand.vmem [shape: f32[256,2], index: 9, kind: input, shape index: {}]
  %s10 = inlined_call_operand.vmem [shape: f32[1,2], index: 10, kind: input, shape index: {}]
  %s11 = inlined_call_operand.hbm [shape: f32[2,1,2], index: 11, kind: output, shape index: {}]
  %s12 = sld [smem:[#allocation0]]
  $region77: #{m18_forward.9} parent=0
    _
  %s14 = ssub.s32 1, %s12
  %s15 = scalar_select 0, %s14, %s12
  $region1: #{m18_forward.9} parent=0
    #allocation3 [shape = 'u8[1024]{0}', space=vmem, size = 0x400, scoped, tag = 'output window, operand 0']
    #allocation4 [shape = 's32[2]{0}', space=sflag, size = 0x8, scoped, tag = 'scoped memory for m18_forward.9']
    %16 = vsyncpa [#allocation4], 0
    %s17 = scalar_lea.sflag [#allocation4], 1
    %18 = vsyncpa %s17, 0
    loop: start=0, step=1, limit=4
    $region2: #{m18_forward.9} parent=1 // loop_pre_header
      _
    $region3: #{m18_forward.9} parent=1 // loop_header
      %s20 = sphi 0, %s24
      %p21 = scmp.ge.s32.totalorder %s20, 4
      %s30 = sphi 0, %s32
      %s33 = sphi 0, %s30
      %s34 = sphi 0, %s33
      %s50 = sphi 0, %s34
      %s54 = sphi 0, %s54
      %s56 = sphi 0, %s54
      %s57 = sphi 0, %s56
      %s71 = sphi 0, %s57
      %s75 = sphi 0, %s75
      %s77 = sphi 0, %s75
      %s78 = sphi 0, %s77
      %s92 = sphi 0, %s78
      %s96 = sphi 0, %s96
      %s98 = sphi 0, %s96
      %s99 = sphi 0, %s98
      %s113 = sphi 0, %s99
      %s117 = sphi 0, %s117
      %s119 = sphi 0, %s117
      %s120 = sphi 0, %s119
      %s134 = sphi 0, %s120
      %s138 = sphi 0, %s138
      %s140 = sphi 0, %s138
      %s141 = sphi 0, %s140
      %s155 = sphi 0, %s141
      %s159 = sphi 0, %s159
      %s161 = sphi 0, %s159
      %s162 = sphi 0, %s161
      %s176 = sphi 0, %s162
      %s180 = sphi 0, %s180
      %s182 = sphi 0, %s180
      %s183 = sphi 0, %s182
      %s197 = sphi 0, %s183
      %s201 = sphi 0, %s201
      %s203 = sphi 0, %s201
      %s204 = sphi 0, %s203
      %s218 = sphi 0, %s204
      %s222 = sphi 0, %s222
      %s224 = sphi 0, %s222
      %s225 = sphi 0, %s224
      %s239 = sphi 0, %s225
      %s243 = sphi 0, %s243
      %s245 = sphi 0, %s243
      %s246 = sphi 0, %s245
      %s260 = sphi 0, %s246
      %s266 = sphi 0, %s268
      %s269 = sphi 0, %s266
      %s270 = sphi 0, %s269
      %s286 = sphi 0, %s270
    $region4: #{m18_forward.9} parent=1 // loop_header_branch
      %23 = sbr.rel (%p21) target = $region8
    $region5: #{m18_forward.9} parent=1 // loop_body
      %s25 = ssub.s32 %s20, 1
      %s26 = ssub.s32 %s20, 2
      %s27 = sadd.s32 %s20, 1
      %s28 = ssub.s32 %s20, %s27
      %p29 = scmp.eq.s32.totalorder %s28, 0
      %s31 = sadd.s32 %s30, 1
      %s32 = scalar_select %p29, %s30, %s31
      %p35 = pneg %p29
      %p36 = scmp.eq.s32.totalorder %s20, 1
      %p37 = por %p35, %p36
      %p38 = scmp.ne.s32.totalorder %s30, %s33
      %p39 = scmp.eq.s32.totalorder %s20, 0
      %p40 = por %p38, %p39
      %p41 = scmp.ne.s32.totalorder %s30, %s33
      %p42 = scmp.eq.s32.totalorder %s25, 1
      %p43 = por %p41, %p42
      %p44 = scmp.ne.s32.totalorder %s33, %s34
      %p45 = scmp.eq.s32.totalorder %s25, 0
      %p46 = por %p44, %p45
      %p47 = scmp.ne.s32.totalorder %s33, %s34
      %p48 = scmp.eq.s32.totalorder %s26, 1
      %p49 = por %p47, %p48
      %p51 = scmp.ne.s32.totalorder %s34, %s50
      %p52 = scmp.eq.s32.totalorder %s26, 0
      %p53 = por %p51, %p52
      %s55 = sadd.s32 %s54, 1
      %p58 = scmp.eq.s32.totalorder %s20, 1
      %p59 = scmp.ne.s32.totalorder %s54, %s56
      %p60 = scmp.eq.s32.totalorder %s20, 0
      %p61 = por %p59, %p60
      %p62 = scmp.ne.s32.totalorder %s54, %s56
      %p63 = scmp.eq.s32.totalorder %s25, 1
      %p64 = por %p62, %p63
      %p65 = scmp.ne.s32.totalorder %s56, %s57
      %p66 = scmp.eq.s32.totalorder %s25, 0
      %p67 = por %p65, %p66
      %p68 = scmp.ne.s32.totalorder %s56, %s57
      %p69 = scmp.eq.s32.totalorder %s26, 1
      %p70 = por %p68, %p69
      %p72 = scmp.ne.s32.totalorder %s57, %s71
      %p73 = scmp.eq.s32.totalorder %s26, 0
      %p74 = por %p72, %p73
      %s76 = sadd.s32 %s75, 1
      %p79 = scmp.eq.s32.totalorder %s20, 1
      %p80 = scmp.ne.s32.totalorder %s75, %s77
      %p81 = scmp.eq.s32.totalorder %s20, 0
      %p82 = por %p80, %p81
      %p83 = scmp.ne.s32.totalorder %s75, %s77
      %p84 = scmp.eq.s32.totalorder %s25, 1
      %p85 = por %p83, %p84
      %p86 = scmp.ne.s32.totalorder %s77, %s78
      %p87 = scmp.eq.s32.totalorder %s25, 0
      %p88 = por %p86, %p87
      %p89 = scmp.ne.s32.totalorder %s77, %s78
      %p90 = scmp.eq.s32.totalorder %s26, 1
      %p91 = por %p89, %p90
      %p93 = scmp.ne.s32.totalorder %s78, %s92
      %p94 = scmp.eq.s32.totalorder %s26, 0
      %p95 = por %p93, %p94
      %s97 = sadd.s32 %s96, 1
      %p100 = scmp.eq.s32.totalorder %s20, 1
      %p101 = scmp.ne.s32.totalorder %s96, %s98
      %p102 = scmp.eq.s32.totalorder %s20, 0
      %p103 = por %p101, %p102
      %p104 = scmp.ne.s32.totalorder %s96, %s98
      %p105 = scmp.eq.s32.totalorder %s25, 1
      %p106 = por %p104, %p105
      %p107 = scmp.ne.s32.totalorder %s98, %s99
      %p108 = scmp.eq.s32.totalorder %s25, 0
      %p109 = por %p107, %p108
      %p110 = scmp.ne.s32.totalorder %s98, %s99
      %p111 = scmp.eq.s32.totalorder %s26, 1
      %p112 = por %p110, %p111
      %p114 = scmp.ne.s32.totalorder %s99, %s113
      %p115 = scmp.eq.s32.totalorder %s26, 0
      %p116 = por %p114, %p115
      %s118 = sadd.s32 %s117, 1
      %p121 = scmp.eq.s32.totalorder %s20, 1
      %p122 = scmp.ne.s32.totalorder %s117, %s119
      %p123 = scmp.eq.s32.totalorder %s20, 0
      %p124 = por %p122, %p123
      %p125 = scmp.ne.s32.totalorder %s117, %s119
      %p126 = scmp.eq.s32.totalorder %s25, 1
      %p127 = por %p125, %p126
      %p128 = scmp.ne.s32.totalorder %s119, %s120
      %p129 = scmp.eq.s32.totalorder %s25, 0
      %p130 = por %p128, %p129
      %p131 = scmp.ne.s32.totalorder %s119, %s120
      %p132 = scmp.eq.s32.totalorder %s26, 1
      %p133 = por %p131, %p132
      %p135 = scmp.ne.s32.totalorder %s120, %s134
      %p136 = scmp.eq.s32.totalorder %s26, 0
      %p137 = por %p135, %p136
      %s139 = sadd.s32 %s138, 1
      %p142 = scmp.eq.s32.totalorder %s20, 1
      %p143 = scmp.ne.s32.totalorder %s138, %s140
      %p144 = scmp.eq.s32.totalorder %s20, 0
      %p145 = por %p143, %p144
      %p146 = scmp.ne.s32.totalorder %s138, %s140
      %p147 = scmp.eq.s32.totalorder %s25, 1
      %p148 = por %p146, %p147
      %p149 = scmp.ne.s32.totalorder %s140, %s141
      %p150 = scmp.eq.s32.totalorder %s25, 0
      %p151 = por %p149, %p150
      %p152 = scmp.ne.s32.totalorder %s140, %s141
      %p153 = scmp.eq.s32.totalorder %s26, 1
      %p154 = por %p152, %p153
      %p156 = scmp.ne.s32.totalorder %s141, %s155
      %p157 = scmp.eq.s32.totalorder %s26, 0
      %p158 = por %p156, %p157
      %s160 = sadd.s32 %s159, 1
      %p163 = scmp.eq.s32.totalorder %s20, 1
      %p164 = scmp.ne.s32.totalorder %s159, %s161
      %p165 = scmp.eq.s32.totalorder %s20, 0
      %p166 = por %p164, %p165
      %p167 = scmp.ne.s32.totalorder %s159, %s161
      %p168 = scmp.eq.s32.totalorder %s25, 1
      %p169 = por %p167, %p168
      %p170 = scmp.ne.s32.totalorder %s161, %s162
      %p171 = scmp.eq.s32.totalorder %s25, 0
      %p172 = por %p170, %p171
      %p173 = scmp.ne.s32.totalorder %s161, %s162
      %p174 = scmp.eq.s32.totalorder %s26, 1
      %p175 = por %p173, %p174
      %p177 = scmp.ne.s32.totalorder %s162, %s176
      %p178 = scmp.eq.s32.totalorder %s26, 0
      %p179 = por %p177, %p178
      %s181 = sadd.s32 %s180, 1
      %p184 = scmp.eq.s32.totalorder %s20, 1
      %p185 = scmp.ne.s32.totalorder %s180, %s182
      %p186 = scmp.eq.s32.totalorder %s20, 0
      %p187 = por %p185, %p186
      %p188 = scmp.ne.s32.totalorder %s180, %s182
      %p189 = scmp.eq.s32.totalorder %s25, 1
      %p190 = por %p188, %p189
      %p191 = scmp.ne.s32.totalorder %s182, %s183
      %p192 = scmp.eq.s32.totalorder %s25, 0
      %p193 = por %p191, %p192
      %p194 = scmp.ne.s32.totalorder %s182, %s183
      %p195 = scmp.eq.s32.totalorder %s26, 1
      %p196 = por %p194, %p195
      %p198 = scmp.ne.s32.totalorder %s183, %s197
      %p199 = scmp.eq.s32.totalorder %s26, 0
      %p200 = por %p198, %p199
      %s202 = sadd.s32 %s201, 1
      %p205 = scmp.eq.s32.totalorder %s20, 1
      %p206 = scmp.ne.s32.totalorder %s201, %s203
      %p207 = scmp.eq.s32.totalorder %s20, 0
      %p208 = por %p206, %p207
      %p209 = scmp.ne.s32.totalorder %s201, %s203
      %p210 = scmp.eq.s32.totalorder %s25, 1
      %p211 = por %p209, %p210
      %p212 = scmp.ne.s32.totalorder %s203, %s204
      %p213 = scmp.eq.s32.totalorder %s25, 0
      %p214 = por %p212, %p213
      %p215 = scmp.ne.s32.totalorder %s203, %s204
      %p216 = scmp.eq.s32.totalorder %s26, 1
      %p217 = por %p215, %p216
      %p219 = scmp.ne.s32.totalorder %s204, %s218
      %p220 = scmp.eq.s32.totalorder %s26, 0
      %p221 = por %p219, %p220
      %s223 = sadd.s32 %s222, 1
      %p226 = scmp.eq.s32.totalorder %s20, 1
      %p227 = scmp.ne.s32.totalorder %s222, %s224
      %p228 = scmp.eq.s32.totalorder %s20, 0
      %p229 = por %p227, %p228
      %p230 = scmp.ne.s32.totalorder %s222, %s224
      %p231 = scmp.eq.s32.totalorder %s25, 1
      %p232 = por %p230, %p231
      %p233 = scmp.ne.s32.totalorder %s224, %s225
      %p234 = scmp.eq.s32.totalorder %s25, 0
      %p235 = por %p233, %p234
      %p236 = scmp.ne.s32.totalorder %s224, %s225
      %p237 = scmp.eq.s32.totalorder %s26, 1
      %p238 = por %p236, %p237
      %p240 = scmp.ne.s32.totalorder %s225, %s239
      %p241 = scmp.eq.s32.totalorder %s26, 0
      %p242 = por %p240, %p241
      %s244 = sadd.s32 %s243, 1
      %p247 = scmp.eq.s32.totalorder %s20, 1
      %p248 = scmp.ne.s32.totalorder %s243, %s245
      %p249 = scmp.eq.s32.totalorder %s20, 0
      %p250 = por %p248, %p249
      %p251 = scmp.ne.s32.totalorder %s243, %s245
      %p252 = scmp.eq.s32.totalorder %s25, 1
      %p253 = por %p251, %p252
      %p254 = scmp.ne.s32.totalorder %s245, %s246
      %p255 = scmp.eq.s32.totalorder %s25, 0
      %p256 = por %p254, %p255
      %p257 = scmp.ne.s32.totalorder %s245, %s246
      %p258 = scmp.eq.s32.totalorder %s26, 1
      %p259 = por %p257, %p258
      %p261 = scmp.ne.s32.totalorder %s246, %s260
      %p262 = scmp.eq.s32.totalorder %s26, 0
      %p263 = por %p261, %p262
      %s264 = ssub.s32 %s20, %s27
      %p265 = scmp.eq.s32.totalorder %s264, 0
      %s267 = sadd.s32 %s266, 1
      %s268 = scalar_select %p265, %s266, %s267
      %p271 = pneg %p265
      %p272 = scmp.eq.s32.totalorder %s20, 1
      %p273 = por %p271, %p272
      %p274 = scmp.ne.s32.totalorder %s266, %s269
      %p275 = scmp.eq.s32.totalorder %s20, 0
      %p276 = por %p274, %p275
      %p277 = scmp.ne.s32.totalorder %s266, %s269
      %p278 = scmp.eq.s32.totalorder %s25, 1
      %p279 = por %p277, %p278
      %p280 = scmp.ne.s32.totalorder %s269, %s270
      %p281 = scmp.eq.s32.totalorder %s25, 0
      %p282 = por %p280, %p281
      %p283 = scmp.ne.s32.totalorder %s269, %s270
      %p284 = scmp.eq.s32.totalorder %s26, 1
      %p285 = por %p283, %p284
      %p287 = scmp.ne.s32.totalorder %s270, %s286
      %p288 = scmp.eq.s32.totalorder %s26, 0
      %p289 = por %p287, %p288
      %p290 = scmp.le.s32.totalorder 1, %s20
      %p291 = scmp.lt.s32.totalorder %s20, 3
      %p292 = pnand %p290, %p291
      %p293 = pneg %p292
      // Predicated region
      $region9: #{m18_forward.9} parent=5 // pred_check
        _
      $region10: #{m18_forward.9} parent=5 // pred_check_branch
        %295 = sbr.rel (%p292) target = $region12
      $region11: #{m18_forward.9} parent=5 // pred_region
        %s296 = ssub.s32 %s20, 1
        // Predicated region
        $region13: #{m18_forward.9} parent=11 // pred_check
          %p297 = pneg %p67
        $region14: #{m18_forward.9} parent=11 // pred_check_branch
          %299 = sbr.rel (%p297) target = $region16
        $region15: #{m18_forward.9} parent=11 // pred_region
          _
        $region16: #{m18_forward.9} parent=11 // pred_fallthru
          _
        // Predicated region
        $region17: #{m18_forward.9} parent=11 // pred_check
          %p300 = pneg %p88
        $region18: #{m18_forward.9} parent=11 // pred_check_branch
          %302 = sbr.rel (%p300) target = $region20
        $region19: #{m18_forward.9} parent=11 // pred_region
          _
        $region20: #{m18_forward.9} parent=11 // pred_fallthru
          _
        // Predicated region
        $region21: #{m18_forward.9} parent=11 // pred_check
          %p303 = pneg %p109
        $region22: #{m18_forward.9} parent=11 // pred_check_branch
          %305 = sbr.rel (%p303) target = $region24
        $region23: #{m18_forward.9} parent=11 // pred_region
          _
        $region24: #{m18_forward.9} parent=11 // pred_fallthru
          _
        // Predicated region
        $region25: #{m18_forward.9} parent=11 // pred_check
          %p306 = pneg %p130
        $region26: #{m18_forward.9} parent=11 // pred_check_branch
          %308 = sbr.rel (%p306) target = $region28
        $region27: #{m18_forward.9} parent=11 // pred_region
          _
        $region28: #{m18_forward.9} parent=11 // pred_fallthru
          _
        // Predicated region
        $region29: #{m18_forward.9} parent=11 // pred_check
          %p309 = pneg %p151
        $region30: #{m18_forward.9} parent=11 // pred_check_branch
          %311 = sbr.rel (%p309) target = $region32
        $region31: #{m18_forward.9} parent=11 // pred_region
          _
        $region32: #{m18_forward.9} parent=11 // pred_fallthru
          _
        // Predicated region
        $region33: #{m18_forward.9} parent=11 // pred_check
          %p312 = pneg %p172
        $region34: #{m18_forward.9} parent=11 // pred_check_branch
          %314 = sbr.rel (%p312) target = $region36
        $region35: #{m18_forward.9} parent=11 // pred_region
          _
        $region36: #{m18_forward.9} parent=11 // pred_fallthru
          _
        // Predicated region
        $region37: #{m18_forward.9} parent=11 // pred_check
          %p315 = pneg %p193
        $region38: #{m18_forward.9} parent=11 // pred_check_branch
          %317 = sbr.rel (%p315) target = $region40
        $region39: #{m18_forward.9} parent=11 // pred_region
          _
        $region40: #{m18_forward.9} parent=11 // pred_fallthru
          _
        // Predicated region
        $region41: #{m18_forward.9} parent=11 // pred_check
          %p318 = pneg %p214
        $region42: #{m18_forward.9} parent=11 // pred_check_branch
          %320 = sbr.rel (%p318) target = $region44
        $region43: #{m18_forward.9} parent=11 // pred_region
          _
        $region44: #{m18_forward.9} parent=11 // pred_fallthru
          _
        // Predicated region
        $region45: #{m18_forward.9} parent=11 // pred_check
          %p321 = pneg %p235
        $region46: #{m18_forward.9} parent=11 // pred_check_branch
          %323 = sbr.rel (%p321) target = $region48
        $region47: #{m18_forward.9} parent=11 // pred_region
          _
        $region48: #{m18_forward.9} parent=11 // pred_fallthru
          _
        // Predicated region
        $region49: #{m18_forward.9} parent=11 // pred_check
          %p324 = pneg %p256
        $region50: #{m18_forward.9} parent=11 // pred_check_branch
          %326 = sbr.rel (%p324) target = $region52
        $region51: #{m18_forward.9} parent=11 // pred_region
          _
        $region52: #{m18_forward.9} parent=11 // pred_fallthru
          _
      $region12: #{m18_forward.9} parent=5 // pred_fallthru
        _
      %p327 = scmp.lt.s32.totalorder %s20, 2
      // Predicated region
      $region53: #{m18_forward.9} parent=5 // pred_check
        %p328 = pneg %p327
      $region54: #{m18_forward.9} parent=5 // pred_check_branch
        %330 = sbr.rel (%p328) target = $region56
      $region55: #{m18_forward.9} parent=5 // pred_region
        // Predicated region
        $region57: #{m18_forward.9} parent=55 // pred_check
          %p331 = pneg %p40
        $region58: #{m18_forward.9} parent=55 // pred_check_branch
          %333 = sbr.rel (%p331) target = $region60
        $region59: #{m18_forward.9} parent=55 // pred_region
          %p334 = scmp.lt.s32.totalorder %s20, 1
          %s335 = scalar_select %p334, %s20, 1
          %s336 = scalar_lea.vmem %s0, %s335
        $region60: #{m18_forward.9} parent=55 // pred_fallthru
          _
      $region56: #{m18_forward.9} parent=5 // pred_fallthru
        _
      %p337 = scmp.le.s32.totalorder 1, %s20
      %p338 = scmp.lt.s32.totalorder %s20, 3
      %p339 = pnand %p337, %p338
      %p340 = pneg %p339
      // Predicated region
      $region61: #{m18_forward.9} parent=5 // pred_check
        _
      $region62: #{m18_forward.9} parent=5 // pred_check_branch
        %342 = sbr.rel (%p339) target = $region64
      $region63: #{m18_forward.9} parent=5 // pred_region
        %s343 = ssub.s32 %s20, 1
        %p344 = scmp.lt.s32.totalorder %s25, 1
        %s345 = scalar_select %p344, %s25, 1
        %s346 = scalar_lea.vmem %s0, %s345
        %p347 = pneg %p46
        %p348 = pneg %p43
        %p349 = pneg %p67
        %p350 = pneg %p64
        %p351 = pneg %p88
        %p352 = pneg %p85
        %p353 = pneg %p109
        %p354 = pneg %p106
        %p355 = pneg %p130
        %p356 = pneg %p127
        %p357 = pneg %p151
        %p358 = pneg %p148
        %p359 = pneg %p172
        %p360 = pneg %p169
        %p361 = pneg %p193
        %p362 = pneg %p190
        %p363 = pneg %p214
        %p364 = pneg %p211
        %p365 = pneg %p235
        %p366 = pneg %p232
        %p367 = pneg %p256
        %p368 = pneg %p253
        %p369 = pneg %p282
        %p370 = pneg %p279
        %s371 = sand.u32 %s269, 1
        %s372 = scalar_lea.sflag [#allocation4], %s371
        %s373 = sand.u32 %s269, 1
        %s374 = scalar_lea.vmem [#allocation3], %s373
        %p375 = scmp.lt.s32.totalorder %s25, 1
        %s376 = scalar_select %p375, %s25, 1
        %s377 = scalar_lea.vmem %s0, %s376
        %379 = vst [vmem:[#allocation2] sm:$0xff] 0.0
        %380 = vst [vmem:[#allocation2 + $0x8] sm:$0xff] 0.0
        %381 = vst [vmem:[#allocation2 + $0x10] sm:$0xff] 0.0
        %382 = vst [vmem:[#allocation2 + $0x18] sm:$0xff] 0.0
        %383 = vst [vmem:[#allocation2 + $0x20] sm:$0x1] 0.0
        %384 = vst [vmem:[#allocation2 + $0x28] sm:$0x1] 0.0
        %v385 = vld [vmem:[%s377] sm:$0x1]
        %v386 = vunpack.c.l.bf16 %v385
        %387 = vst [vmem:[#allocation2 + $0x10] sm:$0x1] %v386
        %v388 = vld [vmem:[#allocation2 + $0x7] ss:$0 sm:$0xff]
        %v389 = vpack.c.bf16 %v388, %v388
        %v390 = vld [vmem:[#allocation2 + $0x11] ss:$0 sm:$0xff]
        %v391 = vpack.c.bf16 %v390, %v390
        %v392 = vld [vmem:[%s1] sm:$0xff]
        %v393 = vld [vmem:[%s1 + $0x8] sm:$0xff]
        %v394 = vld [vmem:[%s1 + $0x10] sm:$0xff]
        %v395 = vld [vmem:[%s1 + $0x18] sm:$0xff]
        %v396 = vld [vmem:[%s1 + $0x20] sm:$0xff]
        %v397 = vld [vmem:[%s1 + $0x28] sm:$0xff]
        %v398 = vld [vmem:[%s1 + $0x30] sm:$0xff]
        %v399 = vld [vmem:[%s1 + $0x38] sm:$0xff]
        %v400 = vld [vmem:[%s1 + $0x40] sm:$0xff]
        %v401 = vld [vmem:[%s1 + $0x48] sm:$0xff]
        %v402 = vld [vmem:[%s1 + $0x50] sm:$0xff]
        %v403 = vld [vmem:[%s1 + $0x58] sm:$0xff]
        %v404 = vld [vmem:[%s1 + $0x60] sm:$0xff]
        %v405 = vld [vmem:[%s1 + $0x68] sm:$0xff]
        %v406 = vld [vmem:[%s1 + $0x70] sm:$0xff]
        %v407 = vld [vmem:[%s1 + $0x78] sm:$0xff]
        %s408 = scalar_lea.vmem %s1, 128
        %v409 = vld [vmem:[%s408] sm:$0xff]
        %v410 = vld [vmem:[%s408 + $0x8] sm:$0xff]
        %v411 = vld [vmem:[%s408 + $0x10] sm:$0xff]
        %v412 = vld [vmem:[%s408 + $0x18] sm:$0xff]
        %v413 = vld [vmem:[%s408 + $0x20] sm:$0xff]
        %v414 = vld [vmem:[%s408 + $0x28] sm:$0xff]
        %v415 = vld [vmem:[%s408 + $0x30] sm:$0xff]
        %v416 = vld [vmem:[%s408 + $0x38] sm:$0xff]
        %v417 = vld [vmem:[%s408 + $0x40] sm:$0xff]
        %v418 = vld [vmem:[%s408 + $0x48] sm:$0xff]
        %v419 = vld [vmem:[%s408 + $0x50] sm:$0xff]
        %v420 = vld [vmem:[%s408 + $0x58] sm:$0xff]
        %v421 = vld [vmem:[%s408 + $0x60] sm:$0xff]
        %v422 = vld [vmem:[%s408 + $0x68] sm:$0xff]
        %v423 = vld [vmem:[%s408 + $0x70] sm:$0xff]
        %v424 = vld [vmem:[%s408 + $0x78] sm:$0xff]
        %v441 = vunpack.c.l.b16 %v409
        %v442 = vunpack.c.h.b16 %v409
        %v443 = vunpack.c.l.b16 %v410
        %v444 = vunpack.c.h.b16 %v410
        %v445 = vunpack.c.l.b16 %v411
        %v446 = vunpack.c.h.b16 %v411
        %v447 = vunpack.c.l.b16 %v412
        %v448 = vunpack.c.h.b16 %v412
        %v449 = vunpack.c.l.b16 %v413
        %v450 = vunpack.c.h.b16 %v413
        %v451 = vunpack.c.l.b16 %v414
        %v452 = vunpack.c.h.b16 %v414
        %v453 = vunpack.c.l.b16 %v415
        %v454 = vunpack.c.h.b16 %v415
        %v455 = vunpack.c.l.b16 %v416
        %v456 = vunpack.c.h.b16 %v416
        %v457 = vunpack.c.l.b16 %v417
        %v458 = vunpack.c.h.b16 %v417
        %v459 = vunpack.c.l.b16 %v418
        %v460 = vunpack.c.h.b16 %v418
        %v461 = vunpack.c.l.b16 %v419
        %v462 = vunpack.c.h.b16 %v419
        %v463 = vunpack.c.l.b16 %v420
        %v464 = vunpack.c.h.b16 %v420
        %v465 = vunpack.c.l.b16 %v421
        %v466 = vunpack.c.h.b16 %v421
        %v467 = vunpack.c.l.b16 %v422
        %v468 = vunpack.c.h.b16 %v422
        %v469 = vunpack.c.l.b16 %v423
        %v470 = vunpack.c.h.b16 %v423
        %v471 = vunpack.c.l.b16 %v424
        %v472 = vunpack.c.h.b16 %v424
        %v473 = vpack.c.b16 %v443, %v441
        %v474 = vpack.c.b16 %v444, %v442
        %v475 = vpack.c.b16 %v447, %v445
        %v476 = vpack.c.b16 %v448, %v446
        %v477 = vpack.c.b16 %v451, %v449
        %v478 = vpack.c.b16 %v452, %v450
        %v479 = vpack.c.b16 %v455, %v453
        %v480 = vpack.c.b16 %v456, %v454
        %v481 = vpack.c.b16 %v459, %v457
        %v482 = vpack.c.b16 %v460, %v458
        %v483 = vpack.c.b16 %v463, %v461
        %v484 = vpack.c.b16 %v464, %v462
        %v485 = vpack.c.b16 %v467, %v465
        %v486 = vpack.c.b16 %v468, %v466
        %v487 = vpack.c.b16 %v471, %v469
        %v488 = vpack.c.b16 %v472, %v470
        %505 = vmatprep.subr.bf16.mxu0 %v474
        %506 = vmatpush1.bf16.msra.mxu0 %v473
        %507 = vmatprep.subr.bf16.mxu0 %v476
        %508 = vmatpush1.bf16.msra.mxu0 %v475
        %509 = vmatprep.subr.bf16.mxu0 %v478
        %510 = vmatpush1.bf16.msra.mxu0 %v477
        %511 = vmatprep.subr.bf16.mxu0 %v480
        %512 = vmatpush1.bf16.msra.mxu0 %v479
        %513 = vmatprep.subr.bf16.mxu0 %v482
        %514 = vmatpush1.bf16.msra.mxu0 %v481
        %515 = vmatprep.subr.bf16.mxu0 %v484
        %516 = vmatpush1.bf16.msra.mxu0 %v483
        %517 = vmatprep.subr.bf16.mxu0 %v486
        %518 = vmatpush1.bf16.msra.mxu0 %v485
        %519 = vmatprep.subr.bf16.mxu0 %v488
        %520 = vmatpush1.bf16.msra.mxu0 %v487
        %521 = vmatprep.subr.bf16.mxu0 0
        %522 = vmatpush1.bf16.msra.mxu0 0
        %523 = vmatprep.subr.bf16.mxu0 0
        %524 = vmatpush1.bf16.msra.mxu0 0
        %525 = vmatprep.subr.bf16.mxu0 0
        %526 = vmatpush1.bf16.msra.mxu0 0
        %527 = vmatprep.subr.bf16.mxu0 0
        %528 = vmatpush1.bf16.msra.mxu0 0
        %529 = vmatprep.subr.bf16.mxu0 0
        %530 = vmatpush1.bf16.msra.mxu0 0
        %531 = vmatprep.subr.bf16.mxu0 0
        %532 = vmatpush1.bf16.msra.mxu0 0
        %533 = vmatprep.subr.bf16.mxu0 0
        %534 = vmatpush1.bf16.msra.mxu0 0
        %535 = vmatprep.subr.bf16.mxu0 0
        %536 = vmatpush1.bf16.msra.mxu0 0
        %537 = vmatprep.mubr.bf16.mxu0 0
        %538 = vmatmul.mubr.bf16.gmra.mrb[0].mxu0 %v385
        %v539 = vpop.f32.mrb[0].mxu0
        %v540 = vadd.f32 0.0, %v539
        %v541 = vpop.f32.mrb[0].mxu0
        %v542 = vadd.f32 0.0, %v541
        %v543 = vpop.f32.mrb[0].mxu0
        %v544 = vpop.f32.mrb[0].mxu0
        %545 = vdwg.mxu0
        %v562 = vunpack.c.l.b16 %v392
        %v563 = vunpack.c.h.b16 %v392
        %v564 = vunpack.c.l.b16 %v393
        %v565 = vunpack.c.h.b16 %v393
        %v566 = vunpack.c.l.b16 %v394
        %v567 = vunpack.c.h.b16 %v394
        %v568 = vunpack.c.l.b16 %v395
        %v569 = vunpack.c.h.b16 %v395
        %v570 = vunpack.c.l.b16 %v396
        %v571 = vunpack.c.h.b16 %v396
        %v572 = vunpack.c.l.b16 %v397
        %v573 = vunpack.c.h.b16 %v397
        %v574 = vunpack.c.l.b16 %v398
        %v575 = vunpack.c.h.b16 %v398
        %v576 = vunpack.c.l.b16 %v399
        %v577 = vunpack.c.h.b16 %v399
        %v578 = vunpack.c.l.b16 %v400
        %v579 = vunpack.c.h.b16 %v400
        %v580 = vunpack.c.l.b16 %v401
        %v581 = vunpack.c.h.b16 %v401
        %v582 = vunpack.c.l.b16 %v402
        %v583 = vunpack.c.h.b16 %v402
        %v584 = vunpack.c.l.b16 %v403
        %v585 = vunpack.c.h.b16 %v403
        %v586 = vunpack.c.l.b16 %v404
        %v587 = vunpack.c.h.b16 %v404
        %v588 = vunpack.c.l.b16 %v405
        %v589 = vunpack.c.h.b16 %v405
        %v590 = vunpack.c.l.b16 %v406
        %v591 = vunpack.c.h.b16 %v406
        %v592 = vunpack.c.l.b16 %v407
        %v593 = vunpack.c.h.b16 %v407
        %v594 = vpack.c.b16 %v564, %v562
        %v595 = vpack.c.b16 %v565, %v563
        %v596 = vpack.c.b16 %v568, %v566
        %v597 = vpack.c.b16 %v569, %v567
        %v598 = vpack.c.b16 %v572, %v570
        %v599 = vpack.c.b16 %v573, %v571
        %v600 = vpack.c.b16 %v576, %v574
        %v601 = vpack.c.b16 %v577, %v575
        %v602 = vpack.c.b16 %v580, %v578
        %v603 = vpack.c.b16 %v581, %v579
        %v604 = vpack.c.b16 %v584, %v582
        %v605 = vpack.c.b16 %v585, %v583
        %v606 = vpack.c.b16 %v588, %v586
        %v607 = vpack.c.b16 %v589, %v587
        %v608 = vpack.c.b16 %v592, %v590
        %v609 = vpack.c.b16 %v593, %v591
        %626 = vmatprep.subr.bf16.mxu0 %v595
        %627 = vmatpush1.bf16.msra.mxu0 %v594
        %628 = vmatprep.subr.bf16.mxu0 %v597
        %629 = vmatpush1.bf16.msra.mxu0 %v596
        %630 = vmatprep.subr.bf16.mxu0 %v599
        %631 = vmatpush1.bf16.msra.mxu0 %v598
        %632 = vmatprep.subr.bf16.mxu0 %v601
        %633 = vmatpush1.bf16.msra.mxu0 %v600
        %634 = vmatprep.subr.bf16.mxu0 %v603
        %635 = vmatpush1.bf16.msra.mxu0 %v602
        %636 = vmatprep.subr.bf16.mxu0 %v605
        %637 = vmatpush1.bf16.msra.mxu0 %v604
        %638 = vmatprep.subr.bf16.mxu0 %v607
        %639 = vmatpush1.bf16.msra.mxu0 %v606
        %640 = vmatprep.subr.bf16.mxu0 %v609
        %641 = vmatpush1.bf16.msra.mxu0 %v608
        %642 = vmatprep.subr.bf16.mxu0 0
        %643 = vmatpush1.bf16.msra.mxu0 0
        %644 = vmatprep.subr.bf16.mxu0 0
        %645 = vmatpush1.bf16.msra.mxu0 0
        %646 = vmatprep.subr.bf16.mxu0 0
        %647 = vmatpush1.bf16.msra.mxu0 0
        %648 = vmatprep.subr.bf16.mxu0 0
        %649 = vmatpush1.bf16.msra.mxu0 0
        %650 = vmatprep.subr.bf16.mxu0 0
        %651 = vmatpush1.bf16.msra.mxu0 0
        %652 = vmatprep.subr.bf16.mxu0 0
        %653 = vmatpush1.bf16.msra.mxu0 0
        %654 = vmatprep.subr.bf16.mxu0 0
        %655 = vmatpush1.bf16.msra.mxu0 0
        %656 = vmatprep.subr.bf16.mxu0 0
        %657 = vmatpush1.bf16.msra.mxu0 0
        %658 = vmatprep.mubr.bf16.mxu0 0
        %659 = vmatmul.mubr.bf16.gmra.mrb[0].mxu0 %v389
        %v660 = vpop.f32.mrb[0].mxu0
        %v661 = vadd.f32 %v540, %v660
        %v662 = vpop.f32.mrb[0].mxu0
        %v663 = vadd.f32 %v542, %v662
        %v664 = vpop.f32.mrb[0].mxu0
        %v665 = vpop.f32.mrb[0].mxu0
        %666 = vdwg.mxu0
        %s667 = scalar_lea.vmem %s1, 256
        %v668 = vld [vmem:[%s667] sm:$0xff]
        %v669 = vld [vmem:[%s667 + $0x8] sm:$0xff]
        %v670 = vld [vmem:[%s667 + $0x10] sm:$0xff]
        %v671 = vld [vmem:[%s667 + $0x18] sm:$0xff]
        %v672 = vld [vmem:[%s667 + $0x20] sm:$0xff]
        %v673 = vld [vmem:[%s667 + $0x28] sm:$0xff]
        %v674 = vld [vmem:[%s667 + $0x30] sm:$0xff]
        %v675 = vld [vmem:[%s667 + $0x38] sm:$0xff]
        %v676 = vld [vmem:[%s667 + $0x40] sm:$0xff]
        %v677 = vld [vmem:[%s667 + $0x48] sm:$0xff]
        %v678 = vld [vmem:[%s667 + $0x50] sm:$0xff]
        %v679 = vld [vmem:[%s667 + $0x58] sm:$0xff]
        %v680 = vld [vmem:[%s667 + $0x60] sm:$0xff]
        %v681 = vld [vmem:[%s667 + $0x68] sm:$0xff]
        %v682 = vld [vmem:[%s667 + $0x70] sm:$0xff]
        %v683 = vld [vmem:[%s667 + $0x78] sm:$0xff]
        %v700 = vunpack.c.l.b16 %v668
        %v701 = vunpack.c.h.b16 %v668
        %v702 = vunpack.c.l.b16 %v669
        %v703 = vunpack.c.h.b16 %v669
        %v704 = vunpack.c.l.b16 %v670
        %v705 = vunpack.c.h.b16 %v670
        %v706 = vunpack.c.l.b16 %v671
        %v707 = vunpack.c.h.b16 %v671
        %v708 = vunpack.c.l.b16 %v672
        %v709 = vunpack.c.h.b16 %v672
        %v710 = vunpack.c.l.b16 %v673
        %v711 = vunpack.c.h.b16 %v673
        %v712 = vunpack.c.l.b16 %v674
        %v713 = vunpack.c.h.b16 %v674
        %v714 = vunpack.c.l.b16 %v675
        %v715 = vunpack.c.h.b16 %v675
        %v716 = vunpack.c.l.b16 %v676
        %v717 = vunpack.c.h.b16 %v676
        %v718 = vunpack.c.l.b16 %v677
        %v719 = vunpack.c.h.b16 %v677
        %v720 = vunpack.c.l.b16 %v678
        %v721 = vunpack.c.h.b16 %v678
        %v722 = vunpack.c.l.b16 %v679
        %v723 = vunpack.c.h.b16 %v679
        %v724 = vunpack.c.l.b16 %v680
        %v725 = vunpack.c.h.b16 %v680
        %v726 = vunpack.c.l.b16 %v681
        %v727 = vunpack.c.h.b16 %v681
        %v728 = vunpack.c.l.b16 %v682
        %v729 = vunpack.c.h.b16 %v682
        %v730 = vunpack.c.l.b16 %v683
        %v731 = vunpack.c.h.b16 %v683
        %v732 = vpack.c.b16 %v702, %v700
        %v733 = vpack.c.b16 %v703, %v701
        %v734 = vpack.c.b16 %v706, %v704
        %v735 = vpack.c.b16 %v707, %v705
        %v736 = vpack.c.b16 %v710, %v708
        %v737 = vpack.c.b16 %v711, %v709
        %v738 = vpack.c.b16 %v714, %v712
        %v739 = vpack.c.b16 %v715, %v713
        %v740 = vpack.c.b16 %v718, %v716
        %v741 = vpack.c.b16 %v719, %v717
        %v742 = vpack.c.b16 %v722, %v720
        %v743 = vpack.c.b16 %v723, %v721
        %v744 = vpack.c.b16 %v726, %v724
        %v745 = vpack.c.b16 %v727, %v725
        %v746 = vpack.c.b16 %v730, %v728
        %v747 = vpack.c.b16 %v731, %v729
        %764 = vmatprep.subr.bf16.mxu0 %v733
        %765 = vmatpush1.bf16.msra.mxu0 %v732
        %766 = vmatprep.subr.bf16.mxu0 %v735
        %767 = vmatpush1.bf16.msra.mxu0 %v734
        %768 = vmatprep.subr.bf16.mxu0 %v737
        %769 = vmatpush1.bf16.msra.mxu0 %v736
        %770 = vmatprep.subr.bf16.mxu0 %v739
        %771 = vmatpush1.bf16.msra.mxu0 %v738
        %772 = vmatprep.subr.bf16.mxu0 %v741
        %773 = vmatpush1.bf16.msra.mxu0 %v740
        %774 = vmatprep.subr.bf16.mxu0 %v743
        %775 = vmatpush1.bf16.msra.mxu0 %v742
        %776 = vmatprep.subr.bf16.mxu0 %v745
        %777 = vmatpush1.bf16.msra.mxu0 %v744
        %778 = vmatprep.subr.bf16.mxu0 %v747
        %779 = vmatpush1.bf16.msra.mxu0 %v746
        %780 = vmatprep.subr.bf16.mxu0 0
        %781 = vmatpush1.bf16.msra.mxu0 0
        %782 = vmatprep.subr.bf16.mxu0 0
        %783 = vmatpush1.bf16.msra.mxu0 0
        %784 = vmatprep.subr.bf16.mxu0 0
        %785 = vmatpush1.bf16.msra.mxu0 0
        %786 = vmatprep.subr.bf16.mxu0 0
        %787 = vmatpush1.bf16.msra.mxu0 0
        %788 = vmatprep.subr.bf16.mxu0 0
        %789 = vmatpush1.bf16.msra.mxu0 0
        %790 = vmatprep.subr.bf16.mxu0 0
        %791 = vmatpush1.bf16.msra.mxu0 0
        %792 = vmatprep.subr.bf16.mxu0 0
        %793 = vmatpush1.bf16.msra.mxu0 0
        %794 = vmatprep.subr.bf16.mxu0 0
        %795 = vmatpush1.bf16.msra.mxu0 0
        %796 = vmatprep.mubr.bf16.mxu0 0
        %797 = vmatmul.mubr.bf16.gmra.mrb[0].mxu0 %v391
        %v798 = vpop.f32.mrb[0].mxu0
        %v799 = vadd.f32 0.0, %v798
        %v800 = vpop.f32.mrb[0].mxu0
        %v801 = vadd.f32 0.0, %v800
        %v802 = vpop.f32.mrb[0].mxu0
        %v803 = vpop.f32.mrb[0].mxu0
        %804 = vdwg.mxu0
        %v805 = vadd.f32 %v661, %v799
        %v806 = vadd.f32 %v663, %v801
        %v807 = vld [vmem:[%s2] sm:$0x3]
        %v809 = vlaneseq
        %v810 = vshrl.u32 %v809, 7
        %v811 = vsub.s32 0, %v810
        %v812 = vrot.slane %v807, %v811
        %v813 = vlaneseq
        %v814 = vshrl.u32 %v813, 7
        %v815 = vsub.s32 1, %v814
        %v816 = vrot.slane %v807, %v815
        %v819 = vadd.f32 %v805, %v812
        %v820 = vadd.f32 %v806, %v816
        %v821 = vmax.f32 %v819, 0.0
        %v822 = vmax.f32 %v820, 0.0
        %v825 = vcombine.low %v821, %v822
        %v827 = vunpack.c.l.s4 1966171168
        %v828 = vunpack.c.0.s8 %v827
        %v829 = vlaneseq
        %v830 = vshrl.u32 %v829, 7
        %v831 = vsub.s32 %v828, %v830
        %v832 = vrot.slane %v825, %v831
        %v834 = vunpack.c.l.s4 1966171168
        %v835 = vunpack.c.0.s8 %v834
        %v836 = vlaneseq
        %v837 = vshrl.u32 %v836, 7
        %v838 = vsub.s32 %v835, %v837
        %v839 = vrot.slane %v832, %v838
        %v841 = vlaneseq
        %vm842 = vcmp.ge.s32.totalorder %v841, 0
        %vm843 = vcmp.lt.s32.totalorder %v841, 256
        %vm844 = vmand %vm842, %vm843
        %s845 = scalar_lea.vmem [#allocation2], 16
        %846 = vst.msk [vmem:[%s845] ss:$8 sm:$0x3] %vm844, %v839
        %847 = vst.msk [vmem:[%s845] ss:$8 sm:$0x0] %vm844, %v839
        %s848 = scalar_lea.vmem [#allocation2], 7
        %v849 = vld [vmem:[%s848] ss:$8 sm:$0x3]
        %v851 = vlaneseq
        %v852 = vshrl.u32 %v851, 7
        %v853 = vsub.s32 0, %v852
        %v854 = vrot.slane %v849, %v853
        %v855 = vlaneseq
        %v856 = vshrl.u32 %v855, 7
        %v857 = vsub.s32 1, %v856
        %v858 = vrot.slane %v849, %v857
        %v861 = vpack.c.bf16 %v854, %v854
        %v862 = vpack.c.bf16 %v858, %v858
        %s863 = scalar_lea.vmem [#allocation2], 17
        %v864 = vld [vmem:[%s863] ss:$8 sm:$0x3]
        %v866 = vlaneseq
        %v867 = vshrl.u32 %v866, 7
        %v868 = vsub.s32 0, %v867
        %v869 = vrot.slane %v864, %v868
        %v870 = vlaneseq
        %v871 = vshrl.u32 %v870, 7
        %v872 = vsub.s32 1, %v871
        %v873 = vrot.slane %v864, %v872
        %v876 = vpack.c.bf16 %v869, %v869
        %v877 = vpack.c.bf16 %v873, %v873
        %v878 = vpack.c.bf16 %v821, %v821
        %v879 = vpack.c.bf16 %v822, %v822
        %v880 = vld [vmem:[%s3] sm:$0xff]
        %v881 = vld [vmem:[%s3 + $0x8] sm:$0xff]
        %v882 = vld [vmem:[%s3 + $0x10] sm:$0xff]
        %v883 = vld [vmem:[%s3 + $0x18] sm:$0xff]
        %v884 = vld [vmem:[%s3 + $0x20] sm:$0xff]
        %v885 = vld [vmem:[%s3 + $0x28] sm:$0xff]
        %v886 = vld [vmem:[%s3 + $0x30] sm:$0xff]
        %v887 = vld [vmem:[%s3 + $0x38] sm:$0xff]
        %v888 = vld [vmem:[%s3 + $0x40] sm:$0xff]
        %v889 = vld [vmem:[%s3 + $0x48] sm:$0xff]
        %v890 = vld [vmem:[%s3 + $0x50] sm:$0xff]
        %v891 = vld [vmem:[%s3 + $0x58] sm:$0xff]
        %v892 = vld [vmem:[%s3 + $0x60] sm:$0xff]
        %v893 = vld [vmem:[%s3 + $0x68] sm:$0xff]
        %v894 = vld [vmem:[%s3 + $0x70] sm:$0xff]
        %v895 = vld [vmem:[%s3 + $0x78] sm:$0xff]
        %v896 = vld [vmem:[%s3 + $0x80] sm:$0xff]
        %v897 = vld [vmem:[%s3 + $0x88] sm:$0xff]
        %v898 = vld [vmem:[%s3 + $0x90] sm:$0xff]
        %v899 = vld [vmem:[%s3 + $0x98] sm:$0xff]
        %v900 = vld [vmem:[%s3 + $0xa0] sm:$0xff]
        %v901 = vld [vmem:[%s3 + $0xa8] sm:$0xff]
        %v902 = vld [vmem:[%s3 + $0xb0] sm:$0xff]
        %v903 = vld [vmem:[%s3 + $0xb8] sm:$0xff]
        %v904 = vld [vmem:[%s3 + $0xc0] sm:$0xff]
        %v905 = vld [vmem:[%s3 + $0xc8] sm:$0xff]
        %v906 = vld [vmem:[%s3 + $0xd0] sm:$0xff]
        %v907 = vld [vmem:[%s3 + $0xd8] sm:$0xff]
        %v908 = vld [vmem:[%s3 + $0xe0] sm:$0xff]
        %v909 = vld [vmem:[%s3 + $0xe8] sm:$0xff]
        %v910 = vld [vmem:[%s3 + $0xf0] sm:$0xff]
        %v911 = vld [vmem:[%s3 + $0xf8] sm:$0xff]
        %s912 = scalar_lea.vmem %s3, 256
        %v913 = vld [vmem:[%s912] sm:$0xff]
        %v914 = vld [vmem:[%s912 + $0x8] sm:$0xff]
        %v915 = vld [vmem:[%s912 + $0x10] sm:$0xff]
        %v916 = vld [vmem:[%s912 + $0x18] sm:$0xff]
        %v917 = vld [vmem:[%s912 + $0x20] sm:$0xff]
        %v918 = vld [vmem:[%s912 + $0x28] sm:$0xff]
        %v919 = vld [vmem:[%s912 + $0x30] sm:$0xff]
        %v920 = vld [vmem:[%s912 + $0x38] sm:$0xff]
        %v921 = vld [vmem:[%s912 + $0x40] sm:$0xff]
        %v922 = vld [vmem:[%s912 + $0x48] sm:$0xff]
        %v923 = vld [vmem:[%s912 + $0x50] sm:$0xff]
        %v924 = vld [vmem:[%s912 + $0x58] sm:$0xff]
        %v925 = vld [vmem:[%s912 + $0x60] sm:$0xff]
        %v926 = vld [vmem:[%s912 + $0x68] sm:$0xff]
        %v927 = vld [vmem:[%s912 + $0x70] sm:$0xff]
        %v928 = vld [vmem:[%s912 + $0x78] sm:$0xff]
        %v929 = vld [vmem:[%s912 + $0x80] sm:$0xff]
        %v930 = vld [vmem:[%s912 + $0x88] sm:$0xff]
        %v931 = vld [vmem:[%s912 + $0x90] sm:$0xff]
        %v932 = vld [vmem:[%s912 + $0x98] sm:$0xff]
        %v933 = vld [vmem:[%s912 + $0xa0] sm:$0xff]
        %v934 = vld [vmem:[%s912 + $0xa8] sm:$0xff]
        %v935 = vld [vmem:[%s912 + $0xb0] sm:$0xff]
        %v936 = vld [vmem:[%s912 + $0xb8] sm:$0xff]
        %v937 = vld [vmem:[%s912 + $0xc0] sm:$0xff]
        %v938 = vld [vmem:[%s912 + $0xc8] sm:$0xff]
        %v939 = vld [vmem:[%s912 + $0xd0] sm:$0xff]
        %v940 = vld [vmem:[%s912 + $0xd8] sm:$0xff]
        %v941 = vld [vmem:[%s912 + $0xe0] sm:$0xff]
        %v942 = vld [vmem:[%s912 + $0xe8] sm:$0xff]
        %v943 = vld [vmem:[%s912 + $0xf0] sm:$0xff]
        %v944 = vld [vmem:[%s912 + $0xf8] sm:$0xff]
        %v977 = vunpack.c.l.b16 %v913
        %v978 = vunpack.c.h.b16 %v913
        %v979 = vunpack.c.l.b16 %v914
        %v980 = vunpack.c.h.b16 %v914
        %v981 = vunpack.c.l.b16 %v915
        %v982 = vunpack.c.h.b16 %v915
        %v983 = vunpack.c.l.b16 %v916
        %v984 = vunpack.c.h.b16 %v916
        %v985 = vunpack.c.l.b16 %v917
        %v986 = vunpack.c.h.b16 %v917
        %v987 = vunpack.c.l.b16 %v918
        %v988 = vunpack.c.h.b16 %v918
        %v989 = vunpack.c.l.b16 %v919
        %v990 = vunpack.c.h.b16 %v919
        %v991 = vunpack.c.l.b16 %v920
        %v992 = vunpack.c.h.b16 %v920
        %v993 = vunpack.c.l.b16 %v921
        %v994 = vunpack.c.h.b16 %v921
        %v995 = vunpack.c.l.b16 %v922
        %v996 = vunpack.c.h.b16 %v922
        %v997 = vunpack.c.l.b16 %v923
        %v998 = vunpack.c.h.b16 %v923
        %v999 = vunpack.c.l.b16 %v924
        %v1000 = vunpack.c.h.b16 %v924
        %v1001 = vunpack.c.l.b16 %v925
        %v1002 = vunpack.c.h.b16 %v925
        %v1003 = vunpack.c.l.b16 %v926
        %v1004 = vunpack.c.h.b16 %v926
        %v1005 = vunpack.c.l.b16 %v927
        %v1006 = vunpack.c.h.b16 %v927
        %v1007 = vunpack.c.l.b16 %v928
        %v1008 = vunpack.c.h.b16 %v928
        %v1009 = vunpack.c.l.b16 %v929
        %v1010 = vunpack.c.h.b16 %v929
        %v1011 = vunpack.c.l.b16 %v930
        %v1012 = vunpack.c.h.b16 %v930
        %v1013 = vunpack.c.l.b16 %v931
        %v1014 = vunpack.c.h.b16 %v931
        %v1015 = vunpack.c.l.b16 %v932
        %v1016 = vunpack.c.h.b16 %v932
        %v1017 = vunpack.c.l.b16 %v933
        %v1018 = vunpack.c.h.b16 %v933
        %v1019 = vunpack.c.l.b16 %v934
        %v1020 = vunpack.c.h.b16 %v934
        %v1021 = vunpack.c.l.b16 %v935
        %v1022 = vunpack.c.h.b16 %v935
        %v1023 = vunpack.c.l.b16 %v936
        %v1024 = vunpack.c.h.b16 %v936
        %v1025 = vunpack.c.l.b16 %v937
        %v1026 = vunpack.c.h.b16 %v937
        %v1027 = vunpack.c.l.b16 %v938
        %v1028 = vunpack.c.h.b16 %v938
        %v1029 = vunpack.c.l.b16 %v939
        %v1030 = vunpack.c.h.b16 %v939
        %v1031 = vunpack.c.l.b16 %v940
        %v1032 = vunpack.c.h.b16 %v940
        %v1033 = vunpack.c.l.b16 %v941
        %v1034 = vunpack.c.h.b16 %v941
        %v1035 = vunpack.c.l.b16 %v942
        %v1036 = vunpack.c.h.b16 %v942
        %v1037 = vunpack.c.l.b16 %v943
        %v1038 = vunpack.c.h.b16 %v943
        %v1039 = vunpack.c.l.b16 %v944
        %v1040 = vunpack.c.h.b16 %v944
        %v1041 = vpack.c.b16 %v979, %v977
        %v1042 = vpack.c.b16 %v980, %v978
        %v1043 = vpack.c.b16 %v983, %v981
        %v1044 = vpack.c.b16 %v984, %v982
        %v1045 = vpack.c.b16 %v987, %v985
        %v1046 = vpack.c.b16 %v988, %v986
        %v1047 = vpack.c.b16 %v991, %v989
        %v1048 = vpack.c.b16 %v992, %v990
        %v1049 = vpack.c.b16 %v995, %v993
        %v1050 = vpack.c.b16 %v996, %v994
        %v1051 = vpack.c.b16 %v999, %v997
        %v1052 = vpack.c.b16 %v1000, %v998
        %v1053 = vpack.c.b16 %v1003, %v1001
        %v1054 = vpack.c.b16 %v1004, %v1002
        %v1055 = vpack.c.b16 %v1007, %v1005
        %v1056 = vpack.c.b16 %v1008, %v1006
        %v1057 = vpack.c.b16 %v1011, %v1009
        %v1058 = vpack.c.b16 %v1012, %v1010
        %v1059 = vpack.c.b16 %v1015, %v1013
        %v1060 = vpack.c.b16 %v1016, %v1014
        %v1061 = vpack.c.b16 %v1019, %v1017
        %v1062 = vpack.c.b16 %v1020, %v1018
        %v1063 = vpack.c.b16 %v1023, %v1021
        %v1064 = vpack.c.b16 %v1024, %v1022
        %v1065 = vpack.c.b16 %v1027, %v1025
        %v1066 = vpack.c.b16 %v1028, %v1026
        %v1067 = vpack.c.b16 %v1031, %v1029
        %v1068 = vpack.c.b16 %v1032, %v1030
        %v1069 = vpack.c.b16 %v1035, %v1033
        %v1070 = vpack.c.b16 %v1036, %v1034
        %v1071 = vpack.c.b16 %v1039, %v1037
        %v1072 = vpack.c.b16 %v1040, %v1038
        %1105 = vmatprep.subr.bf16.mxu0 %v1042
        %1106 = vmatpush1.bf16.msra.mxu0 %v1041
        %1107 = vmatprep.subr.bf16.mxu0 %v1044
        %1108 = vmatpush1.bf16.msra.mxu0 %v1043
        %1109 = vmatprep.subr.bf16.mxu0 %v1046
        %1110 = vmatpush1.bf16.msra.mxu0 %v1045
        %1111 = vmatprep.subr.bf16.mxu0 %v1048
        %1112 = vmatpush1.bf16.msra.mxu0 %v1047
        %1113 = vmatprep.subr.bf16.mxu0 %v1050
        %1114 = vmatpush1.bf16.msra.mxu0 %v1049
        %1115 = vmatprep.subr.bf16.mxu0 %v1052
        %1116 = vmatpush1.bf16.msra.mxu0 %v1051
        %1117 = vmatprep.subr.bf16.mxu0 %v1054
        %1118 = vmatpush1.bf16.msra.mxu0 %v1053
        %1119 = vmatprep.subr.bf16.mxu0 %v1056
        %1120 = vmatpush1.bf16.msra.mxu0 %v1055
        %1121 = vmatprep.subr.bf16.mxu0 %v1058
        %1122 = vmatpush1.bf16.msra.mxu0 %v1057
        %1123 = vmatprep.subr.bf16.mxu0 %v1060
        %1124 = vmatpush1.bf16.msra.mxu0 %v1059
        %1125 = vmatprep.subr.bf16.mxu0 %v1062
        %1126 = vmatpush1.bf16.msra.mxu0 %v1061
        %1127 = vmatprep.subr.bf16.mxu0 %v1064
        %1128 = vmatpush1.bf16.msra.mxu0 %v1063
        %1129 = vmatprep.subr.bf16.mxu0 %v1066
        %1130 = vmatpush1.bf16.msra.mxu0 %v1065
        %1131 = vmatprep.subr.bf16.mxu0 %v1068
        %1132 = vmatpush1.bf16.msra.mxu0 %v1067
        %1133 = vmatprep.subr.bf16.mxu0 %v1070
        %1134 = vmatpush1.bf16.msra.mxu0 %v1069
        %1135 = vmatprep.subr.bf16.mxu0 %v1072
        %1136 = vmatpush1.bf16.msra.mxu0 %v1071
        %1137 = vmatprep.mubr.bf16.mxu0 %v879
        %1138 = vmatmul.mubr.bf16.gmra.mrb[0].mxu0 %v878
        %v1139 = vpop.f32.mrb[0].mxu0
        %v1140 = vadd.f32 0.0, %v1139
        %v1141 = vpop.f32.mrb[0].mxu0
        %v1142 = vadd.f32 0.0, %v1141
        %v1143 = vpop.f32.mrb[0].mxu0
        %v1144 = vpop.f32.mrb[0].mxu0
        %1145 = vdwg.mxu0
        %v1178 = vunpack.c.l.b16 %v880
        %v1179 = vunpack.c.h.b16 %v880
        %v1180 = vunpack.c.l.b16 %v881
        %v1181 = vunpack.c.h.b16 %v881
        %v1182 = vunpack.c.l.b16 %v882
        %v1183 = vunpack.c.h.b16 %v882
        %v1184 = vunpack.c.l.b16 %v883
        %v1185 = vunpack.c.h.b16 %v883
        %v1186 = vunpack.c.l.b16 %v884
        %v1187 = vunpack.c.h.b16 %v884
        %v1188 = vunpack.c.l.b16 %v885
        %v1189 = vunpack.c.h.b16 %v885
        %v1190 = vunpack.c.l.b16 %v886
        %v1191 = vunpack.c.h.b16 %v886
        %v1192 = vunpack.c.l.b16 %v887
        %v1193 = vunpack.c.h.b16 %v887
        %v1194 = vunpack.c.l.b16 %v888
        %v1195 = vunpack.c.h.b16 %v888
        %v1196 = vunpack.c.l.b16 %v889
        %v1197 = vunpack.c.h.b16 %v889
        %v1198 = vunpack.c.l.b16 %v890
        %v1199 = vunpack.c.h.b16 %v890
        %v1200 = vunpack.c.l.b16 %v891
        %v1201 = vunpack.c.h.b16 %v891
        %v1202 = vunpack.c.l.b16 %v892
        %v1203 = vunpack.c.h.b16 %v892
        %v1204 = vunpack.c.l.b16 %v893
        %v1205 = vunpack.c.h.b16 %v893
        %v1206 = vunpack.c.l.b16 %v894
        %v1207 = vunpack.c.h.b16 %v894
        %v1208 = vunpack.c.l.b16 %v895
        %v1209 = vunpack.c.h.b16 %v895
        %v1210 = vunpack.c.l.b16 %v896
        %v1211 = vunpack.c.h.b16 %v896
        %v1212 = vunpack.c.l.b16 %v897
        %v1213 = vunpack.c.h.b16 %v897
        %v1214 = vunpack.c.l.b16 %v898
        %v1215 = vunpack.c.h.b16 %v898
        %v1216 = vunpack.c.l.b16 %v899
        %v1217 = vunpack.c.h.b16 %v899
        %v1218 = vunpack.c.l.b16 %v900
        %v1219 = vunpack.c.h.b16 %v900
        %v1220 = vunpack.c.l.b16 %v901
        %v1221 = vunpack.c.h.b16 %v901
        %v1222 = vunpack.c.l.b16 %v902
        %v1223 = vunpack.c.h.b16 %v902
        %v1224 = vunpack.c.l.b16 %v903
        %v1225 = vunpack.c.h.b16 %v903
        %v1226 = vunpack.c.l.b16 %v904
        %v1227 = vunpack.c.h.b16 %v904
        %v1228 = vunpack.c.l.b16 %v905
        %v1229 = vunpack.c.h.b16 %v905
        %v1230 = vunpack.c.l.b16 %v906
        %v1231 = vunpack.c.h.b16 %v906
        %v1232 = vunpack.c.l.b16 %v907
        %v1233 = vunpack.c.h.b16 %v907
        %v1234 = vunpack.c.l.b16 %v908
        %v1235 = vunpack.c.h.b16 %v908
        %v1236 = vunpack.c.l.b16 %v909
        %v1237 = vunpack.c.h.b16 %v909
        %v1238 = vunpack.c.l.b16 %v910
        %v1239 = vunpack.c.h.b16 %v910
        %v1240 = vunpack.c.l.b16 %v911
        %v1241 = vunpack.c.h.b16 %v911
        %v1242 = vpack.c.b16 %v1180, %v1178
        %v1243 = vpack.c.b16 %v1181, %v1179
        %v1244 = vpack.c.b16 %v1184, %v1182
        %v1245 = vpack.c.b16 %v1185, %v1183
        %v1246 = vpack.c.b16 %v1188, %v1186
        %v1247 = vpack.c.b16 %v1189, %v1187
        %v1248 = vpack.c.b16 %v1192, %v1190
        %v1249 = vpack.c.b16 %v1193, %v1191
        %v1250 = vpack.c.b16 %v1196, %v1194
        %v1251 = vpack.c.b16 %v1197, %v1195
        %v1252 = vpack.c.b16 %v1200, %v1198
        %v1253 = vpack.c.b16 %v1201, %v1199
        %v1254 = vpack.c.b16 %v1204, %v1202
        %v1255 = vpack.c.b16 %v1205, %v1203
        %v1256 = vpack.c.b16 %v1208, %v1206
        %v1257 = vpack.c.b16 %v1209, %v1207
        %v1258 = vpack.c.b16 %v1212, %v1210
        %v1259 = vpack.c.b16 %v1213, %v1211
        %v1260 = vpack.c.b16 %v1216, %v1214
        %v1261 = vpack.c.b16 %v1217, %v1215
        %v1262 = vpack.c.b16 %v1220, %v1218
        %v1263 = vpack.c.b16 %v1221, %v1219
        %v1264 = vpack.c.b16 %v1224, %v1222
        %v1265 = vpack.c.b16 %v1225, %v1223
        %v1266 = vpack.c.b16 %v1228, %v1226
        %v1267 = vpack.c.b16 %v1229, %v1227
        %v1268 = vpack.c.b16 %v1232, %v1230
        %v1269 = vpack.c.b16 %v1233, %v1231
        %v1270 = vpack.c.b16 %v1236, %v1234
        %v1271 = vpack.c.b16 %v1237, %v1235
        %v1272 = vpack.c.b16 %v1240, %v1238
        %v1273 = vpack.c.b16 %v1241, %v1239
        %1306 = vmatprep.subr.bf16.mxu0 %v1243
        %1307 = vmatpush1.bf16.msra.mxu0 %v1242
        %1308 = vmatprep.subr.bf16.mxu0 %v1245
        %1309 = vmatpush1.bf16.msra.mxu0 %v1244
        %1310 = vmatprep.subr.bf16.mxu0 %v1247
        %1311 = vmatpush1.bf16.msra.mxu0 %v1246
        %1312 = vmatprep.subr.bf16.mxu0 %v1249
        %1313 = vmatpush1.bf16.msra.mxu0 %v1248
        %1314 = vmatprep.subr.bf16.mxu0 %v1251
        %1315 = vmatpush1.bf16.msra.mxu0 %v1250
        %1316 = vmatprep.subr.bf16.mxu0 %v1253
        %1317 = vmatpush1.bf16.msra.mxu0 %v1252
        %1318 = vmatprep.subr.bf16.mxu0 %v1255
        %1319 = vmatpush1.bf16.msra.mxu0 %v1254
        %1320 = vmatprep.subr.bf16.mxu0 %v1257
        %1321 = vmatpush1.bf16.msra.mxu0 %v1256
        %1322 = vmatprep.subr.bf16.mxu0 %v1259
        %1323 = vmatpush1.bf16.msra.mxu0 %v1258
        %1324 = vmatprep.subr.bf16.mxu0 %v1261
        %1325 = vmatpush1.bf16.msra.mxu0 %v1260
        %1326 = vmatprep.subr.bf16.mxu0 %v1263
        %1327 = vmatpush1.bf16.msra.mxu0 %v1262
        %1328 = vmatprep.subr.bf16.mxu0 %v1265
        %1329 = vmatpush1.bf16.msra.mxu0 %v1264
        %1330 = vmatprep.subr.bf16.mxu0 %v1267
        %1331 = vmatpush1.bf16.msra.mxu0 %v1266
        %1332 = vmatprep.subr.bf16.mxu0 %v1269
        %1333 = vmatpush1.bf16.msra.mxu0 %v1268
        %1334 = vmatprep.subr.bf16.mxu0 %v1271
        %1335 = vmatpush1.bf16.msra.mxu0 %v1270
        %1336 = vmatprep.subr.bf16.mxu0 %v1273
        %1337 = vmatpush1.bf16.msra.mxu0 %v1272
        %1338 = vmatprep.mubr.bf16.mxu0 %v862
        %1339 = vmatmul.mubr.bf16.gmra.mrb[0].mxu0 %v861
        %v1340 = vpop.f32.mrb[0].mxu0
        %v1341 = vadd.f32 %v1140, %v1340
        %v1342 = vpop.f32.mrb[0].mxu0
        %v1343 = vadd.f32 %v1142, %v1342
        %v1344 = vpop.f32.mrb[0].mxu0
        %v1345 = vpop.f32.mrb[0].mxu0
        %1346 = vdwg.mxu0
        %s1347 = scalar_lea.vmem %s3, 512
        %v1348 = vld [vmem:[%s1347] sm:$0xff]
        %v1349 = vld [vmem:[%s1347 + $0x8] sm:$0xff]
        %v1350 = vld [vmem:[%s1347 + $0x10] sm:$0xff]
        %v1351 = vld [vmem:[%s1347 + $0x18] sm:$0xff]
        %v1352 = vld [vmem:[%s1347 + $0x20] sm:$0xff]
        %v1353 = vld [vmem:[%s1347 + $0x28] sm:$0xff]
        %v1354 = vld [vmem:[%s1347 + $0x30] sm:$0xff]
        %v1355 = vld [vmem:[%s1347 + $0x38] sm:$0xff]
        %v1356 = vld [vmem:[%s1347 + $0x40] sm:$0xff]
        %v1357 = vld [vmem:[%s1347 + $0x48] sm:$0xff]
        %v1358 = vld [vmem:[%s1347 + $0x50] sm:$0xff]
        %v1359 = vld [vmem:[%s1347 + $0x58] sm:$0xff]
        %v1360 = vld [vmem:[%s1347 + $0x60] sm:$0xff]
        %v1361 = vld [vmem:[%s1347 + $0x68] sm:$0xff]
        %v1362 = vld [vmem:[%s1347 + $0x70] sm:$0xff]
        %v1363 = vld [vmem:[%s1347 + $0x78] sm:$0xff]
        %v1364 = vld [vmem:[%s1347 + $0x80] sm:$0xff]
        %v1365 = vld [vmem:[%s1347 + $0x88] sm:$0xff]
        %v1366 = vld [vmem:[%s1347 + $0x90] sm:$0xff]
        %v1367 = vld [vmem:[%s1347 + $0x98] sm:$0xff]
        %v1368 = vld [vmem:[%s1347 + $0xa0] sm:$0xff]
        %v1369 = vld [vmem:[%s1347 + $0xa8] sm:$0xff]
        %v1370 = vld [vmem:[%s1347 + $0xb0] sm:$0xff]
        %v1371 = vld [vmem:[%s1347 + $0xb8] sm:$0xff]
        %v1372 = vld [vmem:[%s1347 + $0xc0] sm:$0xff]
        %v1373 = vld [vmem:[%s1347 + $0xc8] sm:$0xff]
        %v1374 = vld [vmem:[%s1347 + $0xd0] sm:$0xff]
        %v1375 = vld [vmem:[%s1347 + $0xd8] sm:$0xff]
        %v1376 = vld [vmem:[%s1347 + $0xe0] sm:$0xff]
        %v1377 = vld [vmem:[%s1347 + $0xe8] sm:$0xff]
        %v1378 = vld [vmem:[%s1347 + $0xf0] sm:$0xff]
        %v1379 = vld [vmem:[%s1347 + $0xf8] sm:$0xff]
        %v1412 = vunpack.c.l.b16 %v1348
        %v1413 = vunpack.c.h.b16 %v1348
        %v1414 = vunpack.c.l.b16 %v1349
        %v1415 = vunpack.c.h.b16 %v1349
        %v1416 = vunpack.c.l.b16 %v1350
        %v1417 = vunpack.c.h.b16 %v1350
        %v1418 = vunpack.c.l.b16 %v1351
        %v1419 = vunpack.c.h.b16 %v1351
        %v1420 = vunpack.c.l.b16 %v1352
        %v1421 = vunpack.c.h.b16 %v1352
        %v1422 = vunpack.c.l.b16 %v1353
        %v1423 = vunpack.c.h.b16 %v1353
        %v1424 = vunpack.c.l.b16 %v1354
        %v1425 = vunpack.c.h.b16 %v1354
        %v1426 = vunpack.c.l.b16 %v1355
        %v1427 = vunpack.c.h.b16 %v1355
        %v1428 = vunpack.c.l.b16 %v1356
        %v1429 = vunpack.c.h.b16 %v1356
        %v1430 = vunpack.c.l.b16 %v1357
        %v1431 = vunpack.c.h.b16 %v1357
        %v1432 = vunpack.c.l.b16 %v1358
        %v1433 = vunpack.c.h.b16 %v1358
        %v1434 = vunpack.c.l.b16 %v1359
        %v1435 = vunpack.c.h.b16 %v1359
        %v1436 = vunpack.c.l.b16 %v1360
        %v1437 = vunpack.c.h.b16 %v1360
        %v1438 = vunpack.c.l.b16 %v1361
        %v1439 = vunpack.c.h.b16 %v1361
        %v1440 = vunpack.c.l.b16 %v1362
        %v1441 = vunpack.c.h.b16 %v1362
        %v1442 = vunpack.c.l.b16 %v1363
        %v1443 = vunpack.c.h.b16 %v1363
        %v1444 = vunpack.c.l.b16 %v1364
        %v1445 = vunpack.c.h.b16 %v1364
        %v1446 = vunpack.c.l.b16 %v1365
        %v1447 = vunpack.c.h.b16 %v1365
        %v1448 = vunpack.c.l.b16 %v1366
        %v1449 = vunpack.c.h.b16 %v1366
        %v1450 = vunpack.c.l.b16 %v1367
        %v1451 = vunpack.c.h.b16 %v1367
        %v1452 = vunpack.c.l.b16 %v1368
        %v1453 = vunpack.c.h.b16 %v1368
        %v1454 = vunpack.c.l.b16 %v1369
        %v1455 = vunpack.c.h.b16 %v1369
        %v1456 = vunpack.c.l.b16 %v1370
        %v1457 = vunpack.c.h.b16 %v1370
        %v1458 = vunpack.c.l.b16 %v1371
        %v1459 = vunpack.c.h.b16 %v1371
        %v1460 = vunpack.c.l.b16 %v1372
        %v1461 = vunpack.c.h.b16 %v1372
        %v1462 = vunpack.c.l.b16 %v1373
        %v1463 = vunpack.c.h.b16 %v1373
        %v1464 = vunpack.c.l.b16 %v1374
        %v1465 = vunpack.c.h.b16 %v1374
        %v1466 = vunpack.c.l.b16 %v1375
        %v1467 = vunpack.c.h.b16 %v1375
        %v1468 = vunpack.c.l.b16 %v1376
        %v1469 = vunpack.c.h.b16 %v1376
        %v1470 = vunpack.c.l.b16 %v1377
        %v1471 = vunpack.c.h.b16 %v1377
        %v1472 = vunpack.c.l.b16 %v1378
        %v1473 = vunpack.c.h.b16 %v1378
        %v1474 = vunpack.c.l.b16 %v1379
        %v1475 = vunpack.c.h.b16 %v1379
        %v1476 = vpack.c.b16 %v1414, %v1412
        %v1477 = vpack.c.b16 %v1415, %v1413
        %v1478 = vpack.c.b16 %v1418, %v1416
        %v1479 = vpack.c.b16 %v1419, %v1417
        %v1480 = vpack.c.b16 %v1422, %v1420
        %v1481 = vpack.c.b16 %v1423, %v1421
        %v1482 = vpack.c.b16 %v1426, %v1424
        %v1483 = vpack.c.b16 %v1427, %v1425
        %v1484 = vpack.c.b16 %v1430, %v1428
        %v1485 = vpack.c.b16 %v1431, %v1429
        %v1486 = vpack.c.b16 %v1434, %v1432
        %v1487 = vpack.c.b16 %v1435, %v1433
        %v1488 = vpack.c.b16 %v1438, %v1436
        %v1489 = vpack.c.b16 %v1439, %v1437
        %v1490 = vpack.c.b16 %v1442, %v1440
        %v1491 = vpack.c.b16 %v1443, %v1441
        %v1492 = vpack.c.b16 %v1446, %v1444
        %v1493 = vpack.c.b16 %v1447, %v1445
        %v1494 = vpack.c.b16 %v1450, %v1448
        %v1495 = vpack.c.b16 %v1451, %v1449
        %v1496 = vpack.c.b16 %v1454, %v1452
        %v1497 = vpack.c.b16 %v1455, %v1453
        %v1498 = vpack.c.b16 %v1458, %v1456
        %v1499 = vpack.c.b16 %v1459, %v1457
        %v1500 = vpack.c.b16 %v1462, %v1460
        %v1501 = vpack.c.b16 %v1463, %v1461
        %v1502 = vpack.c.b16 %v1466, %v1464
        %v1503 = vpack.c.b16 %v1467, %v1465
        %v1504 = vpack.c.b16 %v1470, %v1468
        %v1505 = vpack.c.b16 %v1471, %v1469
        %v1506 = vpack.c.b16 %v1474, %v1472
        %v1507 = vpack.c.b16 %v1475, %v1473
        %1540 = vmatprep.subr.bf16.mxu0 %v1477
        %1541 = vmatpush1.bf16.msra.mxu0 %v1476
        %1542 = vmatprep.subr.bf16.mxu0 %v1479
        %1543 = vmatpush1.bf16.msra.mxu0 %v1478
        %1544 = vmatprep.subr.bf16.mxu0 %v1481
        %1545 = vmatpush1.bf16.msra.mxu0 %v1480
        %1546 = vmatprep.subr.bf16.mxu0 %v1483
        %1547 = vmatpush1.bf16.msra.mxu0 %v1482
        %1548 = vmatprep.subr.bf16.mxu0 %v1485
        %1549 = vmatpush1.bf16.msra.mxu0 %v1484
        %1550 = vmatprep.subr.bf16.mxu0 %v1487
        %1551 = vmatpush1.bf16.msra.mxu0 %v1486
        %1552 = vmatprep.subr.bf16.mxu0 %v1489
        %1553 = vmatpush1.bf16.msra.mxu0 %v1488
        %1554 = vmatprep.subr.bf16.mxu0 %v1491
        %1555 = vmatpush1.bf16.msra.mxu0 %v1490
        %1556 = vmatprep.subr.bf16.mxu0 %v1493
        %1557 = vmatpush1.bf16.msra.mxu0 %v1492
        %1558 = vmatprep.subr.bf16.mxu0 %v1495
        %1559 = vmatpush1.bf16.msra.mxu0 %v1494
        %1560 = vmatprep.subr.bf16.mxu0 %v1497
        %1561 = vmatpush1.bf16.msra.mxu0 %v1496
        %1562 = vmatprep.subr.bf16.mxu0 %v1499
        %1563 = vmatpush1.bf16.msra.mxu0 %v1498
        %1564 = vmatprep.subr.bf16.mxu0 %v1501
        %1565 = vmatpush1.bf16.msra.mxu0 %v1500
        %1566 = vmatprep.subr.bf16.mxu0 %v1503
        %1567 = vmatpush1.bf16.msra.mxu0 %v1502
        %1568 = vmatprep.subr.bf16.mxu0 %v1505
        %1569 = vmatpush1.bf16.msra.mxu0 %v1504
        %1570 = vmatprep.subr.bf16.mxu0 %v1507
        %1571 = vmatpush1.bf16.msra.mxu0 %v1506
        %1572 = vmatprep.mubr.bf16.mxu0 %v877
        %1573 = vmatmul.mubr.bf16.gmra.mrb[0].mxu0 %v876
        %v1574 = vpop.f32.mrb[0].mxu0
        %v1575 = vadd.f32 0.0, %v1574
        %v1576 = vpop.f32.mrb[0].mxu0
        %v1577 = vadd.f32 0.0, %v1576
        %v1578 = vpop.f32.mrb[0].mxu0
        %v1579 = vpop.f32.mrb[0].mxu0
        %1580 = vdwg.mxu0
        %v1581 = vadd.f32 %v1341, %v1575
        %v1582 = vadd.f32 %v1343, %v1577
        %v1583 = vld [vmem:[%s4] sm:$0x3]
        %v1585 = vlaneseq
        %v1586 = vshrl.u32 %v1585, 7
        %v1587 = vsub.s32 0, %v1586
        %v1588 = vrot.slane %v1583, %v1587
        %v1589 = vlaneseq
        %v1590 = vshrl.u32 %v1589, 7
        %v1591 = vsub.s32 1, %v1590
        %v1592 = vrot.slane %v1583, %v1591
        %v1595 = vadd.f32 %v1581, %v1588
        %v1596 = vadd.f32 %v1582, %v1592
        %v1597 = vmax.f32 %v1595, 0.0
        %v1598 = vmax.f32 %v1596, 0.0
        %v1601 = vcombine.low %v1597, %v1598
        %v1603 = vunpack.c.l.s4 1966171168
        %v1604 = vunpack.c.0.s8 %v1603
        %v1605 = vlaneseq
        %v1606 = vshrl.u32 %v1605, 7
        %v1607 = vsub.s32 %v1604, %v1606
        %v1608 = vrot.slane %v1601, %v1607
        %v1610 = vunpack.c.l.s4 1966171168
        %v1611 = vunpack.c.0.s8 %v1610
        %v1612 = vlaneseq
        %v1613 = vshrl.u32 %v1612, 7
        %v1614 = vsub.s32 %v1611, %v1613
        %v1615 = vrot.slane %v1608, %v1614
        %1617 = vst.msk [vmem:[%s845] ss:$8 sm:$0x3] %vm844, %v1615
        %1618 = vst.msk [vmem:[%s845] ss:$8 sm:$0x0] %vm844, %v1615
        %v1619 = vld [vmem:[%s848] ss:$8 sm:$0x3]
        %v1621 = vlaneseq
        %v1622 = vshrl.u32 %v1621, 7
        %v1623 = vsub.s32 0, %v1622
        %v1624 = vrot.slane %v1619, %v1623
        %v1625 = vlaneseq
        %v1626 = vshrl.u32 %v1625, 7
        %v1627 = vsub.s32 1, %v1626
        %v1628 = vrot.slane %v1619, %v1627
        %v1631 = vpack.c.bf16 %v1624, %v1624
        %v1632 = vpack.c.bf16 %v1628, %v1628
        %v1633 = vld [vmem:[%s863] ss:$8 sm:$0x3]
        %v1635 = vlaneseq
        %v1636 = vshrl.u32 %v1635, 7
        %v1637 = vsub.s32 0, %v1636
        %v1638 = vrot.slane %v1633, %v1637
        %v1639 = vlaneseq
        %v1640 = vshrl.u32 %v1639, 7
        %v1641 = vsub.s32 1, %v1640
        %v1642 = vrot.slane %v1633, %v1641
        %v1645 = vpack.c.bf16 %v1638, %v1638
        %v1646 = vpack.c.bf16 %v1642, %v1642
        %v1647 = vpack.c.bf16 %v1597, %v1597
        %v1648 = vpack.c.bf16 %v1598, %v1598
        %v1649 = vld [vmem:[%s5] sm:$0xff]
        %v1650 = vld [vmem:[%s5 + $0x8] sm:$0xff]
        %v1651 = vld [vmem:[%s5 + $0x10] sm:$0xff]
        %v1652 = vld [vmem:[%s5 + $0x18] sm:$0xff]
        %v1653 = vld [vmem:[%s5 + $0x20] sm:$0xff]
        %v1654 = vld [vmem:[%s5 + $0x28] sm:$0xff]
        %v1655 = vld [vmem:[%s5 + $0x30] sm:$0xff]
        %v1656 = vld [vmem:[%s5 + $0x38] sm:$0xff]
        %v1657 = vld [vmem:[%s5 + $0x40] sm:$0xff]
        %v1658 = vld [vmem:[%s5 + $0x48] sm:$0xff]
        %v1659 = vld [vmem:[%s5 + $0x50] sm:$0xff]
        %v1660 = vld [vmem:[%s5 + $0x58] sm:$0xff]
        %v1661 = vld [vmem:[%s5 + $0x60] sm:$0xff]
        %v1662 = vld [vmem:[%s5 + $0x68] sm:$0xff]
        %v1663 = vld [vmem:[%s5 + $0x70] sm:$0xff]
        %v1664 = vld [vmem:[%s5 + $0x78] sm:$0xff]
        %v1665 = vld [vmem:[%s5 + $0x80] sm:$0xff]
        %v1666 = vld [vmem:[%s5 + $0x88] sm:$0xff]
        %v1667 = vld [vmem:[%s5 + $0x90] sm:$0xff]
        %v1668 = vld [vmem:[%s5 + $0x98] sm:$0xff]
        %v1669 = vld [vmem:[%s5 + $0xa0] sm:$0xff]
        %v1670 = vld [vmem:[%s5 + $0xa8] sm:$0xff]
        %v1671 = vld [vmem:[%s5 + $0xb0] sm:$0xff]
        %v1672 = vld [vmem:[%s5 + $0xb8] sm:$0xff]
        %v1673 = vld [vmem:[%s5 + $0xc0] sm:$0xff]
        %v1674 = vld [vmem:[%s5 + $0xc8] sm:$0xff]
        %v1675 = vld [vmem:[%s5 + $0xd0] sm:$0xff]
        %v1676 = vld [vmem:[%s5 + $0xd8] sm:$0xff]
        %v1677 = vld [vmem:[%s5 + $0xe0] sm:$0xff]
        %v1678 = vld [vmem:[%s5 + $0xe8] sm:$0xff]
        %v1679 = vld [vmem:[%s5 + $0xf0] sm:$0xff]
        %v1680 = vld [vmem:[%s5 + $0xf8] sm:$0xff]
        %s1681 = scalar_lea.vmem %s5, 256
        %v1682 = vld [vmem:[%s1681] sm:$0xff]
        %v1683 = vld [vmem:[%s1681 + $0x8] sm:$0xff]
        %v1684 = vld [vmem:[%s1681 + $0x10] sm:$0xff]
        %v1685 = vld [vmem:[%s1681 + $0x18] sm:$0xff]
        %v1686 = vld [vmem:[%s1681 + $0x20] sm:$0xff]
        %v1687 = vld [vmem:[%s1681 + $0x28] sm:$0xff]
        %v1688 = vld [vmem:[%s1681 + $0x30] sm:$0xff]
        %v1689 = vld [vmem:[%s1681 + $0x38] sm:$0xff]
        %v1690 = vld [vmem:[%s1681 + $0x40] sm:$0xff]
        %v1691 = vld [vmem:[%s1681 + $0x48] sm:$0xff]
        %v1692 = vld [vmem:[%s1681 + $0x50] sm:$0xff]
        %v1693 = vld [vmem:[%s1681 + $0x58] sm:$0xff]
        %v1694 = vld [vmem:[%s1681 + $0x60] sm:$0xff]
        %v1695 = vld [vmem:[%s1681 + $0x68] sm:$0xff]
        %v1696 = vld [vmem:[%s1681 + $0x70] sm:$0xff]
        %v1697 = vld [vmem:[%s1681 + $0x78] sm:$0xff]
        %v1698 = vld [vmem:[%s1681 + $0x80] sm:$0xff]
        %v1699 = vld [vmem:[%s1681 + $0x88] sm:$0xff]
        %v1700 = vld [vmem:[%s1681 + $0x90] sm:$0xff]
        %v1701 = vld [vmem:[%s1681 + $0x98] sm:$0xff]
        %v1702 = vld [vmem:[%s1681 + $0xa0] sm:$0xff]
        %v1703 = vld [vmem:[%s1681 + $0xa8] sm:$0xff]
        %v1704 = vld [vmem:[%s1681 + $0xb0] sm:$0xff]
        %v1705 = vld [vmem:[%s1681 + $0xb8] sm:$0xff]
        %v1706 = vld [vmem:[%s1681 + $0xc0] sm:$0xff]
        %v1707 = vld [vmem:[%s1681 + $0xc8] sm:$0xff]
        %v1708 = vld [vmem:[%s1681 + $0xd0] sm:$0xff]
        %v1709 = vld [vmem:[%s1681 + $0xd8] sm:$0xff]
        %v1710 = vld [vmem:[%s1681 + $0xe0] sm:$0xff]
        %v1711 = vld [vmem:[%s1681 + $0xe8] sm:$0xff]
        %v1712 = vld [vmem:[%s1681 + $0xf0] sm:$0xff]
        %v1713 = vld [vmem:[%s1681 + $0xf8] sm:$0xff]
        %v1746 = vunpack.c.l.b16 %v1682
        %v1747 = vunpack.c.h.b16 %v1682
        %v1748 = vunpack.c.l.b16 %v1683
        %v1749 = vunpack.c.h.b16 %v1683
        %v1750 = vunpack.c.l.b16 %v1684
        %v1751 = vunpack.c.h.b16 %v1684
        %v1752 = vunpack.c.l.b16 %v1685
        %v1753 = vunpack.c.h.b16 %v1685
        %v1754 = vunpack.c.l.b16 %v1686
        %v1755 = vunpack.c.h.b16 %v1686
        %v1756 = vunpack.c.l.b16 %v1687
        %v1757 = vunpack.c.h.b16 %v1687
        %v1758 = vunpack.c.l.b16 %v1688
        %v1759 = vunpack.c.h.b16 %v1688
        %v1760 = vunpack.c.l.b16 %v1689
        %v1761 = vunpack.c.h.b16 %v1689
        %v1762 = vunpack.c.l.b16 %v1690
        %v1763 = vunpack.c.h.b16 %v1690
        %v1764 = vunpack.c.l.b16 %v1691
        %v1765 = vunpack.c.h.b16 %v1691
        %v1766 = vunpack.c.l.b16 %v1692
        %v1767 = vunpack.c.h.b16 %v1692
        %v1768 = vunpack.c.l.b16 %v1693
        %v1769 = vunpack.c.h.b16 %v1693
        %v1770 = vunpack.c.l.b16 %v1694
        %v1771 = vunpack.c.h.b16 %v1694
        %v1772 = vunpack.c.l.b16 %v1695
        %v1773 = vunpack.c.h.b16 %v1695
        %v1774 = vunpack.c.l.b16 %v1696
        %v1775 = vunpack.c.h.b16 %v1696
        %v1776 = vunpack.c.l.b16 %v1697
        %v1777 = vunpack.c.h.b16 %v1697
        %v1778 = vunpack.c.l.b16 %v1698
        %v1779 = vunpack.c.h.b16 %v1698
        %v1780 = vunpack.c.l.b16 %v1699
        %v1781 = vunpack.c.h.b16 %v1699
        %v1782 = vunpack.c.l.b16 %v1700
        %v1783 = vunpack.c.h.b16 %v1700
        %v1784 = vunpack.c.l.b16 %v1701
        %v1785 = vunpack.c.h.b16 %v1701
        %v1786 = vunpack.c.l.b16 %v1702
        %v1787 = vunpack.c.h.b16 %v1702
        %v1788 = vunpack.c.l.b16 %v1703
        %v1789 = vunpack.c.h.b16 %v1703
        %v1790 = vunpack.c.l.b16 %v1704
        %v1791 = vunpack.c.h.b16 %v1704
        %v1792 = vunpack.c.l.b16 %v1705
        %v1793 = vunpack.c.h.b16 %v1705
        %v1794 = vunpack.c.l.b16 %v1706
        %v1795 = vunpack.c.h.b16 %v1706
        %v1796 = vunpack.c.l.b16 %v1707
        %v1797 = vunpack.c.h.b16 %v1707
        %v1798 = vunpack.c.l.b16 %v1708
        %v1799 = vunpack.c.h.b16 %v1708
        %v1800 = vunpack.c.l.b16 %v1709
        %v1801 = vunpack.c.h.b16 %v1709
        %v1802 = vunpack.c.l.b16 %v1710
        %v1803 = vunpack.c.h.b16 %v1710
        %v1804 = vunpack.c.l.b16 %v1711
        %v1805 = vunpack.c.h.b16 %v1711
        %v1806 = vunpack.c.l.b16 %v1712
        %v1807 = vunpack.c.h.b16 %v1712
        %v1808 = vunpack.c.l.b16 %v1713
        %v1809 = vunpack.c.h.b16 %v1713
        %v1810 = vpack.c.b16 %v1748, %v1746
        %v1811 = vpack.c.b16 %v1749, %v1747
        %v1812 = vpack.c.b16 %v1752, %v1750
        %v1813 = vpack.c.b16 %v1753, %v1751
        %v1814 = vpack.c.b16 %v1756, %v1754
        %v1815 = vpack.c.b16 %v1757, %v1755
        %v1816 = vpack.c.b16 %v1760, %v1758
        %v1817 = vpack.c.b16 %v1761, %v1759
        %v1818 = vpack.c.b16 %v1764, %v1762
        %v1819 = vpack.c.b16 %v1765, %v1763
        %v1820 = vpack.c.b16 %v1768, %v1766
        %v1821 = vpack.c.b16 %v1769, %v1767
        %v1822 = vpack.c.b16 %v1772, %v1770
        %v1823 = vpack.c.b16 %v1773, %v1771
        %v1824 = vpack.c.b16 %v1776, %v1774
        %v1825 = vpack.c.b16 %v1777, %v1775
        %v1826 = vpack.c.b16 %v1780, %v1778
        %v1827 = vpack.c.b16 %v1781, %v1779
        %v1828 = vpack.c.b16 %v1784, %v1782
        %v1829 = vpack.c.b16 %v1785, %v1783
        %v1830 = vpack.c.b16 %v1788, %v1786
        %v1831 = vpack.c.b16 %v1789, %v1787
        %v1832 = vpack.c.b16 %v1792, %v1790
        %v1833 = vpack.c.b16 %v1793, %v1791
        %v1834 = vpack.c.b16 %v1796, %v1794
        %v1835 = vpack.c.b16 %v1797, %v1795
        %v1836 = vpack.c.b16 %v1800, %v1798
        %v1837 = vpack.c.b16 %v1801, %v1799
        %v1838 = vpack.c.b16 %v1804, %v1802
        %v1839 = vpack.c.b16 %v1805, %v1803
        %v1840 = vpack.c.b16 %v1808, %v1806
        %v1841 = vpack.c.b16 %v1809, %v1807
        %1874 = vmatprep.subr.bf16.mxu0 %v1811
        %1875 = vmatpush1.bf16.msra.mxu0 %v1810
        %1876 = vmatprep.subr.bf16.mxu0 %v1813
        %1877 = vmatpush1.bf16.msra.mxu0 %v1812
        %1878 = vmatprep.subr.bf16.mxu0 %v1815
        %1879 = vmatpush1.bf16.msra.mxu0 %v1814
        %1880 = vmatprep.subr.bf16.mxu0 %v1817
        %1881 = vmatpush1.bf16.msra.mxu0 %v1816
        %1882 = vmatprep.subr.bf16.mxu0 %v1819
        %1883 = vmatpush1.bf16.msra.mxu0 %v1818
        %1884 = vmatprep.subr.bf16.mxu0 %v1821
        %1885 = vmatpush1.bf16.msra.mxu0 %v1820
        %1886 = vmatprep.subr.bf16.mxu0 %v1823
        %1887 = vmatpush1.bf16.msra.mxu0 %v1822
        %1888 = vmatprep.subr.bf16.mxu0 %v1825
        %1889 = vmatpush1.bf16.msra.mxu0 %v1824
        %1890 = vmatprep.subr.bf16.mxu0 %v1827
        %1891 = vmatpush1.bf16.msra.mxu0 %v1826
        %1892 = vmatprep.subr.bf16.mxu0 %v1829
        %1893 = vmatpush1.bf16.msra.mxu0 %v1828
        %1894 = vmatprep.subr.bf16.mxu0 %v1831
        %1895 = vmatpush1.bf16.msra.mxu0 %v1830
        %1896 = vmatprep.subr.bf16.mxu0 %v1833
        %1897 = vmatpush1.bf16.msra.mxu0 %v1832
        %1898 = vmatprep.subr.bf16.mxu0 %v1835
        %1899 = vmatpush1.bf16.msra.mxu0 %v1834
        %1900 = vmatprep.subr.bf16.mxu0 %v1837
        %1901 = vmatpush1.bf16.msra.mxu0 %v1836
        %1902 = vmatprep.subr.bf16.mxu0 %v1839
        %1903 = vmatpush1.bf16.msra.mxu0 %v1838
        %1904 = vmatprep.subr.bf16.mxu0 %v1841
        %1905 = vmatpush1.bf16.msra.mxu0 %v1840
        %1906 = vmatprep.mubr.bf16.mxu0 %v1648
        %1907 = vmatmul.mubr.bf16.gmra.mrb[0].mxu0 %v1647
        %v1908 = vpop.f32.mrb[0].mxu0
        %v1909 = vadd.f32 0.0, %v1908
        %v1910 = vpop.f32.mrb[0].mxu0
        %v1911 = vadd.f32 0.0, %v1910
        %v1912 = vpop.f32.mrb[0].mxu0
        %v1913 = vpop.f32.mrb[0].mxu0
        %1914 = vdwg.mxu0
        %v1947 = vunpack.c.l.b16 %v1649
        %v1948 = vunpack.c.h.b16 %v1649
        %v1949 = vunpack.c.l.b16 %v1650
        %v1950 = vunpack.c.h.b16 %v1650
        %v1951 = vunpack.c.l.b16 %v1651
        %v1952 = vunpack.c.h.b16 %v1651
        %v1953 = vunpack.c.l.b16 %v1652
        %v1954 = vunpack.c.h.b16 %v1652
        %v1955 = vunpack.c.l.b16 %v1653
        %v1956 = vunpack.c.h.b16 %v1653
        %v1957 = vunpack.c.l.b16 %v1654
        %v1958 = vunpack.c.h.b16 %v1654
        %v1959 = vunpack.c.l.b16 %v1655
        %v1960 = vunpack.c.h.b16 %v1655
        %v1961 = vunpack.c.l.b16 %v1656
        %v1962 = vunpack.c.h.b16 %v1656
        %v1963 = vunpack.c.l.b16 %v1657
        %v1964 = vunpack.c.h.b16 %v1657
        %v1965 = vunpack.c.l.b16 %v1658
        %v1966 = vunpack.c.h.b16 %v1658
        %v1967 = vunpack.c.l.b16 %v1659
        %v1968 = vunpack.c.h.b16 %v1659
        %v1969 = vunpack.c.l.b16 %v1660
        %v1970 = vunpack.c.h.b16 %v1660
        %v1971 = vunpack.c.l.b16 %v1661
        %v1972 = vunpack.c.h.b16 %v1661
        %v1973 = vunpack.c.l.b16 %v1662
        %v1974 = vunpack.c.h.b16 %v1662
        %v1975 = vunpack.c.l.b16 %v1663
        %v1976 = vunpack.c.h.b16 %v1663
        %v1977 = vunpack.c.l.b16 %v1664
        %v1978 = vunpack.c.h.b16 %v1664
        %v1979 = vunpack.c.l.b16 %v1665
        %v1980 = vunpack.c.h.b16 %v1665
        %v1981 = vunpack.c.l.b16 %v1666
        %v1982 = vunpack.c.h.b16 %v1666
        %v1983 = vunpack.c.l.b16 %v1667
        %v1984 = vunpack.c.h.b16 %v1667
        %v1985 = vunpack.c.l.b16 %v1668
        %v1986 = vunpack.c.h.b16 %v1668
        %v1987 = vunpack.c.l.b16 %v1669
        %v1988 = vunpack.c.h.b16 %v1669
        %v1989 = vunpack.c.l.b16 %v1670
        %v1990 = vunpack.c.h.b16 %v1670
        %v1991 = vunpack.c.l.b16 %v1671
        %v1992 = vunpack.c.h.b16 %v1671
        %v1993 = vunpack.c.l.b16 %v1672
        %v1994 = vunpack.c.h.b16 %v1672
        %v1995 = vunpack.c.l.b16 %v1673
        %v1996 = vunpack.c.h.b16 %v1673
        %v1997 = vunpack.c.l.b16 %v1674
        %v1998 = vunpack.c.h.b16 %v1674
        %v1999 = vunpack.c.l.b16 %v1675
        %v2000 = vunpack.c.h.b16 %v1675
        %v2001 = vunpack.c.l.b16 %v1676
        %v2002 = vunpack.c.h.b16 %v1676
        %v2003 = vunpack.c.l.b16 %v1677
        %v2004 = vunpack.c.h.b16 %v1677
        %v2005 = vunpack.c.l.b16 %v1678
        %v2006 = vunpack.c.h.b16 %v1678
        %v2007 = vunpack.c.l.b16 %v1679
        %v2008 = vunpack.c.h.b16 %v1679
        %v2009 = vunpack.c.l.b16 %v1680
        %v2010 = vunpack.c.h.b16 %v1680
        %v2011 = vpack.c.b16 %v1949, %v1947
        %v2012 = vpack.c.b16 %v1950, %v1948
        %v2013 = vpack.c.b16 %v1953, %v1951
        %v2014 = vpack.c.b16 %v1954, %v1952
        %v2015 = vpack.c.b16 %v1957, %v1955
        %v2016 = vpack.c.b16 %v1958, %v1956
        %v2017 = vpack.c.b16 %v1961, %v1959
        %v2018 = vpack.c.b16 %v1962, %v1960
        %v2019 = vpack.c.b16 %v1965, %v1963
        %v2020 = vpack.c.b16 %v1966, %v1964
        %v2021 = vpack.c.b16 %v1969, %v1967
        %v2022 = vpack.c.b16 %v1970, %v1968
        %v2023 = vpack.c.b16 %v1973, %v1971
        %v2024 = vpack.c.b16 %v1974, %v1972
        %v2025 = vpack.c.b16 %v1977, %v1975
        %v2026 = vpack.c.b16 %v1978, %v1976
        %v2027 = vpack.c.b16 %v1981, %v1979
        %v2028 = vpack.c.b16 %v1982, %v1980
        %v2029 = vpack.c.b16 %v1985, %v1983
        %v2030 = vpack.c.b16 %v1986, %v1984
        %v2031 = vpack.c.b16 %v1989, %v1987
        %v2032 = vpack.c.b16 %v1990, %v1988
        %v2033 = vpack.c.b16 %v1993, %v1991
        %v2034 = vpack.c.b16 %v1994, %v1992
        %v2035 = vpack.c.b16 %v1997, %v1995
        %v2036 = vpack.c.b16 %v1998, %v1996
        %v2037 = vpack.c.b16 %v2001, %v1999
        %v2038 = vpack.c.b16 %v2002, %v2000
        %v2039 = vpack.c.b16 %v2005, %v2003
        %v2040 = vpack.c.b16 %v2006, %v2004
        %v2041 = vpack.c.b16 %v2009, %v2007
        %v2042 = vpack.c.b16 %v2010, %v2008
        %2075 = vmatprep.subr.bf16.mxu0 %v2012
        %2076 = vmatpush1.bf16.msra.mxu0 %v2011
        %2077 = vmatprep.subr.bf16.mxu0 %v2014
        %2078 = vmatpush1.bf16.msra.mxu0 %v2013
        %2079 = vmatprep.subr.bf16.mxu0 %v2016
        %2080 = vmatpush1.bf16.msra.mxu0 %v2015
        %2081 = vmatprep.subr.bf16.mxu0 %v2018
        %2082 = vmatpush1.bf16.msra.mxu0 %v2017
        %2083 = vmatprep.subr.bf16.mxu0 %v2020
        %2084 = vmatpush1.bf16.msra.mxu0 %v2019
        %2085 = vmatprep.subr.bf16.mxu0 %v2022
        %2086 = vmatpush1.bf16.msra.mxu0 %v2021
        %2087 = vmatprep.subr.bf16.mxu0 %v2024
        %2088 = vmatpush1.bf16.msra.mxu0 %v2023
        %2089 = vmatprep.subr.bf16.mxu0 %v2026
        %2090 = vmatpush1.bf16.msra.mxu0 %v2025
        %2091 = vmatprep.subr.bf16.mxu0 %v2028
        %2092 = vmatpush1.bf16.msra.mxu0 %v2027
        %2093 = vmatprep.subr.bf16.mxu0 %v2030
        %2094 = vmatpush1.bf16.msra.mxu0 %v2029
        %2095 = vmatprep.subr.bf16.mxu0 %v2032
        %2096 = vmatpush1.bf16.msra.mxu0 %v2031
        %2097 = vmatprep.subr.bf16.mxu0 %v2034
        %2098 = vmatpush1.bf16.msra.mxu0 %v2033
        %2099 = vmatprep.subr.bf16.mxu0 %v2036
        %2100 = vmatpush1.bf16.msra.mxu0 %v2035
        %2101 = vmatprep.subr.bf16.mxu0 %v2038
        %2102 = vmatpush1.bf16.msra.mxu0 %v2037
        %2103 = vmatprep.subr.bf16.mxu0 %v2040
        %2104 = vmatpush1.bf16.msra.mxu0 %v2039
        %2105 = vmatprep.subr.bf16.mxu0 %v2042
        %2106 = vmatpush1.bf16.msra.mxu0 %v2041
        %2107 = vmatprep.mubr.bf16.mxu0 %v1632
        %2108 = vmatmul.mubr.bf16.gmra.mrb[0].mxu0 %v1631
        %v2109 = vpop.f32.mrb[0].mxu0
        %v2110 = vadd.f32 %v1909, %v2109
        %v2111 = vpop.f32.mrb[0].mxu0
        %v2112 = vadd.f32 %v1911, %v2111
        %v2113 = vpop.f32.mrb[0].mxu0
        %v2114 = vpop.f32.mrb[0].mxu0
        %2115 = vdwg.mxu0
        %s2116 = scalar_lea.vmem %s5, 512
        %v2117 = vld [vmem:[%s2116] sm:$0xff]
        %v2118 = vld [vmem:[%s2116 + $0x8] sm:$0xff]
        %v2119 = vld [vmem:[%s2116 + $0x10] sm:$0xff]
        %v2120 = vld [vmem:[%s2116 + $0x18] sm:$0xff]
        %v2121 = vld [vmem:[%s2116 + $0x20] sm:$0xff]
        %v2122 = vld [vmem:[%s2116 + $0x28] sm:$0xff]
        %v2123 = vld [vmem:[%s2116 + $0x30] sm:$0xff]
        %v2124 = vld [vmem:[%s2116 + $0x38] sm:$0xff]
        %v2125 = vld [vmem:[%s2116 + $0x40] sm:$0xff]
        %v2126 = vld [vmem:[%s2116 + $0x48] sm:$0xff]
        %v2127 = vld [vmem:[%s2116 + $0x50] sm:$0xff]
        %v2128 = vld [vmem:[%s2116 + $0x58] sm:$0xff]
        %v2129 = vld [vmem:[%s2116 + $0x60] sm:$0xff]
        %v2130 = vld [vmem:[%s2116 + $0x68] sm:$0xff]
        %v2131 = vld [vmem:[%s2116 + $0x70] sm:$0xff]
        %v2132 = vld [vmem:[%s2116 + $0x78] sm:$0xff]
        %v2133 = vld [vmem:[%s2116 + $0x80] sm:$0xff]
        %v2134 = vld [vmem:[%s2116 + $0x88] sm:$0xff]
        %v2135 = vld [vmem:[%s2116 + $0x90] sm:$0xff]
        %v2136 = vld [vmem:[%s2116 + $0x98] sm:$0xff]
        %v2137 = vld [vmem:[%s2116 + $0xa0] sm:$0xff]
        %v2138 = vld [vmem:[%s2116 + $0xa8] sm:$0xff]
        %v2139 = vld [vmem:[%s2116 + $0xb0] sm:$0xff]
        %v2140 = vld [vmem:[%s2116 + $0xb8] sm:$0xff]
        %v2141 = vld [vmem:[%s2116 + $0xc0] sm:$0xff]
        %v2142 = vld [vmem:[%s2116 + $0xc8] sm:$0xff]
        %v2143 = vld [vmem:[%s2116 + $0xd0] sm:$0xff]
        %v2144 = vld [vmem:[%s2116 + $0xd8] sm:$0xff]
        %v2145 = vld [vmem:[%s2116 + $0xe0] sm:$0xff]
        %v2146 = vld [vmem:[%s2116 + $0xe8] sm:$0xff]
        %v2147 = vld [vmem:[%s2116 + $0xf0] sm:$0xff]
        %v2148 = vld [vmem:[%s2116 + $0xf8] sm:$0xff]
        %v2181 = vunpack.c.l.b16 %v2117
        %v2182 = vunpack.c.h.b16 %v2117
        %v2183 = vunpack.c.l.b16 %v2118
        %v2184 = vunpack.c.h.b16 %v2118
        %v2185 = vunpack.c.l.b16 %v2119
        %v2186 = vunpack.c.h.b16 %v2119
        %v2187 = vunpack.c.l.b16 %v2120
        %v2188 = vunpack.c.h.b16 %v2120
        %v2189 = vunpack.c.l.b16 %v2121
        %v2190 = vunpack.c.h.b16 %v2121
        %v2191 = vunpack.c.l.b16 %v2122
        %v2192 = vunpack.c.h.b16 %v2122
        %v2193 = vunpack.c.l.b16 %v2123
        %v2194 = vunpack.c.h.b16 %v2123
        %v2195 = vunpack.c.l.b16 %v2124
        %v2196 = vunpack.c.h.b16 %v2124
        %v2197 = vunpack.c.l.b16 %v2125
        %v2198 = vunpack.c.h.b16 %v2125
        %v2199 = vunpack.c.l.b16 %v2126
        %v2200 = vunpack.c.h.b16 %v2126
        %v2201 = vunpack.c.l.b16 %v2127
        %v2202 = vunpack.c.h.b16 %v2127
        %v2203 = vunpack.c.l.b16 %v2128
        %v2204 = vunpack.c.h.b16 %v2128
        %v2205 = vunpack.c.l.b16 %v2129
        %v2206 = vunpack.c.h.b16 %v2129
        %v2207 = vunpack.c.l.b16 %v2130
        %v2208 = vunpack.c.h.b16 %v2130
        %v2209 = vunpack.c.l.b16 %v2131
        %v2210 = vunpack.c.h.b16 %v2131
        %v2211 = vunpack.c.l.b16 %v2132
        %v2212 = vunpack.c.h.b16 %v2132
        %v2213 = vunpack.c.l.b16 %v2133
        %v2214 = vunpack.c.h.b16 %v2133
        %v2215 = vunpack.c.l.b16 %v2134
        %v2216 = vunpack.c.h.b16 %v2134
        %v2217 = vunpack.c.l.b16 %v2135
        %v2218 = vunpack.c.h.b16 %v2135
        %v2219 = vunpack.c.l.b16 %v2136
        %v2220 = vunpack.c.h.b16 %v2136
        %v2221 = vunpack.c.l.b16 %v2137
        %v2222 = vunpack.c.h.b16 %v2137
        %v2223 = vunpack.c.l.b16 %v2138
        %v2224 = vunpack.c.h.b16 %v2138
        %v2225 = vunpack.c.l.b16 %v2139
        %v2226 = vunpack.c.h.b16 %v2139
        %v2227 = vunpack.c.l.b16 %v2140
        %v2228 = vunpack.c.h.b16 %v2140
        %v2229 = vunpack.c.l.b16 %v2141
        %v2230 = vunpack.c.h.b16 %v2141
        %v2231 = vunpack.c.l.b16 %v2142
        %v2232 = vunpack.c.h.b16 %v2142
        %v2233 = vunpack.c.l.b16 %v2143
        %v2234 = vunpack.c.h.b16 %v2143
        %v2235 = vunpack.c.l.b16 %v2144
        %v2236 = vunpack.c.h.b16 %v2144
        %v2237 = vunpack.c.l.b16 %v2145
        %v2238 = vunpack.c.h.b16 %v2145
        %v2239 = vunpack.c.l.b16 %v2146
        %v2240 = vunpack.c.h.b16 %v2146
        %v2241 = vunpack.c.l.b16 %v2147
        %v2242 = vunpack.c.h.b16 %v2147
        %v2243 = vunpack.c.l.b16 %v2148
        %v2244 = vunpack.c.h.b16 %v2148
        %v2245 = vpack.c.b16 %v2183, %v2181
        %v2246 = vpack.c.b16 %v2184, %v2182
        %v2247 = vpack.c.b16 %v2187, %v2185
        %v2248 = vpack.c.b16 %v2188, %v2186
        %v2249 = vpack.c.b16 %v2191, %v2189
        %v2250 = vpack.c.b16 %v2192, %v2190
        %v2251 = vpack.c.b16 %v2195, %v2193
        %v2252 = vpack.c.b16 %v2196, %v2194
        %v2253 = vpack.c.b16 %v2199, %v2197
        %v2254 = vpack.c.b16 %v2200, %v2198
        %v2255 = vpack.c.b16 %v2203, %v2201
        %v2256 = vpack.c.b16 %v2204, %v2202
        %v2257 = vpack.c.b16 %v2207, %v2205
        %v2258 = vpack.c.b16 %v2208, %v2206
        %v2259 = vpack.c.b16 %v2211, %v2209
        %v2260 = vpack.c.b16 %v2212, %v2210
        %v2261 = vpack.c.b16 %v2215, %v2213
        %v2262 = vpack.c.b16 %v2216, %v2214
        %v2263 = vpack.c.b16 %v2219, %v2217
        %v2264 = vpack.c.b16 %v2220, %v2218
        %v2265 = vpack.c.b16 %v2223, %v2221
        %v2266 = vpack.c.b16 %v2224, %v2222
        %v2267 = vpack.c.b16 %v2227, %v2225
        %v2268 = vpack.c.b16 %v2228, %v2226
        %v2269 = vpack.c.b16 %v2231, %v2229
        %v2270 = vpack.c.b16 %v2232, %v2230
        %v2271 = vpack.c.b16 %v2235, %v2233
        %v2272 = vpack.c.b16 %v2236, %v2234
        %v2273 = vpack.c.b16 %v2239, %v2237
        %v2274 = vpack.c.b16 %v2240, %v2238
        %v2275 = vpack.c.b16 %v2243, %v2241
        %v2276 = vpack.c.b16 %v2244, %v2242
        %2309 = vmatprep.subr.bf16.mxu0 %v2246
        %2310 = vmatpush1.bf16.msra.mxu0 %v2245
        %2311 = vmatprep.subr.bf16.mxu0 %v2248
        %2312 = vmatpush1.bf16.msra.mxu0 %v2247
        %2313 = vmatprep.subr.bf16.mxu0 %v2250
        %2314 = vmatpush1.bf16.msra.mxu0 %v2249
        %2315 = vmatprep.subr.bf16.mxu0 %v2252
        %2316 = vmatpush1.bf16.msra.mxu0 %v2251
        %2317 = vmatprep.subr.bf16.mxu0 %v2254
        %2318 = vmatpush1.bf16.msra.mxu0 %v2253
        %2319 = vmatprep.subr.bf16.mxu0 %v2256
        %2320 = vmatpush1.bf16.msra.mxu0 %v2255
        %2321 = vmatprep.subr.bf16.mxu0 %v2258
        %2322 = vmatpush1.bf16.msra.mxu0 %v2257
        %2323 = vmatprep.subr.bf16.mxu0 %v2260
        %2324 = vmatpush1.bf16.msra.mxu0 %v2259
        %2325 = vmatprep.subr.bf16.mxu0 %v2262
        %2326 = vmatpush1.bf16.msra.mxu0 %v2261
        %2327 = vmatprep.subr.bf16.mxu0 %v2264
        %2328 = vmatpush1.bf16.msra.mxu0 %v2263
        %2329 = vmatprep.subr.bf16.mxu0 %v2266
        %2330 = vmatpush1.bf16.msra.mxu0 %v2265
        %2331 = vmatprep.subr.bf16.mxu0 %v2268
        %2332 = vmatpush1.bf16.msra.mxu0 %v2267
        %2333 = vmatprep.subr.bf16.mxu0 %v2270
        %2334 = vmatpush1.bf16.msra.mxu0 %v2269
        %2335 = vmatprep.subr.bf16.mxu0 %v2272
        %2336 = vmatpush1.bf16.msra.mxu0 %v2271
        %2337 = vmatprep.subr.bf16.mxu0 %v2274
        %2338 = vmatpush1.bf16.msra.mxu0 %v2273
        %2339 = vmatprep.subr.bf16.mxu0 %v2276
        %2340 = vmatpush1.bf16.msra.mxu0 %v2275
        %2341 = vmatprep.mubr.bf16.mxu0 %v1646
        %2342 = vmatmul.mubr.bf16.gmra.mrb[0].mxu0 %v1645
        %v2343 = vpop.f32.mrb[0].mxu0
        %v2344 = vadd.f32 0.0, %v2343
        %v2345 = vpop.f32.mrb[0].mxu0
        %v2346 = vadd.f32 0.0, %v2345
        %v2347 = vpop.f32.mrb[0].mxu0
        %v2348 = vpop.f32.mrb[0].mxu0
        %2349 = vdwg.mxu0
        %v2350 = vadd.f32 %v2110, %v2344
        %v2351 = vadd.f32 %v2112, %v2346
        %v2352 = vld [vmem:[%s6] sm:$0x3]
        %v2354 = vlaneseq
        %v2355 = vshrl.u32 %v2354, 7
        %v2356 = vsub.s32 0, %v2355
        %v2357 = vrot.slane %v2352, %v2356
        %v2358 = vlaneseq
        %v2359 = vshrl.u32 %v2358, 7
        %v2360 = vsub.s32 1, %v2359
        %v2361 = vrot.slane %v2352, %v2360
        %v2364 = vadd.f32 %v2350, %v2357
        %v2365 = vadd.f32 %v2351, %v2361
        %v2366 = vmax.f32 %v2364, 0.0
        %v2367 = vmax.f32 %v2365, 0.0
        %v2370 = vcombine.low %v2366, %v2367
        %v2372 = vunpack.c.l.s4 1966171168
        %v2373 = vunpack.c.0.s8 %v2372
        %v2374 = vlaneseq
        %v2375 = vshrl.u32 %v2374, 7
        %v2376 = vsub.s32 %v2373, %v2375
        %v2377 = vrot.slane %v2370, %v2376
        %v2379 = vunpack.c.l.s4 1966171168
        %v2380 = vunpack.c.0.s8 %v2379
        %v2381 = vlaneseq
        %v2382 = vshrl.u32 %v2381, 7
        %v2383 = vsub.s32 %v2380, %v2382
        %v2384 = vrot.slane %v2377, %v2383
        %2386 = vst.msk [vmem:[%s845] ss:$8 sm:$0x3] %vm844, %v2384
        %2387 = vst.msk [vmem:[%s845] ss:$8 sm:$0x0] %vm844, %v2384
        %v2388 = vld [vmem:[%s848] ss:$8 sm:$0x3]
        %v2390 = vlaneseq
        %v2391 = vshrl.u32 %v2390, 7
        %v2392 = vsub.s32 0, %v2391
        %v2393 = vrot.slane %v2388, %v2392
        %v2394 = vlaneseq
        %v2395 = vshrl.u32 %v2394, 7
        %v2396 = vsub.s32 1, %v2395
        %v2397 = vrot.slane %v2388, %v2396
        %v2400 = vpack.c.bf16 %v2393, %v2393
        %v2401 = vpack.c.bf16 %v2397, %v2397
        %v2402 = vld [vmem:[%s863] ss:$8 sm:$0x3]
        %v2404 = vlaneseq
        %v2405 = vshrl.u32 %v2404, 7
        %v2406 = vsub.s32 0, %v2405
        %v2407 = vrot.slane %v2402, %v2406
        %v2408 = vlaneseq
        %v2409 = vshrl.u32 %v2408, 7
        %v2410 = vsub.s32 1, %v2409
        %v2411 = vrot.slane %v2402, %v2410
        %v2414 = vpack.c.bf16 %v2407, %v2407
        %v2415 = vpack.c.bf16 %v2411, %v2411
        %v2416 = vpack.c.bf16 %v2366, %v2366
        %v2417 = vpack.c.bf16 %v2367, %v2367
        %v2418 = vld [vmem:[%s7] sm:$0xff]
        %v2419 = vld [vmem:[%s7 + $0x8] sm:$0xff]
        %v2420 = vld [vmem:[%s7 + $0x10] sm:$0xff]
        %v2421 = vld [vmem:[%s7 + $0x18] sm:$0xff]
        %v2422 = vld [vmem:[%s7 + $0x20] sm:$0xff]
        %v2423 = vld [vmem:[%s7 + $0x28] sm:$0xff]
        %v2424 = vld [vmem:[%s7 + $0x30] sm:$0xff]
        %v2425 = vld [vmem:[%s7 + $0x38] sm:$0xff]
        %v2426 = vld [vmem:[%s7 + $0x40] sm:$0xff]
        %v2427 = vld [vmem:[%s7 + $0x48] sm:$0xff]
        %v2428 = vld [vmem:[%s7 + $0x50] sm:$0xff]
        %v2429 = vld [vmem:[%s7 + $0x58] sm:$0xff]
        %v2430 = vld [vmem:[%s7 + $0x60] sm:$0xff]
        %v2431 = vld [vmem:[%s7 + $0x68] sm:$0xff]
        %v2432 = vld [vmem:[%s7 + $0x70] sm:$0xff]
        %v2433 = vld [vmem:[%s7 + $0x78] sm:$0xff]
        %v2434 = vld [vmem:[%s7 + $0x80] sm:$0xff]
        %v2435 = vld [vmem:[%s7 + $0x88] sm:$0xff]
        %v2436 = vld [vmem:[%s7 + $0x90] sm:$0xff]
        %v2437 = vld [vmem:[%s7 + $0x98] sm:$0xff]
        %v2438 = vld [vmem:[%s7 + $0xa0] sm:$0xff]
        %v2439 = vld [vmem:[%s7 + $0xa8] sm:$0xff]
        %v2440 = vld [vmem:[%s7 + $0xb0] sm:$0xff]
        %v2441 = vld [vmem:[%s7 + $0xb8] sm:$0xff]
        %v2442 = vld [vmem:[%s7 + $0xc0] sm:$0xff]
        %v2443 = vld [vmem:[%s7 + $0xc8] sm:$0xff]
        %v2444 = vld [vmem:[%s7 + $0xd0] sm:$0xff]
        %v2445 = vld [vmem:[%s7 + $0xd8] sm:$0xff]
        %v2446 = vld [vmem:[%s7 + $0xe0] sm:$0xff]
        %v2447 = vld [vmem:[%s7 + $0xe8] sm:$0xff]
        %v2448 = vld [vmem:[%s7 + $0xf0] sm:$0xff]
        %v2449 = vld [vmem:[%s7 + $0xf8] sm:$0xff]
        %s2450 = scalar_lea.vmem %s7, 256
        %v2451 = vld [vmem:[%s2450] sm:$0xff]
        %v2452 = vld [vmem:[%s2450 + $0x8] sm:$0xff]
        %v2453 = vld [vmem:[%s2450 + $0x10] sm:$0xff]
        %v2454 = vld [vmem:[%s2450 + $0x18] sm:$0xff]
        %v2455 = vld [vmem:[%s2450 + $0x20] sm:$0xff]
        %v2456 = vld [vmem:[%s2450 + $0x28] sm:$0xff]
        %v2457 = vld [vmem:[%s2450 + $0x30] sm:$0xff]
        %v2458 = vld [vmem:[%s2450 + $0x38] sm:$0xff]
        %v2459 = vld [vmem:[%s2450 + $0x40] sm:$0xff]
        %v2460 = vld [vmem:[%s2450 + $0x48] sm:$0xff]
        %v2461 = vld [vmem:[%s2450 + $0x50] sm:$0xff]
        %v2462 = vld [vmem:[%s2450 + $0x58] sm:$0xff]
        %v2463 = vld [vmem:[%s2450 + $0x60] sm:$0xff]
        %v2464 = vld [vmem:[%s2450 + $0x68] sm:$0xff]
        %v2465 = vld [vmem:[%s2450 + $0x70] sm:$0xff]
        %v2466 = vld [vmem:[%s2450 + $0x78] sm:$0xff]
        %v2467 = vld [vmem:[%s2450 + $0x80] sm:$0xff]
        %v2468 = vld [vmem:[%s2450 + $0x88] sm:$0xff]
        %v2469 = vld [vmem:[%s2450 + $0x90] sm:$0xff]
        %v2470 = vld [vmem:[%s2450 + $0x98] sm:$0xff]
        %v2471 = vld [vmem:[%s2450 + $0xa0] sm:$0xff]
        %v2472 = vld [vmem:[%s2450 + $0xa8] sm:$0xff]
        %v2473 = vld [vmem:[%s2450 + $0xb0] sm:$0xff]
        %v2474 = vld [vmem:[%s2450 + $0xb8] sm:$0xff]
        %v2475 = vld [vmem:[%s2450 + $0xc0] sm:$0xff]
        %v2476 = vld [vmem:[%s2450 + $0xc8] sm:$0xff]
        %v2477 = vld [vmem:[%s2450 + $0xd0] sm:$0xff]
        %v2478 = vld [vmem:[%s2450 + $0xd8] sm:$0xff]
        %v2479 = vld [vmem:[%s2450 + $0xe0] sm:$0xff]
        %v2480 = vld [vmem:[%s2450 + $0xe8] sm:$0xff]
        %v2481 = vld [vmem:[%s2450 + $0xf0] sm:$0xff]
        %v2482 = vld [vmem:[%s2450 + $0xf8] sm:$0xff]
        %v2515 = vunpack.c.l.b16 %v2451
        %v2516 = vunpack.c.h.b16 %v2451
        %v2517 = vunpack.c.l.b16 %v2452
        %v2518 = vunpack.c.h.b16 %v2452
        %v2519 = vunpack.c.l.b16 %v2453
        %v2520 = vunpack.c.h.b16 %v2453
        %v2521 = vunpack.c.l.b16 %v2454
        %v2522 = vunpack.c.h.b16 %v2454
        %v2523 = vunpack.c.l.b16 %v2455
        %v2524 = vunpack.c.h.b16 %v2455
        %v2525 = vunpack.c.l.b16 %v2456
        %v2526 = vunpack.c.h.b16 %v2456
        %v2527 = vunpack.c.l.b16 %v2457
        %v2528 = vunpack.c.h.b16 %v2457
        %v2529 = vunpack.c.l.b16 %v2458
        %v2530 = vunpack.c.h.b16 %v2458
        %v2531 = vunpack.c.l.b16 %v2459
        %v2532 = vunpack.c.h.b16 %v2459
        %v2533 = vunpack.c.l.b16 %v2460
        %v2534 = vunpack.c.h.b16 %v2460
        %v2535 = vunpack.c.l.b16 %v2461
        %v2536 = vunpack.c.h.b16 %v2461
        %v2537 = vunpack.c.l.b16 %v2462
        %v2538 = vunpack.c.h.b16 %v2462
        %v2539 = vunpack.c.l.b16 %v2463
        %v2540 = vunpack.c.h.b16 %v2463
        %v2541 = vunpack.c.l.b16 %v2464
        %v2542 = vunpack.c.h.b16 %v2464
        %v2543 = vunpack.c.l.b16 %v2465
        %v2544 = vunpack.c.h.b16 %v2465
        %v2545 = vunpack.c.l.b16 %v2466
        %v2546 = vunpack.c.h.b16 %v2466
        %v2547 = vunpack.c.l.b16 %v2467
        %v2548 = vunpack.c.h.b16 %v2467
        %v2549 = vunpack.c.l.b16 %v2468
        %v2550 = vunpack.c.h.b16 %v2468
        %v2551 = vunpack.c.l.b16 %v2469
        %v2552 = vunpack.c.h.b16 %v2469
        %v2553 = vunpack.c.l.b16 %v2470
        %v2554 = vunpack.c.h.b16 %v2470
        %v2555 = vunpack.c.l.b16 %v2471
        %v2556 = vunpack.c.h.b16 %v2471
        %v2557 = vunpack.c.l.b16 %v2472
        %v2558 = vunpack.c.h.b16 %v2472
        %v2559 = vunpack.c.l.b16 %v2473
        %v2560 = vunpack.c.h.b16 %v2473
        %v2561 = vunpack.c.l.b16 %v2474
        %v2562 = vunpack.c.h.b16 %v2474
        %v2563 = vunpack.c.l.b16 %v2475
        %v2564 = vunpack.c.h.b16 %v2475
        %v2565 = vunpack.c.l.b16 %v2476
        %v2566 = vunpack.c.h.b16 %v2476
        %v2567 = vunpack.c.l.b16 %v2477
        %v2568 = vunpack.c.h.b16 %v2477
        %v2569 = vunpack.c.l.b16 %v2478
        %v2570 = vunpack.c.h.b16 %v2478
        %v2571 = vunpack.c.l.b16 %v2479
        %v2572 = vunpack.c.h.b16 %v2479
        %v2573 = vunpack.c.l.b16 %v2480
        %v2574 = vunpack.c.h.b16 %v2480
        %v2575 = vunpack.c.l.b16 %v2481
        %v2576 = vunpack.c.h.b16 %v2481
        %v2577 = vunpack.c.l.b16 %v2482
        %v2578 = vunpack.c.h.b16 %v2482
        %v2579 = vpack.c.b16 %v2517, %v2515
        %v2580 = vpack.c.b16 %v2518, %v2516
        %v2581 = vpack.c.b16 %v2521, %v2519
        %v2582 = vpack.c.b16 %v2522, %v2520
        %v2583 = vpack.c.b16 %v2525, %v2523
        %v2584 = vpack.c.b16 %v2526, %v2524
        %v2585 = vpack.c.b16 %v2529, %v2527
        %v2586 = vpack.c.b16 %v2530, %v2528
        %v2587 = vpack.c.b16 %v2533, %v2531
        %v2588 = vpack.c.b16 %v2534, %v2532
        %v2589 = vpack.c.b16 %v2537, %v2535
        %v2590 = vpack.c.b16 %v2538, %v2536
        %v2591 = vpack.c.b16 %v2541, %v2539
        %v2592 = vpack.c.b16 %v2542, %v2540
        %v2593 = vpack.c.b16 %v2545, %v2543
        %v2594 = vpack.c.b16 %v2546, %v2544
        %v2595 = vpack.c.b16 %v2549, %v2547
        %v2596 = vpack.c.b16 %v2550, %v2548
        %v2597 = vpack.c.b16 %v2553, %v2551
        %v2598 = vpack.c.b16 %v2554, %v2552
        %v2599 = vpack.c.b16 %v2557, %v2555
        %v2600 = vpack.c.b16 %v2558, %v2556
        %v2601 = vpack.c.b16 %v2561, %v2559
        %v2602 = vpack.c.b16 %v2562, %v2560
        %v2603 = vpack.c.b16 %v2565, %v2563
        %v2604 = vpack.c.b16 %v2566, %v2564
        %v2605 = vpack.c.b16 %v2569, %v2567
        %v2606 = vpack.c.b16 %v2570, %v2568
        %v2607 = vpack.c.b16 %v2573, %v2571
        %v2608 = vpack.c.b16 %v2574, %v2572
        %v2609 = vpack.c.b16 %v2577, %v2575
        %v2610 = vpack.c.b16 %v2578, %v2576
        %2643 = vmatprep.subr.bf16.mxu0 %v2580
        %2644 = vmatpush1.bf16.msra.mxu0 %v2579
        %2645 = vmatprep.subr.bf16.mxu0 %v2582
        %2646 = vmatpush1.bf16.msra.mxu0 %v2581
        %2647 = vmatprep.subr.bf16.mxu0 %v2584
        %2648 = vmatpush1.bf16.msra.mxu0 %v2583
        %2649 = vmatprep.subr.bf16.mxu0 %v2586
        %2650 = vmatpush1.bf16.msra.mxu0 %v2585
        %2651 = vmatprep.subr.bf16.mxu0 %v2588
        %2652 = vmatpush1.bf16.msra.mxu0 %v2587
        %2653 = vmatprep.subr.bf16.mxu0 %v2590
        %2654 = vmatpush1.bf16.msra.mxu0 %v2589
        %2655 = vmatprep.subr.bf16.mxu0 %v2592
        %2656 = vmatpush1.bf16.msra.mxu0 %v2591
        %2657 = vmatprep.subr.bf16.mxu0 %v2594
        %2658 = vmatpush1.bf16.msra.mxu0 %v2593
        %2659 = vmatprep.subr.bf16.mxu0 %v2596
        %2660 = vmatpush1.bf16.msra.mxu0 %v2595
        %2661 = vmatprep.subr.bf16.mxu0 %v2598
        %2662 = vmatpush1.bf16.msra.mxu0 %v2597
        %2663 = vmatprep.subr.bf16.mxu0 %v2600
        %2664 = vmatpush1.bf16.msra.mxu0 %v2599
        %2665 = vmatprep.subr.bf16.mxu0 %v2602
        %2666 = vmatpush1.bf16.msra.mxu0 %v2601
        %2667 = vmatprep.subr.bf16.mxu0 %v2604
        %2668 = vmatpush1.bf16.msra.mxu0 %v2603
        %2669 = vmatprep.subr.bf16.mxu0 %v2606
        %2670 = vmatpush1.bf16.msra.mxu0 %v2605
        %2671 = vmatprep.subr.bf16.mxu0 %v2608
        %2672 = vmatpush1.bf16.msra.mxu0 %v2607
        %2673 = vmatprep.subr.bf16.mxu0 %v2610
        %2674 = vmatpush1.bf16.msra.mxu0 %v2609
        %2675 = vmatprep.mubr.bf16.mxu0 %v2417
        %2676 = vmatmul.mubr.bf16.gmra.mrb[0].mxu0 %v2416
        %v2677 = vpop.f32.mrb[0].mxu0
        %v2678 = vadd.f32 0.0, %v2677
        %v2679 = vpop.f32.mrb[0].mxu0
        %v2680 = vadd.f32 0.0, %v2679
        %v2681 = vpop.f32.mrb[0].mxu0
        %v2682 = vpop.f32.mrb[0].mxu0
        %2683 = vdwg.mxu0
        %v2716 = vunpack.c.l.b16 %v2418
        %v2717 = vunpack.c.h.b16 %v2418
        %v2718 = vunpack.c.l.b16 %v2419
        %v2719 = vunpack.c.h.b16 %v2419
        %v2720 = vunpack.c.l.b16 %v2420
        %v2721 = vunpack.c.h.b16 %v2420
        %v2722 = vunpack.c.l.b16 %v2421
        %v2723 = vunpack.c.h.b16 %v2421
        %v2724 = vunpack.c.l.b16 %v2422
        %v2725 = vunpack.c.h.b16 %v2422
        %v2726 = vunpack.c.l.b16 %v2423
        %v2727 = vunpack.c.h.b16 %v2423
        %v2728 = vunpack.c.l.b16 %v2424
        %v2729 = vunpack.c.h.b16 %v2424
        %v2730 = vunpack.c.l.b16 %v2425
        %v2731 = vunpack.c.h.b16 %v2425
        %v2732 = vunpack.c.l.b16 %v2426
        %v2733 = vunpack.c.h.b16 %v2426
        %v2734 = vunpack.c.l.b16 %v2427
        %v2735 = vunpack.c.h.b16 %v2427
        %v2736 = vunpack.c.l.b16 %v2428
        %v2737 = vunpack.c.h.b16 %v2428
        %v2738 = vunpack.c.l.b16 %v2429
        %v2739 = vunpack.c.h.b16 %v2429
        %v2740 = vunpack.c.l.b16 %v2430
        %v2741 = vunpack.c.h.b16 %v2430
        %v2742 = vunpack.c.l.b16 %v2431
        %v2743 = vunpack.c.h.b16 %v2431
        %v2744 = vunpack.c.l.b16 %v2432
        %v2745 = vunpack.c.h.b16 %v2432
        %v2746 = vunpack.c.l.b16 %v2433
        %v2747 = vunpack.c.h.b16 %v2433
        %v2748 = vunpack.c.l.b16 %v2434
        %v2749 = vunpack.c.h.b16 %v2434
        %v2750 = vunpack.c.l.b16 %v2435
        %v2751 = vunpack.c.h.b16 %v2435
        %v2752 = vunpack.c.l.b16 %v2436
        %v2753 = vunpack.c.h.b16 %v2436
        %v2754 = vunpack.c.l.b16 %v2437
        %v2755 = vunpack.c.h.b16 %v2437
        %v2756 = vunpack.c.l.b16 %v2438
        %v2757 = vunpack.c.h.b16 %v2438
        %v2758 = vunpack.c.l.b16 %v2439
        %v2759 = vunpack.c.h.b16 %v2439
        %v2760 = vunpack.c.l.b16 %v2440
        %v2761 = vunpack.c.h.b16 %v2440
        %v2762 = vunpack.c.l.b16 %v2441
        %v2763 = vunpack.c.h.b16 %v2441
        %v2764 = vunpack.c.l.b16 %v2442
        %v2765 = vunpack.c.h.b16 %v2442
        %v2766 = vunpack.c.l.b16 %v2443
        %v2767 = vunpack.c.h.b16 %v2443
        %v2768 = vunpack.c.l.b16 %v2444
        %v2769 = vunpack.c.h.b16 %v2444
        %v2770 = vunpack.c.l.b16 %v2445
        %v2771 = vunpack.c.h.b16 %v2445
        %v2772 = vunpack.c.l.b16 %v2446
        %v2773 = vunpack.c.h.b16 %v2446
        %v2774 = vunpack.c.l.b16 %v2447
        %v2775 = vunpack.c.h.b16 %v2447
        %v2776 = vunpack.c.l.b16 %v2448
        %v2777 = vunpack.c.h.b16 %v2448
        %v2778 = vunpack.c.l.b16 %v2449
        %v2779 = vunpack.c.h.b16 %v2449
        %v2780 = vpack.c.b16 %v2718, %v2716
        %v2781 = vpack.c.b16 %v2719, %v2717
        %v2782 = vpack.c.b16 %v2722, %v2720
        %v2783 = vpack.c.b16 %v2723, %v2721
        %v2784 = vpack.c.b16 %v2726, %v2724
        %v2785 = vpack.c.b16 %v2727, %v2725
        %v2786 = vpack.c.b16 %v2730, %v2728
        %v2787 = vpack.c.b16 %v2731, %v2729
        %v2788 = vpack.c.b16 %v2734, %v2732
        %v2789 = vpack.c.b16 %v2735, %v2733
        %v2790 = vpack.c.b16 %v2738, %v2736
        %v2791 = vpack.c.b16 %v2739, %v2737
        %v2792 = vpack.c.b16 %v2742, %v2740
        %v2793 = vpack.c.b16 %v2743, %v2741
        %v2794 = vpack.c.b16 %v2746, %v2744
        %v2795 = vpack.c.b16 %v2747, %v2745
        %v2796 = vpack.c.b16 %v2750, %v2748
        %v2797 = vpack.c.b16 %v2751, %v2749
        %v2798 = vpack.c.b16 %v2754, %v2752
        %v2799 = vpack.c.b16 %v2755, %v2753
        %v2800 = vpack.c.b16 %v2758, %v2756
        %v2801 = vpack.c.b16 %v2759, %v2757
        %v2802 = vpack.c.b16 %v2762, %v2760
        %v2803 = vpack.c.b16 %v2763, %v2761
        %v2804 = vpack.c.b16 %v2766, %v2764
        %v2805 = vpack.c.b16 %v2767, %v2765
        %v2806 = vpack.c.b16 %v2770, %v2768
        %v2807 = vpack.c.b16 %v2771, %v2769
        %v2808 = vpack.c.b16 %v2774, %v2772
        %v2809 = vpack.c.b16 %v2775, %v2773
        %v2810 = vpack.c.b16 %v2778, %v2776
        %v2811 = vpack.c.b16 %v2779, %v2777
        %2844 = vmatprep.subr.bf16.mxu0 %v2781
        %2845 = vmatpush1.bf16.msra.mxu0 %v2780
        %2846 = vmatprep.subr.bf16.mxu0 %v2783
        %2847 = vmatpush1.bf16.msra.mxu0 %v2782
        %2848 = vmatprep.subr.bf16.mxu0 %v2785
        %2849 = vmatpush1.bf16.msra.mxu0 %v2784
        %2850 = vmatprep.subr.bf16.mxu0 %v2787
        %2851 = vmatpush1.bf16.msra.mxu0 %v2786
        %2852 = vmatprep.subr.bf16.mxu0 %v2789
        %2853 = vmatpush1.bf16.msra.mxu0 %v2788
        %2854 = vmatprep.subr.bf16.mxu0 %v2791
        %2855 = vmatpush1.bf16.msra.mxu0 %v2790
        %2856 = vmatprep.subr.bf16.mxu0 %v2793
        %2857 = vmatpush1.bf16.msra.mxu0 %v2792
        %2858 = vmatprep.subr.bf16.mxu0 %v2795
        %2859 = vmatpush1.bf16.msra.mxu0 %v2794
        %2860 = vmatprep.subr.bf16.mxu0 %v2797
        %2861 = vmatpush1.bf16.msra.mxu0 %v2796
        %2862 = vmatprep.subr.bf16.mxu0 %v2799
        %2863 = vmatpush1.bf16.msra.mxu0 %v2798
        %2864 = vmatprep.subr.bf16.mxu0 %v2801
        %2865 = vmatpush1.bf16.msra.mxu0 %v2800
        %2866 = vmatprep.subr.bf16.mxu0 %v2803
        %2867 = vmatpush1.bf16.msra.mxu0 %v2802
        %2868 = vmatprep.subr.bf16.mxu0 %v2805
        %2869 = vmatpush1.bf16.msra.mxu0 %v2804
        %2870 = vmatprep.subr.bf16.mxu0 %v2807
        %2871 = vmatpush1.bf16.msra.mxu0 %v2806
        %2872 = vmatprep.subr.bf16.mxu0 %v2809
        %2873 = vmatpush1.bf16.msra.mxu0 %v2808
        %2874 = vmatprep.subr.bf16.mxu0 %v2811
        %2875 = vmatpush1.bf16.msra.mxu0 %v2810
        %2876 = vmatprep.mubr.bf16.mxu0 %v2401
        %2877 = vmatmul.mubr.bf16.gmra.mrb[0].mxu0 %v2400
        %v2878 = vpop.f32.mrb[0].mxu0
        %v2879 = vadd.f32 %v2678, %v2878
        %v2880 = vpop.f32.mrb[0].mxu0
        %v2881 = vadd.f32 %v2680, %v2880
        %v2882 = vpop.f32.mrb[0].mxu0
        %v2883 = vpop.f32.mrb[0].mxu0
        %2884 = vdwg.mxu0
        %s2885 = scalar_lea.vmem %s7, 512
        %v2886 = vld [vmem:[%s2885] sm:$0xff]
        %v2887 = vld [vmem:[%s2885 + $0x8] sm:$0xff]
        %v2888 = vld [vmem:[%s2885 + $0x10] sm:$0xff]
        %v2889 = vld [vmem:[%s2885 + $0x18] sm:$0xff]
        %v2890 = vld [vmem:[%s2885 + $0x20] sm:$0xff]
        %v2891 = vld [vmem:[%s2885 + $0x28] sm:$0xff]
        %v2892 = vld [vmem:[%s2885 + $0x30] sm:$0xff]
        %v2893 = vld [vmem:[%s2885 + $0x38] sm:$0xff]
        %v2894 = vld [vmem:[%s2885 + $0x40] sm:$0xff]
        %v2895 = vld [vmem:[%s2885 + $0x48] sm:$0xff]
        %v2896 = vld [vmem:[%s2885 + $0x50] sm:$0xff]
        %v2897 = vld [vmem:[%s2885 + $0x58] sm:$0xff]
        %v2898 = vld [vmem:[%s2885 + $0x60] sm:$0xff]
        %v2899 = vld [vmem:[%s2885 + $0x68] sm:$0xff]
        %v2900 = vld [vmem:[%s2885 + $0x70] sm:$0xff]
        %v2901 = vld [vmem:[%s2885 + $0x78] sm:$0xff]
        %v2902 = vld [vmem:[%s2885 + $0x80] sm:$0xff]
        %v2903 = vld [vmem:[%s2885 + $0x88] sm:$0xff]
        %v2904 = vld [vmem:[%s2885 + $0x90] sm:$0xff]
        %v2905 = vld [vmem:[%s2885 + $0x98] sm:$0xff]
        %v2906 = vld [vmem:[%s2885 + $0xa0] sm:$0xff]
        %v2907 = vld [vmem:[%s2885 + $0xa8] sm:$0xff]
        %v2908 = vld [vmem:[%s2885 + $0xb0] sm:$0xff]
        %v2909 = vld [vmem:[%s2885 + $0xb8] sm:$0xff]
        %v2910 = vld [vmem:[%s2885 + $0xc0] sm:$0xff]
        %v2911 = vld [vmem:[%s2885 + $0xc8] sm:$0xff]
        %v2912 = vld [vmem:[%s2885 + $0xd0] sm:$0xff]
        %v2913 = vld [vmem:[%s2885 + $0xd8] sm:$0xff]
        %v2914 = vld [vmem:[%s2885 + $0xe0] sm:$0xff]
        %v2915 = vld [vmem:[%s2885 + $0xe8] sm:$0xff]
        %v2916 = vld [vmem:[%s2885 + $0xf0] sm:$0xff]
        %v2917 = vld [vmem:[%s2885 + $0xf8] sm:$0xff]
        %v2950 = vunpack.c.l.b16 %v2886
        %v2951 = vunpack.c.h.b16 %v2886
        %v2952 = vunpack.c.l.b16 %v2887
        %v2953 = vunpack.c.h.b16 %v2887
        %v2954 = vunpack.c.l.b16 %v2888
        %v2955 = vunpack.c.h.b16 %v2888
        %v2956 = vunpack.c.l.b16 %v2889
        %v2957 = vunpack.c.h.b16 %v2889
        %v2958 = vunpack.c.l.b16 %v2890
        %v2959 = vunpack.c.h.b16 %v2890
        %v2960 = vunpack.c.l.b16 %v2891
        %v2961 = vunpack.c.h.b16 %v2891
        %v2962 = vunpack.c.l.b16 %v2892
        %v2963 = vunpack.c.h.b16 %v2892
        %v2964 = vunpack.c.l.b16 %v2893
        %v2965 = vunpack.c.h.b16 %v2893
        %v2966 = vunpack.c.l.b16 %v2894
        %v2967 = vunpack.c.h.b16 %v2894
        %v2968 = vunpack.c.l.b16 %v2895
        %v2969 = vunpack.c.h.b16 %v2895
        %v2970 = vunpack.c.l.b16 %v2896
        %v2971 = vunpack.c.h.b16 %v2896
        %v2972 = vunpack.c.l.b16 %v2897
        %v2973 = vunpack.c.h.b16 %v2897
        %v2974 = vunpack.c.l.b16 %v2898
        %v2975 = vunpack.c.h.b16 %v2898
        %v2976 = vunpack.c.l.b16 %v2899
        %v2977 = vunpack.c.h.b16 %v2899
        %v2978 = vunpack.c.l.b16 %v2900
        %v2979 = vunpack.c.h.b16 %v2900
        %v2980 = vunpack.c.l.b16 %v2901
        %v2981 = vunpack.c.h.b16 %v2901
        %v2982 = vunpack.c.l.b16 %v2902
        %v2983 = vunpack.c.h.b16 %v2902
        %v2984 = vunpack.c.l.b16 %v2903
        %v2985 = vunpack.c.h.b16 %v2903
        %v2986 = vunpack.c.l.b16 %v2904
        %v2987 = vunpack.c.h.b16 %v2904
        %v2988 = vunpack.c.l.b16 %v2905
        %v2989 = vunpack.c.h.b16 %v2905
        %v2990 = vunpack.c.l.b16 %v2906
        %v2991 = vunpack.c.h.b16 %v2906
        %v2992 = vunpack.c.l.b16 %v2907
        %v2993 = vunpack.c.h.b16 %v2907
        %v2994 = vunpack.c.l.b16 %v2908
        %v2995 = vunpack.c.h.b16 %v2908
        %v2996 = vunpack.c.l.b16 %v2909
        %v2997 = vunpack.c.h.b16 %v2909
        %v2998 = vunpack.c.l.b16 %v2910
        %v2999 = vunpack.c.h.b16 %v2910
        %v3000 = vunpack.c.l.b16 %v2911
        %v3001 = vunpack.c.h.b16 %v2911
        %v3002 = vunpack.c.l.b16 %v2912
        %v3003 = vunpack.c.h.b16 %v2912
        %v3004 = vunpack.c.l.b16 %v2913
        %v3005 = vunpack.c.h.b16 %v2913
        %v3006 = vunpack.c.l.b16 %v2914
        %v3007 = vunpack.c.h.b16 %v2914
        %v3008 = vunpack.c.l.b16 %v2915
        %v3009 = vunpack.c.h.b16 %v2915
        %v3010 = vunpack.c.l.b16 %v2916
        %v3011 = vunpack.c.h.b16 %v2916
        %v3012 = vunpack.c.l.b16 %v2917
        %v3013 = vunpack.c.h.b16 %v2917
        %v3014 = vpack.c.b16 %v2952, %v2950
        %v3015 = vpack.c.b16 %v2953, %v2951
        %v3016 = vpack.c.b16 %v2956, %v2954
        %v3017 = vpack.c.b16 %v2957, %v2955
        %v3018 = vpack.c.b16 %v2960, %v2958
        %v3019 = vpack.c.b16 %v2961, %v2959
        %v3020 = vpack.c.b16 %v2964, %v2962
        %v3021 = vpack.c.b16 %v2965, %v2963
        %v3022 = vpack.c.b16 %v2968, %v2966
        %v3023 = vpack.c.b16 %v2969, %v2967
        %v3024 = vpack.c.b16 %v2972, %v2970
        %v3025 = vpack.c.b16 %v2973, %v2971
        %v3026 = vpack.c.b16 %v2976, %v2974
        %v3027 = vpack.c.b16 %v2977, %v2975
        %v3028 = vpack.c.b16 %v2980, %v2978
        %v3029 = vpack.c.b16 %v2981, %v2979
        %v3030 = vpack.c.b16 %v2984, %v2982
        %v3031 = vpack.c.b16 %v2985, %v2983
        %v3032 = vpack.c.b16 %v2988, %v2986
        %v3033 = vpack.c.b16 %v2989, %v2987
        %v3034 = vpack.c.b16 %v2992, %v2990
        %v3035 = vpack.c.b16 %v2993, %v2991
        %v3036 = vpack.c.b16 %v2996, %v2994
        %v3037 = vpack.c.b16 %v2997, %v2995
        %v3038 = vpack.c.b16 %v3000, %v2998
        %v3039 = vpack.c.b16 %v3001, %v2999
        %v3040 = vpack.c.b16 %v3004, %v3002
        %v3041 = vpack.c.b16 %v3005, %v3003
        %v3042 = vpack.c.b16 %v3008, %v3006
        %v3043 = vpack.c.b16 %v3009, %v3007
        %v3044 = vpack.c.b16 %v3012, %v3010
        %v3045 = vpack.c.b16 %v3013, %v3011
        %3078 = vmatprep.subr.bf16.mxu0 %v3015
        %3079 = vmatpush1.bf16.msra.mxu0 %v3014
        %3080 = vmatprep.subr.bf16.mxu0 %v3017
        %3081 = vmatpush1.bf16.msra.mxu0 %v3016
        %3082 = vmatprep.subr.bf16.mxu0 %v3019
        %3083 = vmatpush1.bf16.msra.mxu0 %v3018
        %3084 = vmatprep.subr.bf16.mxu0 %v3021
        %3085 = vmatpush1.bf16.msra.mxu0 %v3020
        %3086 = vmatprep.subr.bf16.mxu0 %v3023
        %3087 = vmatpush1.bf16.msra.mxu0 %v3022
        %3088 = vmatprep.subr.bf16.mxu0 %v3025
        %3089 = vmatpush1.bf16.msra.mxu0 %v3024
        %3090 = vmatprep.subr.bf16.mxu0 %v3027
        %3091 = vmatpush1.bf16.msra.mxu0 %v3026
        %3092 = vmatprep.subr.bf16.mxu0 %v3029
        %3093 = vmatpush1.bf16.msra.mxu0 %v3028
        %3094 = vmatprep.subr.bf16.mxu0 %v3031
        %3095 = vmatpush1.bf16.msra.mxu0 %v3030
        %3096 = vmatprep.subr.bf16.mxu0 %v3033
        %3097 = vmatpush1.bf16.msra.mxu0 %v3032
        %3098 = vmatprep.subr.bf16.mxu0 %v3035
        %3099 = vmatpush1.bf16.msra.mxu0 %v3034
        %3100 = vmatprep.subr.bf16.mxu0 %v3037
        %3101 = vmatpush1.bf16.msra.mxu0 %v3036
        %3102 = vmatprep.subr.bf16.mxu0 %v3039
        %3103 = vmatpush1.bf16.msra.mxu0 %v3038
        %3104 = vmatprep.subr.bf16.mxu0 %v3041
        %3105 = vmatpush1.bf16.msra.mxu0 %v3040
        %3106 = vmatprep.subr.bf16.mxu0 %v3043
        %3107 = vmatpush1.bf16.msra.mxu0 %v3042
        %3108 = vmatprep.subr.bf16.mxu0 %v3045
        %3109 = vmatpush1.bf16.msra.mxu0 %v3044
        %3110 = vmatprep.mubr.bf16.mxu0 %v2415
        %3111 = vmatmul.mubr.bf16.gmra.mrb[0].mxu0 %v2414
        %v3112 = vpop.f32.mrb[0].mxu0
        %v3113 = vadd.f32 0.0, %v3112
        %v3114 = vpop.f32.mrb[0].mxu0
        %v3115 = vadd.f32 0.0, %v3114
        %v3116 = vpop.f32.mrb[0].mxu0
        %v3117 = vpop.f32.mrb[0].mxu0
        %3118 = vdwg.mxu0
        %v3119 = vadd.f32 %v2879, %v3113
        %v3120 = vadd.f32 %v2881, %v3115
        %v3121 = vld [vmem:[%s8] sm:$0x3]
        %v3123 = vlaneseq
        %v3124 = vshrl.u32 %v3123, 7
        %v3125 = vsub.s32 0, %v3124
        %v3126 = vrot.slane %v3121, %v3125
        %v3127 = vlaneseq
        %v3128 = vshrl.u32 %v3127, 7
        %v3129 = vsub.s32 1, %v3128
        %v3130 = vrot.slane %v3121, %v3129
        %v3133 = vadd.f32 %v3119, %v3126
        %v3134 = vadd.f32 %v3120, %v3130
        %v3135 = vmax.f32 %v3133, 0.0
        %v3136 = vmax.f32 %v3134, 0.0
        %v3137 = vadd.f32 %v3135, 0.0
        %v3138 = vadd.f32 %v3136, 0.0
        %v3139 = vld [vmem:[%s9] sm:$0xff]
        %v3140 = vld [vmem:[%s9 + $0x8] sm:$0xff]
        %v3141 = vld [vmem:[%s9 + $0x10] sm:$0xff]
        %v3142 = vld [vmem:[%s9 + $0x18] sm:$0xff]
        %v3143 = vld [vmem:[%s9 + $0x20] sm:$0xff]
        %v3144 = vld [vmem:[%s9 + $0x28] sm:$0xff]
        %v3145 = vld [vmem:[%s9 + $0x30] sm:$0xff]
        %v3146 = vld [vmem:[%s9 + $0x38] sm:$0xff]
        %v3147 = vld [vmem:[%s9 + $0x40] sm:$0xff]
        %v3148 = vld [vmem:[%s9 + $0x48] sm:$0xff]
        %v3149 = vld [vmem:[%s9 + $0x50] sm:$0xff]
        %v3150 = vld [vmem:[%s9 + $0x58] sm:$0xff]
        %v3151 = vld [vmem:[%s9 + $0x60] sm:$0xff]
        %v3152 = vld [vmem:[%s9 + $0x68] sm:$0xff]
        %v3153 = vld [vmem:[%s9 + $0x70] sm:$0xff]
        %v3154 = vld [vmem:[%s9 + $0x78] sm:$0xff]
        %v3155 = vld [vmem:[%s9 + $0x80] sm:$0xff]
        %v3156 = vld [vmem:[%s9 + $0x88] sm:$0xff]
        %v3157 = vld [vmem:[%s9 + $0x90] sm:$0xff]
        %v3158 = vld [vmem:[%s9 + $0x98] sm:$0xff]
        %v3159 = vld [vmem:[%s9 + $0xa0] sm:$0xff]
        %v3160 = vld [vmem:[%s9 + $0xa8] sm:$0xff]
        %v3161 = vld [vmem:[%s9 + $0xb0] sm:$0xff]
        %v3162 = vld [vmem:[%s9 + $0xb8] sm:$0xff]
        %v3163 = vld [vmem:[%s9 + $0xc0] sm:$0xff]
        %v3164 = vld [vmem:[%s9 + $0xc8] sm:$0xff]
        %v3165 = vld [vmem:[%s9 + $0xd0] sm:$0xff]
        %v3166 = vld [vmem:[%s9 + $0xd8] sm:$0xff]
        %v3167 = vld [vmem:[%s9 + $0xe0] sm:$0xff]
        %v3168 = vld [vmem:[%s9 + $0xe8] sm:$0xff]
        %v3169 = vld [vmem:[%s9 + $0xf0] sm:$0xff]
        %v3170 = vld [vmem:[%s9 + $0xf8] sm:$0xff]
        %v3171 = vld [vmem:[%s10] sm:$0x1]
        %3172 = vmatprep.subr.mxu0 0.0
        %3173 = vmatpush1.msra.mxu0 %v3139
        %3174 = vmatprep.subr.mxu0 0.0
        %3175 = vmatpush1.msra.mxu0 %v3140
        %3176 = vmatprep.subr.mxu0 0.0
        %3177 = vmatpush1.msra.mxu0 %v3141
        %3178 = vmatprep.subr.mxu0 0.0
        %3179 = vmatpush1.msra.mxu0 %v3142
        %3180 = vmatprep.subr.mxu0 0.0
        %3181 = vmatpush1.msra.mxu0 %v3143
        %3182 = vmatprep.subr.mxu0 0.0
        %3183 = vmatpush1.msra.mxu0 %v3144
        %3184 = vmatprep.subr.mxu0 0.0
        %3185 = vmatpush1.msra.mxu0 %v3145
        %3186 = vmatprep.subr.mxu0 0.0
        %3187 = vmatpush1.msra.mxu0 %v3146
        %3188 = vmatprep.subr.mxu0 0.0
        %3189 = vmatpush1.msra.mxu0 %v3147
        %3190 = vmatprep.subr.mxu0 0.0
        %3191 = vmatpush1.msra.mxu0 %v3148
        %3192 = vmatprep.subr.mxu0 0.0
        %3193 = vmatpush1.msra.mxu0 %v3149
        %3194 = vmatprep.subr.mxu0 0.0
        %3195 = vmatpush1.msra.mxu0 %v3150
        %3196 = vmatprep.subr.mxu0 0.0
        %3197 = vmatpush1.msra.mxu0 %v3151
        %3198 = vmatprep.subr.mxu0 0.0
        %3199 = vmatpush1.msra.mxu0 %v3152
        %3200 = vmatprep.subr.mxu0 0.0
        %3201 = vmatpush1.msra.mxu0 %v3153
        %3202 = vmatprep.subr.mxu0 0.0
        %3203 = vmatpush1.msra.mxu0 %v3154
        %3204 = vmatprep.subr.mxu0 0.0
        %3205 = vmatpush1.msra.mxu0 %v3155
        %3206 = vmatprep.subr.mxu0 0.0
        %3207 = vmatpush1.msra.mxu0 %v3156
        %3208 = vmatprep.subr.mxu0 0.0
        %3209 = vmatpush1.msra.mxu0 %v3157
        %3210 = vmatprep.subr.mxu0 0.0
        %3211 = vmatpush1.msra.mxu0 %v3158
        %3212 = vmatprep.subr.mxu0 0.0
        %3213 = vmatpush1.msra.mxu0 %v3159
        %3214 = vmatprep.subr.mxu0 0.0
        %3215 = vmatpush1.msra.mxu0 %v3160
        %3216 = vmatprep.subr.mxu0 0.0
        %3217 = vmatpush1.msra.mxu0 %v3161
        %3218 = vmatprep.subr.mxu0 0.0
        %3219 = vmatpush1.msra.mxu0 %v3162
        %3220 = vmatprep.subr.mxu0 0.0
        %3221 = vmatpush1.msra.mxu0 %v3163
        %3222 = vmatprep.subr.mxu0 0.0
        %3223 = vmatpush1.msra.mxu0 %v3164
        %3224 = vmatprep.subr.mxu0 0.0
        %3225 = vmatpush1.msra.mxu0 %v3165
        %3226 = vmatprep.subr.mxu0 0.0
        %3227 = vmatpush1.msra.mxu0 %v3166
        %3228 = vmatprep.subr.mxu0 0.0
        %3229 = vmatpush1.msra.mxu0 %v3167
        %3230 = vmatprep.subr.mxu0 0.0
        %3231 = vmatpush1.msra.mxu0 %v3168
        %3232 = vmatprep.subr.mxu0 0.0
        %3233 = vmatpush1.msra.mxu0 %v3169
        %3234 = vmatprep.subr.mxu0 0.0
        %3235 = vmatpush1.msra.mxu0 %v3170
        %3236 = vmatprep.mubr.f32.mxu0 %v3138
        %3237 = vmatmul.mubr.f32.gmra.mrb[0].mxu0 %v3137
        %v3238 = vpop.f32.mrb[0].mxu0
        %v3239 = vadd.f32 %v3171, %v3238
        %v3240 = vpop.f32.mrb[0].mxu0
        %3241 = vdwg.mxu0
        %vm3242 = vcmask 8192
        %v3243 = vsel %vm3242, %v3239, -inf
        %3244 = vmax.xlane.f32.xlu0 %v3243
        %v3245 = vpop.xlane.xlu0 %3244
        %v3246 = vsub.f32 %v3239, %v3245
        %v3247 = vmul.f32 %v3246, 1.442695
        %v3248 = vpow.pop %v3247
        %v3249 = vsel %vm3242, %v3248, 0.0
        %3250 = vadd.xlane.f32.xlu0 %v3249
        %v3251 = vpop.xlane.xlu0 %3250
        %v3252 = vlog2.pop %v3251
        %v3253 = vmul.f32 %v3252, 0.6931472
        %v3254 = vadd.f32 %v3245, %v3253
        %v3255 = vsub.f32 %v3239, %v3254
        %3256 = vst.msk [vmem:[%s374] sm:$0x1] %vm3242, %v3255
        %s3257 = sand.u32 %s269, 1
        %s3258 = scalar_lea.sflag [#allocation4], %s3257
        %s3259 = sand.u32 %s269, 1
        %s3260 = scalar_lea.vmem [#allocation3], %s3259
        // Predicated region
        $region65: #{m18_forward.9} parent=63 // pred_check
          %p3261 = pneg %p279
        $region66: #{m18_forward.9} parent=63 // pred_check_branch
          %3263 = sbr.rel (%p3261) target = $region68
        $region67: #{m18_forward.9} parent=63 // pred_region
          %s3265 = ssub.s32 16, 16
          %3266 = vsyncadd %s3258, %s3265
          %s3267 = smul.addr %s25, 16
          %s3268 = scalar_lea.hbm %s11, %s3267
          %s3270 = sshll.u32 %s3260, 4
          %s3271 = int_to_ptr.vmem [resolvable:$true] %s3270
          %3273 = dma.vmem_to_hbm [thread:$0]  %s3271, 16, %s3268, %s3258
        $region68: #{m18_forward.9} parent=63 // pred_fallthru
          _
      $region64: #{m18_forward.9} parent=5 // pred_fallthru
        _
      %p3274 = scmp.le.s32.totalorder 2, %s20
      // Predicated region
      $region69: #{m18_forward.9} parent=5 // pred_check
        %p3275 = pneg %p3274
      $region70: #{m18_forward.9} parent=5 // pred_check_branch
        %3277 = sbr.rel (%p3275) target = $region72
      $region71: #{m18_forward.9} parent=5 // pred_region
        %s3278 = ssub.s32 %s20, 2
        // Predicated region
        $region73: #{m18_forward.9} parent=71 // pred_check
          %p3279 = pneg %p285
        $region74: #{m18_forward.9} parent=71 // pred_check_branch
          %3281 = sbr.rel (%p3279) target = $region76
        $region75: #{m18_forward.9} parent=71 // pred_region
          %s3282 = sand.u32 %s270, 1
          %s3283 = scalar_lea.sflag [#allocation4], %s3282
          %s3284 = sand.u32 %s270, 1
          %s3285 = scalar_lea.vmem [#allocation3], %s3284
          %3286 = dma.done %s3283, 16
        $region76: #{m18_forward.9} parent=71 // pred_fallthru
          _
      $region72: #{m18_forward.9} parent=5 // pred_fallthru
        _
    $region6: #{m18_forward.9} parent=1 // loop_footer
      %s24 = sadd.s32 1, %s20
    $region7: #{m18_forward.9} parent=1 // loop_footer_branch
      %19 = sbr.rel target = $region3
    $region8: #{m18_forward.9} parent=1 // loop_exit
      _
    %3287 = vsyncpa [#allocation4], 1
    %s3288 = scalar_lea.sflag [#allocation4], 1
    %3289 = vsyncpa %s3288, 1

</llo_original>
